<compile_context>
chip_gen: v7x
topology: tpu7x:2x2x1
jax: 0.10.0
libtpu: 0.0.40
codegen_flags: <defaults>
</compile_context>

<pallas_src>
import functools

import jax
import jax.numpy as jnp
from jax import lax
from jax.experimental import pallas as pl
from jax.experimental.pallas import tpu as pltpu


LANE = 128  # lane-dense output width for conv1-3 / fc-head activations


def _round_up(x, m):
    return ((x + m - 1) // m) * m


@functools.lru_cache(maxsize=None)
def _num_tensorcores():
    """2 on dual-TensorCore chips (v4 / v5p / v7x), else 1 (v5e / v6e)."""
    try:
        kind = jax.devices()[0].device_kind.lower()
    except Exception:
        return 1
    if ("v4" in kind) or ("v5p" in kind) or ("7" in kind):
        return 2
    return 1


def _pick_tm(Mp, K):
    """M tile: full M on 1-TC chips, ~M/2 on 2-TC chips; VMEM-capped divisor of Mp."""
    n_tc = _num_tensorcores()
    bytes_per_row = 4 * (K + LANE)
    cap = max(8, (6 * 1024 * 1024) // bytes_per_row)
    tm = Mp if n_tc == 1 else max(8, Mp // 2)
    tm = min(tm, cap, Mp)
    tm = max(8, (tm // 8) * 8)
    while Mp % tm:
        tm -= 8
    return tm


# ----------------------------------------------------------------------------
# Pallas kernel: fused (x @ w) + bias [+ ReLU]  (N lane-dense = 128)
# ----------------------------------------------------------------------------
def _matmul_bias_act_kernel(x_ref, w_ref, b_ref, o_ref, *, relu):
    acc = jnp.dot(x_ref[...], w_ref[...], preferred_element_type=jnp.float32)
    acc = acc + b_ref[...]                 # (tm, N) + (1, N)
    if relu:
        acc = jnp.maximum(acc, 0.0)
    o_ref[...] = acc.astype(o_ref.dtype)


def matmul_bias_act(x, w, b2, *, relu):
    """x: (M, K) f32, w: (K, N) f32, b2: (1, N) f32 -> (M, N) f32."""
    M, K = x.shape
    Kw, N = w.shape
    assert K == Kw and b2.shape == (1, N), (x.shape, w.shape, b2.shape)
    Mp = _round_up(max(M, 8), 8)
    if Mp != M:
        x = jnp.pad(x, ((0, Mp - M), (0, 0)))
    tm = _pick_tm(Mp, K)

    out = pl.pallas_call(
        functools.partial(_matmul_bias_act_kernel, relu=relu),
        out_shape=jax.ShapeDtypeStruct((Mp, N), jnp.float32),
        grid_spec=pltpu.PrefetchScalarGridSpec(
            num_scalar_prefetch=0,
            grid=(Mp // tm,),
            in_specs=[
                pl.BlockSpec((tm, K), lambda i: (i, 0)),
                pl.BlockSpec((K, N), lambda i: (0, 0)),
                pl.BlockSpec((1, N), lambda i: (0, 0)),
            ],
            out_specs=pl.BlockSpec((tm, N), lambda i: (i, 0)),
        ),
        compiler_params=pltpu.CompilerParams(
            dimension_semantics=("parallel",),
            vmem_limit_bytes=32 * 1024 * 1024),
    )(x, w, b2)
    return out[:M] if Mp != M else out


# ----------------------------------------------------------------------------
# conv1-3: NHWC im2col on REAL channels only (plain-JAX glue) + fused matmul
# ----------------------------------------------------------------------------
def conv2d_relu(x, wm, b2, *, cin, kh, kw, stride, pad):
    """x: (B,H,W,C>=cin) NHWC; wm: (Kp,128), rows ordered (kh,kw,cin); b2: (1,128).

    Returns ((B*Ho*Wo, 128), Ho, Wo); output lanes >= real Cout are exactly zero.
    """
    B, H, W, _ = x.shape
    x = x[..., :cin]                                   # drop zero-padded lanes
    xp = jnp.pad(x, ((0, 0), (pad, pad), (pad, pad), (0, 0)))
    Ho = (H + 2 * pad - kh) // stride + 1
    Wo = (W + 2 * pad - kw) // stride + 1
    cols = [xp[:, i:i + stride * Ho:stride, j:j + stride * Wo:stride, :]
            for i in range(kh) for j in range(kw)]
    cols = jnp.concatenate(cols, axis=-1).reshape(B * Ho * Wo, kh * kw * cin)
    Kp = wm.shape[0]
    if Kp != kh * kw * cin:                            # 8-align the contraction
        cols = jnp.pad(cols, ((0, 0), (0, Kp - kh * kw * cin)))
    out = matmul_bias_act(cols, wm, b2, relu=True)     # (B*Ho*Wo, 128)
    return out, Ho, Wo


# ----------------------------------------------------------------------------
# Fused conv4 + conv5 kernel: in-register 3x3 gather (halo pad + row shift)
# Rows of x are one image's 8x8 spatial grid in (h, w) order.
# ----------------------------------------------------------------------------
def _conv45_kernel(x_ref, w4_ref, b4_ref, w5_ref, b5_ref, o_ref):
    wcol = lax.broadcasted_iota(jnp.int32, (64, 1), 0) % 8   # output w coordinate

    def conv3x3(x, w_ref, b_ref):
        c_in = x.shape[1]
        halo = jnp.zeros((16, c_in), jnp.float32)
        xp = jnp.concatenate([halo, x, halo], axis=0)        # (96, c_in)
        acc = jnp.zeros((64, w_ref.shape[-1]), jnp.float32)
        for di in range(3):
            for dj in range(3):
                off = (di - 1) * 8 + (dj - 1)
                src = xp[16 + off:16 + off + 64, :]          # src[r] = x[r+off] (0-ext)
                if dj != 1:                                   # mask w-boundary wrap
                    wsrc = wcol + (dj - 1)
                    src = jnp.where((wsrc >= 0) & (wsrc <= 7), src, 0.0)
                acc = acc + jnp.dot(src, w_ref[di * 3 + dj],
                                    preferred_element_type=jnp.float32)
        return jnp.maximum(acc + b_ref[...], 0.0)

    h4 = conv3x3(x_ref[...], w4_ref, b4_ref)   # (64, 64)
    h5 = conv3x3(h4, w5_ref, b5_ref)           # (64, 64)
    o_ref[...] = h5.astype(o_ref.dtype)


def conv45_fused(x3, w4, b4, w5, b5):
    """x3: (B*64, 128) conv3 output (lanes >= 48 are zero) -> (B*64, 64)."""
    M = x3.shape[0]
    assert M % 64 == 0
    B = M // 64
    return pl.pallas_call(
        _conv45_kernel,
        out_shape=jax.ShapeDtypeStruct((M, 64), jnp.float32),
        grid_spec=pltpu.PrefetchScalarGridSpec(
            num_scalar_prefetch=0,
            grid=(B,),
            in_specs=[
                pl.BlockSpec((64, LANE), lambda b: (b, 0)),
                pl.BlockSpec((9, LANE, 64), lambda b: (0, 0, 0)),
                pl.BlockSpec((1, 64), lambda b: (0, 0)),
                pl.BlockSpec((9, 64, 64), lambda b: (0, 0, 0)),
                pl.BlockSpec((1, 64), lambda b: (0, 0)),
            ],
            out_specs=pl.BlockSpec((64, 64), lambda b: (b, 0)),
        ),
        compiler_params=pltpu.CompilerParams(
            dimension_semantics=("parallel",),
            vmem_limit_bytes=32 * 1024 * 1024),
    )(x3, w4, b4, w5, b5)


# ----------------------------------------------------------------------------
# Fused FC head: relu(x@w1+b1) -> relu(@w2+b2) -> @w3+b3   (K1 = 4096 real)
# ----------------------------------------------------------------------------
def _fc_head_kernel(x_ref, w1_ref, b1_ref, w2_ref, b2_ref, w3_ref, b3_ref, o_ref):
    h = jnp.dot(x_ref[...], w1_ref[...], preferred_element_type=jnp.float32)
    h = jnp.maximum(h + b1_ref[...], 0.0)
    h = jnp.dot(h, w2_ref[...], preferred_element_type=jnp.float32)
    h = jnp.maximum(h + b2_ref[...], 0.0)
    out = jnp.dot(h, w3_ref[...], preferred_element_type=jnp.float32) + b3_ref[...]
    o_ref[...] = out.astype(o_ref.dtype)


def fc_head(x, fc1, fc2, fc3):
    B, K = x.shape
    Bp = _round_up(max(B, 8), 8)
    if Bp != B:
        x = jnp.pad(x, ((0, Bp - B), (0, 0)))
    w1, b1 = fc1
    w2, b2 = fc2
    w3, b3 = fc3
    out = pl.pallas_call(
        _fc_head_kernel,
        out_shape=jax.ShapeDtypeStruct((Bp, LANE), jnp.float32),
        grid_spec=pltpu.PrefetchScalarGridSpec(
            num_scalar_prefetch=0,
            grid=(1,),
            in_specs=[
                pl.BlockSpec((Bp, K), lambda i: (0, 0)),
                pl.BlockSpec((K, LANE), lambda i: (0, 0)),
                pl.BlockSpec((1, LANE), lambda i: (0, 0)),
                pl.BlockSpec((LANE, LANE), lambda i: (0, 0)),
                pl.BlockSpec((1, LANE), lambda i: (0, 0)),
                pl.BlockSpec((LANE, LANE), lambda i: (0, 0)),
                pl.BlockSpec((1, LANE), lambda i: (0, 0)),
            ],
            out_specs=pl.BlockSpec((Bp, LANE), lambda i: (0, 0)),
        ),
        compiler_params=pltpu.CompilerParams(
            dimension_semantics=("arbitrary",),
            vmem_limit_bytes=32 * 1024 * 1024),
    )(x, w1, b1, w2, b2, w3, b3)
    return out[:B]


# ----------------------------------------------------------------------------
# Parameter prep: done ONCE, outside the forward pass
# ----------------------------------------------------------------------------
def prepare_params(params):
    """PyTorch-layout params -> NHWC, trimmed-K, 128-out-padded, pre-transposed."""
    p = {}
    # conv1-3 (im2col layers): weight rows ordered (kh, kw, cin_real), K 8-aligned.
    for name in ("conv1", "conv2", "conv3"):
        w, b = params[name]                                   # (Cout,Cin,kh,kw), (Cout,)
        cout, cin, kh, kw = w.shape
        wt = jnp.transpose(w, (2, 3, 1, 0)).reshape(kh * kw * cin, cout)
        Kp = _round_up(kh * kw * cin, 8)
        wt = jnp.pad(wt, ((0, Kp - kh * kw * cin), (0, LANE - cout)))
        p[name] = (wt, jnp.pad(b, (0, LANE - cout)).reshape(1, LANE))

    # conv4 / conv5 (fused in-kernel gather): per-tap (Kin, 64) matrices.
    w4, b4 = params["conv4"]                                  # (64, 48, 3, 3)
    w4 = jnp.transpose(w4, (2, 3, 1, 0))                      # (3, 3, 48, 64)
    w4 = jnp.pad(w4, ((0, 0), (0, 0), (0, LANE - 48), (0, 0)))  # match conv3's 128 lanes
    p["conv4"] = (w4.reshape(9, LANE, 64), b4.reshape(1, 64))
    w5, b5 = params["conv5"]                                  # (64, 64, 3, 3)
    p["conv5"] = (jnp.transpose(w5, (2, 3, 1, 0)).reshape(9, 64, 64),
                  b5.reshape(1, 64))

    # fc1: PyTorch columns index (c, h, w); our flatten is (h, w, c) with real c=64.
    w1, b1 = params["fc1"]                                    # (100, 4096)
    w1 = jnp.transpose(w1.reshape(100, 64, 8, 8), (2, 3, 1, 0))  # (h, w, c, out)
    w1 = jnp.pad(w1, ((0, 0), (0, 0), (0, 0), (0, LANE - 100))).reshape(4096, LANE)
    p["fc1"] = (w1, jnp.pad(b1, (0, LANE - 100)).reshape(1, LANE))

    w2, b2 = params["fc2"]                                    # (50, 100)
    p["fc2"] = (jnp.pad(w2.T, ((0, LANE - 100), (0, LANE - 50))),
                jnp.pad(b2, (0, LANE - 50)).reshape(1, LANE))
    w3, b3 = params["fc3"]                                    # (6, 50)
    p["fc3"] = (jnp.pad(w3.T, ((0, LANE - 50), (0, LANE - 6))),
                jnp.pad(b3, (0, LANE - 6)).reshape(1, LANE))
    return p


# ----------------------------------------------------------------------------
# PilotNet forward (prepared params, NCHW input like PyTorch)
# ----------------------------------------------------------------------------
def pilotnet_forward(prepped, x):
    B = x.shape[0]
    x = jnp.transpose(x, (0, 2, 3, 1))                                    # (B,64,64,3)
    x, Ho, Wo = conv2d_relu(x, *prepped["conv1"], cin=3, kh=5, kw=5, stride=2, pad=2)
    x = x.reshape(B, Ho, Wo, LANE)                                        # (B,32,32,128)
    x, Ho, Wo = conv2d_relu(x, *prepped["conv2"], cin=24, kh=5, kw=5, stride=2, pad=2)
    x = x.reshape(B, Ho, Wo, LANE)                                        # (B,16,16,128)
    x, Ho, Wo = conv2d_relu(x, *prepped["conv3"], cin=36, kh=5, kw=5, stride=2, pad=2)
    # x: (B*64, 128), rows ordered (b, h, w); conv4+conv5 fused with in-kernel gather.
    x = conv45_fused(x, *prepped["conv4"], *prepped["conv5"])             # (B*64, 64)
    x = x.reshape(B, 8 * 8 * 64)                                          # (h, w, c) flatten
    y = fc_head(x, prepped["fc1"], prepped["fc2"], prepped["fc3"])        # (B, 128)
    return y[:, :6]


# ----------------------------------------------------------------------------
# Parameter init (PyTorch-style shapes) and pure-JAX reference
# ----------------------------------------------------------------------------
def init_params(key):
    shapes = {
        "conv1": ((24, 3, 5, 5), (24,)),
        "conv2": ((36, 24, 5, 5), (36,)),
        "conv3": ((48, 36, 5, 5), (48,)),
        "conv4": ((64, 48, 3, 3), (64,)),
        "conv5": ((64, 64, 3, 3), (64,)),
        "fc1": ((100, 64 * 8 * 8), (100,)),
        "fc2": ((50, 100), (50,)),
        "fc3": ((6, 50), (6,)),
    }
    params = {}
    for name, (wshape, bshape) in shapes.items():
        key, kw_, kb_ = jax.random.split(key, 3)
        fan_in = int(jnp.prod(jnp.array(wshape[1:])))
        scale = 1.0 / jnp.sqrt(jnp.float32(fan_in))
        params[name] = (
            jax.random.normal(kw_, wshape, jnp.float32) * scale,
            jax.random.normal(kb_, bshape, jnp.float32) * scale,
        )
    return params


def _conv_ref(x, w, b, stride, pad):
    y = lax.conv_general_dilated(
        x, w, window_strides=(stride, stride),
        padding=[(pad, pad), (pad, pad)],
        dimension_numbers=("NCHW", "OIHW", "NCHW"))
    return jax.nn.relu(y + b[None, :, None, None])


def pilotnet_reference(params, x):
    x = _conv_ref(x, *params["conv1"], 2, 2)
    x = _conv_ref(x, *params["conv2"], 2, 2)
    x = _conv_ref(x, *params["conv3"], 2, 2)
    x = _conv_ref(x, *params["conv4"], 1, 1)
    x = _conv_ref(x, *params["conv5"], 1, 1)
    x = x.reshape(x.shape[0], -1)
    w1, b1 = params["fc1"]; w2, b2 = params["fc2"]; w3, b3 = params["fc3"]
    x = jax.nn.relu(x @ w1.T + b1)
    x = jax.nn.relu(x @ w2.T + b2)
    return x @ w3.T + b3


if __name__ == "__main__":
    key = jax.random.PRNGKey(0)
    pkey, xkey = jax.random.split(key)
    params = init_params(pkey)
    prepped = prepare_params(params)      # one-time weight layout / padding prep
    # fc1 expects 64*8*8 features -> the module implies a 64x64 spatial input.
    x = jax.random.normal(xkey, (2, 3, 64, 64), jnp.float32)

    out = jax.jit(pilotnet_forward)(prepped, x)
    out = jax.block_until_ready(out)
    assert out.shape == (2, 6), out.shape

    ref = jax.jit(pilotnet_reference)(params, x)
    ref = jax.block_until_ready(ref)
    assert jnp.allclose(out, ref, atol=1e-3, rtol=1e-3), (
        float(jnp.max(jnp.abs(out - ref))))

    print("KERNEL_OK")
</pallas_src>

<mosaic_0001>
module attributes {stable_mosaic.version = 11 : i64} {
  func.func @_matmul_bias_act_kernel(%arg0: i32, %arg1: memref<2048x80xf32, #tpu.memory_space<vmem>>, %arg2: memref<80x128xf32, #tpu.memory_space<vmem>>, %arg3: memref<1x128xf32, #tpu.memory_space<vmem>>, %arg4: memref<2048x128xf32, #tpu.memory_space<vmem>>) attributes {dimension_semantics = [#tpu.dimension_semantics<parallel>], iteration_bounds = array<i64: 1>, scalar_prefetch = 0 : i64, scratch_operands = 0 : i64, tpu.core_type = #tpu.core_type<tc>, window_params = [{transform_indices = @transform_0, window_bounds = array<i64: 2048, 80>}, {pipeline_mode = #tpu.pipeline_mode<synchronous>, transform_indices = @transform_1, window_bounds = array<i64: 80, 128>}, {pipeline_mode = #tpu.pipeline_mode<synchronous>, transform_indices = @transform_2, window_bounds = array<i64: 1, 128>}, {transform_indices = @transform_3, window_bounds = array<i64: 2048, 128>}]} {
    %c0 = arith.constant 0 : index
    %c0_0 = arith.constant 0 : index
    %0 = vector.load %arg1[%c0, %c0_0] : memref<2048x80xf32, #tpu.memory_space<vmem>>, vector<2048x80xf32>
    %c0_1 = arith.constant 0 : index
    %c0_2 = arith.constant 0 : index
    %1 = vector.load %arg2[%c0_1, %c0_2] : memref<80x128xf32, #tpu.memory_space<vmem>>, vector<80x128xf32>
    %cst = arith.constant dense<0.000000e+00> : vector<2048x128xf32>
    %2 = tpu.matmul %0, %1, %cst {dimension_numbers = #tpu.dot_dimension_numbers<[1], [0], [0], [1], [0, 0, 1, 1], [], []>} : vector<2048x80xf32>, vector<80x128xf32>, vector<2048x128xf32> -> vector<2048x128xf32>
    %c0_3 = arith.constant 0 : index
    %c0_4 = arith.constant 0 : index
    %3 = vector.load %arg3[%c0_3, %c0_4] : memref<1x128xf32, #tpu.memory_space<vmem>>, vector<1x128xf32>
    %4 = vector.broadcast %3 : vector<1x128xf32> to vector<2048x128xf32>
    %5 = arith.addf %2, %4 : vector<2048x128xf32>
    %cst_5 = arith.constant 0.000000e+00 : f32
    %6 = vector.broadcast %cst_5 : f32 to vector<2048x128xf32>
    %7 = arith.maximumf %5, %6 : vector<2048x128xf32>
    %c0_6 = arith.constant 0 : index
    %c0_7 = arith.constant 0 : index
    %8 = vector.load %arg4[%c0_6, %c0_7] : memref<2048x128xf32, #tpu.memory_space<vmem>>, vector<2048x128xf32>
    tpu.vector_store %arg4[%c0_6, %c0_7], %7 {strides = array<i32>} : memref<2048x128xf32, #tpu.memory_space<vmem>>, vector<2048x128xf32>,
    return
  }
  func.func @transform_0(%arg0: i32) -> (i32, i32) {
    %c0_i32 = arith.constant 0 : i32
    %c0_i32_0 = arith.constant 0 : i32
    return %arg0, %c0_i32 : i32, i32
  }
  func.func @transform_1(%arg0: i32) -> (i32, i32) {
    %c0_i32 = arith.constant 0 : i32
    %c0_i32_0 = arith.constant 0 : i32
    %c0_i32_1 = arith.constant 0 : i32
    return %c0_i32, %c0_i32_0 : i32, i32
  }
  func.func @transform_2(%arg0: i32) -> (i32, i32) {
    %c0_i32 = arith.constant 0 : i32
    %c0_i32_0 = arith.constant 0 : i32
    %c0_i32_1 = arith.constant 0 : i32
    return %c0_i32, %c0_i32_0 : i32, i32
  }
  func.func @transform_3(%arg0: i32) -> (i32, i32) {
    %c0_i32 = arith.constant 0 : i32
    %c0_i32_0 = arith.constant 0 : i32
    return %arg0, %c0_i32 : i32, i32
  }
}

module attributes {stable_mosaic.version = 11 : i64} {
  func.func @_matmul_bias_act_kernel(%arg0: i32, %arg1: memref<512x600xf32, #tpu.memory_space<vmem>>, %arg2: memref<600x128xf32, #tpu.memory_space<vmem>>, %arg3: memref<1x128xf32, #tpu.memory_space<vmem>>, %arg4: memref<512x128xf32, #tpu.memory_space<vmem>>) attributes {dimension_semantics = [#tpu.dimension_semantics<parallel>], iteration_bounds = array<i64: 1>, scalar_prefetch = 0 : i64, scratch_operands = 0 : i64, tpu.core_type = #tpu.core_type<tc>, window_params = [{transform_indices = @transform_0, window_bounds = array<i64: 512, 600>}, {pipeline_mode = #tpu.pipeline_mode<synchronous>, transform_indices = @transform_1, window_bounds = array<i64: 600, 128>}, {pipeline_mode = #tpu.pipeline_mode<synchronous>, transform_indices = @transform_2, window_bounds = array<i64: 1, 128>}, {transform_indices = @transform_3, window_bounds = array<i64: 512, 128>}]} {
    %c0 = arith.constant 0 : index
    %c0_0 = arith.constant 0 : index
    %0 = vector.load %arg1[%c0, %c0_0] : memref<512x600xf32, #tpu.memory_space<vmem>>, vector<512x600xf32>
    %c0_1 = arith.constant 0 : index
    %c0_2 = arith.constant 0 : index
    %1 = vector.load %arg2[%c0_1, %c0_2] : memref<600x128xf32, #tpu.memory_space<vmem>>, vector<600x128xf32>
    %cst = arith.constant dense<0.000000e+00> : vector<512x128xf32>
    %2 = tpu.matmul %0, %1, %cst {dimension_numbers = #tpu.dot_dimension_numbers<[1], [0], [0], [1], [0, 0, 1, 1], [], []>} : vector<512x600xf32>, vector<600x128xf32>, vector<512x128xf32> -> vector<512x128xf32>
    %c0_3 = arith.constant 0 : index
    %c0_4 = arith.constant 0 : index
    %3 = vector.load %arg3[%c0_3, %c0_4] : memref<1x128xf32, #tpu.memory_space<vmem>>, vector<1x128xf32>
    %4 = vector.broadcast %3 : vector<1x128xf32> to vector<512x128xf32>
    %5 = arith.addf %2, %4 : vector<512x128xf32>
    %cst_5 = arith.constant 0.000000e+00 : f32
    %6 = vector.broadcast %cst_5 : f32 to vector<512x128xf32>
    %7 = arith.maximumf %5, %6 : vector<512x128xf32>
    %c0_6 = arith.constant 0 : index
    %c0_7 = arith.constant 0 : index
    %8 = vector.load %arg4[%c0_6, %c0_7] : memref<512x128xf32, #tpu.memory_space<vmem>>, vector<512x128xf32>
    tpu.vector_store %arg4[%c0_6, %c0_7], %7 {strides = array<i32>} : memref<512x128xf32, #tpu.memory_space<vmem>>, vector<512x128xf32>,
    return
  }
  func.func @transform_0(%arg0: i32) -> (i32, i32) {
    %c0_i32 = arith.constant 0 : i32
    %c0_i32_0 = arith.constant 0 : i32
    return %arg0, %c0_i32 : i32, i32
  }
  func.func @transform_1(%arg0: i32) -> (i32, i32) {
    %c0_i32 = arith.constant 0 : i32
    %c0_i32_0 = arith.constant 0 : i32
    %c0_i32_1 = arith.constant 0 : i32
    return %c0_i32, %c0_i32_0 : i32, i32
  }
  func.func @transform_2(%arg0: i32) -> (i32, i32) {
    %c0_i32 = arith.constant 0 : i32
    %c0_i32_0 = arith.constant 0 : i32
    %c0_i32_1 = arith.constant 0 : i32
    return %c0_i32, %c0_i32_0 : i32, i32
  }
  func.func @transform_3(%arg0: i32) -> (i32, i32) {
    %c0_i32 = arith.constant 0 : i32
    %c0_i32_0 = arith.constant 0 : i32
    return %arg0, %c0_i32 : i32, i32
  }
}

module attributes {stable_mosaic.version = 11 : i64} {
  func.func @_matmul_bias_act_kernel(%arg0: i32, %arg1: memref<128x904xf32, #tpu.memory_space<vmem>>, %arg2: memref<904x128xf32, #tpu.memory_space<vmem>>, %arg3: memref<1x128xf32, #tpu.memory_space<vmem>>, %arg4: memref<128x128xf32, #tpu.memory_space<vmem>>) attributes {dimension_semantics = [#tpu.dimension_semantics<parallel>], iteration_bounds = array<i64: 1>, scalar_prefetch = 0 : i64, scratch_operands = 0 : i64, tpu.core_type = #tpu.core_type<tc>, window_params = [{transform_indices = @transform_0, window_bounds = array<i64: 128, 904>}, {pipeline_mode = #tpu.pipeline_mode<synchronous>, transform_indices = @transform_1, window_bounds = array<i64: 904, 128>}, {pipeline_mode = #tpu.pipeline_mode<synchronous>, transform_indices = @transform_2, window_bounds = array<i64: 1, 128>}, {transform_indices = @transform_3, window_bounds = array<i64: 128, 128>}]} {
    %c0 = arith.constant 0 : index
    %c0_0 = arith.constant 0 : index
    %0 = vector.load %arg1[%c0, %c0_0] : memref<128x904xf32, #tpu.memory_space<vmem>>, vector<128x904xf32>
    %c0_1 = arith.constant 0 : index
    %c0_2 = arith.constant 0 : index
    %1 = vector.load %arg2[%c0_1, %c0_2] : memref<904x128xf32, #tpu.memory_space<vmem>>, vector<904x128xf32>
    %cst = arith.constant dense<0.000000e+00> : vector<128x128xf32>
    %2 = tpu.matmul %0, %1, %cst {dimension_numbers = #tpu.dot_dimension_numbers<[1], [0], [0], [1], [0, 0, 1, 1], [], []>} : vector<128x904xf32>, vector<904x128xf32>, vector<128x128xf32> -> vector<128x128xf32>
    %c0_3 = arith.constant 0 : index
    %c0_4 = arith.constant 0 : index
    %3 = vector.load %arg3[%c0_3, %c0_4] : memref<1x128xf32, #tpu.memory_space<vmem>>, vector<1x128xf32>
    %4 = vector.broadcast %3 : vector<1x128xf32> to vector<128x128xf32>
    %5 = arith.addf %2, %4 : vector<128x128xf32>
    %cst_5 = arith.constant 0.000000e+00 : f32
    %6 = vector.broadcast %cst_5 : f32 to vector<128x128xf32>
    %7 = arith.maximumf %5, %6 : vector<128x128xf32>
    %c0_6 = arith.constant 0 : index
    %c0_7 = arith.constant 0 : index
    %8 = vector.load %arg4[%c0_6, %c0_7] : memref<128x128xf32, #tpu.memory_space<vmem>>, vector<128x128xf32>
    tpu.vector_store %arg4[%c0_6, %c0_7], %7 {strides = array<i32>} : memref<128x128xf32, #tpu.memory_space<vmem>>, vector<128x128xf32>,
    return
  }
  func.func @transform_0(%arg0: i32) -> (i32, i32) {
    %c0_i32 = arith.constant 0 : i32
    %c0_i32_0 = arith.constant 0 : i32
    return %arg0, %c0_i32 : i32, i32
  }
  func.func @transform_1(%arg0: i32) -> (i32, i32) {
    %c0_i32 = arith.constant 0 : i32
    %c0_i32_0 = arith.constant 0 : i32
    %c0_i32_1 = arith.constant 0 : i32
    return %c0_i32, %c0_i32_0 : i32, i32
  }
  func.func @transform_2(%arg0: i32) -> (i32, i32) {
    %c0_i32 = arith.constant 0 : i32
    %c0_i32_0 = arith.constant 0 : i32
    %c0_i32_1 = arith.constant 0 : i32
    return %c0_i32, %c0_i32_0 : i32, i32
  }
  func.func @transform_3(%arg0: i32) -> (i32, i32) {
    %c0_i32 = arith.constant 0 : i32
    %c0_i32_0 = arith.constant 0 : i32
    return %arg0, %c0_i32 : i32, i32
  }
}

module attributes {stable_mosaic.version = 11 : i64} {
  func.func @_conv45_kernel(%arg0: i32, %arg1: memref<64x128xf32, #tpu.memory_space<vmem>>, %arg2: memref<9x128x64xf32, #tpu.memory_space<vmem>>, %arg3: memref<1x64xf32, #tpu.memory_space<vmem>>, %arg4: memref<9x64x64xf32, #tpu.memory_space<vmem>>, %arg5: memref<1x64xf32, #tpu.memory_space<vmem>>, %arg6: memref<64x64xf32, #tpu.memory_space<vmem>>) attributes {dimension_semantics = [#tpu.dimension_semantics<parallel>], iteration_bounds = array<i64: 2>, scalar_prefetch = 0 : i64, scratch_operands = 0 : i64, tpu.core_type = #tpu.core_type<tc>, window_params = [{transform_indices = @transform_0, window_bounds = array<i64: 64, 128>}, {pipeline_mode = #tpu.pipeline_mode<synchronous>, transform_indices = @transform_1, window_bounds = array<i64: 9, 128, 64>}, {pipeline_mode = #tpu.pipeline_mode<synchronous>, transform_indices = @transform_2, window_bounds = array<i64: 1, 64>}, {pipeline_mode = #tpu.pipeline_mode<synchronous>, transform_indices = @transform_3, window_bounds = array<i64: 9, 64, 64>}, {pipeline_mode = #tpu.pipeline_mode<synchronous>, transform_indices = @transform_4, window_bounds = array<i64: 1, 64>}, {transform_indices = @transform_5, window_bounds = array<i64: 64, 64>}]} {
    %0 = tpu.iota {dimensions = array<i32: 0>} : vector<64x1xi32>
    %c8_i32 = arith.constant 8 : i32
    %c0_i32 = arith.constant 0 : i32
    %1 = arith.cmpi eq, %c8_i32, %c0_i32 : i32
    %c1_i32 = arith.constant 1 : i32
    %2 = arith.select %1, %c1_i32, %c8_i32 : i32
    %3 = vector.broadcast %2 : i32 to vector<64x1xi32>
    %4 = arith.remsi %0, %3 : vector<64x1xi32>
    %c0_i32_0 = arith.constant 0 : i32
    %5 = vector.broadcast %c0_i32_0 : i32 to vector<64x1xi32>
    %6 = arith.cmpi ne, %4, %5 : vector<64x1xi32>
    %c0_i32_1 = arith.constant 0 : i32
    %7 = vector.broadcast %c0_i32_1 : i32 to vector<64x1xi32>
    %8 = arith.cmpi slt, %4, %7 : vector<64x1xi32>
    %c0_i32_2 = arith.constant 0 : i32
    %9 = arith.cmpi slt, %2, %c0_i32_2 : i32
    %10 = vector.broadcast %9 : i1 to vector<64x1xi1>
    %11 = vector.broadcast %10 : vector<64x1xi1> to vector<64x1xi1>
    %12 = arith.xori %8, %11 : vector<64x1xi1>
    %13 = arith.andi %12, %6 : vector<64x1xi1>
    %14 = vector.broadcast %2 : i32 to vector<64x1xi32>
    %15 = arith.addi %4, %14 : vector<64x1xi32>
    %16 = arith.select %13, %15, %4 : vector<64x1xi1>, vector<64x1xi32>
    %c0 = arith.constant 0 : index
    %c0_3 = arith.constant 0 : index
    %17 = vector.load %arg1[%c0, %c0_3] : memref<64x128xf32, #tpu.memory_space<vmem>>, vector<64x128xf32>
    %cst = arith.constant 0.000000e+00 : f32
    %18 = vector.broadcast %cst : f32 to vector<16x128xf32>
    %19 = tpu.concatenate %18, %17, %18 in 0 : vector<16x128xf32>, vector<64x128xf32>, vector<16x128xf32> -> vector<96x128xf32>
    %cst_4 = arith.constant 0.000000e+00 : f32
    %20 = vector.broadcast %cst_4 : f32 to vector<64x64xf32>
    %21 = vector.extract_strided_slice %19 {offsets = [7, 0], sizes = [64, 128], strides = [1, 1]} : vector<96x128xf32> to vector<64x128xf32>
    %c-1_i32 = arith.constant -1 : i32
    %22 = vector.broadcast %c-1_i32 : i32 to vector<64x1xi32>
    %23 = arith.addi %16, %22 : vector<64x1xi32>
    %c0_i32_5 = arith.constant 0 : i32
    %24 = vector.broadcast %c0_i32_5 : i32 to vector<64x1xi32>
    %25 = arith.cmpi sge, %23, %24 : vector<64x1xi32>
    %c7_i32 = arith.constant 7 : i32
    %26 = vector.broadcast %c7_i32 : i32 to vector<64x1xi32>
    %27 = arith.cmpi sle, %23, %26 : vector<64x1xi32>
    %28 = arith.andi %25, %27 : vector<64x1xi1>
    %cst_6 = arith.constant 0.000000e+00 : f32
    %29 = vector.shape_cast %28 : vector<64x1xi1> to vector<64x1xi1>
    %30 = vector.broadcast %29 : vector<64x1xi1> to vector<64x128xi1>
    %31 = vector.broadcast %cst_6 : f32 to vector<64x128xf32>
    %32 = arith.select %30, %21, %31 : vector<64x128xi1>, vector<64x128xf32>
    %c0_7 = arith.constant 0 : index
    %c0_8 = arith.constant 0 : index
    %c0_9 = arith.constant 0 : index
    %33 = vector.load %arg2[%c0_7, %c0_8, %c0_9] : memref<9x128x64xf32, #tpu.memory_space<vmem>>, vector<1x128x64xf32>
    %34 = vector.shape_cast %33 : vector<1x128x64xf32> to vector<128x64xf32>
    %cst_10 = arith.constant dense<0.000000e+00> : vector<64x64xf32>
    %35 = tpu.matmul %32, %34, %cst_10 {dimension_numbers = #tpu.dot_dimension_numbers<[1], [0], [0], [1], [0, 0, 1, 1], [], []>} : vector<64x128xf32>, vector<128x64xf32>, vector<64x64xf32> -> vector<64x64xf32>
    %36 = arith.addf %20, %35 : vector<64x64xf32>
    %37 = vector.extract_strided_slice %19 {offsets = [8, 0], sizes = [64, 128], strides = [1, 1]} : vector<96x128xf32> to vector<64x128xf32>
    %c1 = arith.constant 1 : index
    %c0_11 = arith.constant 0 : index
    %c0_12 = arith.constant 0 : index
    %38 = vector.load %arg2[%c1, %c0_11, %c0_12] : memref<9x128x64xf32, #tpu.memory_space<vmem>>, vector<1x128x64xf32>
    %39 = vector.shape_cast %38 : vector<1x128x64xf32> to vector<128x64xf32>
    %cst_13 = arith.constant dense<0.000000e+00> : vector<64x64xf32>
    %40 = tpu.matmul %37, %39, %cst_13 {dimension_numbers = #tpu.dot_dimension_numbers<[1], [0], [0], [1], [0, 0, 1, 1], [], []>} : vector<64x128xf32>, vector<128x64xf32>, vector<64x64xf32> -> vector<64x64xf32>
    %41 = arith.addf %36, %40 : vector<64x64xf32>
    %42 = vector.extract_strided_slice %19 {offsets = [9, 0], sizes = [64, 128], strides = [1, 1]} : vector<96x128xf32> to vector<64x128xf32>
    %c1_i32_14 = arith.constant 1 : i32
    %43 = vector.broadcast %c1_i32_14 : i32 to vector<64x1xi32>
    %44 = arith.addi %16, %43 : vector<64x1xi32>
    %c0_i32_15 = arith.constant 0 : i32
    %45 = vector.broadcast %c0_i32_15 : i32 to vector<64x1xi32>
    %46 = arith.cmpi sge, %44, %45 : vector<64x1xi32>
    %c7_i32_16 = arith.constant 7 : i32
    %47 = vector.broadcast %c7_i32_16 : i32 to vector<64x1xi32>
    %48 = arith.cmpi sle, %44, %47 : vector<64x1xi32>
    %49 = arith.andi %46, %48 : vector<64x1xi1>
    %cst_17 = arith.constant 0.000000e+00 : f32
    %50 = vector.shape_cast %49 : vector<64x1xi1> to vector<64x1xi1>
    %51 = vector.broadcast %50 : vector<64x1xi1> to vector<64x128xi1>
    %52 = vector.broadcast %cst_17 : f32 to vector<64x128xf32>
    %53 = arith.select %51, %42, %52 : vector<64x128xi1>, vector<64x128xf32>
    %c2 = arith.constant 2 : index
    %c0_18 = arith.constant 0 : index
    %c0_19 = arith.constant 0 : index
    %54 = vector.load %arg2[%c2, %c0_18, %c0_19] : memref<9x128x64xf32, #tpu.memory_space<vmem>>, vector<1x128x64xf32>
    %55 = vector.shape_cast %54 : vector<1x128x64xf32> to vector<128x64xf32>
    %cst_20 = arith.constant dense<0.000000e+00> : vector<64x64xf32>
    %56 = tpu.matmul %53, %55, %cst_20 {dimension_numbers = #tpu.dot_dimension_numbers<[1], [0], [0], [1], [0, 0, 1, 1], [], []>} : vector<64x128xf32>, vector<128x64xf32>, vector<64x64xf32> -> vector<64x64xf32>
    %57 = arith.addf %41, %56 : vector<64x64xf32>
    %58 = vector.extract_strided_slice %19 {offsets = [15, 0], sizes = [64, 128], strides = [1, 1]} : vector<96x128xf32> to vector<64x128xf32>
    %c-1_i32_21 = arith.constant -1 : i32
    %59 = vector.broadcast %c-1_i32_21 : i32 to vector<64x1xi32>
    %60 = arith.addi %16, %59 : vector<64x1xi32>
    %c0_i32_22 = arith.constant 0 : i32
    %61 = vector.broadcast %c0_i32_22 : i32 to vector<64x1xi32>
    %62 = arith.cmpi sge, %60, %61 : vector<64x1xi32>
    %c7_i32_23 = arith.constant 7 : i32
    %63 = vector.broadcast %c7_i32_23 : i32 to vector<64x1xi32>
    %64 = arith.cmpi sle, %60, %63 : vector<64x1xi32>
    %65 = arith.andi %62, %64 : vector<64x1xi1>
    %cst_24 = arith.constant 0.000000e+00 : f32
    %66 = vector.shape_cast %65 : vector<64x1xi1> to vector<64x1xi1>
    %67 = vector.broadcast %66 : vector<64x1xi1> to vector<64x128xi1>
    %68 = vector.broadcast %cst_24 : f32 to vector<64x128xf32>
    %69 = arith.select %67, %58, %68 : vector<64x128xi1>, vector<64x128xf32>
    %c3 = arith.constant 3 : index
    %c0_25 = arith.constant 0 : index
    %c0_26 = arith.constant 0 : index
    %70 = vector.load %arg2[%c3, %c0_25, %c0_26] : memref<9x128x64xf32, #tpu.memory_space<vmem>>, vector<1x128x64xf32>
    %71 = vector.shape_cast %70 : vector<1x128x64xf32> to vector<128x64xf32>
    %cst_27 = arith.constant dense<0.000000e+00> : vector<64x64xf32>
    %72 = tpu.matmul %69, %71, %cst_27 {dimension_numbers = #tpu.dot_dimension_numbers<[1], [0], [0], [1], [0, 0, 1, 1], [], []>} : vector<64x128xf32>, vector<128x64xf32>, vector<64x64xf32> -> vector<64x64xf32>
    %73 = arith.addf %57, %72 : vector<64x64xf32>
    %74 = vector.extract_strided_slice %19 {offsets = [16, 0], sizes = [64, 128], strides = [1, 1]} : vector<96x128xf32> to vector<64x128xf32>
    %c4 = arith.constant 4 : index
    %c0_28 = arith.constant 0 : index
    %c0_29 = arith.constant 0 : index
    %75 = vector.load %arg2[%c4, %c0_28, %c0_29] : memref<9x128x64xf32, #tpu.memory_space<vmem>>, vector<1x128x64xf32>
    %76 = vector.shape_cast %75 : vector<1x128x64xf32> to vector<128x64xf32>
    %cst_30 = arith.constant dense<0.000000e+00> : vector<64x64xf32>
    %77 = tpu.matmul %74, %76, %cst_30 {dimension_numbers = #tpu.dot_dimension_numbers<[1], [0], [0], [1], [0, 0, 1, 1], [], []>} : vector<64x128xf32>, vector<128x64xf32>, vector<64x64xf32> -> vector<64x64xf32>
    %78 = arith.addf %73, %77 : vector<64x64xf32>
    %79 = vector.extract_strided_slice %19 {offsets = [17, 0], sizes = [64, 128], strides = [1, 1]} : vector<96x128xf32> to vector<64x128xf32>
    %c1_i32_31 = arith.constant 1 : i32
    %80 = vector.broadcast %c1_i32_31 : i32 to vector<64x1xi32>
    %81 = arith.addi %16, %80 : vector<64x1xi32>
    %c0_i32_32 = arith.constant 0 : i32
    %82 = vector.broadcast %c0_i32_32 : i32 to vector<64x1xi32>
    %83 = arith.cmpi sge, %81, %82 : vector<64x1xi32>
    %c7_i32_33 = arith.constant 7 : i32
    %84 = vector.broadcast %c7_i32_33 : i32 to vector<64x1xi32>
    %85 = arith.cmpi sle, %81, %84 : vector<64x1xi32>
    %86 = arith.andi %83, %85 : vector<64x1xi1>
    %cst_34 = arith.constant 0.000000e+00 : f32
    %87 = vector.shape_cast %86 : vector<64x1xi1> to vector<64x1xi1>
    %88 = vector.broadcast %87 : vector<64x1xi1> to vector<64x128xi1>
    %89 = vector.broadcast %cst_34 : f32 to vector<64x128xf32>
    %90 = arith.select %88, %79, %89 : vector<64x128xi1>, vector<64x128xf32>
    %c5 = arith.constant 5 : index
    %c0_35 = arith.constant 0 : index
    %c0_36 = arith.constant 0 : index
    %91 = vector.load %arg2[%c5, %c0_35, %c0_36] : memref<9x128x64xf32, #tpu.memory_space<vmem>>, vector<1x128x64xf32>
    %92 = vector.shape_cast %91 : vector<1x128x64xf32> to vector<128x64xf32>
    %cst_37 = arith.constant dense<0.000000e+00> : vector<64x64xf32>
    %93 = tpu.matmul %90, %92, %cst_37 {dimension_numbers = #tpu.dot_dimension_numbers<[1], [0], [0], [1], [0, 0, 1, 1], [], []>} : vector<64x128xf32>, vector<128x64xf32>, vector<64x64xf32> -> vector<64x64xf32>
    %94 = arith.addf %78, %93 : vector<64x64xf32>
    %95 = vector.extract_strided_slice %19 {offsets = [23, 0], sizes = [64, 128], strides = [1, 1]} : vector<96x128xf32> to vector<64x128xf32>
    %c-1_i32_38 = arith.constant -1 : i32
    %96 = vector.broadcast %c-1_i32_38 : i32 to vector<64x1xi32>
    %97 = arith.addi %16, %96 : vector<64x1xi32>
    %c0_i32_39 = arith.constant 0 : i32
    %98 = vector.broadcast %c0_i32_39 : i32 to vector<64x1xi32>
    %99 = arith.cmpi sge, %97, %98 : vector<64x1xi32>
    %c7_i32_40 = arith.constant 7 : i32
    %100 = vector.broadcast %c7_i32_40 : i32 to vector<64x1xi32>
    %101 = arith.cmpi sle, %97, %100 : vector<64x1xi32>
    %102 = arith.andi %99, %101 : vector<64x1xi1>
    %cst_41 = arith.constant 0.000000e+00 : f32
    %103 = vector.shape_cast %102 : vector<64x1xi1> to vector<64x1xi1>
    %104 = vector.broadcast %103 : vector<64x1xi1> to vector<64x128xi1>
    %105 = vector.broadcast %cst_41 : f32 to vector<64x128xf32>
    %106 = arith.select %104, %95, %105 : vector<64x128xi1>, vector<64x128xf32>
    %c6 = arith.constant 6 : index
    %c0_42 = arith.constant 0 : index
    %c0_43 = arith.constant 0 : index
    %107 = vector.load %arg2[%c6, %c0_42, %c0_43] : memref<9x128x64xf32, #tpu.memory_space<vmem>>, vector<1x128x64xf32>
    %108 = vector.shape_cast %107 : vector<1x128x64xf32> to vector<128x64xf32>
    %cst_44 = arith.constant dense<0.000000e+00> : vector<64x64xf32>
    %109 = tpu.matmul %106, %108, %cst_44 {dimension_numbers = #tpu.dot_dimension_numbers<[1], [0], [0], [1], [0, 0, 1, 1], [], []>} : vector<64x128xf32>, vector<128x64xf32>, vector<64x64xf32> -> vector<64x64xf32>
    %110 = arith.addf %94, %109 : vector<64x64xf32>
    %111 = vector.extract_strided_slice %19 {offsets = [24, 0], sizes = [64, 128], strides = [1, 1]} : vector<96x128xf32> to vector<64x128xf32>
    %c7 = arith.constant 7 : index
    %c0_45 = arith.constant 0 : index
    %c0_46 = arith.constant 0 : index
    %112 = vector.load %arg2[%c7, %c0_45, %c0_46] : memref<9x128x64xf32, #tpu.memory_space<vmem>>, vector<1x128x64xf32>
    %113 = vector.shape_cast %112 : vector<1x128x64xf32> to vector<128x64xf32>
    %cst_47 = arith.constant dense<0.000000e+00> : vector<64x64xf32>
    %114 = tpu.matmul %111, %113, %cst_47 {dimension_numbers = #tpu.dot_dimension_numbers<[1], [0], [0], [1], [0, 0, 1, 1], [], []>} : vector<64x128xf32>, vector<128x64xf32>, vector<64x64xf32> -> vector<64x64xf32>
    %115 = arith.addf %110, %114 : vector<64x64xf32>
    %116 = vector.extract_strided_slice %19 {offsets = [25, 0], sizes = [64, 128], strides = [1, 1]} : vector<96x128xf32> to vector<64x128xf32>
    %c1_i32_48 = arith.constant 1 : i32
    %117 = vector.broadcast %c1_i32_48 : i32 to vector<64x1xi32>
    %118 = arith.addi %16, %117 : vector<64x1xi32>
    %c0_i32_49 = arith.constant 0 : i32
    %119 = vector.broadcast %c0_i32_49 : i32 to vector<64x1xi32>
    %120 = arith.cmpi sge, %118, %119 : vector<64x1xi32>
    %c7_i32_50 = arith.constant 7 : i32
    %121 = vector.broadcast %c7_i32_50 : i32 to vector<64x1xi32>
    %122 = arith.cmpi sle, %118, %121 : vector<64x1xi32>
    %123 = arith.andi %120, %122 : vector<64x1xi1>
    %cst_51 = arith.constant 0.000000e+00 : f32
    %124 = vector.shape_cast %123 : vector<64x1xi1> to vector<64x1xi1>
    %125 = vector.broadcast %124 : vector<64x1xi1> to vector<64x128xi1>
    %126 = vector.broadcast %cst_51 : f32 to vector<64x128xf32>
    %127 = arith.select %125, %116, %126 : vector<64x128xi1>, vector<64x128xf32>
    %c8 = arith.constant 8 : index
    %c0_52 = arith.constant 0 : index
    %c0_53 = arith.constant 0 : index
    %128 = vector.load %arg2[%c8, %c0_52, %c0_53] : memref<9x128x64xf32, #tpu.memory_space<vmem>>, vector<1x128x64xf32>
    %129 = vector.shape_cast %128 : vector<1x128x64xf32> to vector<128x64xf32>
    %cst_54 = arith.constant dense<0.000000e+00> : vector<64x64xf32>
    %130 = tpu.matmul %127, %129, %cst_54 {dimension_numbers = #tpu.dot_dimension_numbers<[1], [0], [0], [1], [0, 0, 1, 1], [], []>} : vector<64x128xf32>, vector<128x64xf32>, vector<64x64xf32> -> vector<64x64xf32>
    %131 = arith.addf %115, %130 : vector<64x64xf32>
    %c0_55 = arith.constant 0 : index
    %c0_56 = arith.constant 0 : index
    %132 = vector.load %arg3[%c0_55, %c0_56] : memref<1x64xf32, #tpu.memory_space<vmem>>, vector<1x64xf32>
    %133 = vector.broadcast %132 : vector<1x64xf32> to vector<64x64xf32>
    %134 = arith.addf %131, %133 : vector<64x64xf32>
    %cst_57 = arith.constant 0.000000e+00 : f32
    %135 = vector.broadcast %cst_57 : f32 to vector<64x64xf32>
    %136 = arith.maximumf %134, %135 : vector<64x64xf32>
    %cst_58 = arith.constant 0.000000e+00 : f32
    %137 = vector.broadcast %cst_58 : f32 to vector<16x64xf32>
    %138 = tpu.concatenate %137, %136, %137 in 0 : vector<16x64xf32>, vector<64x64xf32>, vector<16x64xf32> -> vector<96x64xf32>
    %cst_59 = arith.constant 0.000000e+00 : f32
    %139 = vector.broadcast %cst_59 : f32 to vector<64x64xf32>
    %140 = vector.extract_strided_slice %138 {offsets = [7, 0], sizes = [64, 64], strides = [1, 1]} : vector<96x64xf32> to vector<64x64xf32>
    %c-1_i32_60 = arith.constant -1 : i32
    %141 = vector.broadcast %c-1_i32_60 : i32 to vector<64x1xi32>
    %142 = arith.addi %16, %141 : vector<64x1xi32>
    %c0_i32_61 = arith.constant 0 : i32
    %143 = vector.broadcast %c0_i32_61 : i32 to vector<64x1xi32>
    %144 = arith.cmpi sge, %142, %143 : vector<64x1xi32>
    %c7_i32_62 = arith.constant 7 : i32
    %145 = vector.broadcast %c7_i32_62 : i32 to vector<64x1xi32>
    %146 = arith.cmpi sle, %142, %145 : vector<64x1xi32>
    %147 = arith.andi %144, %146 : vector<64x1xi1>
    %cst_63 = arith.constant 0.000000e+00 : f32
    %148 = vector.shape_cast %147 : vector<64x1xi1> to vector<64x1xi1>
    %149 = vector.broadcast %148 : vector<64x1xi1> to vector<64x64xi1>
    %150 = vector.broadcast %cst_63 : f32 to vector<64x64xf32>
    %151 = arith.select %149, %140, %150 : vector<64x64xi1>, vector<64x64xf32>
    %c0_64 = arith.constant 0 : index
    %c0_65 = arith.constant 0 : index
    %c0_66 = arith.constant 0 : index
    %152 = vector.load %arg4[%c0_64, %c0_65, %c0_66] : memref<9x64x64xf32, #tpu.memory_space<vmem>>, vector<1x64x64xf32>
    %153 = vector.shape_cast %152 : vector<1x64x64xf32> to vector<64x64xf32>
    %cst_67 = arith.constant dense<0.000000e+00> : vector<64x64xf32>
    %154 = tpu.matmul %151, %153, %cst_67 {dimension_numbers = #tpu.dot_dimension_numbers<[1], [0], [0], [1], [0, 0, 1, 1], [], []>} : vector<64x64xf32>, vector<64x64xf32>, vector<64x64xf32> -> vector<64x64xf32>
    %155 = arith.addf %139, %154 : vector<64x64xf32>
    %156 = vector.extract_strided_slice %138 {offsets = [8, 0], sizes = [64, 64], strides = [1, 1]} : vector<96x64xf32> to vector<64x64xf32>
    %c1_68 = arith.constant 1 : index
    %c0_69 = arith.constant 0 : index
    %c0_70 = arith.constant 0 : index
    %157 = vector.load %arg4[%c1_68, %c0_69, %c0_70] : memref<9x64x64xf32, #tpu.memory_space<vmem>>, vector<1x64x64xf32>
    %158 = vector.shape_cast %157 : vector<1x64x64xf32> to vector<64x64xf32>
    %cst_71 = arith.constant dense<0.000000e+00> : vector<64x64xf32>
    %159 = tpu.matmul %156, %158, %cst_71 {dimension_numbers = #tpu.dot_dimension_numbers<[1], [0], [0], [1], [0, 0, 1, 1], [], []>} : vector<64x64xf32>, vector<64x64xf32>, vector<64x64xf32> -> vector<64x64xf32>
    %160 = arith.addf %155, %159 : vector<64x64xf32>
    %161 = vector.extract_strided_slice %138 {offsets = [9, 0], sizes = [64, 64], strides = [1, 1]} : vector<96x64xf32> to vector<64x64xf32>
    %c1_i32_72 = arith.constant 1 : i32
    %162 = vector.broadcast %c1_i32_72 : i32 to vector<64x1xi32>
    %163 = arith.addi %16, %162 : vector<64x1xi32>
    %c0_i32_73 = arith.constant 0 : i32
    %164 = vector.broadcast %c0_i32_73 : i32 to vector<64x1xi32>
    %165 = arith.cmpi sge, %163, %164 : vector<64x1xi32>
    %c7_i32_74 = arith.constant 7 : i32
    %166 = vector.broadcast %c7_i32_74 : i32 to vector<64x1xi32>
    %167 = arith.cmpi sle, %163, %166 : vector<64x1xi32>
    %168 = arith.andi %165, %167 : vector<64x1xi1>
    %cst_75 = arith.constant 0.000000e+00 : f32
    %169 = vector.shape_cast %168 : vector<64x1xi1> to vector<64x1xi1>
    %170 = vector.broadcast %169 : vector<64x1xi1> to vector<64x64xi1>
    %171 = vector.broadcast %cst_75 : f32 to vector<64x64xf32>
    %172 = arith.select %170, %161, %171 : vector<64x64xi1>, vector<64x64xf32>
    %c2_76 = arith.constant 2 : index
    %c0_77 = arith.constant 0 : index
    %c0_78 = arith.constant 0 : index
    %173 = vector.load %arg4[%c2_76, %c0_77, %c0_78] : memref<9x64x64xf32, #tpu.memory_space<vmem>>, vector<1x64x64xf32>
    %174 = vector.shape_cast %173 : vector<1x64x64xf32> to vector<64x64xf32>
    %cst_79 = arith.constant dense<0.000000e+00> : vector<64x64xf32>
    %175 = tpu.matmul %172, %174, %cst_79 {dimension_numbers = #tpu.dot_dimension_numbers<[1], [0], [0], [1], [0, 0, 1, 1], [], []>} : vector<64x64xf32>, vector<64x64xf32>, vector<64x64xf32> -> vector<64x64xf32>
    %176 = arith.addf %160, %175 : vector<64x64xf32>
    %177 = vector.extract_strided_slice %138 {offsets = [15, 0], sizes = [64, 64], strides = [1, 1]} : vector<96x64xf32> to vector<64x64xf32>
    %c-1_i32_80 = arith.constant -1 : i32
    %178 = vector.broadcast %c-1_i32_80 : i32 to vector<64x1xi32>
    %179 = arith.addi %16, %178 : vector<64x1xi32>
    %c0_i32_81 = arith.constant 0 : i32
    %180 = vector.broadcast %c0_i32_81 : i32 to vector<64x1xi32>
    %181 = arith.cmpi sge, %179, %180 : vector<64x1xi32>
    %c7_i32_82 = arith.constant 7 : i32
    %182 = vector.broadcast %c7_i32_82 : i32 to vector<64x1xi32>
    %183 = arith.cmpi sle, %179, %182 : vector<64x1xi32>
    %184 = arith.andi %181, %183 : vector<64x1xi1>
    %cst_83 = arith.constant 0.000000e+00 : f32
    %185 = vector.shape_cast %184 : vector<64x1xi1> to vector<64x1xi1>
    %186 = vector.broadcast %185 : vector<64x1xi1> to vector<64x64xi1>
    %187 = vector.broadcast %cst_83 : f32 to vector<64x64xf32>
    %188 = arith.select %186, %177, %187 : vector<64x64xi1>, vector<64x64xf32>
    %c3_84 = arith.constant 3 : index
    %c0_85 = arith.constant 0 : index
    %c0_86 = arith.constant 0 : index
    %189 = vector.load %arg4[%c3_84, %c0_85, %c0_86] : memref<9x64x64xf32, #tpu.memory_space<vmem>>, vector<1x64x64xf32>
    %190 = vector.shape_cast %189 : vector<1x64x64xf32> to vector<64x64xf32>
    %cst_87 = arith.constant dense<0.000000e+00> : vector<64x64xf32>
    %191 = tpu.matmul %188, %190, %cst_87 {dimension_numbers = #tpu.dot_dimension_numbers<[1], [0], [0], [1], [0, 0, 1, 1], [], []>} : vector<64x64xf32>, vector<64x64xf32>, vector<64x64xf32> -> vector<64x64xf32>
    %192 = arith.addf %176, %191 : vector<64x64xf32>
    %193 = vector.extract_strided_slice %138 {offsets = [16, 0], sizes = [64, 64], strides = [1, 1]} : vector<96x64xf32> to vector<64x64xf32>
    %c4_88 = arith.constant 4 : index
    %c0_89 = arith.constant 0 : index
    %c0_90 = arith.constant 0 : index
    %194 = vector.load %arg4[%c4_88, %c0_89, %c0_90] : memref<9x64x64xf32, #tpu.memory_space<vmem>>, vector<1x64x64xf32>
    %195 = vector.shape_cast %194 : vector<1x64x64xf32> to vector<64x64xf32>
    %cst_91 = arith.constant dense<0.000000e+00> : vector<64x64xf32>
    %196 = tpu.matmul %193, %195, %cst_91 {dimension_numbers = #tpu.dot_dimension_numbers<[1], [0], [0], [1], [0, 0, 1, 1], [], []>} : vector<64x64xf32>, vector<64x64xf32>, vector<64x64xf32> -> vector<64x64xf32>
    %197 = arith.addf %192, %196 : vector<64x64xf32>
    %198 = vector.extract_strided_slice %138 {offsets = [17, 0], sizes = [64, 64], strides = [1, 1]} : vector<96x64xf32> to vector<64x64xf32>
    %c1_i32_92 = arith.constant 1 : i32
    %199 = vector.broadcast %c1_i32_92 : i32 to vector<64x1xi32>
    %200 = arith.addi %16, %199 : vector<64x1xi32>
    %c0_i32_93 = arith.constant 0 : i32
    %201 = vector.broadcast %c0_i32_93 : i32 to vector<64x1xi32>
    %202 = arith.cmpi sge, %200, %201 : vector<64x1xi32>
    %c7_i32_94 = arith.constant 7 : i32
    %203 = vector.broadcast %c7_i32_94 : i32 to vector<64x1xi32>
    %204 = arith.cmpi sle, %200, %203 : vector<64x1xi32>
    %205 = arith.andi %202, %204 : vector<64x1xi1>
    %cst_95 = arith.constant 0.000000e+00 : f32
    %206 = vector.shape_cast %205 : vector<64x1xi1> to vector<64x1xi1>
    %207 = vector.broadcast %206 : vector<64x1xi1> to vector<64x64xi1>
    %208 = vector.broadcast %cst_95 : f32 to vector<64x64xf32>
    %209 = arith.select %207, %198, %208 : vector<64x64xi1>, vector<64x64xf32>
    %c5_96 = arith.constant 5 : index
    %c0_97 = arith.constant 0 : index
    %c0_98 = arith.constant 0 : index
    %210 = vector.load %arg4[%c5_96, %c0_97, %c0_98] : memref<9x64x64xf32, #tpu.memory_space<vmem>>, vector<1x64x64xf32>
    %211 = vector.shape_cast %210 : vector<1x64x64xf32> to vector<64x64xf32>
    %cst_99 = arith.constant dense<0.000000e+00> : vector<64x64xf32>
    %212 = tpu.matmul %209, %211, %cst_99 {dimension_numbers = #tpu.dot_dimension_numbers<[1], [0], [0], [1], [0, 0, 1, 1], [], []>} : vector<64x64xf32>, vector<64x64xf32>, vector<64x64xf32> -> vector<64x64xf32>
    %213 = arith.addf %197, %212 : vector<64x64xf32>
    %214 = vector.extract_strided_slice %138 {offsets = [23, 0], sizes = [64, 64], strides = [1, 1]} : vector<96x64xf32> to vector<64x64xf32>
    %c-1_i32_100 = arith.constant -1 : i32
    %215 = vector.broadcast %c-1_i32_100 : i32 to vector<64x1xi32>
    %216 = arith.addi %16, %215 : vector<64x1xi32>
    %c0_i32_101 = arith.constant 0 : i32
    %217 = vector.broadcast %c0_i32_101 : i32 to vector<64x1xi32>
    %218 = arith.cmpi sge, %216, %217 : vector<64x1xi32>
    %c7_i32_102 = arith.constant 7 : i32
    %219 = vector.broadcast %c7_i32_102 : i32 to vector<64x1xi32>
    %220 = arith.cmpi sle, %216, %219 : vector<64x1xi32>
    %221 = arith.andi %218, %220 : vector<64x1xi1>
    %cst_103 = arith.constant 0.000000e+00 : f32
    %222 = vector.shape_cast %221 : vector<64x1xi1> to vector<64x1xi1>
    %223 = vector.broadcast %222 : vector<64x1xi1> to vector<64x64xi1>
    %224 = vector.broadcast %cst_103 : f32 to vector<64x64xf32>
    %225 = arith.select %223, %214, %224 : vector<64x64xi1>, vector<64x64xf32>
    %c6_104 = arith.constant 6 : index
    %c0_105 = arith.constant 0 : index
    %c0_106 = arith.constant 0 : index
    %226 = vector.load %arg4[%c6_104, %c0_105, %c0_106] : memref<9x64x64xf32, #tpu.memory_space<vmem>>, vector<1x64x64xf32>
    %227 = vector.shape_cast %226 : vector<1x64x64xf32> to vector<64x64xf32>
    %cst_107 = arith.constant dense<0.000000e+00> : vector<64x64xf32>
    %228 = tpu.matmul %225, %227, %cst_107 {dimension_numbers = #tpu.dot_dimension_numbers<[1], [0], [0], [1], [0, 0, 1, 1], [], []>} : vector<64x64xf32>, vector<64x64xf32>, vector<64x64xf32> -> vector<64x64xf32>
    %229 = arith.addf %213, %228 : vector<64x64xf32>
    %230 = vector.extract_strided_slice %138 {offsets = [24, 0], sizes = [64, 64], strides = [1, 1]} : vector<96x64xf32> to vector<64x64xf32>
    %c7_108 = arith.constant 7 : index
    %c0_109 = arith.constant 0 : index
    %c0_110 = arith.constant 0 : index
    %231 = vector.load %arg4[%c7_108, %c0_109, %c0_110] : memref<9x64x64xf32, #tpu.memory_space<vmem>>, vector<1x64x64xf32>
    %232 = vector.shape_cast %231 : vector<1x64x64xf32> to vector<64x64xf32>
    %cst_111 = arith.constant dense<0.000000e+00> : vector<64x64xf32>
    %233 = tpu.matmul %230, %232, %cst_111 {dimension_numbers = #tpu.dot_dimension_numbers<[1], [0], [0], [1], [0, 0, 1, 1], [], []>} : vector<64x64xf32>, vector<64x64xf32>, vector<64x64xf32> -> vector<64x64xf32>
    %234 = arith.addf %229, %233 : vector<64x64xf32>
    %235 = vector.extract_strided_slice %138 {offsets = [25, 0], sizes = [64, 64], strides = [1, 1]} : vector<96x64xf32> to vector<64x64xf32>
    %c1_i32_112 = arith.constant 1 : i32
    %236 = vector.broadcast %c1_i32_112 : i32 to vector<64x1xi32>
    %237 = arith.addi %16, %236 : vector<64x1xi32>
    %c0_i32_113 = arith.constant 0 : i32
    %238 = vector.broadcast %c0_i32_113 : i32 to vector<64x1xi32>
    %239 = arith.cmpi sge, %237, %238 : vector<64x1xi32>
    %c7_i32_114 = arith.constant 7 : i32
    %240 = vector.broadcast %c7_i32_114 : i32 to vector<64x1xi32>
    %241 = arith.cmpi sle, %237, %240 : vector<64x1xi32>
    %242 = arith.andi %239, %241 : vector<64x1xi1>
    %cst_115 = arith.constant 0.000000e+00 : f32
    %243 = vector.shape_cast %242 : vector<64x1xi1> to vector<64x1xi1>
    %244 = vector.broadcast %243 : vector<64x1xi1> to vector<64x64xi1>
    %245 = vector.broadcast %cst_115 : f32 to vector<64x64xf32>
    %246 = arith.select %244, %235, %245 : vector<64x64xi1>, vector<64x64xf32>
    %c8_116 = arith.constant 8 : index
    %c0_117 = arith.constant 0 : index
    %c0_118 = arith.constant 0 : index
    %247 = vector.load %arg4[%c8_116, %c0_117, %c0_118] : memref<9x64x64xf32, #tpu.memory_space<vmem>>, vector<1x64x64xf32>
    %248 = vector.shape_cast %247 : vector<1x64x64xf32> to vector<64x64xf32>
    %cst_119 = arith.constant dense<0.000000e+00> : vector<64x64xf32>
    %249 = tpu.matmul %246, %248, %cst_119 {dimension_numbers = #tpu.dot_dimension_numbers<[1], [0], [0], [1], [0, 0, 1, 1], [], []>} : vector<64x64xf32>, vector<64x64xf32>, vector<64x64xf32> -> vector<64x64xf32>
    %250 = arith.addf %234, %249 : vector<64x64xf32>
    %c0_120 = arith.constant 0 : index
    %c0_121 = arith.constant 0 : index
    %251 = vector.load %arg5[%c0_120, %c0_121] : memref<1x64xf32, #tpu.memory_space<vmem>>, vector<1x64xf32>
    %252 = vector.broadcast %251 : vector<1x64xf32> to vector<64x64xf32>
    %253 = arith.addf %250, %252 : vector<64x64xf32>
    %cst_122 = arith.constant 0.000000e+00 : f32
    %254 = vector.broadcast %cst_122 : f32 to vector<64x64xf32>
    %255 = arith.maximumf %253, %254 : vector<64x64xf32>
    %c0_123 = arith.constant 0 : index
    %c0_124 = arith.constant 0 : index
    %256 = vector.load %arg6[%c0_123, %c0_124] : memref<64x64xf32, #tpu.memory_space<vmem>>, vector<64x64xf32>
    tpu.vector_store %arg6[%c0_123, %c0_124], %255 {strides = array<i32>} : memref<64x64xf32, #tpu.memory_space<vmem>>, vector<64x64xf32>,
    return
  }
  func.func @transform_0(%arg0: i32) -> (i32, i32) {
    %c0_i32 = arith.constant 0 : i32
    %c0_i32_0 = arith.constant 0 : i32
    return %arg0, %c0_i32 : i32, i32
  }
  func.func @transform_1(%arg0: i32) -> (i32, i32, i32) {
    %c0_i32 = arith.constant 0 : i32
    %c0_i32_0 = arith.constant 0 : i32
    %c0_i32_1 = arith.constant 0 : i32
    %c0_i32_2 = arith.constant 0 : i32
    return %c0_i32, %c0_i32_0, %c0_i32_1 : i32, i32, i32
  }
  func.func @transform_2(%arg0: i32) -> (i32, i32) {
    %c0_i32 = arith.constant 0 : i32
    %c0_i32_0 = arith.constant 0 : i32
    %c0_i32_1 = arith.constant 0 : i32
    return %c0_i32, %c0_i32_0 : i32, i32
  }
  func.func @transform_3(%arg0: i32) -> (i32, i32, i32) {
    %c0_i32 = arith.constant 0 : i32
    %c0_i32_0 = arith.constant 0 : i32
    %c0_i32_1 = arith.constant 0 : i32
    %c0_i32_2 = arith.constant 0 : i32
    return %c0_i32, %c0_i32_0, %c0_i32_1 : i32, i32, i32
  }
  func.func @transform_4(%arg0: i32) -> (i32, i32) {
    %c0_i32 = arith.constant 0 : i32
    %c0_i32_0 = arith.constant 0 : i32
    %c0_i32_1 = arith.constant 0 : i32
    return %c0_i32, %c0_i32_0 : i32, i32
  }
  func.func @transform_5(%arg0: i32) -> (i32, i32) {
    %c0_i32 = arith.constant 0 : i32
    %c0_i32_0 = arith.constant 0 : i32
    return %arg0, %c0_i32 : i32, i32
  }
}

module attributes {stable_mosaic.version = 11 : i64} {
  func.func @_fc_head_kernel(%arg0: i32, %arg1: memref<8x4096xf32, #tpu.memory_space<vmem>>, %arg2: memref<4096x128xf32, #tpu.memory_space<vmem>>, %arg3: memref<1x128xf32, #tpu.memory_space<vmem>>, %arg4: memref<128x128xf32, #tpu.memory_space<vmem>>, %arg5: memref<1x128xf32, #tpu.memory_space<vmem>>, %arg6: memref<128x128xf32, #tpu.memory_space<vmem>>, %arg7: memref<1x128xf32, #tpu.memory_space<vmem>>, %arg8: memref<8x128xf32, #tpu.memory_space<vmem>>) attributes {dimension_semantics = [#tpu.dimension_semantics<arbitrary>], iteration_bounds = array<i64: 1>, scalar_prefetch = 0 : i64, scratch_operands = 0 : i64, tpu.core_type = #tpu.core_type<tc>, window_params = [{pipeline_mode = #tpu.pipeline_mode<synchronous>, transform_indices = @transform_0, window_bounds = array<i64: 8, 4096>}, {pipeline_mode = #tpu.pipeline_mode<synchronous>, transform_indices = @transform_1, window_bounds = array<i64: 4096, 128>}, {pipeline_mode = #tpu.pipeline_mode<synchronous>, transform_indices = @transform_2, window_bounds = array<i64: 1, 128>}, {pipeline_mode = #tpu.pipeline_mode<synchronous>, transform_indices = @transform_3, window_bounds = array<i64: 128, 128>}, {pipeline_mode = #tpu.pipeline_mode<synchronous>, transform_indices = @transform_4, window_bounds = array<i64: 1, 128>}, {pipeline_mode = #tpu.pipeline_mode<synchronous>, transform_indices = @transform_5, window_bounds = array<i64: 128, 128>}, {pipeline_mode = #tpu.pipeline_mode<synchronous>, transform_indices = @transform_6, window_bounds = array<i64: 1, 128>}, {pipeline_mode = #tpu.pipeline_mode<synchronous>, transform_indices = @transform_7, window_bounds = array<i64: 8, 128>}]} {
    %c0 = arith.constant 0 : index
    %c0_0 = arith.constant 0 : index
    %0 = vector.load %arg1[%c0, %c0_0] : memref<8x4096xf32, #tpu.memory_space<vmem>>, vector<8x4096xf32>
    %c0_1 = arith.constant 0 : index
    %c0_2 = arith.constant 0 : index
    %1 = vector.load %arg2[%c0_1, %c0_2] : memref<4096x128xf32, #tpu.memory_space<vmem>>, vector<4096x128xf32>
    %cst = arith.constant dense<0.000000e+00> : vector<8x128xf32>
    %2 = tpu.matmul %0, %1, %cst {dimension_numbers = #tpu.dot_dimension_numbers<[1], [0], [0], [1], [0, 0, 1, 1], [], []>} : vector<8x4096xf32>, vector<4096x128xf32>, vector<8x128xf32> -> vector<8x128xf32>
    %c0_3 = arith.constant 0 : index
    %c0_4 = arith.constant 0 : index
    %3 = vector.load %arg3[%c0_3, %c0_4] : memref<1x128xf32, #tpu.memory_space<vmem>>, vector<1x128xf32>
    %4 = vector.broadcast %3 : vector<1x128xf32> to vector<8x128xf32>
    %5 = arith.addf %2, %4 : vector<8x128xf32>
    %cst_5 = arith.constant 0.000000e+00 : f32
    %6 = vector.broadcast %cst_5 : f32 to vector<8x128xf32>
    %7 = arith.maximumf %5, %6 : vector<8x128xf32>
    %c0_6 = arith.constant 0 : index
    %c0_7 = arith.constant 0 : index
    %8 = vector.load %arg4[%c0_6, %c0_7] : memref<128x128xf32, #tpu.memory_space<vmem>>, vector<128x128xf32>
    %cst_8 = arith.constant dense<0.000000e+00> : vector<8x128xf32>
    %9 = tpu.matmul %7, %8, %cst_8 {dimension_numbers = #tpu.dot_dimension_numbers<[1], [0], [0], [1], [0, 0, 1, 1], [], []>} : vector<8x128xf32>, vector<128x128xf32>, vector<8x128xf32> -> vector<8x128xf32>
    %c0_9 = arith.constant 0 : index
    %c0_10 = arith.constant 0 : index
    %10 = vector.load %arg5[%c0_9, %c0_10] : memref<1x128xf32, #tpu.memory_space<vmem>>, vector<1x128xf32>
    %11 = vector.broadcast %10 : vector<1x128xf32> to vector<8x128xf32>
    %12 = arith.addf %9, %11 : vector<8x128xf32>
    %cst_11 = arith.constant 0.000000e+00 : f32
    %13 = vector.broadcast %cst_11 : f32 to vector<8x128xf32>
    %14 = arith.maximumf %12, %13 : vector<8x128xf32>
    %c0_12 = arith.constant 0 : index
    %c0_13 = arith.constant 0 : index
    %15 = vector.load %arg6[%c0_12, %c0_13] : memref<128x128xf32, #tpu.memory_space<vmem>>, vector<128x128xf32>
    %cst_14 = arith.constant dense<0.000000e+00> : vector<8x128xf32>
    %16 = tpu.matmul %14, %15, %cst_14 {dimension_numbers = #tpu.dot_dimension_numbers<[1], [0], [0], [1], [0, 0, 1, 1], [], []>} : vector<8x128xf32>, vector<128x128xf32>, vector<8x128xf32> -> vector<8x128xf32>
    %c0_15 = arith.constant 0 : index
    %c0_16 = arith.constant 0 : index
    %17 = vector.load %arg7[%c0_15, %c0_16] : memref<1x128xf32, #tpu.memory_space<vmem>>, vector<1x128xf32>
    %18 = vector.broadcast %17 : vector<1x128xf32> to vector<8x128xf32>
    %19 = arith.addf %16, %18 : vector<8x128xf32>
    %c0_17 = arith.constant 0 : index
    %c0_18 = arith.constant 0 : index
    %20 = vector.load %arg8[%c0_17, %c0_18] : memref<8x128xf32, #tpu.memory_space<vmem>>, vector<8x128xf32>
    tpu.vector_store %arg8[%c0_17, %c0_18], %19 {strides = array<i32>} : memref<8x128xf32, #tpu.memory_space<vmem>>, vector<8x128xf32>,
    return
  }
  func.func @transform_0(%arg0: i32) -> (i32, i32) {
    %c0_i32 = arith.constant 0 : i32
    %c0_i32_0 = arith.constant 0 : i32
    %c0_i32_1 = arith.constant 0 : i32
    return %c0_i32, %c0_i32_0 : i32, i32
  }
  func.func @transform_1(%arg0: i32) -> (i32, i32) {
    %c0_i32 = arith.constant 0 : i32
    %c0_i32_0 = arith.constant 0 : i32
    %c0_i32_1 = arith.constant 0 : i32
    return %c0_i32, %c0_i32_0 : i32, i32
  }
  func.func @transform_2(%arg0: i32) -> (i32, i32) {
    %c0_i32 = arith.constant 0 : i32
    %c0_i32_0 = arith.constant 0 : i32
    %c0_i32_1 = arith.constant 0 : i32
    return %c0_i32, %c0_i32_0 : i32, i32
  }
  func.func @transform_3(%arg0: i32) -> (i32, i32) {
    %c0_i32 = arith.constant 0 : i32
    %c0_i32_0 = arith.constant 0 : i32
    %c0_i32_1 = arith.constant 0 : i32
    return %c0_i32, %c0_i32_0 : i32, i32
  }
  func.func @transform_4(%arg0: i32) -> (i32, i32) {
    %c0_i32 = arith.constant 0 : i32
    %c0_i32_0 = arith.constant 0 : i32
    %c0_i32_1 = arith.constant 0 : i32
    return %c0_i32, %c0_i32_0 : i32, i32
  }
  func.func @transform_5(%arg0: i32) -> (i32, i32) {
    %c0_i32 = arith.constant 0 : i32
    %c0_i32_0 = arith.constant 0 : i32
    %c0_i32_1 = arith.constant 0 : i32
    return %c0_i32, %c0_i32_0 : i32, i32
  }
  func.func @transform_6(%arg0: i32) -> (i32, i32) {
    %c0_i32 = arith.constant 0 : i32
    %c0_i32_0 = arith.constant 0 : i32
    %c0_i32_1 = arith.constant 0 : i32
    return %c0_i32, %c0_i32_0 : i32, i32
  }
  func.func @transform_7(%arg0: i32) -> (i32, i32) {
    %c0_i32 = arith.constant 0 : i32
    %c0_i32_0 = arith.constant 0 : i32
    %c0_i32_1 = arith.constant 0 : i32
    return %c0_i32, %c0_i32_0 : i32, i32
  }
}

</mosaic_0001>

<llo_original>
// kernel: pilotnet_forward.5
$region0: #{pilotnet_forward.5}
  #allocation0 [shape = 'u32[]', space=smem, size = 0x4, offset = 0x4, fixed_abs, tag = 'smem constant byte address 0x4 - core index']
  #allocation1 [shape = 'u32[144,128]{1,0:T(1,128)}', space=vmem, size = 0x12000, scoped, tag = 'internal scratch']
  %s0 = inlined_call_operand.vmem [shape: f32[2048,80], index: 0, kind: input, shape index: {}]
  %s1 = inlined_call_operand.vmem [shape: f32[80,128], index: 1, kind: input, shape index: {}]
  %s2 = inlined_call_operand.vmem [shape: f32[1,128], index: 2, kind: input, shape index: {}]
  %s3 = inlined_call_operand.vmem [shape: f32[2048,128], index: 3, kind: output, shape index: {}]
  %s4 = sld [smem:[#allocation0]]
  $region22: #{pilotnet_forward.5} parent=0
    _
  %s6 = ssub.s32 1, %s4
  %s7 = scalar_select 0, %s6, %s4
  // Predicated region
  $region2: #{pilotnet_forward.5} parent=0 // pred_check
    _
  $region3: #{pilotnet_forward.5} parent=0 // pred_check_branch
    %9 = sbr.rel (0) target = $region5
  $region4: #{pilotnet_forward.5} parent=0 // pred_region
    _
  $region5: #{pilotnet_forward.5} parent=0 // pred_fallthru
    _
  // Predicated region
  $region6: #{pilotnet_forward.5} parent=0 // pred_check
    _
  $region7: #{pilotnet_forward.5} parent=0 // pred_check_branch
    %11 = sbr.rel (0) target = $region9
  $region8: #{pilotnet_forward.5} parent=0 // pred_region
    _
  $region9: #{pilotnet_forward.5} parent=0 // pred_fallthru
    _
  // Predicated region
  $region10: #{pilotnet_forward.5} parent=0 // pred_check
    _
  $region11: #{pilotnet_forward.5} parent=0 // pred_check_branch
    %13 = sbr.rel (0) target = $region13
  $region12: #{pilotnet_forward.5} parent=0 // pred_region
    _
  $region13: #{pilotnet_forward.5} parent=0 // pred_fallthru
    _
  %v14 = vld [vmem:[%s0] sm:$0xff]
  %v15 = vld [vmem:[%s0 + $0x8] sm:$0xff]
  %v16 = vld [vmem:[%s0 + $0x10] sm:$0xff]
  %v17 = vld [vmem:[%s0 + $0x18] sm:$0xff]
  %v18 = vld [vmem:[%s0 + $0x20] sm:$0xff]
  %v19 = vld [vmem:[%s0 + $0x28] sm:$0xff]
  %v20 = vld [vmem:[%s0 + $0x30] sm:$0xff]
  %v21 = vld [vmem:[%s0 + $0x38] sm:$0xff]
  %v22 = vld [vmem:[%s0 + $0x40] sm:$0xff]
  %v23 = vld [vmem:[%s0 + $0x48] sm:$0xff]
  %v24 = vld [vmem:[%s0 + $0x50] sm:$0xff]
  %v25 = vld [vmem:[%s0 + $0x58] sm:$0xff]
  %v26 = vld [vmem:[%s0 + $0x60] sm:$0xff]
  %v27 = vld [vmem:[%s0 + $0x68] sm:$0xff]
  %v28 = vld [vmem:[%s0 + $0x70] sm:$0xff]
  %v29 = vld [vmem:[%s0 + $0x78] sm:$0xff]
  %v30 = vld [vmem:[%s0 + $0x80] sm:$0xff]
  %v31 = vld [vmem:[%s0 + $0x88] sm:$0xff]
  %v32 = vld [vmem:[%s0 + $0x90] sm:$0xff]
  %v33 = vld [vmem:[%s0 + $0x98] sm:$0xff]
  %v34 = vld [vmem:[%s0 + $0xa0] sm:$0xff]
  %v35 = vld [vmem:[%s0 + $0xa8] sm:$0xff]
  %v36 = vld [vmem:[%s0 + $0xb0] sm:$0xff]
  %v37 = vld [vmem:[%s0 + $0xb8] sm:$0xff]
  %v38 = vld [vmem:[%s0 + $0xc0] sm:$0xff]
  %v39 = vld [vmem:[%s0 + $0xc8] sm:$0xff]
  %v40 = vld [vmem:[%s0 + $0xd0] sm:$0xff]
  %v41 = vld [vmem:[%s0 + $0xd8] sm:$0xff]
  %v42 = vld [vmem:[%s0 + $0xe0] sm:$0xff]
  %v43 = vld [vmem:[%s0 + $0xe8] sm:$0xff]
  %v44 = vld [vmem:[%s0 + $0xf0] sm:$0xff]
  %v45 = vld [vmem:[%s0 + $0xf8] sm:$0xff]
  %v46 = vld [vmem:[%s0 + $0x100] sm:$0xff]
  %v47 = vld [vmem:[%s0 + $0x108] sm:$0xff]
  %v48 = vld [vmem:[%s0 + $0x110] sm:$0xff]
  %v49 = vld [vmem:[%s0 + $0x118] sm:$0xff]
  %v50 = vld [vmem:[%s0 + $0x120] sm:$0xff]
  %v51 = vld [vmem:[%s0 + $0x128] sm:$0xff]
  %v52 = vld [vmem:[%s0 + $0x130] sm:$0xff]
  %v53 = vld [vmem:[%s0 + $0x138] sm:$0xff]
  %v54 = vld [vmem:[%s0 + $0x140] sm:$0xff]
  %v55 = vld [vmem:[%s0 + $0x148] sm:$0xff]
  %v56 = vld [vmem:[%s0 + $0x150] sm:$0xff]
  %v57 = vld [vmem:[%s0 + $0x158] sm:$0xff]
  %v58 = vld [vmem:[%s0 + $0x160] sm:$0xff]
  %v59 = vld [vmem:[%s0 + $0x168] sm:$0xff]
  %v60 = vld [vmem:[%s0 + $0x170] sm:$0xff]
  %v61 = vld [vmem:[%s0 + $0x178] sm:$0xff]
  %v62 = vld [vmem:[%s0 + $0x180] sm:$0xff]
  %v63 = vld [vmem:[%s0 + $0x188] sm:$0xff]
  %v64 = vld [vmem:[%s0 + $0x190] sm:$0xff]
  %v65 = vld [vmem:[%s0 + $0x198] sm:$0xff]
  %v66 = vld [vmem:[%s0 + $0x1a0] sm:$0xff]
  %v67 = vld [vmem:[%s0 + $0x1a8] sm:$0xff]
  %v68 = vld [vmem:[%s0 + $0x1b0] sm:$0xff]
  %v69 = vld [vmem:[%s0 + $0x1b8] sm:$0xff]
  %v70 = vld [vmem:[%s0 + $0x1c0] sm:$0xff]
  %v71 = vld [vmem:[%s0 + $0x1c8] sm:$0xff]
  %v72 = vld [vmem:[%s0 + $0x1d0] sm:$0xff]
  %v73 = vld [vmem:[%s0 + $0x1d8] sm:$0xff]
  %v74 = vld [vmem:[%s0 + $0x1e0] sm:$0xff]
  %v75 = vld [vmem:[%s0 + $0x1e8] sm:$0xff]
  %v76 = vld [vmem:[%s0 + $0x1f0] sm:$0xff]
  %v77 = vld [vmem:[%s0 + $0x1f8] sm:$0xff]
  %v78 = vld [vmem:[%s0 + $0x200] sm:$0xff]
  %v79 = vld [vmem:[%s0 + $0x208] sm:$0xff]
  %v80 = vld [vmem:[%s0 + $0x210] sm:$0xff]
  %v81 = vld [vmem:[%s0 + $0x218] sm:$0xff]
  %v82 = vld [vmem:[%s0 + $0x220] sm:$0xff]
  %v83 = vld [vmem:[%s0 + $0x228] sm:$0xff]
  %v84 = vld [vmem:[%s0 + $0x230] sm:$0xff]
  %v85 = vld [vmem:[%s0 + $0x238] sm:$0xff]
  %v86 = vld [vmem:[%s0 + $0x240] sm:$0xff]
  %v87 = vld [vmem:[%s0 + $0x248] sm:$0xff]
  %v88 = vld [vmem:[%s0 + $0x250] sm:$0xff]
  %v89 = vld [vmem:[%s0 + $0x258] sm:$0xff]
  %v90 = vld [vmem:[%s0 + $0x260] sm:$0xff]
  %v91 = vld [vmem:[%s0 + $0x268] sm:$0xff]
  %v92 = vld [vmem:[%s0 + $0x270] sm:$0xff]
  %v93 = vld [vmem:[%s0 + $0x278] sm:$0xff]
  %v94 = vld [vmem:[%s0 + $0x280] sm:$0xff]
  %v95 = vld [vmem:[%s0 + $0x288] sm:$0xff]
  %v96 = vld [vmem:[%s0 + $0x290] sm:$0xff]
  %v97 = vld [vmem:[%s0 + $0x298] sm:$0xff]
  %v98 = vld [vmem:[%s0 + $0x2a0] sm:$0xff]
  %v99 = vld [vmem:[%s0 + $0x2a8] sm:$0xff]
  %v100 = vld [vmem:[%s0 + $0x2b0] sm:$0xff]
  %v101 = vld [vmem:[%s0 + $0x2b8] sm:$0xff]
  %v102 = vld [vmem:[%s0 + $0x2c0] sm:$0xff]
  %v103 = vld [vmem:[%s0 + $0x2c8] sm:$0xff]
  %v104 = vld [vmem:[%s0 + $0x2d0] sm:$0xff]
  %v105 = vld [vmem:[%s0 + $0x2d8] sm:$0xff]
  %v106 = vld [vmem:[%s0 + $0x2e0] sm:$0xff]
  %v107 = vld [vmem:[%s0 + $0x2e8] sm:$0xff]
  %v108 = vld [vmem:[%s0 + $0x2f0] sm:$0xff]
  %v109 = vld [vmem:[%s0 + $0x2f8] sm:$0xff]
  %v110 = vld [vmem:[%s0 + $0x300] sm:$0xff]
  %v111 = vld [vmem:[%s0 + $0x308] sm:$0xff]
  %v112 = vld [vmem:[%s0 + $0x310] sm:$0xff]
  %v113 = vld [vmem:[%s0 + $0x318] sm:$0xff]
  %v114 = vld [vmem:[%s0 + $0x320] sm:$0xff]
  %v115 = vld [vmem:[%s0 + $0x328] sm:$0xff]
  %v116 = vld [vmem:[%s0 + $0x330] sm:$0xff]
  %v117 = vld [vmem:[%s0 + $0x338] sm:$0xff]
  %v118 = vld [vmem:[%s0 + $0x340] sm:$0xff]
  %v119 = vld [vmem:[%s0 + $0x348] sm:$0xff]
  %v120 = vld [vmem:[%s0 + $0x350] sm:$0xff]
  %v121 = vld [vmem:[%s0 + $0x358] sm:$0xff]
  %v122 = vld [vmem:[%s0 + $0x360] sm:$0xff]
  %v123 = vld [vmem:[%s0 + $0x368] sm:$0xff]
  %v124 = vld [vmem:[%s0 + $0x370] sm:$0xff]
  %v125 = vld [vmem:[%s0 + $0x378] sm:$0xff]
  %v126 = vld [vmem:[%s0 + $0x380] sm:$0xff]
  %v127 = vld [vmem:[%s0 + $0x388] sm:$0xff]
  %v128 = vld [vmem:[%s0 + $0x390] sm:$0xff]
  %v129 = vld [vmem:[%s0 + $0x398] sm:$0xff]
  %v130 = vld [vmem:[%s0 + $0x3a0] sm:$0xff]
  %v131 = vld [vmem:[%s0 + $0x3a8] sm:$0xff]
  %v132 = vld [vmem:[%s0 + $0x3b0] sm:$0xff]
  %v133 = vld [vmem:[%s0 + $0x3b8] sm:$0xff]
  %v134 = vld [vmem:[%s0 + $0x3c0] sm:$0xff]
  %v135 = vld [vmem:[%s0 + $0x3c8] sm:$0xff]
  %v136 = vld [vmem:[%s0 + $0x3d0] sm:$0xff]
  %v137 = vld [vmem:[%s0 + $0x3d8] sm:$0xff]
  %v138 = vld [vmem:[%s0 + $0x3e0] sm:$0xff]
  %v139 = vld [vmem:[%s0 + $0x3e8] sm:$0xff]
  %v140 = vld [vmem:[%s0 + $0x3f0] sm:$0xff]
  %v141 = vld [vmem:[%s0 + $0x3f8] sm:$0xff]
  %v142 = vld [vmem:[%s0 + $0x400] sm:$0xff]
  %v143 = vld [vmem:[%s0 + $0x408] sm:$0xff]
  %v144 = vld [vmem:[%s0 + $0x410] sm:$0xff]
  %v145 = vld [vmem:[%s0 + $0x418] sm:$0xff]
  %v146 = vld [vmem:[%s0 + $0x420] sm:$0xff]
  %v147 = vld [vmem:[%s0 + $0x428] sm:$0xff]
  %v148 = vld [vmem:[%s0 + $0x430] sm:$0xff]
  %v149 = vld [vmem:[%s0 + $0x438] sm:$0xff]
  %v150 = vld [vmem:[%s0 + $0x440] sm:$0xff]
  %v151 = vld [vmem:[%s0 + $0x448] sm:$0xff]
  %v152 = vld [vmem:[%s0 + $0x450] sm:$0xff]
  %v153 = vld [vmem:[%s0 + $0x458] sm:$0xff]
  %v154 = vld [vmem:[%s0 + $0x460] sm:$0xff]
  %v155 = vld [vmem:[%s0 + $0x468] sm:$0xff]
  %v156 = vld [vmem:[%s0 + $0x470] sm:$0xff]
  %v157 = vld [vmem:[%s0 + $0x478] sm:$0xff]
  %v158 = vld [vmem:[%s0 + $0x480] sm:$0xff]
  %v159 = vld [vmem:[%s0 + $0x488] sm:$0xff]
  %v160 = vld [vmem:[%s0 + $0x490] sm:$0xff]
  %v161 = vld [vmem:[%s0 + $0x498] sm:$0xff]
  %v162 = vld [vmem:[%s0 + $0x4a0] sm:$0xff]
  %v163 = vld [vmem:[%s0 + $0x4a8] sm:$0xff]
  %v164 = vld [vmem:[%s0 + $0x4b0] sm:$0xff]
  %v165 = vld [vmem:[%s0 + $0x4b8] sm:$0xff]
  %v166 = vld [vmem:[%s0 + $0x4c0] sm:$0xff]
  %v167 = vld [vmem:[%s0 + $0x4c8] sm:$0xff]
  %v168 = vld [vmem:[%s0 + $0x4d0] sm:$0xff]
  %v169 = vld [vmem:[%s0 + $0x4d8] sm:$0xff]
  %v170 = vld [vmem:[%s0 + $0x4e0] sm:$0xff]
  %v171 = vld [vmem:[%s0 + $0x4e8] sm:$0xff]
  %v172 = vld [vmem:[%s0 + $0x4f0] sm:$0xff]
  %v173 = vld [vmem:[%s0 + $0x4f8] sm:$0xff]
  %v174 = vld [vmem:[%s0 + $0x500] sm:$0xff]
  %v175 = vld [vmem:[%s0 + $0x508] sm:$0xff]
  %v176 = vld [vmem:[%s0 + $0x510] sm:$0xff]
  %v177 = vld [vmem:[%s0 + $0x518] sm:$0xff]
  %v178 = vld [vmem:[%s0 + $0x520] sm:$0xff]
  %v179 = vld [vmem:[%s0 + $0x528] sm:$0xff]
  %v180 = vld [vmem:[%s0 + $0x530] sm:$0xff]
  %v181 = vld [vmem:[%s0 + $0x538] sm:$0xff]
  %v182 = vld [vmem:[%s0 + $0x540] sm:$0xff]
  %v183 = vld [vmem:[%s0 + $0x548] sm:$0xff]
  %v184 = vld [vmem:[%s0 + $0x550] sm:$0xff]
  %v185 = vld [vmem:[%s0 + $0x558] sm:$0xff]
  %v186 = vld [vmem:[%s0 + $0x560] sm:$0xff]
  %v187 = vld [vmem:[%s0 + $0x568] sm:$0xff]
  %v188 = vld [vmem:[%s0 + $0x570] sm:$0xff]
  %v189 = vld [vmem:[%s0 + $0x578] sm:$0xff]
  %v190 = vld [vmem:[%s0 + $0x580] sm:$0xff]
  %v191 = vld [vmem:[%s0 + $0x588] sm:$0xff]
  %v192 = vld [vmem:[%s0 + $0x590] sm:$0xff]
  %v193 = vld [vmem:[%s0 + $0x598] sm:$0xff]
  %v194 = vld [vmem:[%s0 + $0x5a0] sm:$0xff]
  %v195 = vld [vmem:[%s0 + $0x5a8] sm:$0xff]
  %v196 = vld [vmem:[%s0 + $0x5b0] sm:$0xff]
  %v197 = vld [vmem:[%s0 + $0x5b8] sm:$0xff]
  %v198 = vld [vmem:[%s0 + $0x5c0] sm:$0xff]
  %v199 = vld [vmem:[%s0 + $0x5c8] sm:$0xff]
  %v200 = vld [vmem:[%s0 + $0x5d0] sm:$0xff]
  %v201 = vld [vmem:[%s0 + $0x5d8] sm:$0xff]
  %v202 = vld [vmem:[%s0 + $0x5e0] sm:$0xff]
  %v203 = vld [vmem:[%s0 + $0x5e8] sm:$0xff]
  %v204 = vld [vmem:[%s0 + $0x5f0] sm:$0xff]
  %v205 = vld [vmem:[%s0 + $0x5f8] sm:$0xff]
  %v206 = vld [vmem:[%s0 + $0x600] sm:$0xff]
  %v207 = vld [vmem:[%s0 + $0x608] sm:$0xff]
  %v208 = vld [vmem:[%s0 + $0x610] sm:$0xff]
  %v209 = vld [vmem:[%s0 + $0x618] sm:$0xff]
  %v210 = vld [vmem:[%s0 + $0x620] sm:$0xff]
  %v211 = vld [vmem:[%s0 + $0x628] sm:$0xff]
  %v212 = vld [vmem:[%s0 + $0x630] sm:$0xff]
  %v213 = vld [vmem:[%s0 + $0x638] sm:$0xff]
  %v214 = vld [vmem:[%s0 + $0x640] sm:$0xff]
  %v215 = vld [vmem:[%s0 + $0x648] sm:$0xff]
  %v216 = vld [vmem:[%s0 + $0x650] sm:$0xff]
  %v217 = vld [vmem:[%s0 + $0x658] sm:$0xff]
  %v218 = vld [vmem:[%s0 + $0x660] sm:$0xff]
  %v219 = vld [vmem:[%s0 + $0x668] sm:$0xff]
  %v220 = vld [vmem:[%s0 + $0x670] sm:$0xff]
  %v221 = vld [vmem:[%s0 + $0x678] sm:$0xff]
  %v222 = vld [vmem:[%s0 + $0x680] sm:$0xff]
  %v223 = vld [vmem:[%s0 + $0x688] sm:$0xff]
  %v224 = vld [vmem:[%s0 + $0x690] sm:$0xff]
  %v225 = vld [vmem:[%s0 + $0x698] sm:$0xff]
  %v226 = vld [vmem:[%s0 + $0x6a0] sm:$0xff]
  %v227 = vld [vmem:[%s0 + $0x6a8] sm:$0xff]
  %v228 = vld [vmem:[%s0 + $0x6b0] sm:$0xff]
  %v229 = vld [vmem:[%s0 + $0x6b8] sm:$0xff]
  %v230 = vld [vmem:[%s0 + $0x6c0] sm:$0xff]
  %v231 = vld [vmem:[%s0 + $0x6c8] sm:$0xff]
  %v232 = vld [vmem:[%s0 + $0x6d0] sm:$0xff]
  %v233 = vld [vmem:[%s0 + $0x6d8] sm:$0xff]
  %v234 = vld [vmem:[%s0 + $0x6e0] sm:$0xff]
  %v235 = vld [vmem:[%s0 + $0x6e8] sm:$0xff]
  %v236 = vld [vmem:[%s0 + $0x6f0] sm:$0xff]
  %v237 = vld [vmem:[%s0 + $0x6f8] sm:$0xff]
  %v238 = vld [vmem:[%s0 + $0x700] sm:$0xff]
  %v239 = vld [vmem:[%s0 + $0x708] sm:$0xff]
  %v240 = vld [vmem:[%s0 + $0x710] sm:$0xff]
  %v241 = vld [vmem:[%s0 + $0x718] sm:$0xff]
  %v242 = vld [vmem:[%s0 + $0x720] sm:$0xff]
  %v243 = vld [vmem:[%s0 + $0x728] sm:$0xff]
  %v244 = vld [vmem:[%s0 + $0x730] sm:$0xff]
  %v245 = vld [vmem:[%s0 + $0x738] sm:$0xff]
  %v246 = vld [vmem:[%s0 + $0x740] sm:$0xff]
  %v247 = vld [vmem:[%s0 + $0x748] sm:$0xff]
  %v248 = vld [vmem:[%s0 + $0x750] sm:$0xff]
  %v249 = vld [vmem:[%s0 + $0x758] sm:$0xff]
  %v250 = vld [vmem:[%s0 + $0x760] sm:$0xff]
  %v251 = vld [vmem:[%s0 + $0x768] sm:$0xff]
  %v252 = vld [vmem:[%s0 + $0x770] sm:$0xff]
  %v253 = vld [vmem:[%s0 + $0x778] sm:$0xff]
  %v254 = vld [vmem:[%s0 + $0x780] sm:$0xff]
  %v255 = vld [vmem:[%s0 + $0x788] sm:$0xff]
  %v256 = vld [vmem:[%s0 + $0x790] sm:$0xff]
  %v257 = vld [vmem:[%s0 + $0x798] sm:$0xff]
  %v258 = vld [vmem:[%s0 + $0x7a0] sm:$0xff]
  %v259 = vld [vmem:[%s0 + $0x7a8] sm:$0xff]
  %v260 = vld [vmem:[%s0 + $0x7b0] sm:$0xff]
  %v261 = vld [vmem:[%s0 + $0x7b8] sm:$0xff]
  %v262 = vld [vmem:[%s0 + $0x7c0] sm:$0xff]
  %v263 = vld [vmem:[%s0 + $0x7c8] sm:$0xff]
  %v264 = vld [vmem:[%s0 + $0x7d0] sm:$0xff]
  %v265 = vld [vmem:[%s0 + $0x7d8] sm:$0xff]
  %v266 = vld [vmem:[%s0 + $0x7e0] sm:$0xff]
  %v267 = vld [vmem:[%s0 + $0x7e8] sm:$0xff]
  %v268 = vld [vmem:[%s0 + $0x7f0] sm:$0xff]
  %v269 = vld [vmem:[%s0 + $0x7f8] sm:$0xff]
  %v270 = vld [vmem:[%s1] sm:$0xff]
  %v271 = vld [vmem:[%s1 + $0x8] sm:$0xff]
  %v272 = vld [vmem:[%s1 + $0x10] sm:$0xff]
  %v273 = vld [vmem:[%s1 + $0x18] sm:$0xff]
  %v274 = vld [vmem:[%s1 + $0x20] sm:$0xff]
  %v275 = vld [vmem:[%s1 + $0x28] sm:$0xff]
  %v276 = vld [vmem:[%s1 + $0x30] sm:$0xff]
  %v277 = vld [vmem:[%s1 + $0x38] sm:$0xff]
  %v278 = vld [vmem:[%s1 + $0x40] sm:$0xff]
  %v279 = vld [vmem:[%s1 + $0x48] sm:$0xff]
  %v280 = vld [vmem:[%s2] sm:$0x1]
  %v282 = vlaneseq
  %v283 = vshrl.u32 %v282, 7
  %v284 = vsub.s32 0, %v283
  %v285 = vrot.slane %v280, %v284
  %vm287 = vcmask 654336
  %v289 = vsel %vm287, %v14, 0
  %v292 = vsel %vm287, %v15, 0
  %v295 = vsel %vm287, %v16, 0
  %v298 = vsel %vm287, %v17, 0
  %v301 = vsel %vm287, %v18, 0
  %v304 = vsel %vm287, %v19, 0
  %v307 = vsel %vm287, %v20, 0
  %v310 = vsel %vm287, %v21, 0
  %v313 = vsel %vm287, %v22, 0
  %v316 = vsel %vm287, %v23, 0
  %v319 = vsel %vm287, %v24, 0
  %v322 = vsel %vm287, %v25, 0
  %v325 = vsel %vm287, %v26, 0
  %v328 = vsel %vm287, %v27, 0
  %v331 = vsel %vm287, %v28, 0
  %v334 = vsel %vm287, %v29, 0
  %v337 = vsel %vm287, %v30, 0
  %v340 = vsel %vm287, %v31, 0
  %v343 = vsel %vm287, %v32, 0
  %v346 = vsel %vm287, %v33, 0
  %v349 = vsel %vm287, %v34, 0
  %v352 = vsel %vm287, %v35, 0
  %v355 = vsel %vm287, %v36, 0
  %v358 = vsel %vm287, %v37, 0
  %v361 = vsel %vm287, %v38, 0
  %v364 = vsel %vm287, %v39, 0
  %v367 = vsel %vm287, %v40, 0
  %v370 = vsel %vm287, %v41, 0
  %v373 = vsel %vm287, %v42, 0
  %v376 = vsel %vm287, %v43, 0
  %v379 = vsel %vm287, %v44, 0
  %v382 = vsel %vm287, %v45, 0
  %v385 = vsel %vm287, %v46, 0
  %v388 = vsel %vm287, %v47, 0
  %v391 = vsel %vm287, %v48, 0
  %v394 = vsel %vm287, %v49, 0
  %v397 = vsel %vm287, %v50, 0
  %v400 = vsel %vm287, %v51, 0
  %v403 = vsel %vm287, %v52, 0
  %v406 = vsel %vm287, %v53, 0
  %v409 = vsel %vm287, %v54, 0
  %v412 = vsel %vm287, %v55, 0
  %v415 = vsel %vm287, %v56, 0
  %v418 = vsel %vm287, %v57, 0
  %v421 = vsel %vm287, %v58, 0
  %v424 = vsel %vm287, %v59, 0
  %v427 = vsel %vm287, %v60, 0
  %v430 = vsel %vm287, %v61, 0
  %v433 = vsel %vm287, %v62, 0
  %v436 = vsel %vm287, %v63, 0
  %v439 = vsel %vm287, %v64, 0
  %v442 = vsel %vm287, %v65, 0
  %v445 = vsel %vm287, %v66, 0
  %v448 = vsel %vm287, %v67, 0
  %v451 = vsel %vm287, %v68, 0
  %v454 = vsel %vm287, %v69, 0
  %v457 = vsel %vm287, %v70, 0
  %v460 = vsel %vm287, %v71, 0
  %v463 = vsel %vm287, %v72, 0
  %v466 = vsel %vm287, %v73, 0
  %v469 = vsel %vm287, %v74, 0
  %v472 = vsel %vm287, %v75, 0
  %v475 = vsel %vm287, %v76, 0
  %v478 = vsel %vm287, %v77, 0
  %v481 = vsel %vm287, %v78, 0
  %v484 = vsel %vm287, %v79, 0
  %v487 = vsel %vm287, %v80, 0
  %v490 = vsel %vm287, %v81, 0
  %v493 = vsel %vm287, %v82, 0
  %v496 = vsel %vm287, %v83, 0
  %v499 = vsel %vm287, %v84, 0
  %v502 = vsel %vm287, %v85, 0
  %v505 = vsel %vm287, %v86, 0
  %v508 = vsel %vm287, %v87, 0
  %v511 = vsel %vm287, %v88, 0
  %v514 = vsel %vm287, %v89, 0
  %v517 = vsel %vm287, %v90, 0
  %v520 = vsel %vm287, %v91, 0
  %v523 = vsel %vm287, %v92, 0
  %v526 = vsel %vm287, %v93, 0
  %v529 = vsel %vm287, %v94, 0
  %v532 = vsel %vm287, %v95, 0
  %v535 = vsel %vm287, %v96, 0
  %v538 = vsel %vm287, %v97, 0
  %v541 = vsel %vm287, %v98, 0
  %v544 = vsel %vm287, %v99, 0
  %v547 = vsel %vm287, %v100, 0
  %v550 = vsel %vm287, %v101, 0
  %v553 = vsel %vm287, %v102, 0
  %v556 = vsel %vm287, %v103, 0
  %v559 = vsel %vm287, %v104, 0
  %v562 = vsel %vm287, %v105, 0
  %v565 = vsel %vm287, %v106, 0
  %v568 = vsel %vm287, %v107, 0
  %v571 = vsel %vm287, %v108, 0
  %v574 = vsel %vm287, %v109, 0
  %v577 = vsel %vm287, %v110, 0
  %v580 = vsel %vm287, %v111, 0
  %v583 = vsel %vm287, %v112, 0
  %v586 = vsel %vm287, %v113, 0
  %v589 = vsel %vm287, %v114, 0
  %v592 = vsel %vm287, %v115, 0
  %v595 = vsel %vm287, %v116, 0
  %v598 = vsel %vm287, %v117, 0
  %v601 = vsel %vm287, %v118, 0
  %v604 = vsel %vm287, %v119, 0
  %v607 = vsel %vm287, %v120, 0
  %v610 = vsel %vm287, %v121, 0
  %v613 = vsel %vm287, %v122, 0
  %v616 = vsel %vm287, %v123, 0
  %v619 = vsel %vm287, %v124, 0
  %v622 = vsel %vm287, %v125, 0
  %v625 = vsel %vm287, %v126, 0
  %v628 = vsel %vm287, %v127, 0
  %v631 = vsel %vm287, %v128, 0
  %v634 = vsel %vm287, %v129, 0
  %v637 = vsel %vm287, %v130, 0
  %v640 = vsel %vm287, %v131, 0
  %v643 = vsel %vm287, %v132, 0
  %v646 = vsel %vm287, %v133, 0
  %v649 = vsel %vm287, %v134, 0
  %v652 = vsel %vm287, %v135, 0
  %v655 = vsel %vm287, %v136, 0
  %v658 = vsel %vm287, %v137, 0
  %v661 = vsel %vm287, %v138, 0
  %v664 = vsel %vm287, %v139, 0
  %v667 = vsel %vm287, %v140, 0
  %v670 = vsel %vm287, %v141, 0
  %v673 = vsel %vm287, %v142, 0
  %v676 = vsel %vm287, %v143, 0
  %v679 = vsel %vm287, %v144, 0
  %v682 = vsel %vm287, %v145, 0
  %v685 = vsel %vm287, %v146, 0
  %v688 = vsel %vm287, %v147, 0
  %v691 = vsel %vm287, %v148, 0
  %v694 = vsel %vm287, %v149, 0
  %v697 = vsel %vm287, %v150, 0
  %v700 = vsel %vm287, %v151, 0
  %v703 = vsel %vm287, %v152, 0
  %v706 = vsel %vm287, %v153, 0
  %v709 = vsel %vm287, %v154, 0
  %v712 = vsel %vm287, %v155, 0
  %v715 = vsel %vm287, %v156, 0
  %v718 = vsel %vm287, %v157, 0
  %v721 = vsel %vm287, %v158, 0
  %v724 = vsel %vm287, %v159, 0
  %v727 = vsel %vm287, %v160, 0
  %v730 = vsel %vm287, %v161, 0
  %v733 = vsel %vm287, %v162, 0
  %v736 = vsel %vm287, %v163, 0
  %v739 = vsel %vm287, %v164, 0
  %v742 = vsel %vm287, %v165, 0
  %v745 = vsel %vm287, %v166, 0
  %v748 = vsel %vm287, %v167, 0
  %v751 = vsel %vm287, %v168, 0
  %v754 = vsel %vm287, %v169, 0
  %v757 = vsel %vm287, %v170, 0
  %v760 = vsel %vm287, %v171, 0
  %v763 = vsel %vm287, %v172, 0
  %v766 = vsel %vm287, %v173, 0
  %v769 = vsel %vm287, %v174, 0
  %v772 = vsel %vm287, %v175, 0
  %v775 = vsel %vm287, %v176, 0
  %v778 = vsel %vm287, %v177, 0
  %v781 = vsel %vm287, %v178, 0
  %v784 = vsel %vm287, %v179, 0
  %v787 = vsel %vm287, %v180, 0
  %v790 = vsel %vm287, %v181, 0
  %v793 = vsel %vm287, %v182, 0
  %v796 = vsel %vm287, %v183, 0
  %v799 = vsel %vm287, %v184, 0
  %v802 = vsel %vm287, %v185, 0
  %v805 = vsel %vm287, %v186, 0
  %v808 = vsel %vm287, %v187, 0
  %v811 = vsel %vm287, %v188, 0
  %v814 = vsel %vm287, %v189, 0
  %v817 = vsel %vm287, %v190, 0
  %v820 = vsel %vm287, %v191, 0
  %v823 = vsel %vm287, %v192, 0
  %v826 = vsel %vm287, %v193, 0
  %v829 = vsel %vm287, %v194, 0
  %v832 = vsel %vm287, %v195, 0
  %v835 = vsel %vm287, %v196, 0
  %v838 = vsel %vm287, %v197, 0
  %v841 = vsel %vm287, %v198, 0
  %v844 = vsel %vm287, %v199, 0
  %v847 = vsel %vm287, %v200, 0
  %v850 = vsel %vm287, %v201, 0
  %v853 = vsel %vm287, %v202, 0
  %v856 = vsel %vm287, %v203, 0
  %v859 = vsel %vm287, %v204, 0
  %v862 = vsel %vm287, %v205, 0
  %v865 = vsel %vm287, %v206, 0
  %v868 = vsel %vm287, %v207, 0
  %v871 = vsel %vm287, %v208, 0
  %v874 = vsel %vm287, %v209, 0
  %v877 = vsel %vm287, %v210, 0
  %v880 = vsel %vm287, %v211, 0
  %v883 = vsel %vm287, %v212, 0
  %v886 = vsel %vm287, %v213, 0
  %v889 = vsel %vm287, %v214, 0
  %v892 = vsel %vm287, %v215, 0
  %v895 = vsel %vm287, %v216, 0
  %v898 = vsel %vm287, %v217, 0
  %v901 = vsel %vm287, %v218, 0
  %v904 = vsel %vm287, %v219, 0
  %v907 = vsel %vm287, %v220, 0
  %v910 = vsel %vm287, %v221, 0
  %v913 = vsel %vm287, %v222, 0
  %v916 = vsel %vm287, %v223, 0
  %v919 = vsel %vm287, %v224, 0
  %v922 = vsel %vm287, %v225, 0
  %v925 = vsel %vm287, %v226, 0
  %v928 = vsel %vm287, %v227, 0
  %v931 = vsel %vm287, %v228, 0
  %v934 = vsel %vm287, %v229, 0
  %v937 = vsel %vm287, %v230, 0
  %v940 = vsel %vm287, %v231, 0
  %v943 = vsel %vm287, %v232, 0
  %v946 = vsel %vm287, %v233, 0
  %v949 = vsel %vm287, %v234, 0
  %v952 = vsel %vm287, %v235, 0
  %v955 = vsel %vm287, %v236, 0
  %v958 = vsel %vm287, %v237, 0
  %v961 = vsel %vm287, %v238, 0
  %v964 = vsel %vm287, %v239, 0
  %v967 = vsel %vm287, %v240, 0
  %v970 = vsel %vm287, %v241, 0
  %v973 = vsel %vm287, %v242, 0
  %v976 = vsel %vm287, %v243, 0
  %v979 = vsel %vm287, %v244, 0
  %v982 = vsel %vm287, %v245, 0
  %v985 = vsel %vm287, %v246, 0
  %v988 = vsel %vm287, %v247, 0
  %v991 = vsel %vm287, %v248, 0
  %v994 = vsel %vm287, %v249, 0
  %v997 = vsel %vm287, %v250, 0
  %v1000 = vsel %vm287, %v251, 0
  %v1003 = vsel %vm287, %v252, 0
  %v1006 = vsel %vm287, %v253, 0
  %v1009 = vsel %vm287, %v254, 0
  %v1012 = vsel %vm287, %v255, 0
  %v1015 = vsel %vm287, %v256, 0
  %v1018 = vsel %vm287, %v257, 0
  %v1021 = vsel %vm287, %v258, 0
  %v1024 = vsel %vm287, %v259, 0
  %v1027 = vsel %vm287, %v260, 0
  %v1030 = vsel %vm287, %v261, 0
  %v1033 = vsel %vm287, %v262, 0
  %v1036 = vsel %vm287, %v263, 0
  %v1039 = vsel %vm287, %v264, 0
  %v1042 = vsel %vm287, %v265, 0
  %v1045 = vsel %vm287, %v266, 0
  %v1048 = vsel %vm287, %v267, 0
  %v1051 = vsel %vm287, %v268, 0
  %v1054 = vsel %vm287, %v269, 0
  %1056 = vmatprep.subr.mxu0 0.0
  %1057 = vmatpush1.msra.mxu0 %v270
  %1058 = vmatprep.subr.mxu0 0.0
  %1059 = vmatpush1.msra.mxu0 %v271
  %1060 = vmatprep.subr.mxu0 0.0
  %1061 = vmatpush1.msra.mxu0 %v272
  %1062 = vmatprep.subr.mxu0 0.0
  %1063 = vmatpush1.msra.mxu0 %v273
  %1064 = vmatprep.subr.mxu0 0.0
  %1065 = vmatpush1.msra.mxu0 %v274
  %1066 = vmatprep.subr.mxu0 0.0
  %1067 = vmatpush1.msra.mxu0 %v275
  %1068 = vmatprep.subr.mxu0 0.0
  %1069 = vmatpush1.msra.mxu0 %v276
  %1070 = vmatprep.subr.mxu0 0.0
  %1071 = vmatpush1.msra.mxu0 %v277
  %1072 = vmatprep.subr.mxu0 0.0
  %1073 = vmatpush1.msra.mxu0 %v278
  %1074 = vmatprep.subr.mxu0 0.0
  %1075 = vmatpush1.msra.mxu0 %v279
  %1076 = vmatprep.subr.mxu0 0.0
  %1077 = vmatpush1.msra.mxu0 0.0
  %1078 = vmatprep.subr.mxu0 0.0
  %1079 = vmatpush1.msra.mxu0 0.0
  %1080 = vmatprep.subr.mxu0 0.0
  %1081 = vmatpush1.msra.mxu0 0.0
  %1082 = vmatprep.subr.mxu0 0.0
  %1083 = vmatpush1.msra.mxu0 0.0
  %1084 = vmatprep.subr.mxu0 0.0
  %1085 = vmatpush1.msra.mxu0 0.0
  %1086 = vmatprep.subr.mxu0 0.0
  %1087 = vmatpush1.msra.mxu0 0.0
  %1088 = vmatprep.subr.mxu0 0.0
  %1089 = vmatpush1.msra.mxu0 0.0
  %1090 = vmatprep.subr.mxu0 0.0
  %1091 = vmatpush1.msra.mxu0 0.0
  %1092 = vmatprep.subr.mxu0 0.0
  %1093 = vmatpush1.msra.mxu0 0.0
  %1094 = vmatprep.subr.mxu0 0.0
  %1095 = vmatpush1.msra.mxu0 0.0
  %1096 = vmatprep.subr.mxu0 0.0
  %1097 = vmatpush1.msra.mxu0 0.0
  %1098 = vmatprep.subr.mxu0 0.0
  %1099 = vmatpush1.msra.mxu0 0.0
  %1100 = vmatprep.subr.mxu0 0.0
  %1101 = vmatpush1.msra.mxu0 0.0
  %1102 = vmatprep.subr.mxu0 0.0
  %1103 = vmatpush1.msra.mxu0 0.0
  %1104 = vmatprep.subr.mxu0 0.0
  %1105 = vmatpush1.msra.mxu0 0.0
  %1106 = vmatprep.subr.mxu0 0.0
  %1107 = vmatpush1.msra.mxu0 0.0
  %1108 = vmatprep.subr.mxu0 0.0
  %1109 = vmatpush1.msra.mxu0 0.0
  %1110 = vmatprep.subr.mxu0 0.0
  %1111 = vmatpush1.msra.mxu0 0.0
  %1112 = vmatprep.subr.mxu0 0.0
  %1113 = vmatpush1.msra.mxu0 0.0
  %1114 = vmatprep.subr.mxu0 0.0
  %1115 = vmatpush1.msra.mxu0 0.0
  %1116 = vmatprep.subr.mxu0 0.0
  %1117 = vmatpush1.msra.mxu0 0.0
  %1118 = vmatprep.subr.mxu0 0.0
  %1119 = vmatpush1.msra.mxu0 0.0
  %1120 = vmatprep.mubr.f32.mxu0 0.0
  %1121 = vmatmul.mubr.f32.gmra.mrb[0].mxu0 %v289
  %v1122 = vpop.f32.mrb[0].mxu0
  %v1123 = vadd.f32 %v285, %v1122
  %v1124 = vpop.f32.mrb[0].mxu0
  %1125 = vmatprep.mubr.f32.mxu0 0.0
  %1126 = vmatmul.mubr.f32.gmra.mrb[0].mxu0 %v292
  %v1127 = vpop.f32.mrb[0].mxu0
  %v1128 = vadd.f32 %v285, %v1127
  %v1129 = vpop.f32.mrb[0].mxu0
  %1130 = vmatprep.mubr.f32.mxu0 0.0
  %1131 = vmatmul.mubr.f32.gmra.mrb[0].mxu0 %v295
  %v1132 = vpop.f32.mrb[0].mxu0
  %v1133 = vadd.f32 %v285, %v1132
  %v1134 = vpop.f32.mrb[0].mxu0
  %1135 = vmatprep.mubr.f32.mxu0 0.0
  %1136 = vmatmul.mubr.f32.gmra.mrb[0].mxu0 %v298
  %v1137 = vpop.f32.mrb[0].mxu0
  %v1138 = vadd.f32 %v285, %v1137
  %v1139 = vpop.f32.mrb[0].mxu0
  %1140 = vmatprep.mubr.f32.mxu0 0.0
  %1141 = vmatmul.mubr.f32.gmra.mrb[0].mxu0 %v301
  %v1142 = vpop.f32.mrb[0].mxu0
  %v1143 = vadd.f32 %v285, %v1142
  %v1144 = vpop.f32.mrb[0].mxu0
  %1145 = vmatprep.mubr.f32.mxu0 0.0
  %1146 = vmatmul.mubr.f32.gmra.mrb[0].mxu0 %v304
  %v1147 = vpop.f32.mrb[0].mxu0
  %v1148 = vadd.f32 %v285, %v1147
  %v1149 = vpop.f32.mrb[0].mxu0
  %1150 = vmatprep.mubr.f32.mxu0 0.0
  %1151 = vmatmul.mubr.f32.gmra.mrb[0].mxu0 %v307
  %v1152 = vpop.f32.mrb[0].mxu0
  %v1153 = vadd.f32 %v285, %v1152
  %v1154 = vpop.f32.mrb[0].mxu0
  %1155 = vmatprep.mubr.f32.mxu0 0.0
  %1156 = vmatmul.mubr.f32.gmra.mrb[0].mxu0 %v310
  %v1157 = vpop.f32.mrb[0].mxu0
  %v1158 = vadd.f32 %v285, %v1157
  %v1159 = vpop.f32.mrb[0].mxu0
  %1160 = vmatprep.mubr.f32.mxu0 0.0
  %1161 = vmatmul.mubr.f32.gmra.mrb[0].mxu0 %v313
  %v1162 = vpop.f32.mrb[0].mxu0
  %v1163 = vadd.f32 %v285, %v1162
  %v1164 = vpop.f32.mrb[0].mxu0
  %1165 = vmatprep.mubr.f32.mxu0 0.0
  %1166 = vmatmul.mubr.f32.gmra.mrb[0].mxu0 %v316
  %v1167 = vpop.f32.mrb[0].mxu0
  %v1168 = vadd.f32 %v285, %v1167
  %v1169 = vpop.f32.mrb[0].mxu0
  %1170 = vmatprep.mubr.f32.mxu0 0.0
  %1171 = vmatmul.mubr.f32.gmra.mrb[0].mxu0 %v319
  %v1172 = vpop.f32.mrb[0].mxu0
  %v1173 = vadd.f32 %v285, %v1172
  %v1174 = vpop.f32.mrb[0].mxu0
  %1175 = vmatprep.mubr.f32.mxu0 0.0
  %1176 = vmatmul.mubr.f32.gmra.mrb[0].mxu0 %v322
  %v1177 = vpop.f32.mrb[0].mxu0
  %v1178 = vadd.f32 %v285, %v1177
  %v1179 = vpop.f32.mrb[0].mxu0
  %1180 = vmatprep.mubr.f32.mxu0 0.0
  %1181 = vmatmul.mubr.f32.gmra.mrb[0].mxu0 %v325
  %v1182 = vpop.f32.mrb[0].mxu0
  %v1183 = vadd.f32 %v285, %v1182
  %v1184 = vpop.f32.mrb[0].mxu0
  %1185 = vmatprep.mubr.f32.mxu0 0.0
  %1186 = vmatmul.mubr.f32.gmra.mrb[0].mxu0 %v328
  %v1187 = vpop.f32.mrb[0].mxu0
  %v1188 = vadd.f32 %v285, %v1187
  %v1189 = vpop.f32.mrb[0].mxu0
  %1190 = vmatprep.mubr.f32.mxu0 0.0
  %1191 = vmatmul.mubr.f32.gmra.mrb[0].mxu0 %v331
  %v1192 = vpop.f32.mrb[0].mxu0
  %v1193 = vadd.f32 %v285, %v1192
  %v1194 = vpop.f32.mrb[0].mxu0
  %1195 = vmatprep.mubr.f32.mxu0 0.0
  %1196 = vmatmul.mubr.f32.gmra.mrb[0].mxu0 %v334
  %v1197 = vpop.f32.mrb[0].mxu0
  %v1198 = vadd.f32 %v285, %v1197
  %v1199 = vpop.f32.mrb[0].mxu0
  %1200 = vmatprep.mubr.f32.mxu0 0.0
  %1201 = vmatmul.mubr.f32.gmra.mrb[0].mxu0 %v337
  %v1202 = vpop.f32.mrb[0].mxu0
  %v1203 = vadd.f32 %v285, %v1202
  %v1204 = vpop.f32.mrb[0].mxu0
  %1205 = vmatprep.mubr.f32.mxu0 0.0
  %1206 = vmatmul.mubr.f32.gmra.mrb[0].mxu0 %v340
  %v1207 = vpop.f32.mrb[0].mxu0
  %v1208 = vadd.f32 %v285, %v1207
  %v1209 = vpop.f32.mrb[0].mxu0
  %1210 = vmatprep.mubr.f32.mxu0 0.0
  %1211 = vmatmul.mubr.f32.gmra.mrb[0].mxu0 %v343
  %v1212 = vpop.f32.mrb[0].mxu0
  %v1213 = vadd.f32 %v285, %v1212
  %v1214 = vpop.f32.mrb[0].mxu0
  %1215 = vmatprep.mubr.f32.mxu0 0.0
  %1216 = vmatmul.mubr.f32.gmra.mrb[0].mxu0 %v346
  %v1217 = vpop.f32.mrb[0].mxu0
  %v1218 = vadd.f32 %v285, %v1217
  %v1219 = vpop.f32.mrb[0].mxu0
  %1220 = vmatprep.mubr.f32.mxu0 0.0
  %1221 = vmatmul.mubr.f32.gmra.mrb[0].mxu0 %v349
  %v1222 = vpop.f32.mrb[0].mxu0
  %v1223 = vadd.f32 %v285, %v1222
  %v1224 = vpop.f32.mrb[0].mxu0
  %1225 = vmatprep.mubr.f32.mxu0 0.0
  %1226 = vmatmul.mubr.f32.gmra.mrb[0].mxu0 %v352
  %v1227 = vpop.f32.mrb[0].mxu0
  %v1228 = vadd.f32 %v285, %v1227
  %v1229 = vpop.f32.mrb[0].mxu0
  %1230 = vmatprep.mubr.f32.mxu0 0.0
  %1231 = vmatmul.mubr.f32.gmra.mrb[0].mxu0 %v355
  %v1232 = vpop.f32.mrb[0].mxu0
  %v1233 = vadd.f32 %v285, %v1232
  %v1234 = vpop.f32.mrb[0].mxu0
  %1235 = vmatprep.mubr.f32.mxu0 0.0
  %1236 = vmatmul.mubr.f32.gmra.mrb[0].mxu0 %v358
  %v1237 = vpop.f32.mrb[0].mxu0
  %v1238 = vadd.f32 %v285, %v1237
  %v1239 = vpop.f32.mrb[0].mxu0
  %1240 = vmatprep.mubr.f32.mxu0 0.0
  %1241 = vmatmul.mubr.f32.gmra.mrb[0].mxu0 %v361
  %v1242 = vpop.f32.mrb[0].mxu0
  %v1243 = vadd.f32 %v285, %v1242
  %v1244 = vpop.f32.mrb[0].mxu0
  %1245 = vmatprep.mubr.f32.mxu0 0.0
  %1246 = vmatmul.mubr.f32.gmra.mrb[0].mxu0 %v364
  %v1247 = vpop.f32.mrb[0].mxu0
  %v1248 = vadd.f32 %v285, %v1247
  %v1249 = vpop.f32.mrb[0].mxu0
  %1250 = vmatprep.mubr.f32.mxu0 0.0
  %1251 = vmatmul.mubr.f32.gmra.mrb[0].mxu0 %v367
  %v1252 = vpop.f32.mrb[0].mxu0
  %v1253 = vadd.f32 %v285, %v1252
  %v1254 = vpop.f32.mrb[0].mxu0
  %1255 = vmatprep.mubr.f32.mxu0 0.0
  %1256 = vmatmul.mubr.f32.gmra.mrb[0].mxu0 %v370
  %v1257 = vpop.f32.mrb[0].mxu0
  %v1258 = vadd.f32 %v285, %v1257
  %v1259 = vpop.f32.mrb[0].mxu0
  %1260 = vmatprep.mubr.f32.mxu0 0.0
  %1261 = vmatmul.mubr.f32.gmra.mrb[0].mxu0 %v373
  %v1262 = vpop.f32.mrb[0].mxu0
  %v1263 = vadd.f32 %v285, %v1262
  %v1264 = vpop.f32.mrb[0].mxu0
  %1265 = vmatprep.mubr.f32.mxu0 0.0
  %1266 = vmatmul.mubr.f32.gmra.mrb[0].mxu0 %v376
  %v1267 = vpop.f32.mrb[0].mxu0
  %v1268 = vadd.f32 %v285, %v1267
  %v1269 = vpop.f32.mrb[0].mxu0
  %1270 = vmatprep.mubr.f32.mxu0 0.0
  %1271 = vmatmul.mubr.f32.gmra.mrb[0].mxu0 %v379
  %v1272 = vpop.f32.mrb[0].mxu0
  %v1273 = vadd.f32 %v285, %v1272
  %v1274 = vpop.f32.mrb[0].mxu0
  %1275 = vmatprep.mubr.f32.mxu0 0.0
  %1276 = vmatmul.mubr.f32.gmra.mrb[0].mxu0 %v382
  %v1277 = vpop.f32.mrb[0].mxu0
  %v1278 = vadd.f32 %v285, %v1277
  %v1279 = vpop.f32.mrb[0].mxu0
  %1280 = vmatprep.mubr.f32.mxu0 0.0
  %1281 = vmatmul.mubr.f32.gmra.mrb[0].mxu0 %v385
  %v1282 = vpop.f32.mrb[0].mxu0
  %v1283 = vadd.f32 %v285, %v1282
  %v1284 = vpop.f32.mrb[0].mxu0
  %1285 = vmatprep.mubr.f32.mxu0 0.0
  %1286 = vmatmul.mubr.f32.gmra.mrb[0].mxu0 %v388
  %v1287 = vpop.f32.mrb[0].mxu0
  %v1288 = vadd.f32 %v285, %v1287
  %v1289 = vpop.f32.mrb[0].mxu0
  %1290 = vmatprep.mubr.f32.mxu0 0.0
  %1291 = vmatmul.mubr.f32.gmra.mrb[0].mxu0 %v391
  %v1292 = vpop.f32.mrb[0].mxu0
  %v1293 = vadd.f32 %v285, %v1292
  %v1294 = vpop.f32.mrb[0].mxu0
  %1295 = vmatprep.mubr.f32.mxu0 0.0
  %1296 = vmatmul.mubr.f32.gmra.mrb[0].mxu0 %v394
  %v1297 = vpop.f32.mrb[0].mxu0
  %v1298 = vadd.f32 %v285, %v1297
  %v1299 = vpop.f32.mrb[0].mxu0
  %1300 = vmatprep.mubr.f32.mxu0 0.0
  %1301 = vmatmul.mubr.f32.gmra.mrb[0].mxu0 %v397
  %v1302 = vpop.f32.mrb[0].mxu0
  %v1303 = vadd.f32 %v285, %v1302
  %v1304 = vpop.f32.mrb[0].mxu0
  %1305 = vmatprep.mubr.f32.mxu0 0.0
  %1306 = vmatmul.mubr.f32.gmra.mrb[0].mxu0 %v400
  %v1307 = vpop.f32.mrb[0].mxu0
  %v1308 = vadd.f32 %v285, %v1307
  %v1309 = vpop.f32.mrb[0].mxu0
  %1310 = vmatprep.mubr.f32.mxu0 0.0
  %1311 = vmatmul.mubr.f32.gmra.mrb[0].mxu0 %v403
  %v1312 = vpop.f32.mrb[0].mxu0
  %v1313 = vadd.f32 %v285, %v1312
  %v1314 = vpop.f32.mrb[0].mxu0
  %1315 = vmatprep.mubr.f32.mxu0 0.0
  %1316 = vmatmul.mubr.f32.gmra.mrb[0].mxu0 %v406
  %v1317 = vpop.f32.mrb[0].mxu0
  %v1318 = vadd.f32 %v285, %v1317
  %v1319 = vpop.f32.mrb[0].mxu0
  %1320 = vmatprep.mubr.f32.mxu0 0.0
  %1321 = vmatmul.mubr.f32.gmra.mrb[0].mxu0 %v409
  %v1322 = vpop.f32.mrb[0].mxu0
  %v1323 = vadd.f32 %v285, %v1322
  %v1324 = vpop.f32.mrb[0].mxu0
  %1325 = vmatprep.mubr.f32.mxu0 0.0
  %1326 = vmatmul.mubr.f32.gmra.mrb[0].mxu0 %v412
  %v1327 = vpop.f32.mrb[0].mxu0
  %v1328 = vadd.f32 %v285, %v1327
  %v1329 = vpop.f32.mrb[0].mxu0
  %1330 = vmatprep.mubr.f32.mxu0 0.0
  %1331 = vmatmul.mubr.f32.gmra.mrb[0].mxu0 %v415
  %v1332 = vpop.f32.mrb[0].mxu0
  %v1333 = vadd.f32 %v285, %v1332
  %v1334 = vpop.f32.mrb[0].mxu0
  %1335 = vmatprep.mubr.f32.mxu0 0.0
  %1336 = vmatmul.mubr.f32.gmra.mrb[0].mxu0 %v418
  %v1337 = vpop.f32.mrb[0].mxu0
  %v1338 = vadd.f32 %v285, %v1337
  %v1339 = vpop.f32.mrb[0].mxu0
  %1340 = vmatprep.mubr.f32.mxu0 0.0
  %1341 = vmatmul.mubr.f32.gmra.mrb[0].mxu0 %v421
  %v1342 = vpop.f32.mrb[0].mxu0
  %v1343 = vadd.f32 %v285, %v1342
  %v1344 = vpop.f32.mrb[0].mxu0
  %1345 = vmatprep.mubr.f32.mxu0 0.0
  %1346 = vmatmul.mubr.f32.gmra.mrb[0].mxu0 %v424
  %v1347 = vpop.f32.mrb[0].mxu0
  %v1348 = vadd.f32 %v285, %v1347
  %v1349 = vpop.f32.mrb[0].mxu0
  %1350 = vmatprep.mubr.f32.mxu0 0.0
  %1351 = vmatmul.mubr.f32.gmra.mrb[0].mxu0 %v427
  %v1352 = vpop.f32.mrb[0].mxu0
  %v1353 = vadd.f32 %v285, %v1352
  %v1354 = vpop.f32.mrb[0].mxu0
  %1355 = vmatprep.mubr.f32.mxu0 0.0
  %1356 = vmatmul.mubr.f32.gmra.mrb[0].mxu0 %v430
  %v1357 = vpop.f32.mrb[0].mxu0
  %v1358 = vadd.f32 %v285, %v1357
  %v1359 = vpop.f32.mrb[0].mxu0
  %1360 = vmatprep.mubr.f32.mxu0 0.0
  %1361 = vmatmul.mubr.f32.gmra.mrb[0].mxu0 %v433
  %v1362 = vpop.f32.mrb[0].mxu0
  %v1363 = vadd.f32 %v285, %v1362
  %v1364 = vpop.f32.mrb[0].mxu0
  %1365 = vmatprep.mubr.f32.mxu0 0.0
  %1366 = vmatmul.mubr.f32.gmra.mrb[0].mxu0 %v436
  %v1367 = vpop.f32.mrb[0].mxu0
  %v1368 = vadd.f32 %v285, %v1367
  %v1369 = vpop.f32.mrb[0].mxu0
  %1370 = vmatprep.mubr.f32.mxu0 0.0
  %1371 = vmatmul.mubr.f32.gmra.mrb[0].mxu0 %v439
  %v1372 = vpop.f32.mrb[0].mxu0
  %v1373 = vadd.f32 %v285, %v1372
  %v1374 = vpop.f32.mrb[0].mxu0
  %1375 = vmatprep.mubr.f32.mxu0 0.0
  %1376 = vmatmul.mubr.f32.gmra.mrb[0].mxu0 %v442
  %v1377 = vpop.f32.mrb[0].mxu0
  %v1378 = vadd.f32 %v285, %v1377
  %v1379 = vpop.f32.mrb[0].mxu0
  %1380 = vmatprep.mubr.f32.mxu0 0.0
  %1381 = vmatmul.mubr.f32.gmra.mrb[0].mxu0 %v445
  %v1382 = vpop.f32.mrb[0].mxu0
  %v1383 = vadd.f32 %v285, %v1382
  %v1384 = vpop.f32.mrb[0].mxu0
  %1385 = vmatprep.mubr.f32.mxu0 0.0
  %1386 = vmatmul.mubr.f32.gmra.mrb[0].mxu0 %v448
  %v1387 = vpop.f32.mrb[0].mxu0
  %v1388 = vadd.f32 %v285, %v1387
  %v1389 = vpop.f32.mrb[0].mxu0
  %1390 = vmatprep.mubr.f32.mxu0 0.0
  %1391 = vmatmul.mubr.f32.gmra.mrb[0].mxu0 %v451
  %v1392 = vpop.f32.mrb[0].mxu0
  %v1393 = vadd.f32 %v285, %v1392
  %v1394 = vpop.f32.mrb[0].mxu0
  %1395 = vmatprep.mubr.f32.mxu0 0.0
  %1396 = vmatmul.mubr.f32.gmra.mrb[0].mxu0 %v454
  %v1397 = vpop.f32.mrb[0].mxu0
  %v1398 = vadd.f32 %v285, %v1397
  %v1399 = vpop.f32.mrb[0].mxu0
  %1400 = vmatprep.mubr.f32.mxu0 0.0
  %1401 = vmatmul.mubr.f32.gmra.mrb[0].mxu0 %v457
  %v1402 = vpop.f32.mrb[0].mxu0
  %v1403 = vadd.f32 %v285, %v1402
  %v1404 = vpop.f32.mrb[0].mxu0
  %1405 = vmatprep.mubr.f32.mxu0 0.0
  %1406 = vmatmul.mubr.f32.gmra.mrb[0].mxu0 %v460
  %v1407 = vpop.f32.mrb[0].mxu0
  %v1408 = vadd.f32 %v285, %v1407
  %v1409 = vpop.f32.mrb[0].mxu0
  %1410 = vmatprep.mubr.f32.mxu0 0.0
  %1411 = vmatmul.mubr.f32.gmra.mrb[0].mxu0 %v463
  %v1412 = vpop.f32.mrb[0].mxu0
  %v1413 = vadd.f32 %v285, %v1412
  %v1414 = vpop.f32.mrb[0].mxu0
  %1415 = vmatprep.mubr.f32.mxu0 0.0
  %1416 = vmatmul.mubr.f32.gmra.mrb[0].mxu0 %v466
  %v1417 = vpop.f32.mrb[0].mxu0
  %v1418 = vadd.f32 %v285, %v1417
  %v1419 = vpop.f32.mrb[0].mxu0
  %1420 = vmatprep.mubr.f32.mxu0 0.0
  %1421 = vmatmul.mubr.f32.gmra.mrb[0].mxu0 %v469
  %v1422 = vpop.f32.mrb[0].mxu0
  %v1423 = vadd.f32 %v285, %v1422
  %v1424 = vpop.f32.mrb[0].mxu0
  %1425 = vmatprep.mubr.f32.mxu0 0.0
  %1426 = vmatmul.mubr.f32.gmra.mrb[0].mxu0 %v472
  %v1427 = vpop.f32.mrb[0].mxu0
  %v1428 = vadd.f32 %v285, %v1427
  %v1429 = vpop.f32.mrb[0].mxu0
  %1430 = vmatprep.mubr.f32.mxu0 0.0
  %1431 = vmatmul.mubr.f32.gmra.mrb[0].mxu0 %v475
  %v1432 = vpop.f32.mrb[0].mxu0
  %v1433 = vadd.f32 %v285, %v1432
  %v1434 = vpop.f32.mrb[0].mxu0
  %1435 = vmatprep.mubr.f32.mxu0 0.0
  %1436 = vmatmul.mubr.f32.gmra.mrb[0].mxu0 %v478
  %v1437 = vpop.f32.mrb[0].mxu0
  %v1438 = vadd.f32 %v285, %v1437
  %v1439 = vpop.f32.mrb[0].mxu0
  %1440 = vmatprep.mubr.f32.mxu0 0.0
  %1441 = vmatmul.mubr.f32.gmra.mrb[0].mxu0 %v481
  %v1442 = vpop.f32.mrb[0].mxu0
  %v1443 = vadd.f32 %v285, %v1442
  %v1444 = vpop.f32.mrb[0].mxu0
  %1445 = vmatprep.mubr.f32.mxu0 0.0
  %1446 = vmatmul.mubr.f32.gmra.mrb[0].mxu0 %v484
  %v1447 = vpop.f32.mrb[0].mxu0
  %v1448 = vadd.f32 %v285, %v1447
  %v1449 = vpop.f32.mrb[0].mxu0
  %1450 = vmatprep.mubr.f32.mxu0 0.0
  %1451 = vmatmul.mubr.f32.gmra.mrb[0].mxu0 %v487
  %v1452 = vpop.f32.mrb[0].mxu0
  %v1453 = vadd.f32 %v285, %v1452
  %v1454 = vpop.f32.mrb[0].mxu0
  %1455 = vmatprep.mubr.f32.mxu0 0.0
  %1456 = vmatmul.mubr.f32.gmra.mrb[0].mxu0 %v490
  %v1457 = vpop.f32.mrb[0].mxu0
  %v1458 = vadd.f32 %v285, %v1457
  %v1459 = vpop.f32.mrb[0].mxu0
  %1460 = vmatprep.mubr.f32.mxu0 0.0
  %1461 = vmatmul.mubr.f32.gmra.mrb[0].mxu0 %v493
  %v1462 = vpop.f32.mrb[0].mxu0
  %v1463 = vadd.f32 %v285, %v1462
  %v1464 = vpop.f32.mrb[0].mxu0
  %1465 = vmatprep.mubr.f32.mxu0 0.0
  %1466 = vmatmul.mubr.f32.gmra.mrb[0].mxu0 %v496
  %v1467 = vpop.f32.mrb[0].mxu0
  %v1468 = vadd.f32 %v285, %v1467
  %v1469 = vpop.f32.mrb[0].mxu0
  %1470 = vmatprep.mubr.f32.mxu0 0.0
  %1471 = vmatmul.mubr.f32.gmra.mrb[0].mxu0 %v499
  %v1472 = vpop.f32.mrb[0].mxu0
  %v1473 = vadd.f32 %v285, %v1472
  %v1474 = vpop.f32.mrb[0].mxu0
  %1475 = vmatprep.mubr.f32.mxu0 0.0
  %1476 = vmatmul.mubr.f32.gmra.mrb[0].mxu0 %v502
  %v1477 = vpop.f32.mrb[0].mxu0
  %v1478 = vadd.f32 %v285, %v1477
  %v1479 = vpop.f32.mrb[0].mxu0
  %1480 = vmatprep.mubr.f32.mxu0 0.0
  %1481 = vmatmul.mubr.f32.gmra.mrb[0].mxu0 %v505
  %v1482 = vpop.f32.mrb[0].mxu0
  %v1483 = vadd.f32 %v285, %v1482
  %v1484 = vpop.f32.mrb[0].mxu0
  %1485 = vmatprep.mubr.f32.mxu0 0.0
  %1486 = vmatmul.mubr.f32.gmra.mrb[0].mxu0 %v508
  %v1487 = vpop.f32.mrb[0].mxu0
  %v1488 = vadd.f32 %v285, %v1487
  %v1489 = vpop.f32.mrb[0].mxu0
  %1490 = vmatprep.mubr.f32.mxu0 0.0
  %1491 = vmatmul.mubr.f32.gmra.mrb[0].mxu0 %v511
  %v1492 = vpop.f32.mrb[0].mxu0
  %v1493 = vadd.f32 %v285, %v1492
  %v1494 = vpop.f32.mrb[0].mxu0
  %1495 = vmatprep.mubr.f32.mxu0 0.0
  %1496 = vmatmul.mubr.f32.gmra.mrb[0].mxu0 %v514
  %v1497 = vpop.f32.mrb[0].mxu0
  %v1498 = vadd.f32 %v285, %v1497
  %v1499 = vpop.f32.mrb[0].mxu0
  %1500 = vmatprep.mubr.f32.mxu0 0.0
  %1501 = vmatmul.mubr.f32.gmra.mrb[0].mxu0 %v517
  %v1502 = vpop.f32.mrb[0].mxu0
  %v1503 = vadd.f32 %v285, %v1502
  %v1504 = vpop.f32.mrb[0].mxu0
  %1505 = vmatprep.mubr.f32.mxu0 0.0
  %1506 = vmatmul.mubr.f32.gmra.mrb[0].mxu0 %v520
  %v1507 = vpop.f32.mrb[0].mxu0
  %v1508 = vadd.f32 %v285, %v1507
  %v1509 = vpop.f32.mrb[0].mxu0
  %1510 = vmatprep.mubr.f32.mxu0 0.0
  %1511 = vmatmul.mubr.f32.gmra.mrb[0].mxu0 %v523
  %v1512 = vpop.f32.mrb[0].mxu0
  %v1513 = vadd.f32 %v285, %v1512
  %v1514 = vpop.f32.mrb[0].mxu0
  %1515 = vmatprep.mubr.f32.mxu0 0.0
  %1516 = vmatmul.mubr.f32.gmra.mrb[0].mxu0 %v526
  %v1517 = vpop.f32.mrb[0].mxu0
  %v1518 = vadd.f32 %v285, %v1517
  %v1519 = vpop.f32.mrb[0].mxu0
  %1520 = vmatprep.mubr.f32.mxu0 0.0
  %1521 = vmatmul.mubr.f32.gmra.mrb[0].mxu0 %v529
  %v1522 = vpop.f32.mrb[0].mxu0
  %v1523 = vadd.f32 %v285, %v1522
  %v1524 = vpop.f32.mrb[0].mxu0
  %1525 = vmatprep.mubr.f32.mxu0 0.0
  %1526 = vmatmul.mubr.f32.gmra.mrb[0].mxu0 %v532
  %v1527 = vpop.f32.mrb[0].mxu0
  %v1528 = vadd.f32 %v285, %v1527
  %v1529 = vpop.f32.mrb[0].mxu0
  %1530 = vmatprep.mubr.f32.mxu0 0.0
  %1531 = vmatmul.mubr.f32.gmra.mrb[0].mxu0 %v535
  %v1532 = vpop.f32.mrb[0].mxu0
  %v1533 = vadd.f32 %v285, %v1532
  %v1534 = vpop.f32.mrb[0].mxu0
  %1535 = vmatprep.mubr.f32.mxu0 0.0
  %1536 = vmatmul.mubr.f32.gmra.mrb[0].mxu0 %v538
  %v1537 = vpop.f32.mrb[0].mxu0
  %v1538 = vadd.f32 %v285, %v1537
  %v1539 = vpop.f32.mrb[0].mxu0
  %1540 = vmatprep.mubr.f32.mxu0 0.0
  %1541 = vmatmul.mubr.f32.gmra.mrb[0].mxu0 %v541
  %v1542 = vpop.f32.mrb[0].mxu0
  %v1543 = vadd.f32 %v285, %v1542
  %v1544 = vpop.f32.mrb[0].mxu0
  %1545 = vmatprep.mubr.f32.mxu0 0.0
  %1546 = vmatmul.mubr.f32.gmra.mrb[0].mxu0 %v544
  %v1547 = vpop.f32.mrb[0].mxu0
  %v1548 = vadd.f32 %v285, %v1547
  %v1549 = vpop.f32.mrb[0].mxu0
  %1550 = vmatprep.mubr.f32.mxu0 0.0
  %1551 = vmatmul.mubr.f32.gmra.mrb[0].mxu0 %v547
  %v1552 = vpop.f32.mrb[0].mxu0
  %v1553 = vadd.f32 %v285, %v1552
  %v1554 = vpop.f32.mrb[0].mxu0
  %1555 = vmatprep.mubr.f32.mxu0 0.0
  %1556 = vmatmul.mubr.f32.gmra.mrb[0].mxu0 %v550
  %v1557 = vpop.f32.mrb[0].mxu0
  %v1558 = vadd.f32 %v285, %v1557
  %v1559 = vpop.f32.mrb[0].mxu0
  %1560 = vmatprep.mubr.f32.mxu0 0.0
  %1561 = vmatmul.mubr.f32.gmra.mrb[0].mxu0 %v553
  %v1562 = vpop.f32.mrb[0].mxu0
  %v1563 = vadd.f32 %v285, %v1562
  %v1564 = vpop.f32.mrb[0].mxu0
  %1565 = vmatprep.mubr.f32.mxu0 0.0
  %1566 = vmatmul.mubr.f32.gmra.mrb[0].mxu0 %v556
  %v1567 = vpop.f32.mrb[0].mxu0
  %v1568 = vadd.f32 %v285, %v1567
  %v1569 = vpop.f32.mrb[0].mxu0
  %1570 = vmatprep.mubr.f32.mxu0 0.0
  %1571 = vmatmul.mubr.f32.gmra.mrb[0].mxu0 %v559
  %v1572 = vpop.f32.mrb[0].mxu0
  %v1573 = vadd.f32 %v285, %v1572
  %v1574 = vpop.f32.mrb[0].mxu0
  %1575 = vmatprep.mubr.f32.mxu0 0.0
  %1576 = vmatmul.mubr.f32.gmra.mrb[0].mxu0 %v562
  %v1577 = vpop.f32.mrb[0].mxu0
  %v1578 = vadd.f32 %v285, %v1577
  %v1579 = vpop.f32.mrb[0].mxu0
  %1580 = vmatprep.mubr.f32.mxu0 0.0
  %1581 = vmatmul.mubr.f32.gmra.mrb[0].mxu0 %v565
  %v1582 = vpop.f32.mrb[0].mxu0
  %v1583 = vadd.f32 %v285, %v1582
  %v1584 = vpop.f32.mrb[0].mxu0
  %1585 = vmatprep.mubr.f32.mxu0 0.0
  %1586 = vmatmul.mubr.f32.gmra.mrb[0].mxu0 %v568
  %v1587 = vpop.f32.mrb[0].mxu0
  %v1588 = vadd.f32 %v285, %v1587
  %v1589 = vpop.f32.mrb[0].mxu0
  %1590 = vmatprep.mubr.f32.mxu0 0.0
  %1591 = vmatmul.mubr.f32.gmra.mrb[0].mxu0 %v571
  %v1592 = vpop.f32.mrb[0].mxu0
  %v1593 = vadd.f32 %v285, %v1592
  %v1594 = vpop.f32.mrb[0].mxu0
  %1595 = vmatprep.mubr.f32.mxu0 0.0
  %1596 = vmatmul.mubr.f32.gmra.mrb[0].mxu0 %v574
  %v1597 = vpop.f32.mrb[0].mxu0
  %v1598 = vadd.f32 %v285, %v1597
  %v1599 = vpop.f32.mrb[0].mxu0
  %1600 = vmatprep.mubr.f32.mxu0 0.0
  %1601 = vmatmul.mubr.f32.gmra.mrb[0].mxu0 %v577
  %v1602 = vpop.f32.mrb[0].mxu0
  %v1603 = vadd.f32 %v285, %v1602
  %v1604 = vpop.f32.mrb[0].mxu0
  %1605 = vmatprep.mubr.f32.mxu0 0.0
  %1606 = vmatmul.mubr.f32.gmra.mrb[0].mxu0 %v580
  %v1607 = vpop.f32.mrb[0].mxu0
  %v1608 = vadd.f32 %v285, %v1607
  %v1609 = vpop.f32.mrb[0].mxu0
  %1610 = vmatprep.mubr.f32.mxu0 0.0
  %1611 = vmatmul.mubr.f32.gmra.mrb[0].mxu0 %v583
  %v1612 = vpop.f32.mrb[0].mxu0
  %v1613 = vadd.f32 %v285, %v1612
  %v1614 = vpop.f32.mrb[0].mxu0
  %1615 = vmatprep.mubr.f32.mxu0 0.0
  %1616 = vmatmul.mubr.f32.gmra.mrb[0].mxu0 %v586
  %v1617 = vpop.f32.mrb[0].mxu0
  %v1618 = vadd.f32 %v285, %v1617
  %v1619 = vpop.f32.mrb[0].mxu0
  %1620 = vmatprep.mubr.f32.mxu0 0.0
  %1621 = vmatmul.mubr.f32.gmra.mrb[0].mxu0 %v589
  %v1622 = vpop.f32.mrb[0].mxu0
  %v1623 = vadd.f32 %v285, %v1622
  %v1624 = vpop.f32.mrb[0].mxu0
  %1625 = vmatprep.mubr.f32.mxu0 0.0
  %1626 = vmatmul.mubr.f32.gmra.mrb[0].mxu0 %v592
  %v1627 = vpop.f32.mrb[0].mxu0
  %v1628 = vadd.f32 %v285, %v1627
  %v1629 = vpop.f32.mrb[0].mxu0
  %1630 = vmatprep.mubr.f32.mxu0 0.0
  %1631 = vmatmul.mubr.f32.gmra.mrb[0].mxu0 %v595
  %v1632 = vpop.f32.mrb[0].mxu0
  %v1633 = vadd.f32 %v285, %v1632
  %v1634 = vpop.f32.mrb[0].mxu0
  %1635 = vmatprep.mubr.f32.mxu0 0.0
  %1636 = vmatmul.mubr.f32.gmra.mrb[0].mxu0 %v598
  %v1637 = vpop.f32.mrb[0].mxu0
  %v1638 = vadd.f32 %v285, %v1637
  %v1639 = vpop.f32.mrb[0].mxu0
  %1640 = vmatprep.mubr.f32.mxu0 0.0
  %1641 = vmatmul.mubr.f32.gmra.mrb[0].mxu0 %v601
  %v1642 = vpop.f32.mrb[0].mxu0
  %v1643 = vadd.f32 %v285, %v1642
  %v1644 = vpop.f32.mrb[0].mxu0
  %1645 = vmatprep.mubr.f32.mxu0 0.0
  %1646 = vmatmul.mubr.f32.gmra.mrb[0].mxu0 %v604
  %v1647 = vpop.f32.mrb[0].mxu0
  %v1648 = vadd.f32 %v285, %v1647
  %v1649 = vpop.f32.mrb[0].mxu0
  %1650 = vmatprep.mubr.f32.mxu0 0.0
  %1651 = vmatmul.mubr.f32.gmra.mrb[0].mxu0 %v607
  %v1652 = vpop.f32.mrb[0].mxu0
  %v1653 = vadd.f32 %v285, %v1652
  %v1654 = vpop.f32.mrb[0].mxu0
  %1655 = vmatprep.mubr.f32.mxu0 0.0
  %1656 = vmatmul.mubr.f32.gmra.mrb[0].mxu0 %v610
  %v1657 = vpop.f32.mrb[0].mxu0
  %v1658 = vadd.f32 %v285, %v1657
  %v1659 = vpop.f32.mrb[0].mxu0
  %1660 = vmatprep.mubr.f32.mxu0 0.0
  %1661 = vmatmul.mubr.f32.gmra.mrb[0].mxu0 %v613
  %v1662 = vpop.f32.mrb[0].mxu0
  %v1663 = vadd.f32 %v285, %v1662
  %v1664 = vpop.f32.mrb[0].mxu0
  %1665 = vmatprep.mubr.f32.mxu0 0.0
  %1666 = vmatmul.mubr.f32.gmra.mrb[0].mxu0 %v616
  %v1667 = vpop.f32.mrb[0].mxu0
  %v1668 = vadd.f32 %v285, %v1667
  %v1669 = vpop.f32.mrb[0].mxu0
  %1670 = vmatprep.mubr.f32.mxu0 0.0
  %1671 = vmatmul.mubr.f32.gmra.mrb[0].mxu0 %v619
  %v1672 = vpop.f32.mrb[0].mxu0
  %v1673 = vadd.f32 %v285, %v1672
  %v1674 = vpop.f32.mrb[0].mxu0
  %1675 = vmatprep.mubr.f32.mxu0 0.0
  %1676 = vmatmul.mubr.f32.gmra.mrb[0].mxu0 %v622
  %v1677 = vpop.f32.mrb[0].mxu0
  %v1678 = vadd.f32 %v285, %v1677
  %v1679 = vpop.f32.mrb[0].mxu0
  %1680 = vmatprep.mubr.f32.mxu0 0.0
  %1681 = vmatmul.mubr.f32.gmra.mrb[0].mxu0 %v625
  %v1682 = vpop.f32.mrb[0].mxu0
  %v1683 = vadd.f32 %v285, %v1682
  %v1684 = vpop.f32.mrb[0].mxu0
  %1685 = vmatprep.mubr.f32.mxu0 0.0
  %1686 = vmatmul.mubr.f32.gmra.mrb[0].mxu0 %v628
  %v1687 = vpop.f32.mrb[0].mxu0
  %v1688 = vadd.f32 %v285, %v1687
  %v1689 = vpop.f32.mrb[0].mxu0
  %1690 = vmatprep.mubr.f32.mxu0 0.0
  %1691 = vmatmul.mubr.f32.gmra.mrb[0].mxu0 %v631
  %v1692 = vpop.f32.mrb[0].mxu0
  %v1693 = vadd.f32 %v285, %v1692
  %v1694 = vpop.f32.mrb[0].mxu0
  %1695 = vmatprep.mubr.f32.mxu0 0.0
  %1696 = vmatmul.mubr.f32.gmra.mrb[0].mxu0 %v634
  %v1697 = vpop.f32.mrb[0].mxu0
  %v1698 = vadd.f32 %v285, %v1697
  %v1699 = vpop.f32.mrb[0].mxu0
  %1700 = vmatprep.mubr.f32.mxu0 0.0
  %1701 = vmatmul.mubr.f32.gmra.mrb[0].mxu0 %v637
  %v1702 = vpop.f32.mrb[0].mxu0
  %v1703 = vadd.f32 %v285, %v1702
  %v1704 = vpop.f32.mrb[0].mxu0
  %1705 = vmatprep.mubr.f32.mxu0 0.0
  %1706 = vmatmul.mubr.f32.gmra.mrb[0].mxu0 %v640
  %v1707 = vpop.f32.mrb[0].mxu0
  %v1708 = vadd.f32 %v285, %v1707
  %v1709 = vpop.f32.mrb[0].mxu0
  %1710 = vmatprep.mubr.f32.mxu0 0.0
  %1711 = vmatmul.mubr.f32.gmra.mrb[0].mxu0 %v643
  %v1712 = vpop.f32.mrb[0].mxu0
  %v1713 = vadd.f32 %v285, %v1712
  %v1714 = vpop.f32.mrb[0].mxu0
  %1715 = vmatprep.mubr.f32.mxu0 0.0
  %1716 = vmatmul.mubr.f32.gmra.mrb[0].mxu0 %v646
  %v1717 = vpop.f32.mrb[0].mxu0
  %v1718 = vadd.f32 %v285, %v1717
  %v1719 = vpop.f32.mrb[0].mxu0
  %1720 = vmatprep.mubr.f32.mxu0 0.0
  %1721 = vmatmul.mubr.f32.gmra.mrb[0].mxu0 %v649
  %v1722 = vpop.f32.mrb[0].mxu0
  %v1723 = vadd.f32 %v285, %v1722
  %v1724 = vpop.f32.mrb[0].mxu0
  %1725 = vmatprep.mubr.f32.mxu0 0.0
  %1726 = vmatmul.mubr.f32.gmra.mrb[0].mxu0 %v652
  %v1727 = vpop.f32.mrb[0].mxu0
  %v1728 = vadd.f32 %v285, %v1727
  %v1729 = vpop.f32.mrb[0].mxu0
  %1730 = vmatprep.mubr.f32.mxu0 0.0
  %1731 = vmatmul.mubr.f32.gmra.mrb[0].mxu0 %v655
  %v1732 = vpop.f32.mrb[0].mxu0
  %v1733 = vadd.f32 %v285, %v1732
  %v1734 = vpop.f32.mrb[0].mxu0
  %1735 = vmatprep.mubr.f32.mxu0 0.0
  %1736 = vmatmul.mubr.f32.gmra.mrb[0].mxu0 %v658
  %v1737 = vpop.f32.mrb[0].mxu0
  %v1738 = vadd.f32 %v285, %v1737
  %v1739 = vpop.f32.mrb[0].mxu0
  %1740 = vmatprep.mubr.f32.mxu0 0.0
  %1741 = vmatmul.mubr.f32.gmra.mrb[0].mxu0 %v661
  %v1742 = vpop.f32.mrb[0].mxu0
  %v1743 = vadd.f32 %v285, %v1742
  %v1744 = vpop.f32.mrb[0].mxu0
  %1745 = vmatprep.mubr.f32.mxu0 0.0
  %1746 = vmatmul.mubr.f32.gmra.mrb[0].mxu0 %v664
  %v1747 = vpop.f32.mrb[0].mxu0
  %v1748 = vadd.f32 %v285, %v1747
  %v1749 = vpop.f32.mrb[0].mxu0
  %1750 = vmatprep.mubr.f32.mxu0 0.0
  %1751 = vmatmul.mubr.f32.gmra.mrb[0].mxu0 %v667
  %v1752 = vpop.f32.mrb[0].mxu0
  %v1753 = vadd.f32 %v285, %v1752
  %v1754 = vpop.f32.mrb[0].mxu0
  %1755 = vmatprep.mubr.f32.mxu0 0.0
  %1756 = vmatmul.mubr.f32.gmra.mrb[0].mxu0 %v670
  %v1757 = vpop.f32.mrb[0].mxu0
  %v1758 = vadd.f32 %v285, %v1757
  %v1759 = vpop.f32.mrb[0].mxu0
  %1760 = vmatprep.mubr.f32.mxu0 0.0
  %1761 = vmatmul.mubr.f32.gmra.mrb[0].mxu0 %v673
  %v1762 = vpop.f32.mrb[0].mxu0
  %v1763 = vadd.f32 %v285, %v1762
  %v1764 = vpop.f32.mrb[0].mxu0
  %1765 = vmatprep.mubr.f32.mxu0 0.0
  %1766 = vmatmul.mubr.f32.gmra.mrb[0].mxu0 %v676
  %v1767 = vpop.f32.mrb[0].mxu0
  %v1768 = vadd.f32 %v285, %v1767
  %v1769 = vpop.f32.mrb[0].mxu0
  %1770 = vmatprep.mubr.f32.mxu0 0.0
  %1771 = vmatmul.mubr.f32.gmra.mrb[0].mxu0 %v679
  %v1772 = vpop.f32.mrb[0].mxu0
  %v1773 = vadd.f32 %v285, %v1772
  %v1774 = vpop.f32.mrb[0].mxu0
  %1775 = vmatprep.mubr.f32.mxu0 0.0
  %1776 = vmatmul.mubr.f32.gmra.mrb[0].mxu0 %v682
  %v1777 = vpop.f32.mrb[0].mxu0
  %v1778 = vadd.f32 %v285, %v1777
  %v1779 = vpop.f32.mrb[0].mxu0
  %1780 = vmatprep.mubr.f32.mxu0 0.0
  %1781 = vmatmul.mubr.f32.gmra.mrb[0].mxu0 %v685
  %v1782 = vpop.f32.mrb[0].mxu0
  %v1783 = vadd.f32 %v285, %v1782
  %v1784 = vpop.f32.mrb[0].mxu0
  %1785 = vmatprep.mubr.f32.mxu0 0.0
  %1786 = vmatmul.mubr.f32.gmra.mrb[0].mxu0 %v688
  %v1787 = vpop.f32.mrb[0].mxu0
  %v1788 = vadd.f32 %v285, %v1787
  %v1789 = vpop.f32.mrb[0].mxu0
  %1790 = vmatprep.mubr.f32.mxu0 0.0
  %1791 = vmatmul.mubr.f32.gmra.mrb[0].mxu0 %v691
  %v1792 = vpop.f32.mrb[0].mxu0
  %v1793 = vadd.f32 %v285, %v1792
  %v1794 = vpop.f32.mrb[0].mxu0
  %1795 = vmatprep.mubr.f32.mxu0 0.0
  %1796 = vmatmul.mubr.f32.gmra.mrb[0].mxu0 %v694
  %v1797 = vpop.f32.mrb[0].mxu0
  %v1798 = vadd.f32 %v285, %v1797
  %v1799 = vpop.f32.mrb[0].mxu0
  %1800 = vmatprep.mubr.f32.mxu0 0.0
  %1801 = vmatmul.mubr.f32.gmra.mrb[0].mxu0 %v697
  %v1802 = vpop.f32.mrb[0].mxu0
  %v1803 = vadd.f32 %v285, %v1802
  %v1804 = vpop.f32.mrb[0].mxu0
  %1805 = vmatprep.mubr.f32.mxu0 0.0
  %1806 = vmatmul.mubr.f32.gmra.mrb[0].mxu0 %v700
  %v1807 = vpop.f32.mrb[0].mxu0
  %v1808 = vadd.f32 %v285, %v1807
  %v1809 = vpop.f32.mrb[0].mxu0
  %1810 = vmatprep.mubr.f32.mxu0 0.0
  %1811 = vmatmul.mubr.f32.gmra.mrb[0].mxu0 %v703
  %v1812 = vpop.f32.mrb[0].mxu0
  %v1813 = vadd.f32 %v285, %v1812
  %v1814 = vpop.f32.mrb[0].mxu0
  %1815 = vmatprep.mubr.f32.mxu0 0.0
  %1816 = vmatmul.mubr.f32.gmra.mrb[0].mxu0 %v706
  %v1817 = vpop.f32.mrb[0].mxu0
  %v1818 = vadd.f32 %v285, %v1817
  %v1819 = vpop.f32.mrb[0].mxu0
  %1820 = vmatprep.mubr.f32.mxu0 0.0
  %1821 = vmatmul.mubr.f32.gmra.mrb[0].mxu0 %v709
  %v1822 = vpop.f32.mrb[0].mxu0
  %v1823 = vadd.f32 %v285, %v1822
  %v1824 = vpop.f32.mrb[0].mxu0
  %1825 = vmatprep.mubr.f32.mxu0 0.0
  %1826 = vmatmul.mubr.f32.gmra.mrb[0].mxu0 %v712
  %v1827 = vpop.f32.mrb[0].mxu0
  %v1828 = vadd.f32 %v285, %v1827
  %v1829 = vpop.f32.mrb[0].mxu0
  %1830 = vmatprep.mubr.f32.mxu0 0.0
  %1831 = vmatmul.mubr.f32.gmra.mrb[0].mxu0 %v715
  %v1832 = vpop.f32.mrb[0].mxu0
  %v1833 = vadd.f32 %v285, %v1832
  %v1834 = vpop.f32.mrb[0].mxu0
  %1835 = vmatprep.mubr.f32.mxu0 0.0
  %1836 = vmatmul.mubr.f32.gmra.mrb[0].mxu0 %v718
  %v1837 = vpop.f32.mrb[0].mxu0
  %v1838 = vadd.f32 %v285, %v1837
  %v1839 = vpop.f32.mrb[0].mxu0
  %1840 = vmatprep.mubr.f32.mxu0 0.0
  %1841 = vmatmul.mubr.f32.gmra.mrb[0].mxu0 %v721
  %v1842 = vpop.f32.mrb[0].mxu0
  %v1843 = vadd.f32 %v285, %v1842
  %v1844 = vpop.f32.mrb[0].mxu0
  %1845 = vmatprep.mubr.f32.mxu0 0.0
  %1846 = vmatmul.mubr.f32.gmra.mrb[0].mxu0 %v724
  %v1847 = vpop.f32.mrb[0].mxu0
  %v1848 = vadd.f32 %v285, %v1847
  %v1849 = vpop.f32.mrb[0].mxu0
  %1850 = vmatprep.mubr.f32.mxu0 0.0
  %1851 = vmatmul.mubr.f32.gmra.mrb[0].mxu0 %v727
  %v1852 = vpop.f32.mrb[0].mxu0
  %v1853 = vadd.f32 %v285, %v1852
  %v1854 = vpop.f32.mrb[0].mxu0
  %1855 = vmatprep.mubr.f32.mxu0 0.0
  %1856 = vmatmul.mubr.f32.gmra.mrb[0].mxu0 %v730
  %v1857 = vpop.f32.mrb[0].mxu0
  %v1858 = vadd.f32 %v285, %v1857
  %v1859 = vpop.f32.mrb[0].mxu0
  %1860 = vmatprep.mubr.f32.mxu0 0.0
  %1861 = vmatmul.mubr.f32.gmra.mrb[0].mxu0 %v733
  %v1862 = vpop.f32.mrb[0].mxu0
  %v1863 = vadd.f32 %v285, %v1862
  %v1864 = vpop.f32.mrb[0].mxu0
  %1865 = vmatprep.mubr.f32.mxu0 0.0
  %1866 = vmatmul.mubr.f32.gmra.mrb[0].mxu0 %v736
  %v1867 = vpop.f32.mrb[0].mxu0
  %v1868 = vadd.f32 %v285, %v1867
  %v1869 = vpop.f32.mrb[0].mxu0
  %1870 = vmatprep.mubr.f32.mxu0 0.0
  %1871 = vmatmul.mubr.f32.gmra.mrb[0].mxu0 %v739
  %v1872 = vpop.f32.mrb[0].mxu0
  %v1873 = vadd.f32 %v285, %v1872
  %v1874 = vpop.f32.mrb[0].mxu0
  %1875 = vmatprep.mubr.f32.mxu0 0.0
  %1876 = vmatmul.mubr.f32.gmra.mrb[0].mxu0 %v742
  %v1877 = vpop.f32.mrb[0].mxu0
  %v1878 = vadd.f32 %v285, %v1877
  %v1879 = vpop.f32.mrb[0].mxu0
  %1880 = vmatprep.mubr.f32.mxu0 0.0
  %1881 = vmatmul.mubr.f32.gmra.mrb[0].mxu0 %v745
  %v1882 = vpop.f32.mrb[0].mxu0
  %v1883 = vadd.f32 %v285, %v1882
  %v1884 = vpop.f32.mrb[0].mxu0
  %1885 = vmatprep.mubr.f32.mxu0 0.0
  %1886 = vmatmul.mubr.f32.gmra.mrb[0].mxu0 %v748
  %v1887 = vpop.f32.mrb[0].mxu0
  %v1888 = vadd.f32 %v285, %v1887
  %v1889 = vpop.f32.mrb[0].mxu0
  %1890 = vmatprep.mubr.f32.mxu0 0.0
  %1891 = vmatmul.mubr.f32.gmra.mrb[0].mxu0 %v751
  %v1892 = vpop.f32.mrb[0].mxu0
  %v1893 = vadd.f32 %v285, %v1892
  %v1894 = vpop.f32.mrb[0].mxu0
  %1895 = vmatprep.mubr.f32.mxu0 0.0
  %1896 = vmatmul.mubr.f32.gmra.mrb[0].mxu0 %v754
  %v1897 = vpop.f32.mrb[0].mxu0
  %v1898 = vadd.f32 %v285, %v1897
  %v1899 = vpop.f32.mrb[0].mxu0
  %1900 = vmatprep.mubr.f32.mxu0 0.0
  %1901 = vmatmul.mubr.f32.gmra.mrb[0].mxu0 %v757
  %v1902 = vpop.f32.mrb[0].mxu0
  %v1903 = vadd.f32 %v285, %v1902
  %v1904 = vpop.f32.mrb[0].mxu0
  %1905 = vmatprep.mubr.f32.mxu0 0.0
  %1906 = vmatmul.mubr.f32.gmra.mrb[0].mxu0 %v760
  %v1907 = vpop.f32.mrb[0].mxu0
  %v1908 = vadd.f32 %v285, %v1907
  %v1909 = vpop.f32.mrb[0].mxu0
  %1910 = vmatprep.mubr.f32.mxu0 0.0
  %1911 = vmatmul.mubr.f32.gmra.mrb[0].mxu0 %v763
  %v1912 = vpop.f32.mrb[0].mxu0
  %v1913 = vadd.f32 %v285, %v1912
  %v1914 = vpop.f32.mrb[0].mxu0
  %1915 = vmatprep.mubr.f32.mxu0 0.0
  %1916 = vmatmul.mubr.f32.gmra.mrb[0].mxu0 %v766
  %v1917 = vpop.f32.mrb[0].mxu0
  %v1918 = vadd.f32 %v285, %v1917
  %v1919 = vpop.f32.mrb[0].mxu0
  %1920 = vmatprep.mubr.f32.mxu0 0.0
  %1921 = vmatmul.mubr.f32.gmra.mrb[0].mxu0 %v769
  %v1922 = vpop.f32.mrb[0].mxu0
  %v1923 = vadd.f32 %v285, %v1922
  %v1924 = vpop.f32.mrb[0].mxu0
  %1925 = vmatprep.mubr.f32.mxu0 0.0
  %1926 = vmatmul.mubr.f32.gmra.mrb[0].mxu0 %v772
  %v1927 = vpop.f32.mrb[0].mxu0
  %v1928 = vadd.f32 %v285, %v1927
  %v1929 = vpop.f32.mrb[0].mxu0
  %1930 = vmatprep.mubr.f32.mxu0 0.0
  %1931 = vmatmul.mubr.f32.gmra.mrb[0].mxu0 %v775
  %v1932 = vpop.f32.mrb[0].mxu0
  %v1933 = vadd.f32 %v285, %v1932
  %v1934 = vpop.f32.mrb[0].mxu0
  %1935 = vmatprep.mubr.f32.mxu0 0.0
  %1936 = vmatmul.mubr.f32.gmra.mrb[0].mxu0 %v778
  %v1937 = vpop.f32.mrb[0].mxu0
  %v1938 = vadd.f32 %v285, %v1937
  %v1939 = vpop.f32.mrb[0].mxu0
  %1940 = vmatprep.mubr.f32.mxu0 0.0
  %1941 = vmatmul.mubr.f32.gmra.mrb[0].mxu0 %v781
  %v1942 = vpop.f32.mrb[0].mxu0
  %v1943 = vadd.f32 %v285, %v1942
  %v1944 = vpop.f32.mrb[0].mxu0
  %1945 = vmatprep.mubr.f32.mxu0 0.0
  %1946 = vmatmul.mubr.f32.gmra.mrb[0].mxu0 %v784
  %v1947 = vpop.f32.mrb[0].mxu0
  %v1948 = vadd.f32 %v285, %v1947
  %v1949 = vpop.f32.mrb[0].mxu0
  %1950 = vmatprep.mubr.f32.mxu0 0.0
  %1951 = vmatmul.mubr.f32.gmra.mrb[0].mxu0 %v787
  %v1952 = vpop.f32.mrb[0].mxu0
  %v1953 = vadd.f32 %v285, %v1952
  %v1954 = vpop.f32.mrb[0].mxu0
  %1955 = vmatprep.mubr.f32.mxu0 0.0
  %1956 = vmatmul.mubr.f32.gmra.mrb[0].mxu0 %v790
  %v1957 = vpop.f32.mrb[0].mxu0
  %v1958 = vadd.f32 %v285, %v1957
  %v1959 = vpop.f32.mrb[0].mxu0
  %1960 = vmatprep.mubr.f32.mxu0 0.0
  %1961 = vmatmul.mubr.f32.gmra.mrb[0].mxu0 %v793
  %v1962 = vpop.f32.mrb[0].mxu0
  %v1963 = vadd.f32 %v285, %v1962
  %v1964 = vpop.f32.mrb[0].mxu0
  %1965 = vmatprep.mubr.f32.mxu0 0.0
  %1966 = vmatmul.mubr.f32.gmra.mrb[0].mxu0 %v796
  %v1967 = vpop.f32.mrb[0].mxu0
  %v1968 = vadd.f32 %v285, %v1967
  %v1969 = vpop.f32.mrb[0].mxu0
  %1970 = vmatprep.mubr.f32.mxu0 0.0
  %1971 = vmatmul.mubr.f32.gmra.mrb[0].mxu0 %v799
  %v1972 = vpop.f32.mrb[0].mxu0
  %v1973 = vadd.f32 %v285, %v1972
  %v1974 = vpop.f32.mrb[0].mxu0
  %1975 = vmatprep.mubr.f32.mxu0 0.0
  %1976 = vmatmul.mubr.f32.gmra.mrb[0].mxu0 %v802
  %v1977 = vpop.f32.mrb[0].mxu0
  %v1978 = vadd.f32 %v285, %v1977
  %v1979 = vpop.f32.mrb[0].mxu0
  %1980 = vmatprep.mubr.f32.mxu0 0.0
  %1981 = vmatmul.mubr.f32.gmra.mrb[0].mxu0 %v805
  %v1982 = vpop.f32.mrb[0].mxu0
  %v1983 = vadd.f32 %v285, %v1982
  %v1984 = vpop.f32.mrb[0].mxu0
  %1985 = vmatprep.mubr.f32.mxu0 0.0
  %1986 = vmatmul.mubr.f32.gmra.mrb[0].mxu0 %v808
  %v1987 = vpop.f32.mrb[0].mxu0
  %v1988 = vadd.f32 %v285, %v1987
  %v1989 = vpop.f32.mrb[0].mxu0
  %1990 = vmatprep.mubr.f32.mxu0 0.0
  %1991 = vmatmul.mubr.f32.gmra.mrb[0].mxu0 %v811
  %v1992 = vpop.f32.mrb[0].mxu0
  %v1993 = vadd.f32 %v285, %v1992
  %v1994 = vpop.f32.mrb[0].mxu0
  %1995 = vmatprep.mubr.f32.mxu0 0.0
  %1996 = vmatmul.mubr.f32.gmra.mrb[0].mxu0 %v814
  %v1997 = vpop.f32.mrb[0].mxu0
  %v1998 = vadd.f32 %v285, %v1997
  %v1999 = vpop.f32.mrb[0].mxu0
  %2000 = vmatprep.mubr.f32.mxu0 0.0
  %2001 = vmatmul.mubr.f32.gmra.mrb[0].mxu0 %v817
  %v2002 = vpop.f32.mrb[0].mxu0
  %v2003 = vadd.f32 %v285, %v2002
  %v2004 = vpop.f32.mrb[0].mxu0
  %2005 = vmatprep.mubr.f32.mxu0 0.0
  %2006 = vmatmul.mubr.f32.gmra.mrb[0].mxu0 %v820
  %v2007 = vpop.f32.mrb[0].mxu0
  %v2008 = vadd.f32 %v285, %v2007
  %v2009 = vpop.f32.mrb[0].mxu0
  %2010 = vmatprep.mubr.f32.mxu0 0.0
  %2011 = vmatmul.mubr.f32.gmra.mrb[0].mxu0 %v823
  %v2012 = vpop.f32.mrb[0].mxu0
  %v2013 = vadd.f32 %v285, %v2012
  %v2014 = vpop.f32.mrb[0].mxu0
  %2015 = vmatprep.mubr.f32.mxu0 0.0
  %2016 = vmatmul.mubr.f32.gmra.mrb[0].mxu0 %v826
  %v2017 = vpop.f32.mrb[0].mxu0
  %v2018 = vadd.f32 %v285, %v2017
  %v2019 = vpop.f32.mrb[0].mxu0
  %2020 = vmatprep.mubr.f32.mxu0 0.0
  %2021 = vmatmul.mubr.f32.gmra.mrb[0].mxu0 %v829
  %v2022 = vpop.f32.mrb[0].mxu0
  %v2023 = vadd.f32 %v285, %v2022
  %v2024 = vpop.f32.mrb[0].mxu0
  %2025 = vmatprep.mubr.f32.mxu0 0.0
  %2026 = vmatmul.mubr.f32.gmra.mrb[0].mxu0 %v832
  %v2027 = vpop.f32.mrb[0].mxu0
  %v2028 = vadd.f32 %v285, %v2027
  %v2029 = vpop.f32.mrb[0].mxu0
  %2030 = vmatprep.mubr.f32.mxu0 0.0
  %2031 = vmatmul.mubr.f32.gmra.mrb[0].mxu0 %v835
  %v2032 = vpop.f32.mrb[0].mxu0
  %v2033 = vadd.f32 %v285, %v2032
  %v2034 = vpop.f32.mrb[0].mxu0
  %2035 = vmatprep.mubr.f32.mxu0 0.0
  %2036 = vmatmul.mubr.f32.gmra.mrb[0].mxu0 %v838
  %v2037 = vpop.f32.mrb[0].mxu0
  %v2038 = vadd.f32 %v285, %v2037
  %v2039 = vpop.f32.mrb[0].mxu0
  %2040 = vmatprep.mubr.f32.mxu0 0.0
  %2041 = vmatmul.mubr.f32.gmra.mrb[0].mxu0 %v841
  %v2042 = vpop.f32.mrb[0].mxu0
  %v2043 = vadd.f32 %v285, %v2042
  %v2044 = vpop.f32.mrb[0].mxu0
  %2045 = vmatprep.mubr.f32.mxu0 0.0
  %2046 = vmatmul.mubr.f32.gmra.mrb[0].mxu0 %v844
  %v2047 = vpop.f32.mrb[0].mxu0
  %v2048 = vadd.f32 %v285, %v2047
  %v2049 = vpop.f32.mrb[0].mxu0
  %2050 = vmatprep.mubr.f32.mxu0 0.0
  %2051 = vmatmul.mubr.f32.gmra.mrb[0].mxu0 %v847
  %v2052 = vpop.f32.mrb[0].mxu0
  %v2053 = vadd.f32 %v285, %v2052
  %v2054 = vpop.f32.mrb[0].mxu0
  %2055 = vmatprep.mubr.f32.mxu0 0.0
  %2056 = vmatmul.mubr.f32.gmra.mrb[0].mxu0 %v850
  %v2057 = vpop.f32.mrb[0].mxu0
  %v2058 = vadd.f32 %v285, %v2057
  %v2059 = vpop.f32.mrb[0].mxu0
  %2060 = vmatprep.mubr.f32.mxu0 0.0
  %2061 = vmatmul.mubr.f32.gmra.mrb[0].mxu0 %v853
  %v2062 = vpop.f32.mrb[0].mxu0
  %v2063 = vadd.f32 %v285, %v2062
  %v2064 = vpop.f32.mrb[0].mxu0
  %2065 = vmatprep.mubr.f32.mxu0 0.0
  %2066 = vmatmul.mubr.f32.gmra.mrb[0].mxu0 %v856
  %v2067 = vpop.f32.mrb[0].mxu0
  %v2068 = vadd.f32 %v285, %v2067
  %v2069 = vpop.f32.mrb[0].mxu0
  %2070 = vmatprep.mubr.f32.mxu0 0.0
  %2071 = vmatmul.mubr.f32.gmra.mrb[0].mxu0 %v859
  %v2072 = vpop.f32.mrb[0].mxu0
  %v2073 = vadd.f32 %v285, %v2072
  %v2074 = vpop.f32.mrb[0].mxu0
  %2075 = vmatprep.mubr.f32.mxu0 0.0
  %2076 = vmatmul.mubr.f32.gmra.mrb[0].mxu0 %v862
  %v2077 = vpop.f32.mrb[0].mxu0
  %v2078 = vadd.f32 %v285, %v2077
  %v2079 = vpop.f32.mrb[0].mxu0
  %2080 = vmatprep.mubr.f32.mxu0 0.0
  %2081 = vmatmul.mubr.f32.gmra.mrb[0].mxu0 %v865
  %v2082 = vpop.f32.mrb[0].mxu0
  %v2083 = vadd.f32 %v285, %v2082
  %v2084 = vpop.f32.mrb[0].mxu0
  %2085 = vmatprep.mubr.f32.mxu0 0.0
  %2086 = vmatmul.mubr.f32.gmra.mrb[0].mxu0 %v868
  %v2087 = vpop.f32.mrb[0].mxu0
  %v2088 = vadd.f32 %v285, %v2087
  %v2089 = vpop.f32.mrb[0].mxu0
  %2090 = vmatprep.mubr.f32.mxu0 0.0
  %2091 = vmatmul.mubr.f32.gmra.mrb[0].mxu0 %v871
  %v2092 = vpop.f32.mrb[0].mxu0
  %v2093 = vadd.f32 %v285, %v2092
  %v2094 = vpop.f32.mrb[0].mxu0
  %2095 = vmatprep.mubr.f32.mxu0 0.0
  %2096 = vmatmul.mubr.f32.gmra.mrb[0].mxu0 %v874
  %v2097 = vpop.f32.mrb[0].mxu0
  %v2098 = vadd.f32 %v285, %v2097
  %v2099 = vpop.f32.mrb[0].mxu0
  %2100 = vmatprep.mubr.f32.mxu0 0.0
  %2101 = vmatmul.mubr.f32.gmra.mrb[0].mxu0 %v877
  %v2102 = vpop.f32.mrb[0].mxu0
  %v2103 = vadd.f32 %v285, %v2102
  %v2104 = vpop.f32.mrb[0].mxu0
  %2105 = vmatprep.mubr.f32.mxu0 0.0
  %2106 = vmatmul.mubr.f32.gmra.mrb[0].mxu0 %v880
  %v2107 = vpop.f32.mrb[0].mxu0
  %v2108 = vadd.f32 %v285, %v2107
  %v2109 = vpop.f32.mrb[0].mxu0
  %2110 = vmatprep.mubr.f32.mxu0 0.0
  %2111 = vmatmul.mubr.f32.gmra.mrb[0].mxu0 %v883
  %v2112 = vpop.f32.mrb[0].mxu0
  %v2113 = vadd.f32 %v285, %v2112
  %v2114 = vpop.f32.mrb[0].mxu0
  %2115 = vmatprep.mubr.f32.mxu0 0.0
  %2116 = vmatmul.mubr.f32.gmra.mrb[0].mxu0 %v886
  %v2117 = vpop.f32.mrb[0].mxu0
  %v2118 = vadd.f32 %v285, %v2117
  %v2119 = vpop.f32.mrb[0].mxu0
  %2120 = vmatprep.mubr.f32.mxu0 0.0
  %2121 = vmatmul.mubr.f32.gmra.mrb[0].mxu0 %v889
  %v2122 = vpop.f32.mrb[0].mxu0
  %v2123 = vadd.f32 %v285, %v2122
  %v2124 = vpop.f32.mrb[0].mxu0
  %2125 = vmatprep.mubr.f32.mxu0 0.0
  %2126 = vmatmul.mubr.f32.gmra.mrb[0].mxu0 %v892
  %v2127 = vpop.f32.mrb[0].mxu0
  %v2128 = vadd.f32 %v285, %v2127
  %v2129 = vpop.f32.mrb[0].mxu0
  %2130 = vmatprep.mubr.f32.mxu0 0.0
  %2131 = vmatmul.mubr.f32.gmra.mrb[0].mxu0 %v895
  %v2132 = vpop.f32.mrb[0].mxu0
  %v2133 = vadd.f32 %v285, %v2132
  %v2134 = vpop.f32.mrb[0].mxu0
  %2135 = vmatprep.mubr.f32.mxu0 0.0
  %2136 = vmatmul.mubr.f32.gmra.mrb[0].mxu0 %v898
  %v2137 = vpop.f32.mrb[0].mxu0
  %v2138 = vadd.f32 %v285, %v2137
  %v2139 = vpop.f32.mrb[0].mxu0
  %2140 = vmatprep.mubr.f32.mxu0 0.0
  %2141 = vmatmul.mubr.f32.gmra.mrb[0].mxu0 %v901
  %v2142 = vpop.f32.mrb[0].mxu0
  %v2143 = vadd.f32 %v285, %v2142
  %v2144 = vpop.f32.mrb[0].mxu0
  %2145 = vmatprep.mubr.f32.mxu0 0.0
  %2146 = vmatmul.mubr.f32.gmra.mrb[0].mxu0 %v904
  %v2147 = vpop.f32.mrb[0].mxu0
  %v2148 = vadd.f32 %v285, %v2147
  %v2149 = vpop.f32.mrb[0].mxu0
  %2150 = vmatprep.mubr.f32.mxu0 0.0
  %2151 = vmatmul.mubr.f32.gmra.mrb[0].mxu0 %v907
  %v2152 = vpop.f32.mrb[0].mxu0
  %v2153 = vadd.f32 %v285, %v2152
  %v2154 = vpop.f32.mrb[0].mxu0
  %2155 = vmatprep.mubr.f32.mxu0 0.0
  %2156 = vmatmul.mubr.f32.gmra.mrb[0].mxu0 %v910
  %v2157 = vpop.f32.mrb[0].mxu0
  %v2158 = vadd.f32 %v285, %v2157
  %v2159 = vpop.f32.mrb[0].mxu0
  %2160 = vmatprep.mubr.f32.mxu0 0.0
  %2161 = vmatmul.mubr.f32.gmra.mrb[0].mxu0 %v913
  %v2162 = vpop.f32.mrb[0].mxu0
  %v2163 = vadd.f32 %v285, %v2162
  %v2164 = vpop.f32.mrb[0].mxu0
  %2165 = vmatprep.mubr.f32.mxu0 0.0
  %2166 = vmatmul.mubr.f32.gmra.mrb[0].mxu0 %v916
  %v2167 = vpop.f32.mrb[0].mxu0
  %v2168 = vadd.f32 %v285, %v2167
  %v2169 = vpop.f32.mrb[0].mxu0
  %2170 = vmatprep.mubr.f32.mxu0 0.0
  %2171 = vmatmul.mubr.f32.gmra.mrb[0].mxu0 %v919
  %v2172 = vpop.f32.mrb[0].mxu0
  %v2173 = vadd.f32 %v285, %v2172
  %v2174 = vpop.f32.mrb[0].mxu0
  %2175 = vmatprep.mubr.f32.mxu0 0.0
  %2176 = vmatmul.mubr.f32.gmra.mrb[0].mxu0 %v922
  %v2177 = vpop.f32.mrb[0].mxu0
  %v2178 = vadd.f32 %v285, %v2177
  %v2179 = vpop.f32.mrb[0].mxu0
  %2180 = vmatprep.mubr.f32.mxu0 0.0
  %2181 = vmatmul.mubr.f32.gmra.mrb[0].mxu0 %v925
  %v2182 = vpop.f32.mrb[0].mxu0
  %v2183 = vadd.f32 %v285, %v2182
  %v2184 = vpop.f32.mrb[0].mxu0
  %2185 = vmatprep.mubr.f32.mxu0 0.0
  %2186 = vmatmul.mubr.f32.gmra.mrb[0].mxu0 %v928
  %v2187 = vpop.f32.mrb[0].mxu0
  %v2188 = vadd.f32 %v285, %v2187
  %v2189 = vpop.f32.mrb[0].mxu0
  %2190 = vmatprep.mubr.f32.mxu0 0.0
  %2191 = vmatmul.mubr.f32.gmra.mrb[0].mxu0 %v931
  %v2192 = vpop.f32.mrb[0].mxu0
  %v2193 = vadd.f32 %v285, %v2192
  %v2194 = vpop.f32.mrb[0].mxu0
  %2195 = vmatprep.mubr.f32.mxu0 0.0
  %2196 = vmatmul.mubr.f32.gmra.mrb[0].mxu0 %v934
  %v2197 = vpop.f32.mrb[0].mxu0
  %v2198 = vadd.f32 %v285, %v2197
  %v2199 = vpop.f32.mrb[0].mxu0
  %2200 = vmatprep.mubr.f32.mxu0 0.0
  %2201 = vmatmul.mubr.f32.gmra.mrb[0].mxu0 %v937
  %v2202 = vpop.f32.mrb[0].mxu0
  %v2203 = vadd.f32 %v285, %v2202
  %v2204 = vpop.f32.mrb[0].mxu0
  %2205 = vmatprep.mubr.f32.mxu0 0.0
  %2206 = vmatmul.mubr.f32.gmra.mrb[0].mxu0 %v940
  %v2207 = vpop.f32.mrb[0].mxu0
  %v2208 = vadd.f32 %v285, %v2207
  %v2209 = vpop.f32.mrb[0].mxu0
  %2210 = vmatprep.mubr.f32.mxu0 0.0
  %2211 = vmatmul.mubr.f32.gmra.mrb[0].mxu0 %v943
  %v2212 = vpop.f32.mrb[0].mxu0
  %v2213 = vadd.f32 %v285, %v2212
  %v2214 = vpop.f32.mrb[0].mxu0
  %2215 = vmatprep.mubr.f32.mxu0 0.0
  %2216 = vmatmul.mubr.f32.gmra.mrb[0].mxu0 %v946
  %v2217 = vpop.f32.mrb[0].mxu0
  %v2218 = vadd.f32 %v285, %v2217
  %v2219 = vpop.f32.mrb[0].mxu0
  %2220 = vmatprep.mubr.f32.mxu0 0.0
  %2221 = vmatmul.mubr.f32.gmra.mrb[0].mxu0 %v949
  %v2222 = vpop.f32.mrb[0].mxu0
  %v2223 = vadd.f32 %v285, %v2222
  %v2224 = vpop.f32.mrb[0].mxu0
  %2225 = vmatprep.mubr.f32.mxu0 0.0
  %2226 = vmatmul.mubr.f32.gmra.mrb[0].mxu0 %v952
  %v2227 = vpop.f32.mrb[0].mxu0
  %v2228 = vadd.f32 %v285, %v2227
  %v2229 = vpop.f32.mrb[0].mxu0
  %2230 = vmatprep.mubr.f32.mxu0 0.0
  %2231 = vmatmul.mubr.f32.gmra.mrb[0].mxu0 %v955
  %v2232 = vpop.f32.mrb[0].mxu0
  %v2233 = vadd.f32 %v285, %v2232
  %v2234 = vpop.f32.mrb[0].mxu0
  %2235 = vmatprep.mubr.f32.mxu0 0.0
  %2236 = vmatmul.mubr.f32.gmra.mrb[0].mxu0 %v958
  %v2237 = vpop.f32.mrb[0].mxu0
  %v2238 = vadd.f32 %v285, %v2237
  %v2239 = vpop.f32.mrb[0].mxu0
  %2240 = vmatprep.mubr.f32.mxu0 0.0
  %2241 = vmatmul.mubr.f32.gmra.mrb[0].mxu0 %v961
  %v2242 = vpop.f32.mrb[0].mxu0
  %v2243 = vadd.f32 %v285, %v2242
  %v2244 = vpop.f32.mrb[0].mxu0
  %2245 = vmatprep.mubr.f32.mxu0 0.0
  %2246 = vmatmul.mubr.f32.gmra.mrb[0].mxu0 %v964
  %v2247 = vpop.f32.mrb[0].mxu0
  %v2248 = vadd.f32 %v285, %v2247
  %v2249 = vpop.f32.mrb[0].mxu0
  %2250 = vmatprep.mubr.f32.mxu0 0.0
  %2251 = vmatmul.mubr.f32.gmra.mrb[0].mxu0 %v967
  %v2252 = vpop.f32.mrb[0].mxu0
  %v2253 = vadd.f32 %v285, %v2252
  %v2254 = vpop.f32.mrb[0].mxu0
  %2255 = vmatprep.mubr.f32.mxu0 0.0
  %2256 = vmatmul.mubr.f32.gmra.mrb[0].mxu0 %v970
  %v2257 = vpop.f32.mrb[0].mxu0
  %v2258 = vadd.f32 %v285, %v2257
  %v2259 = vpop.f32.mrb[0].mxu0
  %2260 = vmatprep.mubr.f32.mxu0 0.0
  %2261 = vmatmul.mubr.f32.gmra.mrb[0].mxu0 %v973
  %v2262 = vpop.f32.mrb[0].mxu0
  %v2263 = vadd.f32 %v285, %v2262
  %v2264 = vpop.f32.mrb[0].mxu0
  %2265 = vmatprep.mubr.f32.mxu0 0.0
  %2266 = vmatmul.mubr.f32.gmra.mrb[0].mxu0 %v976
  %v2267 = vpop.f32.mrb[0].mxu0
  %v2268 = vadd.f32 %v285, %v2267
  %v2269 = vpop.f32.mrb[0].mxu0
  %2270 = vmatprep.mubr.f32.mxu0 0.0
  %2271 = vmatmul.mubr.f32.gmra.mrb[0].mxu0 %v979
  %v2272 = vpop.f32.mrb[0].mxu0
  %v2273 = vadd.f32 %v285, %v2272
  %v2274 = vpop.f32.mrb[0].mxu0
  %2275 = vmatprep.mubr.f32.mxu0 0.0
  %2276 = vmatmul.mubr.f32.gmra.mrb[0].mxu0 %v982
  %v2277 = vpop.f32.mrb[0].mxu0
  %v2278 = vadd.f32 %v285, %v2277
  %v2279 = vpop.f32.mrb[0].mxu0
  %2280 = vmatprep.mubr.f32.mxu0 0.0
  %2281 = vmatmul.mubr.f32.gmra.mrb[0].mxu0 %v985
  %v2282 = vpop.f32.mrb[0].mxu0
  %v2283 = vadd.f32 %v285, %v2282
  %v2284 = vpop.f32.mrb[0].mxu0
  %2285 = vmatprep.mubr.f32.mxu0 0.0
  %2286 = vmatmul.mubr.f32.gmra.mrb[0].mxu0 %v988
  %v2287 = vpop.f32.mrb[0].mxu0
  %v2288 = vadd.f32 %v285, %v2287
  %v2289 = vpop.f32.mrb[0].mxu0
  %2290 = vmatprep.mubr.f32.mxu0 0.0
  %2291 = vmatmul.mubr.f32.gmra.mrb[0].mxu0 %v991
  %v2292 = vpop.f32.mrb[0].mxu0
  %v2293 = vadd.f32 %v285, %v2292
  %v2294 = vpop.f32.mrb[0].mxu0
  %2295 = vmatprep.mubr.f32.mxu0 0.0
  %2296 = vmatmul.mubr.f32.gmra.mrb[0].mxu0 %v994
  %v2297 = vpop.f32.mrb[0].mxu0
  %v2298 = vadd.f32 %v285, %v2297
  %v2299 = vpop.f32.mrb[0].mxu0
  %2300 = vmatprep.mubr.f32.mxu0 0.0
  %2301 = vmatmul.mubr.f32.gmra.mrb[0].mxu0 %v997
  %v2302 = vpop.f32.mrb[0].mxu0
  %v2303 = vadd.f32 %v285, %v2302
  %v2304 = vpop.f32.mrb[0].mxu0
  %2305 = vmatprep.mubr.f32.mxu0 0.0
  %2306 = vmatmul.mubr.f32.gmra.mrb[0].mxu0 %v1000
  %v2307 = vpop.f32.mrb[0].mxu0
  %v2308 = vadd.f32 %v285, %v2307
  %v2309 = vpop.f32.mrb[0].mxu0
  %2310 = vmatprep.mubr.f32.mxu0 0.0
  %2311 = vmatmul.mubr.f32.gmra.mrb[0].mxu0 %v1003
  %v2312 = vpop.f32.mrb[0].mxu0
  %v2313 = vadd.f32 %v285, %v2312
  %v2314 = vpop.f32.mrb[0].mxu0
  %2315 = vmatprep.mubr.f32.mxu0 0.0
  %2316 = vmatmul.mubr.f32.gmra.mrb[0].mxu0 %v1006
  %v2317 = vpop.f32.mrb[0].mxu0
  %v2318 = vadd.f32 %v285, %v2317
  %v2319 = vpop.f32.mrb[0].mxu0
  %2320 = vmatprep.mubr.f32.mxu0 0.0
  %2321 = vmatmul.mubr.f32.gmra.mrb[0].mxu0 %v1009
  %v2322 = vpop.f32.mrb[0].mxu0
  %v2323 = vadd.f32 %v285, %v2322
  %v2324 = vpop.f32.mrb[0].mxu0
  %2325 = vmatprep.mubr.f32.mxu0 0.0
  %2326 = vmatmul.mubr.f32.gmra.mrb[0].mxu0 %v1012
  %v2327 = vpop.f32.mrb[0].mxu0
  %v2328 = vadd.f32 %v285, %v2327
  %v2329 = vpop.f32.mrb[0].mxu0
  %2330 = vmatprep.mubr.f32.mxu0 0.0
  %2331 = vmatmul.mubr.f32.gmra.mrb[0].mxu0 %v1015
  %v2332 = vpop.f32.mrb[0].mxu0
  %v2333 = vadd.f32 %v285, %v2332
  %v2334 = vpop.f32.mrb[0].mxu0
  %2335 = vmatprep.mubr.f32.mxu0 0.0
  %2336 = vmatmul.mubr.f32.gmra.mrb[0].mxu0 %v1018
  %v2337 = vpop.f32.mrb[0].mxu0
  %v2338 = vadd.f32 %v285, %v2337
  %v2339 = vpop.f32.mrb[0].mxu0
  %2340 = vmatprep.mubr.f32.mxu0 0.0
  %2341 = vmatmul.mubr.f32.gmra.mrb[0].mxu0 %v1021
  %v2342 = vpop.f32.mrb[0].mxu0
  %v2343 = vadd.f32 %v285, %v2342
  %v2344 = vpop.f32.mrb[0].mxu0
  %2345 = vmatprep.mubr.f32.mxu0 0.0
  %2346 = vmatmul.mubr.f32.gmra.mrb[0].mxu0 %v1024
  %v2347 = vpop.f32.mrb[0].mxu0
  %v2348 = vadd.f32 %v285, %v2347
  %v2349 = vpop.f32.mrb[0].mxu0
  %2350 = vmatprep.mubr.f32.mxu0 0.0
  %2351 = vmatmul.mubr.f32.gmra.mrb[0].mxu0 %v1027
  %v2352 = vpop.f32.mrb[0].mxu0
  %v2353 = vadd.f32 %v285, %v2352
  %v2354 = vpop.f32.mrb[0].mxu0
  %2355 = vmatprep.mubr.f32.mxu0 0.0
  %2356 = vmatmul.mubr.f32.gmra.mrb[0].mxu0 %v1030
  %v2357 = vpop.f32.mrb[0].mxu0
  %v2358 = vadd.f32 %v285, %v2357
  %v2359 = vpop.f32.mrb[0].mxu0
  %2360 = vmatprep.mubr.f32.mxu0 0.0
  %2361 = vmatmul.mubr.f32.gmra.mrb[0].mxu0 %v1033
  %v2362 = vpop.f32.mrb[0].mxu0
  %v2363 = vadd.f32 %v285, %v2362
  %v2364 = vpop.f32.mrb[0].mxu0
  %2365 = vmatprep.mubr.f32.mxu0 0.0
  %2366 = vmatmul.mubr.f32.gmra.mrb[0].mxu0 %v1036
  %v2367 = vpop.f32.mrb[0].mxu0
  %v2368 = vadd.f32 %v285, %v2367
  %v2369 = vpop.f32.mrb[0].mxu0
  %2370 = vmatprep.mubr.f32.mxu0 0.0
  %2371 = vmatmul.mubr.f32.gmra.mrb[0].mxu0 %v1039
  %v2372 = vpop.f32.mrb[0].mxu0
  %v2373 = vadd.f32 %v285, %v2372
  %v2374 = vpop.f32.mrb[0].mxu0
  %2375 = vmatprep.mubr.f32.mxu0 0.0
  %2376 = vmatmul.mubr.f32.gmra.mrb[0].mxu0 %v1042
  %v2377 = vpop.f32.mrb[0].mxu0
  %v2378 = vadd.f32 %v285, %v2377
  %v2379 = vpop.f32.mrb[0].mxu0
  %2380 = vmatprep.mubr.f32.mxu0 0.0
  %2381 = vmatmul.mubr.f32.gmra.mrb[0].mxu0 %v1045
  %v2382 = vpop.f32.mrb[0].mxu0
  %v2383 = vadd.f32 %v285, %v2382
  %v2384 = vpop.f32.mrb[0].mxu0
  %2385 = vmatprep.mubr.f32.mxu0 0.0
  %2386 = vmatmul.mubr.f32.gmra.mrb[0].mxu0 %v1048
  %v2387 = vpop.f32.mrb[0].mxu0
  %v2388 = vadd.f32 %v285, %v2387
  %v2389 = vpop.f32.mrb[0].mxu0
  %2390 = vmatprep.mubr.f32.mxu0 0.0
  %2391 = vmatmul.mubr.f32.gmra.mrb[0].mxu0 %v1051
  %v2392 = vpop.f32.mrb[0].mxu0
  %v2393 = vadd.f32 %v285, %v2392
  %v2394 = vpop.f32.mrb[0].mxu0
  %2395 = vmatprep.mubr.f32.mxu0 0.0
  %2396 = vmatmul.mubr.f32.gmra.mrb[0].mxu0 %v1054
  %v2397 = vpop.f32.mrb[0].mxu0
  %v2398 = vadd.f32 %v285, %v2397
  %v2399 = vpop.f32.mrb[0].mxu0
  %2400 = vdwg.mxu0
  %v2401 = vmax.f32 %v1123, 0.0
  %v2402 = vmax.f32 %v1128, 0.0
  %v2403 = vmax.f32 %v1133, 0.0
  %v2404 = vmax.f32 %v1138, 0.0
  %v2405 = vmax.f32 %v1143, 0.0
  %v2406 = vmax.f32 %v1148, 0.0
  %v2407 = vmax.f32 %v1153, 0.0
  %v2408 = vmax.f32 %v1158, 0.0
  %v2409 = vmax.f32 %v1163, 0.0
  %v2410 = vmax.f32 %v1168, 0.0
  %v2411 = vmax.f32 %v1173, 0.0
  %v2412 = vmax.f32 %v1178, 0.0
  %v2413 = vmax.f32 %v1183, 0.0
  %v2414 = vmax.f32 %v1188, 0.0
  %v2415 = vmax.f32 %v1193, 0.0
  %v2416 = vmax.f32 %v1198, 0.0
  %v2417 = vmax.f32 %v1203, 0.0
  %v2418 = vmax.f32 %v1208, 0.0
  %v2419 = vmax.f32 %v1213, 0.0
  %v2420 = vmax.f32 %v1218, 0.0
  %v2421 = vmax.f32 %v1223, 0.0
  %v2422 = vmax.f32 %v1228, 0.0
  %v2423 = vmax.f32 %v1233, 0.0
  %v2424 = vmax.f32 %v1238, 0.0
  %v2425 = vmax.f32 %v1243, 0.0
  %v2426 = vmax.f32 %v1248, 0.0
  %v2427 = vmax.f32 %v1253, 0.0
  %v2428 = vmax.f32 %v1258, 0.0
  %v2429 = vmax.f32 %v1263, 0.0
  %v2430 = vmax.f32 %v1268, 0.0
  %v2431 = vmax.f32 %v1273, 0.0
  %v2432 = vmax.f32 %v1278, 0.0
  %v2433 = vmax.f32 %v1283, 0.0
  %v2434 = vmax.f32 %v1288, 0.0
  %v2435 = vmax.f32 %v1293, 0.0
  %v2436 = vmax.f32 %v1298, 0.0
  %v2437 = vmax.f32 %v1303, 0.0
  %v2438 = vmax.f32 %v1308, 0.0
  %v2439 = vmax.f32 %v1313, 0.0
  %v2440 = vmax.f32 %v1318, 0.0
  %v2441 = vmax.f32 %v1323, 0.0
  %v2442 = vmax.f32 %v1328, 0.0
  %v2443 = vmax.f32 %v1333, 0.0
  %v2444 = vmax.f32 %v1338, 0.0
  %v2445 = vmax.f32 %v1343, 0.0
  %v2446 = vmax.f32 %v1348, 0.0
  %v2447 = vmax.f32 %v1353, 0.0
  %v2448 = vmax.f32 %v1358, 0.0
  %v2449 = vmax.f32 %v1363, 0.0
  %v2450 = vmax.f32 %v1368, 0.0
  %v2451 = vmax.f32 %v1373, 0.0
  %v2452 = vmax.f32 %v1378, 0.0
  %v2453 = vmax.f32 %v1383, 0.0
  %v2454 = vmax.f32 %v1388, 0.0
  %v2455 = vmax.f32 %v1393, 0.0
  %v2456 = vmax.f32 %v1398, 0.0
  %v2457 = vmax.f32 %v1403, 0.0
  %v2458 = vmax.f32 %v1408, 0.0
  %v2459 = vmax.f32 %v1413, 0.0
  %v2460 = vmax.f32 %v1418, 0.0
  %v2461 = vmax.f32 %v1423, 0.0
  %v2462 = vmax.f32 %v1428, 0.0
  %v2463 = vmax.f32 %v1433, 0.0
  %v2464 = vmax.f32 %v1438, 0.0
  %v2465 = vmax.f32 %v1443, 0.0
  %v2466 = vmax.f32 %v1448, 0.0
  %v2467 = vmax.f32 %v1453, 0.0
  %v2468 = vmax.f32 %v1458, 0.0
  %v2469 = vmax.f32 %v1463, 0.0
  %v2470 = vmax.f32 %v1468, 0.0
  %v2471 = vmax.f32 %v1473, 0.0
  %v2472 = vmax.f32 %v1478, 0.0
  %v2473 = vmax.f32 %v1483, 0.0
  %v2474 = vmax.f32 %v1488, 0.0
  %v2475 = vmax.f32 %v1493, 0.0
  %v2476 = vmax.f32 %v1498, 0.0
  %v2477 = vmax.f32 %v1503, 0.0
  %v2478 = vmax.f32 %v1508, 0.0
  %v2479 = vmax.f32 %v1513, 0.0
  %v2480 = vmax.f32 %v1518, 0.0
  %v2481 = vmax.f32 %v1523, 0.0
  %v2482 = vmax.f32 %v1528, 0.0
  %v2483 = vmax.f32 %v1533, 0.0
  %v2484 = vmax.f32 %v1538, 0.0
  %v2485 = vmax.f32 %v1543, 0.0
  %v2486 = vmax.f32 %v1548, 0.0
  %v2487 = vmax.f32 %v1553, 0.0
  %v2488 = vmax.f32 %v1558, 0.0
  %v2489 = vmax.f32 %v1563, 0.0
  %v2490 = vmax.f32 %v1568, 0.0
  %v2491 = vmax.f32 %v1573, 0.0
  %v2492 = vmax.f32 %v1578, 0.0
  %v2493 = vmax.f32 %v1583, 0.0
  %v2494 = vmax.f32 %v1588, 0.0
  %v2495 = vmax.f32 %v1593, 0.0
  %v2496 = vmax.f32 %v1598, 0.0
  %v2497 = vmax.f32 %v1603, 0.0
  %v2498 = vmax.f32 %v1608, 0.0
  %v2499 = vmax.f32 %v1613, 0.0
  %v2500 = vmax.f32 %v1618, 0.0
  %v2501 = vmax.f32 %v1623, 0.0
  %v2502 = vmax.f32 %v1628, 0.0
  %v2503 = vmax.f32 %v1633, 0.0
  %v2504 = vmax.f32 %v1638, 0.0
  %v2505 = vmax.f32 %v1643, 0.0
  %v2506 = vmax.f32 %v1648, 0.0
  %v2507 = vmax.f32 %v1653, 0.0
  %v2508 = vmax.f32 %v1658, 0.0
  %v2509 = vmax.f32 %v1663, 0.0
  %v2510 = vmax.f32 %v1668, 0.0
  %v2511 = vmax.f32 %v1673, 0.0
  %v2512 = vmax.f32 %v1678, 0.0
  %v2513 = vmax.f32 %v1683, 0.0
  %v2514 = vmax.f32 %v1688, 0.0
  %v2515 = vmax.f32 %v1693, 0.0
  %v2516 = vmax.f32 %v1698, 0.0
  %v2517 = vmax.f32 %v1703, 0.0
  %v2518 = vmax.f32 %v1708, 0.0
  %v2519 = vmax.f32 %v1713, 0.0
  %v2520 = vmax.f32 %v1718, 0.0
  %v2521 = vmax.f32 %v1723, 0.0
  %v2522 = vmax.f32 %v1728, 0.0
  %v2523 = vmax.f32 %v1733, 0.0
  %v2524 = vmax.f32 %v1738, 0.0
  %v2525 = vmax.f32 %v1743, 0.0
  %v2526 = vmax.f32 %v1748, 0.0
  %v2527 = vmax.f32 %v1753, 0.0
  %v2528 = vmax.f32 %v1758, 0.0
  %v2529 = vmax.f32 %v1763, 0.0
  %v2530 = vmax.f32 %v1768, 0.0
  %v2531 = vmax.f32 %v1773, 0.0
  %v2532 = vmax.f32 %v1778, 0.0
  %v2533 = vmax.f32 %v1783, 0.0
  %v2534 = vmax.f32 %v1788, 0.0
  %v2535 = vmax.f32 %v1793, 0.0
  %v2536 = vmax.f32 %v1798, 0.0
  %v2537 = vmax.f32 %v1803, 0.0
  %v2538 = vmax.f32 %v1808, 0.0
  %v2539 = vmax.f32 %v1813, 0.0
  %v2540 = vmax.f32 %v1818, 0.0
  %v2541 = vmax.f32 %v1823, 0.0
  %v2542 = vmax.f32 %v1828, 0.0
  %v2543 = vmax.f32 %v1833, 0.0
  %v2544 = vmax.f32 %v1838, 0.0
  %v2545 = vmax.f32 %v1843, 0.0
  %v2546 = vmax.f32 %v1848, 0.0
  %v2547 = vmax.f32 %v1853, 0.0
  %v2548 = vmax.f32 %v1858, 0.0
  %v2549 = vmax.f32 %v1863, 0.0
  %v2550 = vmax.f32 %v1868, 0.0
  %v2551 = vmax.f32 %v1873, 0.0
  %v2552 = vmax.f32 %v1878, 0.0
  %v2553 = vmax.f32 %v1883, 0.0
  %v2554 = vmax.f32 %v1888, 0.0
  %v2555 = vmax.f32 %v1893, 0.0
  %v2556 = vmax.f32 %v1898, 0.0
  %v2557 = vmax.f32 %v1903, 0.0
  %v2558 = vmax.f32 %v1908, 0.0
  %v2559 = vmax.f32 %v1913, 0.0
  %v2560 = vmax.f32 %v1918, 0.0
  %v2561 = vmax.f32 %v1923, 0.0
  %v2562 = vmax.f32 %v1928, 0.0
  %v2563 = vmax.f32 %v1933, 0.0
  %v2564 = vmax.f32 %v1938, 0.0
  %v2565 = vmax.f32 %v1943, 0.0
  %v2566 = vmax.f32 %v1948, 0.0
  %v2567 = vmax.f32 %v1953, 0.0
  %v2568 = vmax.f32 %v1958, 0.0
  %v2569 = vmax.f32 %v1963, 0.0
  %v2570 = vmax.f32 %v1968, 0.0
  %v2571 = vmax.f32 %v1973, 0.0
  %v2572 = vmax.f32 %v1978, 0.0
  %v2573 = vmax.f32 %v1983, 0.0
  %v2574 = vmax.f32 %v1988, 0.0
  %v2575 = vmax.f32 %v1993, 0.0
  %v2576 = vmax.f32 %v1998, 0.0
  %v2577 = vmax.f32 %v2003, 0.0
  %v2578 = vmax.f32 %v2008, 0.0
  %v2579 = vmax.f32 %v2013, 0.0
  %v2580 = vmax.f32 %v2018, 0.0
  %v2581 = vmax.f32 %v2023, 0.0
  %v2582 = vmax.f32 %v2028, 0.0
  %v2583 = vmax.f32 %v2033, 0.0
  %v2584 = vmax.f32 %v2038, 0.0
  %v2585 = vmax.f32 %v2043, 0.0
  %v2586 = vmax.f32 %v2048, 0.0
  %v2587 = vmax.f32 %v2053, 0.0
  %v2588 = vmax.f32 %v2058, 0.0
  %v2589 = vmax.f32 %v2063, 0.0
  %v2590 = vmax.f32 %v2068, 0.0
  %v2591 = vmax.f32 %v2073, 0.0
  %v2592 = vmax.f32 %v2078, 0.0
  %v2593 = vmax.f32 %v2083, 0.0
  %v2594 = vmax.f32 %v2088, 0.0
  %v2595 = vmax.f32 %v2093, 0.0
  %v2596 = vmax.f32 %v2098, 0.0
  %v2597 = vmax.f32 %v2103, 0.0
  %v2598 = vmax.f32 %v2108, 0.0
  %v2599 = vmax.f32 %v2113, 0.0
  %v2600 = vmax.f32 %v2118, 0.0
  %v2601 = vmax.f32 %v2123, 0.0
  %v2602 = vmax.f32 %v2128, 0.0
  %v2603 = vmax.f32 %v2133, 0.0
  %v2604 = vmax.f32 %v2138, 0.0
  %v2605 = vmax.f32 %v2143, 0.0
  %v2606 = vmax.f32 %v2148, 0.0
  %v2607 = vmax.f32 %v2153, 0.0
  %v2608 = vmax.f32 %v2158, 0.0
  %v2609 = vmax.f32 %v2163, 0.0
  %v2610 = vmax.f32 %v2168, 0.0
  %v2611 = vmax.f32 %v2173, 0.0
  %v2612 = vmax.f32 %v2178, 0.0
  %v2613 = vmax.f32 %v2183, 0.0
  %v2614 = vmax.f32 %v2188, 0.0
  %v2615 = vmax.f32 %v2193, 0.0
  %v2616 = vmax.f32 %v2198, 0.0
  %v2617 = vmax.f32 %v2203, 0.0
  %v2618 = vmax.f32 %v2208, 0.0
  %v2619 = vmax.f32 %v2213, 0.0
  %v2620 = vmax.f32 %v2218, 0.0
  %v2621 = vmax.f32 %v2223, 0.0
  %v2622 = vmax.f32 %v2228, 0.0
  %v2623 = vmax.f32 %v2233, 0.0
  %v2624 = vmax.f32 %v2238, 0.0
  %v2625 = vmax.f32 %v2243, 0.0
  %v2626 = vmax.f32 %v2248, 0.0
  %v2627 = vmax.f32 %v2253, 0.0
  %v2628 = vmax.f32 %v2258, 0.0
  %v2629 = vmax.f32 %v2263, 0.0
  %v2630 = vmax.f32 %v2268, 0.0
  %v2631 = vmax.f32 %v2273, 0.0
  %v2632 = vmax.f32 %v2278, 0.0
  %v2633 = vmax.f32 %v2283, 0.0
  %v2634 = vmax.f32 %v2288, 0.0
  %v2635 = vmax.f32 %v2293, 0.0
  %v2636 = vmax.f32 %v2298, 0.0
  %v2637 = vmax.f32 %v2303, 0.0
  %v2638 = vmax.f32 %v2308, 0.0
  %v2639 = vmax.f32 %v2313, 0.0
  %v2640 = vmax.f32 %v2318, 0.0
  %v2641 = vmax.f32 %v2323, 0.0
  %v2642 = vmax.f32 %v2328, 0.0
  %v2643 = vmax.f32 %v2333, 0.0
  %v2644 = vmax.f32 %v2338, 0.0
  %v2645 = vmax.f32 %v2343, 0.0
  %v2646 = vmax.f32 %v2348, 0.0
  %v2647 = vmax.f32 %v2353, 0.0
  %v2648 = vmax.f32 %v2358, 0.0
  %v2649 = vmax.f32 %v2363, 0.0
  %v2650 = vmax.f32 %v2368, 0.0
  %v2651 = vmax.f32 %v2373, 0.0
  %v2652 = vmax.f32 %v2378, 0.0
  %v2653 = vmax.f32 %v2383, 0.0
  %v2654 = vmax.f32 %v2388, 0.0
  %v2655 = vmax.f32 %v2393, 0.0
  %v2656 = vmax.f32 %v2398, 0.0
  %2657 = vst [vmem:[%s3] sm:$0xff] %v2401
  %2658 = vst [vmem:[%s3 + $0x8] sm:$0xff] %v2402
  %2659 = vst [vmem:[%s3 + $0x10] sm:$0xff] %v2403
  %2660 = vst [vmem:[%s3 + $0x18] sm:$0xff] %v2404
  %2661 = vst [vmem:[%s3 + $0x20] sm:$0xff] %v2405
  %2662 = vst [vmem:[%s3 + $0x28] sm:$0xff] %v2406
  %2663 = vst [vmem:[%s3 + $0x30] sm:$0xff] %v2407
  %2664 = vst [vmem:[%s3 + $0x38] sm:$0xff] %v2408
  %2665 = vst [vmem:[%s3 + $0x40] sm:$0xff] %v2409
  %2666 = vst [vmem:[%s3 + $0x48] sm:$0xff] %v2410
  %2667 = vst [vmem:[%s3 + $0x50] sm:$0xff] %v2411
  %2668 = vst [vmem:[%s3 + $0x58] sm:$0xff] %v2412
  %2669 = vst [vmem:[%s3 + $0x60] sm:$0xff] %v2413
  %2670 = vst [vmem:[%s3 + $0x68] sm:$0xff] %v2414
  %2671 = vst [vmem:[%s3 + $0x70] sm:$0xff] %v2415
  %2672 = vst [vmem:[%s3 + $0x78] sm:$0xff] %v2416
  %2673 = vst [vmem:[%s3 + $0x80] sm:$0xff] %v2417
  %2674 = vst [vmem:[%s3 + $0x88] sm:$0xff] %v2418
  %2675 = vst [vmem:[%s3 + $0x90] sm:$0xff] %v2419
  %2676 = vst [vmem:[%s3 + $0x98] sm:$0xff] %v2420
  %2677 = vst [vmem:[%s3 + $0xa0] sm:$0xff] %v2421
  %2678 = vst [vmem:[%s3 + $0xa8] sm:$0xff] %v2422
  %2679 = vst [vmem:[%s3 + $0xb0] sm:$0xff] %v2423
  %2680 = vst [vmem:[%s3 + $0xb8] sm:$0xff] %v2424
  %2681 = vst [vmem:[%s3 + $0xc0] sm:$0xff] %v2425
  %2682 = vst [vmem:[%s3 + $0xc8] sm:$0xff] %v2426
  %2683 = vst [vmem:[%s3 + $0xd0] sm:$0xff] %v2427
  %2684 = vst [vmem:[%s3 + $0xd8] sm:$0xff] %v2428
  %2685 = vst [vmem:[%s3 + $0xe0] sm:$0xff] %v2429
  %2686 = vst [vmem:[%s3 + $0xe8] sm:$0xff] %v2430
  %2687 = vst [vmem:[%s3 + $0xf0] sm:$0xff] %v2431
  %2688 = vst [vmem:[%s3 + $0xf8] sm:$0xff] %v2432
  %2689 = vst [vmem:[%s3 + $0x100] sm:$0xff] %v2433
  %2690 = vst [vmem:[%s3 + $0x108] sm:$0xff] %v2434
  %2691 = vst [vmem:[%s3 + $0x110] sm:$0xff] %v2435
  %2692 = vst [vmem:[%s3 + $0x118] sm:$0xff] %v2436
  %2693 = vst [vmem:[%s3 + $0x120] sm:$0xff] %v2437
  %2694 = vst [vmem:[%s3 + $0x128] sm:$0xff] %v2438
  %2695 = vst [vmem:[%s3 + $0x130] sm:$0xff] %v2439
  %2696 = vst [vmem:[%s3 + $0x138] sm:$0xff] %v2440
  %2697 = vst [vmem:[%s3 + $0x140] sm:$0xff] %v2441
  %2698 = vst [vmem:[%s3 + $0x148] sm:$0xff] %v2442
  %2699 = vst [vmem:[%s3 + $0x150] sm:$0xff] %v2443
  %2700 = vst [vmem:[%s3 + $0x158] sm:$0xff] %v2444
  %2701 = vst [vmem:[%s3 + $0x160] sm:$0xff] %v2445
  %2702 = vst [vmem:[%s3 + $0x168] sm:$0xff] %v2446
  %2703 = vst [vmem:[%s3 + $0x170] sm:$0xff] %v2447
  %2704 = vst [vmem:[%s3 + $0x178] sm:$0xff] %v2448
  %2705 = vst [vmem:[%s3 + $0x180] sm:$0xff] %v2449
  %2706 = vst [vmem:[%s3 + $0x188] sm:$0xff] %v2450
  %2707 = vst [vmem:[%s3 + $0x190] sm:$0xff] %v2451
  %2708 = vst [vmem:[%s3 + $0x198] sm:$0xff] %v2452
  %2709 = vst [vmem:[%s3 + $0x1a0] sm:$0xff] %v2453
  %2710 = vst [vmem:[%s3 + $0x1a8] sm:$0xff] %v2454
  %2711 = vst [vmem:[%s3 + $0x1b0] sm:$0xff] %v2455
  %2712 = vst [vmem:[%s3 + $0x1b8] sm:$0xff] %v2456
  %2713 = vst [vmem:[%s3 + $0x1c0] sm:$0xff] %v2457
  %2714 = vst [vmem:[%s3 + $0x1c8] sm:$0xff] %v2458
  %2715 = vst [vmem:[%s3 + $0x1d0] sm:$0xff] %v2459
  %2716 = vst [vmem:[%s3 + $0x1d8] sm:$0xff] %v2460
  %2717 = vst [vmem:[%s3 + $0x1e0] sm:$0xff] %v2461
  %2718 = vst [vmem:[%s3 + $0x1e8] sm:$0xff] %v2462
  %2719 = vst [vmem:[%s3 + $0x1f0] sm:$0xff] %v2463
  %2720 = vst [vmem:[%s3 + $0x1f8] sm:$0xff] %v2464
  %2721 = vst [vmem:[%s3 + $0x200] sm:$0xff] %v2465
  %2722 = vst [vmem:[%s3 + $0x208] sm:$0xff] %v2466
  %2723 = vst [vmem:[%s3 + $0x210] sm:$0xff] %v2467
  %2724 = vst [vmem:[%s3 + $0x218] sm:$0xff] %v2468
  %2725 = vst [vmem:[%s3 + $0x220] sm:$0xff] %v2469
  %2726 = vst [vmem:[%s3 + $0x228] sm:$0xff] %v2470
  %2727 = vst [vmem:[%s3 + $0x230] sm:$0xff] %v2471
  %2728 = vst [vmem:[%s3 + $0x238] sm:$0xff] %v2472
  %2729 = vst [vmem:[%s3 + $0x240] sm:$0xff] %v2473
  %2730 = vst [vmem:[%s3 + $0x248] sm:$0xff] %v2474
  %2731 = vst [vmem:[%s3 + $0x250] sm:$0xff] %v2475
  %2732 = vst [vmem:[%s3 + $0x258] sm:$0xff] %v2476
  %2733 = vst [vmem:[%s3 + $0x260] sm:$0xff] %v2477
  %2734 = vst [vmem:[%s3 + $0x268] sm:$0xff] %v2478
  %2735 = vst [vmem:[%s3 + $0x270] sm:$0xff] %v2479
  %2736 = vst [vmem:[%s3 + $0x278] sm:$0xff] %v2480
  %2737 = vst [vmem:[%s3 + $0x280] sm:$0xff] %v2481
  %2738 = vst [vmem:[%s3 + $0x288] sm:$0xff] %v2482
  %2739 = vst [vmem:[%s3 + $0x290] sm:$0xff] %v2483
  %2740 = vst [vmem:[%s3 + $0x298] sm:$0xff] %v2484
  %2741 = vst [vmem:[%s3 + $0x2a0] sm:$0xff] %v2485
  %2742 = vst [vmem:[%s3 + $0x2a8] sm:$0xff] %v2486
  %2743 = vst [vmem:[%s3 + $0x2b0] sm:$0xff] %v2487
  %2744 = vst [vmem:[%s3 + $0x2b8] sm:$0xff] %v2488
  %2745 = vst [vmem:[%s3 + $0x2c0] sm:$0xff] %v2489
  %2746 = vst [vmem:[%s3 + $0x2c8] sm:$0xff] %v2490
  %2747 = vst [vmem:[%s3 + $0x2d0] sm:$0xff] %v2491
  %2748 = vst [vmem:[%s3 + $0x2d8] sm:$0xff] %v2492
  %2749 = vst [vmem:[%s3 + $0x2e0] sm:$0xff] %v2493
  %2750 = vst [vmem:[%s3 + $0x2e8] sm:$0xff] %v2494
  %2751 = vst [vmem:[%s3 + $0x2f0] sm:$0xff] %v2495
  %2752 = vst [vmem:[%s3 + $0x2f8] sm:$0xff] %v2496
  %2753 = vst [vmem:[%s3 + $0x300] sm:$0xff] %v2497
  %2754 = vst [vmem:[%s3 + $0x308] sm:$0xff] %v2498
  %2755 = vst [vmem:[%s3 + $0x310] sm:$0xff] %v2499
  %2756 = vst [vmem:[%s3 + $0x318] sm:$0xff] %v2500
  %2757 = vst [vmem:[%s3 + $0x320] sm:$0xff] %v2501
  %2758 = vst [vmem:[%s3 + $0x328] sm:$0xff] %v2502
  %2759 = vst [vmem:[%s3 + $0x330] sm:$0xff] %v2503
  %2760 = vst [vmem:[%s3 + $0x338] sm:$0xff] %v2504
  %2761 = vst [vmem:[%s3 + $0x340] sm:$0xff] %v2505
  %2762 = vst [vmem:[%s3 + $0x348] sm:$0xff] %v2506
  %2763 = vst [vmem:[%s3 + $0x350] sm:$0xff] %v2507
  %2764 = vst [vmem:[%s3 + $0x358] sm:$0xff] %v2508
  %2765 = vst [vmem:[%s3 + $0x360] sm:$0xff] %v2509
  %2766 = vst [vmem:[%s3 + $0x368] sm:$0xff] %v2510
  %2767 = vst [vmem:[%s3 + $0x370] sm:$0xff] %v2511
  %2768 = vst [vmem:[%s3 + $0x378] sm:$0xff] %v2512
  %2769 = vst [vmem:[%s3 + $0x380] sm:$0xff] %v2513
  %2770 = vst [vmem:[%s3 + $0x388] sm:$0xff] %v2514
  %2771 = vst [vmem:[%s3 + $0x390] sm:$0xff] %v2515
  %2772 = vst [vmem:[%s3 + $0x398] sm:$0xff] %v2516
  %2773 = vst [vmem:[%s3 + $0x3a0] sm:$0xff] %v2517
  %2774 = vst [vmem:[%s3 + $0x3a8] sm:$0xff] %v2518
  %2775 = vst [vmem:[%s3 + $0x3b0] sm:$0xff] %v2519
  %2776 = vst [vmem:[%s3 + $0x3b8] sm:$0xff] %v2520
  %2777 = vst [vmem:[%s3 + $0x3c0] sm:$0xff] %v2521
  %2778 = vst [vmem:[%s3 + $0x3c8] sm:$0xff] %v2522
  %2779 = vst [vmem:[%s3 + $0x3d0] sm:$0xff] %v2523
  %2780 = vst [vmem:[%s3 + $0x3d8] sm:$0xff] %v2524
  %2781 = vst [vmem:[%s3 + $0x3e0] sm:$0xff] %v2525
  %2782 = vst [vmem:[%s3 + $0x3e8] sm:$0xff] %v2526
  %2783 = vst [vmem:[%s3 + $0x3f0] sm:$0xff] %v2527
  %2784 = vst [vmem:[%s3 + $0x3f8] sm:$0xff] %v2528
  %2785 = vst [vmem:[%s3 + $0x400] sm:$0xff] %v2529
  %2786 = vst [vmem:[%s3 + $0x408] sm:$0xff] %v2530
  %2787 = vst [vmem:[%s3 + $0x410] sm:$0xff] %v2531
  %2788 = vst [vmem:[%s3 + $0x418] sm:$0xff] %v2532
  %2789 = vst [vmem:[%s3 + $0x420] sm:$0xff] %v2533
  %2790 = vst [vmem:[%s3 + $0x428] sm:$0xff] %v2534
  %2791 = vst [vmem:[%s3 + $0x430] sm:$0xff] %v2535
  %2792 = vst [vmem:[%s3 + $0x438] sm:$0xff] %v2536
  %2793 = vst [vmem:[%s3 + $0x440] sm:$0xff] %v2537
  %2794 = vst [vmem:[%s3 + $0x448] sm:$0xff] %v2538
  %2795 = vst [vmem:[%s3 + $0x450] sm:$0xff] %v2539
  %2796 = vst [vmem:[%s3 + $0x458] sm:$0xff] %v2540
  %2797 = vst [vmem:[%s3 + $0x460] sm:$0xff] %v2541
  %2798 = vst [vmem:[%s3 + $0x468] sm:$0xff] %v2542
  %2799 = vst [vmem:[%s3 + $0x470] sm:$0xff] %v2543
  %2800 = vst [vmem:[%s3 + $0x478] sm:$0xff] %v2544
  %2801 = vst [vmem:[%s3 + $0x480] sm:$0xff] %v2545
  %2802 = vst [vmem:[%s3 + $0x488] sm:$0xff] %v2546
  %2803 = vst [vmem:[%s3 + $0x490] sm:$0xff] %v2547
  %2804 = vst [vmem:[%s3 + $0x498] sm:$0xff] %v2548
  %2805 = vst [vmem:[%s3 + $0x4a0] sm:$0xff] %v2549
  %2806 = vst [vmem:[%s3 + $0x4a8] sm:$0xff] %v2550
  %2807 = vst [vmem:[%s3 + $0x4b0] sm:$0xff] %v2551
  %2808 = vst [vmem:[%s3 + $0x4b8] sm:$0xff] %v2552
  %2809 = vst [vmem:[%s3 + $0x4c0] sm:$0xff] %v2553
  %2810 = vst [vmem:[%s3 + $0x4c8] sm:$0xff] %v2554
  %2811 = vst [vmem:[%s3 + $0x4d0] sm:$0xff] %v2555
  %2812 = vst [vmem:[%s3 + $0x4d8] sm:$0xff] %v2556
  %2813 = vst [vmem:[%s3 + $0x4e0] sm:$0xff] %v2557
  %2814 = vst [vmem:[%s3 + $0x4e8] sm:$0xff] %v2558
  %2815 = vst [vmem:[%s3 + $0x4f0] sm:$0xff] %v2559
  %2816 = vst [vmem:[%s3 + $0x4f8] sm:$0xff] %v2560
  %2817 = vst [vmem:[%s3 + $0x500] sm:$0xff] %v2561
  %2818 = vst [vmem:[%s3 + $0x508] sm:$0xff] %v2562
  %2819 = vst [vmem:[%s3 + $0x510] sm:$0xff] %v2563
  %2820 = vst [vmem:[%s3 + $0x518] sm:$0xff] %v2564
  %2821 = vst [vmem:[%s3 + $0x520] sm:$0xff] %v2565
  %2822 = vst [vmem:[%s3 + $0x528] sm:$0xff] %v2566
  %2823 = vst [vmem:[%s3 + $0x530] sm:$0xff] %v2567
  %2824 = vst [vmem:[%s3 + $0x538] sm:$0xff] %v2568
  %2825 = vst [vmem:[%s3 + $0x540] sm:$0xff] %v2569
  %2826 = vst [vmem:[%s3 + $0x548] sm:$0xff] %v2570
  %2827 = vst [vmem:[%s3 + $0x550] sm:$0xff] %v2571
  %2828 = vst [vmem:[%s3 + $0x558] sm:$0xff] %v2572
  %2829 = vst [vmem:[%s3 + $0x560] sm:$0xff] %v2573
  %2830 = vst [vmem:[%s3 + $0x568] sm:$0xff] %v2574
  %2831 = vst [vmem:[%s3 + $0x570] sm:$0xff] %v2575
  %2832 = vst [vmem:[%s3 + $0x578] sm:$0xff] %v2576
  %2833 = vst [vmem:[%s3 + $0x580] sm:$0xff] %v2577
  %2834 = vst [vmem:[%s3 + $0x588] sm:$0xff] %v2578
  %2835 = vst [vmem:[%s3 + $0x590] sm:$0xff] %v2579
  %2836 = vst [vmem:[%s3 + $0x598] sm:$0xff] %v2580
  %2837 = vst [vmem:[%s3 + $0x5a0] sm:$0xff] %v2581
  %2838 = vst [vmem:[%s3 + $0x5a8] sm:$0xff] %v2582
  %2839 = vst [vmem:[%s3 + $0x5b0] sm:$0xff] %v2583
  %2840 = vst [vmem:[%s3 + $0x5b8] sm:$0xff] %v2584
  %2841 = vst [vmem:[%s3 + $0x5c0] sm:$0xff] %v2585
  %2842 = vst [vmem:[%s3 + $0x5c8] sm:$0xff] %v2586
  %2843 = vst [vmem:[%s3 + $0x5d0] sm:$0xff] %v2587
  %2844 = vst [vmem:[%s3 + $0x5d8] sm:$0xff] %v2588
  %2845 = vst [vmem:[%s3 + $0x5e0] sm:$0xff] %v2589
  %2846 = vst [vmem:[%s3 + $0x5e8] sm:$0xff] %v2590
  %2847 = vst [vmem:[%s3 + $0x5f0] sm:$0xff] %v2591
  %2848 = vst [vmem:[%s3 + $0x5f8] sm:$0xff] %v2592
  %2849 = vst [vmem:[%s3 + $0x600] sm:$0xff] %v2593
  %2850 = vst [vmem:[%s3 + $0x608] sm:$0xff] %v2594
  %2851 = vst [vmem:[%s3 + $0x610] sm:$0xff] %v2595
  %2852 = vst [vmem:[%s3 + $0x618] sm:$0xff] %v2596
  %2853 = vst [vmem:[%s3 + $0x620] sm:$0xff] %v2597
  %2854 = vst [vmem:[%s3 + $0x628] sm:$0xff] %v2598
  %2855 = vst [vmem:[%s3 + $0x630] sm:$0xff] %v2599
  %2856 = vst [vmem:[%s3 + $0x638] sm:$0xff] %v2600
  %2857 = vst [vmem:[%s3 + $0x640] sm:$0xff] %v2601
  %2858 = vst [vmem:[%s3 + $0x648] sm:$0xff] %v2602
  %2859 = vst [vmem:[%s3 + $0x650] sm:$0xff] %v2603
  %2860 = vst [vmem:[%s3 + $0x658] sm:$0xff] %v2604
  %2861 = vst [vmem:[%s3 + $0x660] sm:$0xff] %v2605
  %2862 = vst [vmem:[%s3 + $0x668] sm:$0xff] %v2606
  %2863 = vst [vmem:[%s3 + $0x670] sm:$0xff] %v2607
  %2864 = vst [vmem:[%s3 + $0x678] sm:$0xff] %v2608
  %2865 = vst [vmem:[%s3 + $0x680] sm:$0xff] %v2609
  %2866 = vst [vmem:[%s3 + $0x688] sm:$0xff] %v2610
  %2867 = vst [vmem:[%s3 + $0x690] sm:$0xff] %v2611
  %2868 = vst [vmem:[%s3 + $0x698] sm:$0xff] %v2612
  %2869 = vst [vmem:[%s3 + $0x6a0] sm:$0xff] %v2613
  %2870 = vst [vmem:[%s3 + $0x6a8] sm:$0xff] %v2614
  %2871 = vst [vmem:[%s3 + $0x6b0] sm:$0xff] %v2615
  %2872 = vst [vmem:[%s3 + $0x6b8] sm:$0xff] %v2616
  %2873 = vst [vmem:[%s3 + $0x6c0] sm:$0xff] %v2617
  %2874 = vst [vmem:[%s3 + $0x6c8] sm:$0xff] %v2618
  %2875 = vst [vmem:[%s3 + $0x6d0] sm:$0xff] %v2619
  %2876 = vst [vmem:[%s3 + $0x6d8] sm:$0xff] %v2620
  %2877 = vst [vmem:[%s3 + $0x6e0] sm:$0xff] %v2621
  %2878 = vst [vmem:[%s3 + $0x6e8] sm:$0xff] %v2622
  %2879 = vst [vmem:[%s3 + $0x6f0] sm:$0xff] %v2623
  %2880 = vst [vmem:[%s3 + $0x6f8] sm:$0xff] %v2624
  %2881 = vst [vmem:[%s3 + $0x700] sm:$0xff] %v2625
  %2882 = vst [vmem:[%s3 + $0x708] sm:$0xff] %v2626
  %2883 = vst [vmem:[%s3 + $0x710] sm:$0xff] %v2627
  %2884 = vst [vmem:[%s3 + $0x718] sm:$0xff] %v2628
  %2885 = vst [vmem:[%s3 + $0x720] sm:$0xff] %v2629
  %2886 = vst [vmem:[%s3 + $0x728] sm:$0xff] %v2630
  %2887 = vst [vmem:[%s3 + $0x730] sm:$0xff] %v2631
  %2888 = vst [vmem:[%s3 + $0x738] sm:$0xff] %v2632
  %2889 = vst [vmem:[%s3 + $0x740] sm:$0xff] %v2633
  %2890 = vst [vmem:[%s3 + $0x748] sm:$0xff] %v2634
  %2891 = vst [vmem:[%s3 + $0x750] sm:$0xff] %v2635
  %2892 = vst [vmem:[%s3 + $0x758] sm:$0xff] %v2636
  %2893 = vst [vmem:[%s3 + $0x760] sm:$0xff] %v2637
  %2894 = vst [vmem:[%s3 + $0x768] sm:$0xff] %v2638
  %2895 = vst [vmem:[%s3 + $0x770] sm:$0xff] %v2639
  %2896 = vst [vmem:[%s3 + $0x778] sm:$0xff] %v2640
  %2897 = vst [vmem:[%s3 + $0x780] sm:$0xff] %v2641
  %2898 = vst [vmem:[%s3 + $0x788] sm:$0xff] %v2642
  %2899 = vst [vmem:[%s3 + $0x790] sm:$0xff] %v2643
  %2900 = vst [vmem:[%s3 + $0x798] sm:$0xff] %v2644
  %2901 = vst [vmem:[%s3 + $0x7a0] sm:$0xff] %v2645
  %2902 = vst [vmem:[%s3 + $0x7a8] sm:$0xff] %v2646
  %2903 = vst [vmem:[%s3 + $0x7b0] sm:$0xff] %v2647
  %2904 = vst [vmem:[%s3 + $0x7b8] sm:$0xff] %v2648
  %2905 = vst [vmem:[%s3 + $0x7c0] sm:$0xff] %v2649
  %2906 = vst [vmem:[%s3 + $0x7c8] sm:$0xff] %v2650
  %2907 = vst [vmem:[%s3 + $0x7d0] sm:$0xff] %v2651
  %2908 = vst [vmem:[%s3 + $0x7d8] sm:$0xff] %v2652
  %2909 = vst [vmem:[%s3 + $0x7e0] sm:$0xff] %v2653
  %2910 = vst [vmem:[%s3 + $0x7e8] sm:$0xff] %v2654
  %2911 = vst [vmem:[%s3 + $0x7f0] sm:$0xff] %v2655
  %2912 = vst [vmem:[%s3 + $0x7f8] sm:$0xff] %v2656
  // Predicated region
  $region14: #{pilotnet_forward.5} parent=0 // pred_check
    _
  $region15: #{pilotnet_forward.5} parent=0 // pred_check_branch
    %2914 = sbr.rel (0) target = $region17
  $region16: #{pilotnet_forward.5} parent=0 // pred_region
    _
  $region17: #{pilotnet_forward.5} parent=0 // pred_fallthru
    _
  // Predicated region
  $region18: #{pilotnet_forward.5} parent=0 // pred_check
    _
  $region19: #{pilotnet_forward.5} parent=0 // pred_check_branch
    %2916 = sbr.rel (0) target = $region21
  $region20: #{pilotnet_forward.5} parent=0 // pred_region
    _
  $region21: #{pilotnet_forward.5} parent=0 // pred_fallthru
    _

// kernel: pilotnet_forward.6
$region0: #{pilotnet_forward.6}
  #allocation0 [shape = 'u32[]', space=smem, size = 0x4, offset = 0x4, fixed_abs, tag = 'smem constant byte address 0x4 - core index']
  #allocation1 [shape = 'u32[144,128]{1,0:T(1,128)}', space=vmem, size = 0x12000, scoped, tag = 'internal scratch']
  %s0 = inlined_call_operand.vmem [shape: f32[512,600], index: 0, kind: input, shape index: {}]
  %s1 = inlined_call_operand.vmem [shape: f32[600,128], index: 1, kind: input, shape index: {}]
  %s2 = inlined_call_operand.vmem [shape: f32[1,128], index: 2, kind: input, shape index: {}]
  %s3 = inlined_call_operand.vmem [shape: f32[512,128], index: 3, kind: output, shape index: {}]
  %s4 = sld [smem:[#allocation0]]
  $region22: #{pilotnet_forward.6} parent=0
    _
  %s6 = ssub.s32 1, %s4
  %s7 = scalar_select 0, %s6, %s4
  // Predicated region
  $region2: #{pilotnet_forward.6} parent=0 // pred_check
    _
  $region3: #{pilotnet_forward.6} parent=0 // pred_check_branch
    %9 = sbr.rel (0) target = $region5
  $region4: #{pilotnet_forward.6} parent=0 // pred_region
    _
  $region5: #{pilotnet_forward.6} parent=0 // pred_fallthru
    _
  // Predicated region
  $region6: #{pilotnet_forward.6} parent=0 // pred_check
    _
  $region7: #{pilotnet_forward.6} parent=0 // pred_check_branch
    %11 = sbr.rel (0) target = $region9
  $region8: #{pilotnet_forward.6} parent=0 // pred_region
    _
  $region9: #{pilotnet_forward.6} parent=0 // pred_fallthru
    _
  // Predicated region
  $region10: #{pilotnet_forward.6} parent=0 // pred_check
    _
  $region11: #{pilotnet_forward.6} parent=0 // pred_check_branch
    %13 = sbr.rel (0) target = $region13
  $region12: #{pilotnet_forward.6} parent=0 // pred_region
    _
  $region13: #{pilotnet_forward.6} parent=0 // pred_fallthru
    _
  %v14 = vld [vmem:[%s0] sm:$0xff]
  %v15 = vld [vmem:[%s0 + $0x8] sm:$0xff]
  %v16 = vld [vmem:[%s0 + $0x10] sm:$0xff]
  %v17 = vld [vmem:[%s0 + $0x18] sm:$0xff]
  %v18 = vld [vmem:[%s0 + $0x20] sm:$0xff]
  %v19 = vld [vmem:[%s0 + $0x28] sm:$0xff]
  %v20 = vld [vmem:[%s0 + $0x30] sm:$0xff]
  %v21 = vld [vmem:[%s0 + $0x38] sm:$0xff]
  %v22 = vld [vmem:[%s0 + $0x40] sm:$0xff]
  %v23 = vld [vmem:[%s0 + $0x48] sm:$0xff]
  %v24 = vld [vmem:[%s0 + $0x50] sm:$0xff]
  %v25 = vld [vmem:[%s0 + $0x58] sm:$0xff]
  %v26 = vld [vmem:[%s0 + $0x60] sm:$0xff]
  %v27 = vld [vmem:[%s0 + $0x68] sm:$0xff]
  %v28 = vld [vmem:[%s0 + $0x70] sm:$0xff]
  %v29 = vld [vmem:[%s0 + $0x78] sm:$0xff]
  %v30 = vld [vmem:[%s0 + $0x80] sm:$0xff]
  %v31 = vld [vmem:[%s0 + $0x88] sm:$0xff]
  %v32 = vld [vmem:[%s0 + $0x90] sm:$0xff]
  %v33 = vld [vmem:[%s0 + $0x98] sm:$0xff]
  %v34 = vld [vmem:[%s0 + $0xa0] sm:$0xff]
  %v35 = vld [vmem:[%s0 + $0xa8] sm:$0xff]
  %v36 = vld [vmem:[%s0 + $0xb0] sm:$0xff]
  %v37 = vld [vmem:[%s0 + $0xb8] sm:$0xff]
  %v38 = vld [vmem:[%s0 + $0xc0] sm:$0xff]
  %v39 = vld [vmem:[%s0 + $0xc8] sm:$0xff]
  %v40 = vld [vmem:[%s0 + $0xd0] sm:$0xff]
  %v41 = vld [vmem:[%s0 + $0xd8] sm:$0xff]
  %v42 = vld [vmem:[%s0 + $0xe0] sm:$0xff]
  %v43 = vld [vmem:[%s0 + $0xe8] sm:$0xff]
  %v44 = vld [vmem:[%s0 + $0xf0] sm:$0xff]
  %v45 = vld [vmem:[%s0 + $0xf8] sm:$0xff]
  %v46 = vld [vmem:[%s0 + $0x100] sm:$0xff]
  %v47 = vld [vmem:[%s0 + $0x108] sm:$0xff]
  %v48 = vld [vmem:[%s0 + $0x110] sm:$0xff]
  %v49 = vld [vmem:[%s0 + $0x118] sm:$0xff]
  %v50 = vld [vmem:[%s0 + $0x120] sm:$0xff]
  %v51 = vld [vmem:[%s0 + $0x128] sm:$0xff]
  %v52 = vld [vmem:[%s0 + $0x130] sm:$0xff]
  %v53 = vld [vmem:[%s0 + $0x138] sm:$0xff]
  %v54 = vld [vmem:[%s0 + $0x140] sm:$0xff]
  %v55 = vld [vmem:[%s0 + $0x148] sm:$0xff]
  %v56 = vld [vmem:[%s0 + $0x150] sm:$0xff]
  %v57 = vld [vmem:[%s0 + $0x158] sm:$0xff]
  %v58 = vld [vmem:[%s0 + $0x160] sm:$0xff]
  %v59 = vld [vmem:[%s0 + $0x168] sm:$0xff]
  %v60 = vld [vmem:[%s0 + $0x170] sm:$0xff]
  %v61 = vld [vmem:[%s0 + $0x178] sm:$0xff]
  %v62 = vld [vmem:[%s0 + $0x180] sm:$0xff]
  %v63 = vld [vmem:[%s0 + $0x188] sm:$0xff]
  %v64 = vld [vmem:[%s0 + $0x190] sm:$0xff]
  %v65 = vld [vmem:[%s0 + $0x198] sm:$0xff]
  %v66 = vld [vmem:[%s0 + $0x1a0] sm:$0xff]
  %v67 = vld [vmem:[%s0 + $0x1a8] sm:$0xff]
  %v68 = vld [vmem:[%s0 + $0x1b0] sm:$0xff]
  %v69 = vld [vmem:[%s0 + $0x1b8] sm:$0xff]
  %v70 = vld [vmem:[%s0 + $0x1c0] sm:$0xff]
  %v71 = vld [vmem:[%s0 + $0x1c8] sm:$0xff]
  %v72 = vld [vmem:[%s0 + $0x1d0] sm:$0xff]
  %v73 = vld [vmem:[%s0 + $0x1d8] sm:$0xff]
  %v74 = vld [vmem:[%s0 + $0x1e0] sm:$0xff]
  %v75 = vld [vmem:[%s0 + $0x1e8] sm:$0xff]
  %v76 = vld [vmem:[%s0 + $0x1f0] sm:$0xff]
  %v77 = vld [vmem:[%s0 + $0x1f8] sm:$0xff]
  %v78 = vld [vmem:[%s0 + $0x200] sm:$0xff]
  %v79 = vld [vmem:[%s0 + $0x208] sm:$0xff]
  %v80 = vld [vmem:[%s0 + $0x210] sm:$0xff]
  %v81 = vld [vmem:[%s0 + $0x218] sm:$0xff]
  %v82 = vld [vmem:[%s0 + $0x220] sm:$0xff]
  %v83 = vld [vmem:[%s0 + $0x228] sm:$0xff]
  %v84 = vld [vmem:[%s0 + $0x230] sm:$0xff]
  %v85 = vld [vmem:[%s0 + $0x238] sm:$0xff]
  %v86 = vld [vmem:[%s0 + $0x240] sm:$0xff]
  %v87 = vld [vmem:[%s0 + $0x248] sm:$0xff]
  %v88 = vld [vmem:[%s0 + $0x250] sm:$0xff]
  %v89 = vld [vmem:[%s0 + $0x258] sm:$0xff]
  %v90 = vld [vmem:[%s0 + $0x260] sm:$0xff]
  %v91 = vld [vmem:[%s0 + $0x268] sm:$0xff]
  %v92 = vld [vmem:[%s0 + $0x270] sm:$0xff]
  %v93 = vld [vmem:[%s0 + $0x278] sm:$0xff]
  %v94 = vld [vmem:[%s0 + $0x280] sm:$0xff]
  %v95 = vld [vmem:[%s0 + $0x288] sm:$0xff]
  %v96 = vld [vmem:[%s0 + $0x290] sm:$0xff]
  %v97 = vld [vmem:[%s0 + $0x298] sm:$0xff]
  %v98 = vld [vmem:[%s0 + $0x2a0] sm:$0xff]
  %v99 = vld [vmem:[%s0 + $0x2a8] sm:$0xff]
  %v100 = vld [vmem:[%s0 + $0x2b0] sm:$0xff]
  %v101 = vld [vmem:[%s0 + $0x2b8] sm:$0xff]
  %v102 = vld [vmem:[%s0 + $0x2c0] sm:$0xff]
  %v103 = vld [vmem:[%s0 + $0x2c8] sm:$0xff]
  %v104 = vld [vmem:[%s0 + $0x2d0] sm:$0xff]
  %v105 = vld [vmem:[%s0 + $0x2d8] sm:$0xff]
  %v106 = vld [vmem:[%s0 + $0x2e0] sm:$0xff]
  %v107 = vld [vmem:[%s0 + $0x2e8] sm:$0xff]
  %v108 = vld [vmem:[%s0 + $0x2f0] sm:$0xff]
  %v109 = vld [vmem:[%s0 + $0x2f8] sm:$0xff]
  %v110 = vld [vmem:[%s0 + $0x300] sm:$0xff]
  %v111 = vld [vmem:[%s0 + $0x308] sm:$0xff]
  %v112 = vld [vmem:[%s0 + $0x310] sm:$0xff]
  %v113 = vld [vmem:[%s0 + $0x318] sm:$0xff]
  %v114 = vld [vmem:[%s0 + $0x320] sm:$0xff]
  %v115 = vld [vmem:[%s0 + $0x328] sm:$0xff]
  %v116 = vld [vmem:[%s0 + $0x330] sm:$0xff]
  %v117 = vld [vmem:[%s0 + $0x338] sm:$0xff]
  %v118 = vld [vmem:[%s0 + $0x340] sm:$0xff]
  %v119 = vld [vmem:[%s0 + $0x348] sm:$0xff]
  %v120 = vld [vmem:[%s0 + $0x350] sm:$0xff]
  %v121 = vld [vmem:[%s0 + $0x358] sm:$0xff]
  %v122 = vld [vmem:[%s0 + $0x360] sm:$0xff]
  %v123 = vld [vmem:[%s0 + $0x368] sm:$0xff]
  %v124 = vld [vmem:[%s0 + $0x370] sm:$0xff]
  %v125 = vld [vmem:[%s0 + $0x378] sm:$0xff]
  %v126 = vld [vmem:[%s0 + $0x380] sm:$0xff]
  %v127 = vld [vmem:[%s0 + $0x388] sm:$0xff]
  %v128 = vld [vmem:[%s0 + $0x390] sm:$0xff]
  %v129 = vld [vmem:[%s0 + $0x398] sm:$0xff]
  %v130 = vld [vmem:[%s0 + $0x3a0] sm:$0xff]
  %v131 = vld [vmem:[%s0 + $0x3a8] sm:$0xff]
  %v132 = vld [vmem:[%s0 + $0x3b0] sm:$0xff]
  %v133 = vld [vmem:[%s0 + $0x3b8] sm:$0xff]
  %v134 = vld [vmem:[%s0 + $0x3c0] sm:$0xff]
  %v135 = vld [vmem:[%s0 + $0x3c8] sm:$0xff]
  %v136 = vld [vmem:[%s0 + $0x3d0] sm:$0xff]
  %v137 = vld [vmem:[%s0 + $0x3d8] sm:$0xff]
  %v138 = vld [vmem:[%s0 + $0x3e0] sm:$0xff]
  %v139 = vld [vmem:[%s0 + $0x3e8] sm:$0xff]
  %v140 = vld [vmem:[%s0 + $0x3f0] sm:$0xff]
  %v141 = vld [vmem:[%s0 + $0x3f8] sm:$0xff]
  %v142 = vld [vmem:[%s0 + $0x400] sm:$0xff]
  %v143 = vld [vmem:[%s0 + $0x408] sm:$0xff]
  %v144 = vld [vmem:[%s0 + $0x410] sm:$0xff]
  %v145 = vld [vmem:[%s0 + $0x418] sm:$0xff]
  %v146 = vld [vmem:[%s0 + $0x420] sm:$0xff]
  %v147 = vld [vmem:[%s0 + $0x428] sm:$0xff]
  %v148 = vld [vmem:[%s0 + $0x430] sm:$0xff]
  %v149 = vld [vmem:[%s0 + $0x438] sm:$0xff]
  %v150 = vld [vmem:[%s0 + $0x440] sm:$0xff]
  %v151 = vld [vmem:[%s0 + $0x448] sm:$0xff]
  %v152 = vld [vmem:[%s0 + $0x450] sm:$0xff]
  %v153 = vld [vmem:[%s0 + $0x458] sm:$0xff]
  %v154 = vld [vmem:[%s0 + $0x460] sm:$0xff]
  %v155 = vld [vmem:[%s0 + $0x468] sm:$0xff]
  %v156 = vld [vmem:[%s0 + $0x470] sm:$0xff]
  %v157 = vld [vmem:[%s0 + $0x478] sm:$0xff]
  %v158 = vld [vmem:[%s0 + $0x480] sm:$0xff]
  %v159 = vld [vmem:[%s0 + $0x488] sm:$0xff]
  %v160 = vld [vmem:[%s0 + $0x490] sm:$0xff]
  %v161 = vld [vmem:[%s0 + $0x498] sm:$0xff]
  %v162 = vld [vmem:[%s0 + $0x4a0] sm:$0xff]
  %v163 = vld [vmem:[%s0 + $0x4a8] sm:$0xff]
  %v164 = vld [vmem:[%s0 + $0x4b0] sm:$0xff]
  %v165 = vld [vmem:[%s0 + $0x4b8] sm:$0xff]
  %v166 = vld [vmem:[%s0 + $0x4c0] sm:$0xff]
  %v167 = vld [vmem:[%s0 + $0x4c8] sm:$0xff]
  %v168 = vld [vmem:[%s0 + $0x4d0] sm:$0xff]
  %v169 = vld [vmem:[%s0 + $0x4d8] sm:$0xff]
  %v170 = vld [vmem:[%s0 + $0x4e0] sm:$0xff]
  %v171 = vld [vmem:[%s0 + $0x4e8] sm:$0xff]
  %v172 = vld [vmem:[%s0 + $0x4f0] sm:$0xff]
  %v173 = vld [vmem:[%s0 + $0x4f8] sm:$0xff]
  %v174 = vld [vmem:[%s0 + $0x500] sm:$0xff]
  %v175 = vld [vmem:[%s0 + $0x508] sm:$0xff]
  %v176 = vld [vmem:[%s0 + $0x510] sm:$0xff]
  %v177 = vld [vmem:[%s0 + $0x518] sm:$0xff]
  %v178 = vld [vmem:[%s0 + $0x520] sm:$0xff]
  %v179 = vld [vmem:[%s0 + $0x528] sm:$0xff]
  %v180 = vld [vmem:[%s0 + $0x530] sm:$0xff]
  %v181 = vld [vmem:[%s0 + $0x538] sm:$0xff]
  %v182 = vld [vmem:[%s0 + $0x540] sm:$0xff]
  %v183 = vld [vmem:[%s0 + $0x548] sm:$0xff]
  %v184 = vld [vmem:[%s0 + $0x550] sm:$0xff]
  %v185 = vld [vmem:[%s0 + $0x558] sm:$0xff]
  %v186 = vld [vmem:[%s0 + $0x560] sm:$0xff]
  %v187 = vld [vmem:[%s0 + $0x568] sm:$0xff]
  %v188 = vld [vmem:[%s0 + $0x570] sm:$0xff]
  %v189 = vld [vmem:[%s0 + $0x578] sm:$0xff]
  %v190 = vld [vmem:[%s0 + $0x580] sm:$0xff]
  %v191 = vld [vmem:[%s0 + $0x588] sm:$0xff]
  %v192 = vld [vmem:[%s0 + $0x590] sm:$0xff]
  %v193 = vld [vmem:[%s0 + $0x598] sm:$0xff]
  %v194 = vld [vmem:[%s0 + $0x5a0] sm:$0xff]
  %v195 = vld [vmem:[%s0 + $0x5a8] sm:$0xff]
  %v196 = vld [vmem:[%s0 + $0x5b0] sm:$0xff]
  %v197 = vld [vmem:[%s0 + $0x5b8] sm:$0xff]
  %v198 = vld [vmem:[%s0 + $0x5c0] sm:$0xff]
  %v199 = vld [vmem:[%s0 + $0x5c8] sm:$0xff]
  %v200 = vld [vmem:[%s0 + $0x5d0] sm:$0xff]
  %v201 = vld [vmem:[%s0 + $0x5d8] sm:$0xff]
  %v202 = vld [vmem:[%s0 + $0x5e0] sm:$0xff]
  %v203 = vld [vmem:[%s0 + $0x5e8] sm:$0xff]
  %v204 = vld [vmem:[%s0 + $0x5f0] sm:$0xff]
  %v205 = vld [vmem:[%s0 + $0x5f8] sm:$0xff]
  %v206 = vld [vmem:[%s0 + $0x600] sm:$0xff]
  %v207 = vld [vmem:[%s0 + $0x608] sm:$0xff]
  %v208 = vld [vmem:[%s0 + $0x610] sm:$0xff]
  %v209 = vld [vmem:[%s0 + $0x618] sm:$0xff]
  %v210 = vld [vmem:[%s0 + $0x620] sm:$0xff]
  %v211 = vld [vmem:[%s0 + $0x628] sm:$0xff]
  %v212 = vld [vmem:[%s0 + $0x630] sm:$0xff]
  %v213 = vld [vmem:[%s0 + $0x638] sm:$0xff]
  %v214 = vld [vmem:[%s0 + $0x640] sm:$0xff]
  %v215 = vld [vmem:[%s0 + $0x648] sm:$0xff]
  %v216 = vld [vmem:[%s0 + $0x650] sm:$0xff]
  %v217 = vld [vmem:[%s0 + $0x658] sm:$0xff]
  %v218 = vld [vmem:[%s0 + $0x660] sm:$0xff]
  %v219 = vld [vmem:[%s0 + $0x668] sm:$0xff]
  %v220 = vld [vmem:[%s0 + $0x670] sm:$0xff]
  %v221 = vld [vmem:[%s0 + $0x678] sm:$0xff]
  %v222 = vld [vmem:[%s0 + $0x680] sm:$0xff]
  %v223 = vld [vmem:[%s0 + $0x688] sm:$0xff]
  %v224 = vld [vmem:[%s0 + $0x690] sm:$0xff]
  %v225 = vld [vmem:[%s0 + $0x698] sm:$0xff]
  %v226 = vld [vmem:[%s0 + $0x6a0] sm:$0xff]
  %v227 = vld [vmem:[%s0 + $0x6a8] sm:$0xff]
  %v228 = vld [vmem:[%s0 + $0x6b0] sm:$0xff]
  %v229 = vld [vmem:[%s0 + $0x6b8] sm:$0xff]
  %v230 = vld [vmem:[%s0 + $0x6c0] sm:$0xff]
  %v231 = vld [vmem:[%s0 + $0x6c8] sm:$0xff]
  %v232 = vld [vmem:[%s0 + $0x6d0] sm:$0xff]
  %v233 = vld [vmem:[%s0 + $0x6d8] sm:$0xff]
  %v234 = vld [vmem:[%s0 + $0x6e0] sm:$0xff]
  %v235 = vld [vmem:[%s0 + $0x6e8] sm:$0xff]
  %v236 = vld [vmem:[%s0 + $0x6f0] sm:$0xff]
  %v237 = vld [vmem:[%s0 + $0x6f8] sm:$0xff]
  %v238 = vld [vmem:[%s0 + $0x700] sm:$0xff]
  %v239 = vld [vmem:[%s0 + $0x708] sm:$0xff]
  %v240 = vld [vmem:[%s0 + $0x710] sm:$0xff]
  %v241 = vld [vmem:[%s0 + $0x718] sm:$0xff]
  %v242 = vld [vmem:[%s0 + $0x720] sm:$0xff]
  %v243 = vld [vmem:[%s0 + $0x728] sm:$0xff]
  %v244 = vld [vmem:[%s0 + $0x730] sm:$0xff]
  %v245 = vld [vmem:[%s0 + $0x738] sm:$0xff]
  %v246 = vld [vmem:[%s0 + $0x740] sm:$0xff]
  %v247 = vld [vmem:[%s0 + $0x748] sm:$0xff]
  %v248 = vld [vmem:[%s0 + $0x750] sm:$0xff]
  %v249 = vld [vmem:[%s0 + $0x758] sm:$0xff]
  %v250 = vld [vmem:[%s0 + $0x760] sm:$0xff]
  %v251 = vld [vmem:[%s0 + $0x768] sm:$0xff]
  %v252 = vld [vmem:[%s0 + $0x770] sm:$0xff]
  %v253 = vld [vmem:[%s0 + $0x778] sm:$0xff]
  %v254 = vld [vmem:[%s0 + $0x780] sm:$0xff]
  %v255 = vld [vmem:[%s0 + $0x788] sm:$0xff]
  %v256 = vld [vmem:[%s0 + $0x790] sm:$0xff]
  %v257 = vld [vmem:[%s0 + $0x798] sm:$0xff]
  %v258 = vld [vmem:[%s0 + $0x7a0] sm:$0xff]
  %v259 = vld [vmem:[%s0 + $0x7a8] sm:$0xff]
  %v260 = vld [vmem:[%s0 + $0x7b0] sm:$0xff]
  %v261 = vld [vmem:[%s0 + $0x7b8] sm:$0xff]
  %v262 = vld [vmem:[%s0 + $0x7c0] sm:$0xff]
  %v263 = vld [vmem:[%s0 + $0x7c8] sm:$0xff]
  %v264 = vld [vmem:[%s0 + $0x7d0] sm:$0xff]
  %v265 = vld [vmem:[%s0 + $0x7d8] sm:$0xff]
  %v266 = vld [vmem:[%s0 + $0x7e0] sm:$0xff]
  %v267 = vld [vmem:[%s0 + $0x7e8] sm:$0xff]
  %v268 = vld [vmem:[%s0 + $0x7f0] sm:$0xff]
  %v269 = vld [vmem:[%s0 + $0x7f8] sm:$0xff]
  %v270 = vld [vmem:[%s0 + $0x800] sm:$0xff]
  %v271 = vld [vmem:[%s0 + $0x808] sm:$0xff]
  %v272 = vld [vmem:[%s0 + $0x810] sm:$0xff]
  %v273 = vld [vmem:[%s0 + $0x818] sm:$0xff]
  %v274 = vld [vmem:[%s0 + $0x820] sm:$0xff]
  %v275 = vld [vmem:[%s0 + $0x828] sm:$0xff]
  %v276 = vld [vmem:[%s0 + $0x830] sm:$0xff]
  %v277 = vld [vmem:[%s0 + $0x838] sm:$0xff]
  %v278 = vld [vmem:[%s0 + $0x840] sm:$0xff]
  %v279 = vld [vmem:[%s0 + $0x848] sm:$0xff]
  %v280 = vld [vmem:[%s0 + $0x850] sm:$0xff]
  %v281 = vld [vmem:[%s0 + $0x858] sm:$0xff]
  %v282 = vld [vmem:[%s0 + $0x860] sm:$0xff]
  %v283 = vld [vmem:[%s0 + $0x868] sm:$0xff]
  %v284 = vld [vmem:[%s0 + $0x870] sm:$0xff]
  %v285 = vld [vmem:[%s0 + $0x878] sm:$0xff]
  %v286 = vld [vmem:[%s0 + $0x880] sm:$0xff]
  %v287 = vld [vmem:[%s0 + $0x888] sm:$0xff]
  %v288 = vld [vmem:[%s0 + $0x890] sm:$0xff]
  %v289 = vld [vmem:[%s0 + $0x898] sm:$0xff]
  %v290 = vld [vmem:[%s0 + $0x8a0] sm:$0xff]
  %v291 = vld [vmem:[%s0 + $0x8a8] sm:$0xff]
  %v292 = vld [vmem:[%s0 + $0x8b0] sm:$0xff]
  %v293 = vld [vmem:[%s0 + $0x8b8] sm:$0xff]
  %v294 = vld [vmem:[%s0 + $0x8c0] sm:$0xff]
  %v295 = vld [vmem:[%s0 + $0x8c8] sm:$0xff]
  %v296 = vld [vmem:[%s0 + $0x8d0] sm:$0xff]
  %v297 = vld [vmem:[%s0 + $0x8d8] sm:$0xff]
  %v298 = vld [vmem:[%s0 + $0x8e0] sm:$0xff]
  %v299 = vld [vmem:[%s0 + $0x8e8] sm:$0xff]
  %v300 = vld [vmem:[%s0 + $0x8f0] sm:$0xff]
  %v301 = vld [vmem:[%s0 + $0x8f8] sm:$0xff]
  %v302 = vld [vmem:[%s0 + $0x900] sm:$0xff]
  %v303 = vld [vmem:[%s0 + $0x908] sm:$0xff]
  %v304 = vld [vmem:[%s0 + $0x910] sm:$0xff]
  %v305 = vld [vmem:[%s0 + $0x918] sm:$0xff]
  %v306 = vld [vmem:[%s0 + $0x920] sm:$0xff]
  %v307 = vld [vmem:[%s0 + $0x928] sm:$0xff]
  %v308 = vld [vmem:[%s0 + $0x930] sm:$0xff]
  %v309 = vld [vmem:[%s0 + $0x938] sm:$0xff]
  %v310 = vld [vmem:[%s0 + $0x940] sm:$0xff]
  %v311 = vld [vmem:[%s0 + $0x948] sm:$0xff]
  %v312 = vld [vmem:[%s0 + $0x950] sm:$0xff]
  %v313 = vld [vmem:[%s0 + $0x958] sm:$0xff]
  %v314 = vld [vmem:[%s0 + $0x960] sm:$0xff]
  %v315 = vld [vmem:[%s0 + $0x968] sm:$0xff]
  %v316 = vld [vmem:[%s0 + $0x970] sm:$0xff]
  %v317 = vld [vmem:[%s0 + $0x978] sm:$0xff]
  %v318 = vld [vmem:[%s0 + $0x980] sm:$0xff]
  %v319 = vld [vmem:[%s0 + $0x988] sm:$0xff]
  %v320 = vld [vmem:[%s0 + $0x990] sm:$0xff]
  %v321 = vld [vmem:[%s0 + $0x998] sm:$0xff]
  %v322 = vld [vmem:[%s0 + $0x9a0] sm:$0xff]
  %v323 = vld [vmem:[%s0 + $0x9a8] sm:$0xff]
  %v324 = vld [vmem:[%s0 + $0x9b0] sm:$0xff]
  %v325 = vld [vmem:[%s0 + $0x9b8] sm:$0xff]
  %v326 = vld [vmem:[%s0 + $0x9c0] sm:$0xff]
  %v327 = vld [vmem:[%s0 + $0x9c8] sm:$0xff]
  %v328 = vld [vmem:[%s0 + $0x9d0] sm:$0xff]
  %v329 = vld [vmem:[%s0 + $0x9d8] sm:$0xff]
  %v330 = vld [vmem:[%s0 + $0x9e0] sm:$0xff]
  %v331 = vld [vmem:[%s0 + $0x9e8] sm:$0xff]
  %v332 = vld [vmem:[%s0 + $0x9f0] sm:$0xff]
  %v333 = vld [vmem:[%s0 + $0x9f8] sm:$0xff]
  %v334 = vld [vmem:[%s1] sm:$0xff]
  %v335 = vld [vmem:[%s1 + $0x8] sm:$0xff]
  %v336 = vld [vmem:[%s1 + $0x10] sm:$0xff]
  %v337 = vld [vmem:[%s1 + $0x18] sm:$0xff]
  %v338 = vld [vmem:[%s1 + $0x20] sm:$0xff]
  %v339 = vld [vmem:[%s1 + $0x28] sm:$0xff]
  %v340 = vld [vmem:[%s1 + $0x30] sm:$0xff]
  %v341 = vld [vmem:[%s1 + $0x38] sm:$0xff]
  %v342 = vld [vmem:[%s1 + $0x40] sm:$0xff]
  %v343 = vld [vmem:[%s1 + $0x48] sm:$0xff]
  %v344 = vld [vmem:[%s1 + $0x50] sm:$0xff]
  %v345 = vld [vmem:[%s1 + $0x58] sm:$0xff]
  %v346 = vld [vmem:[%s1 + $0x60] sm:$0xff]
  %v347 = vld [vmem:[%s1 + $0x68] sm:$0xff]
  %v348 = vld [vmem:[%s1 + $0x70] sm:$0xff]
  %v349 = vld [vmem:[%s1 + $0x78] sm:$0xff]
  %v350 = vld [vmem:[%s1 + $0x80] sm:$0xff]
  %v351 = vld [vmem:[%s1 + $0x88] sm:$0xff]
  %v352 = vld [vmem:[%s1 + $0x90] sm:$0xff]
  %v353 = vld [vmem:[%s1 + $0x98] sm:$0xff]
  %v354 = vld [vmem:[%s1 + $0xa0] sm:$0xff]
  %v355 = vld [vmem:[%s1 + $0xa8] sm:$0xff]
  %v356 = vld [vmem:[%s1 + $0xb0] sm:$0xff]
  %v357 = vld [vmem:[%s1 + $0xb8] sm:$0xff]
  %v358 = vld [vmem:[%s1 + $0xc0] sm:$0xff]
  %v359 = vld [vmem:[%s1 + $0xc8] sm:$0xff]
  %v360 = vld [vmem:[%s1 + $0xd0] sm:$0xff]
  %v361 = vld [vmem:[%s1 + $0xd8] sm:$0xff]
  %v362 = vld [vmem:[%s1 + $0xe0] sm:$0xff]
  %v363 = vld [vmem:[%s1 + $0xe8] sm:$0xff]
  %v364 = vld [vmem:[%s1 + $0xf0] sm:$0xff]
  %v365 = vld [vmem:[%s1 + $0xf8] sm:$0xff]
  %v366 = vld [vmem:[%s1 + $0x100] sm:$0xff]
  %v367 = vld [vmem:[%s1 + $0x108] sm:$0xff]
  %v368 = vld [vmem:[%s1 + $0x110] sm:$0xff]
  %v369 = vld [vmem:[%s1 + $0x118] sm:$0xff]
  %v370 = vld [vmem:[%s1 + $0x120] sm:$0xff]
  %v371 = vld [vmem:[%s1 + $0x128] sm:$0xff]
  %v372 = vld [vmem:[%s1 + $0x130] sm:$0xff]
  %v373 = vld [vmem:[%s1 + $0x138] sm:$0xff]
  %v374 = vld [vmem:[%s1 + $0x140] sm:$0xff]
  %v375 = vld [vmem:[%s1 + $0x148] sm:$0xff]
  %v376 = vld [vmem:[%s1 + $0x150] sm:$0xff]
  %v377 = vld [vmem:[%s1 + $0x158] sm:$0xff]
  %v378 = vld [vmem:[%s1 + $0x160] sm:$0xff]
  %v379 = vld [vmem:[%s1 + $0x168] sm:$0xff]
  %v380 = vld [vmem:[%s1 + $0x170] sm:$0xff]
  %v381 = vld [vmem:[%s1 + $0x178] sm:$0xff]
  %v382 = vld [vmem:[%s1 + $0x180] sm:$0xff]
  %v383 = vld [vmem:[%s1 + $0x188] sm:$0xff]
  %v384 = vld [vmem:[%s1 + $0x190] sm:$0xff]
  %v385 = vld [vmem:[%s1 + $0x198] sm:$0xff]
  %v386 = vld [vmem:[%s1 + $0x1a0] sm:$0xff]
  %v387 = vld [vmem:[%s1 + $0x1a8] sm:$0xff]
  %v388 = vld [vmem:[%s1 + $0x1b0] sm:$0xff]
  %v389 = vld [vmem:[%s1 + $0x1b8] sm:$0xff]
  %v390 = vld [vmem:[%s1 + $0x1c0] sm:$0xff]
  %v391 = vld [vmem:[%s1 + $0x1c8] sm:$0xff]
  %v392 = vld [vmem:[%s1 + $0x1d0] sm:$0xff]
  %v393 = vld [vmem:[%s1 + $0x1d8] sm:$0xff]
  %v394 = vld [vmem:[%s1 + $0x1e0] sm:$0xff]
  %v395 = vld [vmem:[%s1 + $0x1e8] sm:$0xff]
  %v396 = vld [vmem:[%s1 + $0x1f0] sm:$0xff]
  %v397 = vld [vmem:[%s1 + $0x1f8] sm:$0xff]
  %v398 = vld [vmem:[%s1 + $0x200] sm:$0xff]
  %v399 = vld [vmem:[%s1 + $0x208] sm:$0xff]
  %v400 = vld [vmem:[%s1 + $0x210] sm:$0xff]
  %v401 = vld [vmem:[%s1 + $0x218] sm:$0xff]
  %v402 = vld [vmem:[%s1 + $0x220] sm:$0xff]
  %v403 = vld [vmem:[%s1 + $0x228] sm:$0xff]
  %v404 = vld [vmem:[%s1 + $0x230] sm:$0xff]
  %v405 = vld [vmem:[%s1 + $0x238] sm:$0xff]
  %v406 = vld [vmem:[%s1 + $0x240] sm:$0xff]
  %v407 = vld [vmem:[%s1 + $0x248] sm:$0xff]
  %v408 = vld [vmem:[%s1 + $0x250] sm:$0xff]
  %v409 = vld [vmem:[%s2] sm:$0x1]
  %v411 = vlaneseq
  %v412 = vshrl.u32 %v411, 7
  %v413 = vsub.s32 0, %v412
  %v414 = vrot.slane %v409, %v413
  %vm416 = vcmask 719872
  %v418 = vsel %vm416, %v18, 0
  %v421 = vsel %vm416, %v23, 0
  %v424 = vsel %vm416, %v28, 0
  %v427 = vsel %vm416, %v33, 0
  %v430 = vsel %vm416, %v38, 0
  %v433 = vsel %vm416, %v43, 0
  %v436 = vsel %vm416, %v48, 0
  %v439 = vsel %vm416, %v53, 0
  %v442 = vsel %vm416, %v58, 0
  %v445 = vsel %vm416, %v63, 0
  %v448 = vsel %vm416, %v68, 0
  %v451 = vsel %vm416, %v73, 0
  %v454 = vsel %vm416, %v78, 0
  %v457 = vsel %vm416, %v83, 0
  %v460 = vsel %vm416, %v88, 0
  %v463 = vsel %vm416, %v93, 0
  %v466 = vsel %vm416, %v98, 0
  %v469 = vsel %vm416, %v103, 0
  %v472 = vsel %vm416, %v108, 0
  %v475 = vsel %vm416, %v113, 0
  %v478 = vsel %vm416, %v118, 0
  %v481 = vsel %vm416, %v123, 0
  %v484 = vsel %vm416, %v128, 0
  %v487 = vsel %vm416, %v133, 0
  %v490 = vsel %vm416, %v138, 0
  %v493 = vsel %vm416, %v143, 0
  %v496 = vsel %vm416, %v148, 0
  %v499 = vsel %vm416, %v153, 0
  %v502 = vsel %vm416, %v158, 0
  %v505 = vsel %vm416, %v163, 0
  %v508 = vsel %vm416, %v168, 0
  %v511 = vsel %vm416, %v173, 0
  %v514 = vsel %vm416, %v178, 0
  %v517 = vsel %vm416, %v183, 0
  %v520 = vsel %vm416, %v188, 0
  %v523 = vsel %vm416, %v193, 0
  %v526 = vsel %vm416, %v198, 0
  %v529 = vsel %vm416, %v203, 0
  %v532 = vsel %vm416, %v208, 0
  %v535 = vsel %vm416, %v213, 0
  %v538 = vsel %vm416, %v218, 0
  %v541 = vsel %vm416, %v223, 0
  %v544 = vsel %vm416, %v228, 0
  %v547 = vsel %vm416, %v233, 0
  %v550 = vsel %vm416, %v238, 0
  %v553 = vsel %vm416, %v243, 0
  %v556 = vsel %vm416, %v248, 0
  %v559 = vsel %vm416, %v253, 0
  %v562 = vsel %vm416, %v258, 0
  %v565 = vsel %vm416, %v263, 0
  %v568 = vsel %vm416, %v268, 0
  %v571 = vsel %vm416, %v273, 0
  %v574 = vsel %vm416, %v278, 0
  %v577 = vsel %vm416, %v283, 0
  %v580 = vsel %vm416, %v288, 0
  %v583 = vsel %vm416, %v293, 0
  %v586 = vsel %vm416, %v298, 0
  %v589 = vsel %vm416, %v303, 0
  %v592 = vsel %vm416, %v308, 0
  %v595 = vsel %vm416, %v313, 0
  %v598 = vsel %vm416, %v318, 0
  %v601 = vsel %vm416, %v323, 0
  %v604 = vsel %vm416, %v328, 0
  %v607 = vsel %vm416, %v333, 0
  %609 = vmatprep.subr.mxu0 0.0
  %610 = vmatpush1.msra.mxu0 %v334
  %611 = vmatprep.subr.mxu0 0.0
  %612 = vmatpush1.msra.mxu0 %v335
  %613 = vmatprep.subr.mxu0 0.0
  %614 = vmatpush1.msra.mxu0 %v336
  %615 = vmatprep.subr.mxu0 0.0
  %616 = vmatpush1.msra.mxu0 %v337
  %617 = vmatprep.subr.mxu0 0.0
  %618 = vmatpush1.msra.mxu0 %v338
  %619 = vmatprep.subr.mxu0 0.0
  %620 = vmatpush1.msra.mxu0 %v339
  %621 = vmatprep.subr.mxu0 0.0
  %622 = vmatpush1.msra.mxu0 %v340
  %623 = vmatprep.subr.mxu0 0.0
  %624 = vmatpush1.msra.mxu0 %v341
  %625 = vmatprep.subr.mxu0 0.0
  %626 = vmatpush1.msra.mxu0 %v342
  %627 = vmatprep.subr.mxu0 0.0
  %628 = vmatpush1.msra.mxu0 %v343
  %629 = vmatprep.subr.mxu0 0.0
  %630 = vmatpush1.msra.mxu0 %v344
  %631 = vmatprep.subr.mxu0 0.0
  %632 = vmatpush1.msra.mxu0 %v345
  %633 = vmatprep.subr.mxu0 0.0
  %634 = vmatpush1.msra.mxu0 %v346
  %635 = vmatprep.subr.mxu0 0.0
  %636 = vmatpush1.msra.mxu0 %v347
  %637 = vmatprep.subr.mxu0 0.0
  %638 = vmatpush1.msra.mxu0 %v348
  %639 = vmatprep.subr.mxu0 0.0
  %640 = vmatpush1.msra.mxu0 %v349
  %641 = vmatprep.subr.mxu0 0.0
  %642 = vmatpush1.msra.mxu0 %v350
  %643 = vmatprep.subr.mxu0 0.0
  %644 = vmatpush1.msra.mxu0 %v351
  %645 = vmatprep.subr.mxu0 0.0
  %646 = vmatpush1.msra.mxu0 %v352
  %647 = vmatprep.subr.mxu0 0.0
  %648 = vmatpush1.msra.mxu0 %v353
  %649 = vmatprep.subr.mxu0 0.0
  %650 = vmatpush1.msra.mxu0 %v354
  %651 = vmatprep.subr.mxu0 0.0
  %652 = vmatpush1.msra.mxu0 %v355
  %653 = vmatprep.subr.mxu0 0.0
  %654 = vmatpush1.msra.mxu0 %v356
  %655 = vmatprep.subr.mxu0 0.0
  %656 = vmatpush1.msra.mxu0 %v357
  %657 = vmatprep.subr.mxu0 0.0
  %658 = vmatpush1.msra.mxu0 %v358
  %659 = vmatprep.subr.mxu0 0.0
  %660 = vmatpush1.msra.mxu0 %v359
  %661 = vmatprep.subr.mxu0 0.0
  %662 = vmatpush1.msra.mxu0 %v360
  %663 = vmatprep.subr.mxu0 0.0
  %664 = vmatpush1.msra.mxu0 %v361
  %665 = vmatprep.subr.mxu0 0.0
  %666 = vmatpush1.msra.mxu0 %v362
  %667 = vmatprep.subr.mxu0 0.0
  %668 = vmatpush1.msra.mxu0 %v363
  %669 = vmatprep.subr.mxu0 0.0
  %670 = vmatpush1.msra.mxu0 %v364
  %671 = vmatprep.subr.mxu0 0.0
  %672 = vmatpush1.msra.mxu0 %v365
  %673 = vmatprep.mubr.f32.mxu0 %v15
  %674 = vmatmul.mubr.f32.gmra.mrb[0].mxu0 %v14
  %v675 = vpop.f32.mrb[0].mxu0
  %v676 = vadd.f32 %v414, %v675
  %v677 = vpop.f32.mrb[0].mxu0
  %678 = vmatprep.mubr.f32.mxu0 %v20
  %679 = vmatmul.mubr.f32.gmra.mrb[0].mxu0 %v19
  %v680 = vpop.f32.mrb[0].mxu0
  %v681 = vadd.f32 %v414, %v680
  %v682 = vpop.f32.mrb[0].mxu0
  %683 = vmatprep.mubr.f32.mxu0 %v25
  %684 = vmatmul.mubr.f32.gmra.mrb[0].mxu0 %v24
  %v685 = vpop.f32.mrb[0].mxu0
  %v686 = vadd.f32 %v414, %v685
  %v687 = vpop.f32.mrb[0].mxu0
  %688 = vmatprep.mubr.f32.mxu0 %v30
  %689 = vmatmul.mubr.f32.gmra.mrb[0].mxu0 %v29
  %v690 = vpop.f32.mrb[0].mxu0
  %v691 = vadd.f32 %v414, %v690
  %v692 = vpop.f32.mrb[0].mxu0
  %693 = vmatprep.mubr.f32.mxu0 %v35
  %694 = vmatmul.mubr.f32.gmra.mrb[0].mxu0 %v34
  %v695 = vpop.f32.mrb[0].mxu0
  %v696 = vadd.f32 %v414, %v695
  %v697 = vpop.f32.mrb[0].mxu0
  %698 = vmatprep.mubr.f32.mxu0 %v40
  %699 = vmatmul.mubr.f32.gmra.mrb[0].mxu0 %v39
  %v700 = vpop.f32.mrb[0].mxu0
  %v701 = vadd.f32 %v414, %v700
  %v702 = vpop.f32.mrb[0].mxu0
  %703 = vmatprep.mubr.f32.mxu0 %v45
  %704 = vmatmul.mubr.f32.gmra.mrb[0].mxu0 %v44
  %v705 = vpop.f32.mrb[0].mxu0
  %v706 = vadd.f32 %v414, %v705
  %v707 = vpop.f32.mrb[0].mxu0
  %708 = vmatprep.mubr.f32.mxu0 %v50
  %709 = vmatmul.mubr.f32.gmra.mrb[0].mxu0 %v49
  %v710 = vpop.f32.mrb[0].mxu0
  %v711 = vadd.f32 %v414, %v710
  %v712 = vpop.f32.mrb[0].mxu0
  %713 = vmatprep.mubr.f32.mxu0 %v55
  %714 = vmatmul.mubr.f32.gmra.mrb[0].mxu0 %v54
  %v715 = vpop.f32.mrb[0].mxu0
  %v716 = vadd.f32 %v414, %v715
  %v717 = vpop.f32.mrb[0].mxu0
  %718 = vmatprep.mubr.f32.mxu0 %v60
  %719 = vmatmul.mubr.f32.gmra.mrb[0].mxu0 %v59
  %v720 = vpop.f32.mrb[0].mxu0
  %v721 = vadd.f32 %v414, %v720
  %v722 = vpop.f32.mrb[0].mxu0
  %723 = vmatprep.mubr.f32.mxu0 %v65
  %724 = vmatmul.mubr.f32.gmra.mrb[0].mxu0 %v64
  %v725 = vpop.f32.mrb[0].mxu0
  %v726 = vadd.f32 %v414, %v725
  %v727 = vpop.f32.mrb[0].mxu0
  %728 = vmatprep.mubr.f32.mxu0 %v70
  %729 = vmatmul.mubr.f32.gmra.mrb[0].mxu0 %v69
  %v730 = vpop.f32.mrb[0].mxu0
  %v731 = vadd.f32 %v414, %v730
  %v732 = vpop.f32.mrb[0].mxu0
  %733 = vmatprep.mubr.f32.mxu0 %v75
  %734 = vmatmul.mubr.f32.gmra.mrb[0].mxu0 %v74
  %v735 = vpop.f32.mrb[0].mxu0
  %v736 = vadd.f32 %v414, %v735
  %v737 = vpop.f32.mrb[0].mxu0
  %738 = vmatprep.mubr.f32.mxu0 %v80
  %739 = vmatmul.mubr.f32.gmra.mrb[0].mxu0 %v79
  %v740 = vpop.f32.mrb[0].mxu0
  %v741 = vadd.f32 %v414, %v740
  %v742 = vpop.f32.mrb[0].mxu0
  %743 = vmatprep.mubr.f32.mxu0 %v85
  %744 = vmatmul.mubr.f32.gmra.mrb[0].mxu0 %v84
  %v745 = vpop.f32.mrb[0].mxu0
  %v746 = vadd.f32 %v414, %v745
  %v747 = vpop.f32.mrb[0].mxu0
  %748 = vmatprep.mubr.f32.mxu0 %v90
  %749 = vmatmul.mubr.f32.gmra.mrb[0].mxu0 %v89
  %v750 = vpop.f32.mrb[0].mxu0
  %v751 = vadd.f32 %v414, %v750
  %v752 = vpop.f32.mrb[0].mxu0
  %753 = vmatprep.mubr.f32.mxu0 %v95
  %754 = vmatmul.mubr.f32.gmra.mrb[0].mxu0 %v94
  %v755 = vpop.f32.mrb[0].mxu0
  %v756 = vadd.f32 %v414, %v755
  %v757 = vpop.f32.mrb[0].mxu0
  %758 = vmatprep.mubr.f32.mxu0 %v100
  %759 = vmatmul.mubr.f32.gmra.mrb[0].mxu0 %v99
  %v760 = vpop.f32.mrb[0].mxu0
  %v761 = vadd.f32 %v414, %v760
  %v762 = vpop.f32.mrb[0].mxu0
  %763 = vmatprep.mubr.f32.mxu0 %v105
  %764 = vmatmul.mubr.f32.gmra.mrb[0].mxu0 %v104
  %v765 = vpop.f32.mrb[0].mxu0
  %v766 = vadd.f32 %v414, %v765
  %v767 = vpop.f32.mrb[0].mxu0
  %768 = vmatprep.mubr.f32.mxu0 %v110
  %769 = vmatmul.mubr.f32.gmra.mrb[0].mxu0 %v109
  %v770 = vpop.f32.mrb[0].mxu0
  %v771 = vadd.f32 %v414, %v770
  %v772 = vpop.f32.mrb[0].mxu0
  %773 = vmatprep.mubr.f32.mxu0 %v115
  %774 = vmatmul.mubr.f32.gmra.mrb[0].mxu0 %v114
  %v775 = vpop.f32.mrb[0].mxu0
  %v776 = vadd.f32 %v414, %v775
  %v777 = vpop.f32.mrb[0].mxu0
  %778 = vmatprep.mubr.f32.mxu0 %v120
  %779 = vmatmul.mubr.f32.gmra.mrb[0].mxu0 %v119
  %v780 = vpop.f32.mrb[0].mxu0
  %v781 = vadd.f32 %v414, %v780
  %v782 = vpop.f32.mrb[0].mxu0
  %783 = vmatprep.mubr.f32.mxu0 %v125
  %784 = vmatmul.mubr.f32.gmra.mrb[0].mxu0 %v124
  %v785 = vpop.f32.mrb[0].mxu0
  %v786 = vadd.f32 %v414, %v785
  %v787 = vpop.f32.mrb[0].mxu0
  %788 = vmatprep.mubr.f32.mxu0 %v130
  %789 = vmatmul.mubr.f32.gmra.mrb[0].mxu0 %v129
  %v790 = vpop.f32.mrb[0].mxu0
  %v791 = vadd.f32 %v414, %v790
  %v792 = vpop.f32.mrb[0].mxu0
  %793 = vmatprep.mubr.f32.mxu0 %v135
  %794 = vmatmul.mubr.f32.gmra.mrb[0].mxu0 %v134
  %v795 = vpop.f32.mrb[0].mxu0
  %v796 = vadd.f32 %v414, %v795
  %v797 = vpop.f32.mrb[0].mxu0
  %798 = vmatprep.mubr.f32.mxu0 %v140
  %799 = vmatmul.mubr.f32.gmra.mrb[0].mxu0 %v139
  %v800 = vpop.f32.mrb[0].mxu0
  %v801 = vadd.f32 %v414, %v800
  %v802 = vpop.f32.mrb[0].mxu0
  %803 = vmatprep.mubr.f32.mxu0 %v145
  %804 = vmatmul.mubr.f32.gmra.mrb[0].mxu0 %v144
  %v805 = vpop.f32.mrb[0].mxu0
  %v806 = vadd.f32 %v414, %v805
  %v807 = vpop.f32.mrb[0].mxu0
  %808 = vmatprep.mubr.f32.mxu0 %v150
  %809 = vmatmul.mubr.f32.gmra.mrb[0].mxu0 %v149
  %v810 = vpop.f32.mrb[0].mxu0
  %v811 = vadd.f32 %v414, %v810
  %v812 = vpop.f32.mrb[0].mxu0
  %813 = vmatprep.mubr.f32.mxu0 %v155
  %814 = vmatmul.mubr.f32.gmra.mrb[0].mxu0 %v154
  %v815 = vpop.f32.mrb[0].mxu0
  %v816 = vadd.f32 %v414, %v815
  %v817 = vpop.f32.mrb[0].mxu0
  %818 = vmatprep.mubr.f32.mxu0 %v160
  %819 = vmatmul.mubr.f32.gmra.mrb[0].mxu0 %v159
  %v820 = vpop.f32.mrb[0].mxu0
  %v821 = vadd.f32 %v414, %v820
  %v822 = vpop.f32.mrb[0].mxu0
  %823 = vmatprep.mubr.f32.mxu0 %v165
  %824 = vmatmul.mubr.f32.gmra.mrb[0].mxu0 %v164
  %v825 = vpop.f32.mrb[0].mxu0
  %v826 = vadd.f32 %v414, %v825
  %v827 = vpop.f32.mrb[0].mxu0
  %828 = vmatprep.mubr.f32.mxu0 %v170
  %829 = vmatmul.mubr.f32.gmra.mrb[0].mxu0 %v169
  %v830 = vpop.f32.mrb[0].mxu0
  %v831 = vadd.f32 %v414, %v830
  %v832 = vpop.f32.mrb[0].mxu0
  %833 = vmatprep.mubr.f32.mxu0 %v175
  %834 = vmatmul.mubr.f32.gmra.mrb[0].mxu0 %v174
  %v835 = vpop.f32.mrb[0].mxu0
  %v836 = vadd.f32 %v414, %v835
  %v837 = vpop.f32.mrb[0].mxu0
  %838 = vmatprep.mubr.f32.mxu0 %v180
  %839 = vmatmul.mubr.f32.gmra.mrb[0].mxu0 %v179
  %v840 = vpop.f32.mrb[0].mxu0
  %v841 = vadd.f32 %v414, %v840
  %v842 = vpop.f32.mrb[0].mxu0
  %843 = vmatprep.mubr.f32.mxu0 %v185
  %844 = vmatmul.mubr.f32.gmra.mrb[0].mxu0 %v184
  %v845 = vpop.f32.mrb[0].mxu0
  %v846 = vadd.f32 %v414, %v845
  %v847 = vpop.f32.mrb[0].mxu0
  %848 = vmatprep.mubr.f32.mxu0 %v190
  %849 = vmatmul.mubr.f32.gmra.mrb[0].mxu0 %v189
  %v850 = vpop.f32.mrb[0].mxu0
  %v851 = vadd.f32 %v414, %v850
  %v852 = vpop.f32.mrb[0].mxu0
  %853 = vmatprep.mubr.f32.mxu0 %v195
  %854 = vmatmul.mubr.f32.gmra.mrb[0].mxu0 %v194
  %v855 = vpop.f32.mrb[0].mxu0
  %v856 = vadd.f32 %v414, %v855
  %v857 = vpop.f32.mrb[0].mxu0
  %858 = vmatprep.mubr.f32.mxu0 %v200
  %859 = vmatmul.mubr.f32.gmra.mrb[0].mxu0 %v199
  %v860 = vpop.f32.mrb[0].mxu0
  %v861 = vadd.f32 %v414, %v860
  %v862 = vpop.f32.mrb[0].mxu0
  %863 = vmatprep.mubr.f32.mxu0 %v205
  %864 = vmatmul.mubr.f32.gmra.mrb[0].mxu0 %v204
  %v865 = vpop.f32.mrb[0].mxu0
  %v866 = vadd.f32 %v414, %v865
  %v867 = vpop.f32.mrb[0].mxu0
  %868 = vmatprep.mubr.f32.mxu0 %v210
  %869 = vmatmul.mubr.f32.gmra.mrb[0].mxu0 %v209
  %v870 = vpop.f32.mrb[0].mxu0
  %v871 = vadd.f32 %v414, %v870
  %v872 = vpop.f32.mrb[0].mxu0
  %873 = vmatprep.mubr.f32.mxu0 %v215
  %874 = vmatmul.mubr.f32.gmra.mrb[0].mxu0 %v214
  %v875 = vpop.f32.mrb[0].mxu0
  %v876 = vadd.f32 %v414, %v875
  %v877 = vpop.f32.mrb[0].mxu0
  %878 = vmatprep.mubr.f32.mxu0 %v220
  %879 = vmatmul.mubr.f32.gmra.mrb[0].mxu0 %v219
  %v880 = vpop.f32.mrb[0].mxu0
  %v881 = vadd.f32 %v414, %v880
  %v882 = vpop.f32.mrb[0].mxu0
  %883 = vmatprep.mubr.f32.mxu0 %v225
  %884 = vmatmul.mubr.f32.gmra.mrb[0].mxu0 %v224
  %v885 = vpop.f32.mrb[0].mxu0
  %v886 = vadd.f32 %v414, %v885
  %v887 = vpop.f32.mrb[0].mxu0
  %888 = vmatprep.mubr.f32.mxu0 %v230
  %889 = vmatmul.mubr.f32.gmra.mrb[0].mxu0 %v229
  %v890 = vpop.f32.mrb[0].mxu0
  %v891 = vadd.f32 %v414, %v890
  %v892 = vpop.f32.mrb[0].mxu0
  %893 = vmatprep.mubr.f32.mxu0 %v235
  %894 = vmatmul.mubr.f32.gmra.mrb[0].mxu0 %v234
  %v895 = vpop.f32.mrb[0].mxu0
  %v896 = vadd.f32 %v414, %v895
  %v897 = vpop.f32.mrb[0].mxu0
  %898 = vmatprep.mubr.f32.mxu0 %v240
  %899 = vmatmul.mubr.f32.gmra.mrb[0].mxu0 %v239
  %v900 = vpop.f32.mrb[0].mxu0
  %v901 = vadd.f32 %v414, %v900
  %v902 = vpop.f32.mrb[0].mxu0
  %903 = vmatprep.mubr.f32.mxu0 %v245
  %904 = vmatmul.mubr.f32.gmra.mrb[0].mxu0 %v244
  %v905 = vpop.f32.mrb[0].mxu0
  %v906 = vadd.f32 %v414, %v905
  %v907 = vpop.f32.mrb[0].mxu0
  %908 = vmatprep.mubr.f32.mxu0 %v250
  %909 = vmatmul.mubr.f32.gmra.mrb[0].mxu0 %v249
  %v910 = vpop.f32.mrb[0].mxu0
  %v911 = vadd.f32 %v414, %v910
  %v912 = vpop.f32.mrb[0].mxu0
  %913 = vmatprep.mubr.f32.mxu0 %v255
  %914 = vmatmul.mubr.f32.gmra.mrb[0].mxu0 %v254
  %v915 = vpop.f32.mrb[0].mxu0
  %v916 = vadd.f32 %v414, %v915
  %v917 = vpop.f32.mrb[0].mxu0
  %918 = vmatprep.mubr.f32.mxu0 %v260
  %919 = vmatmul.mubr.f32.gmra.mrb[0].mxu0 %v259
  %v920 = vpop.f32.mrb[0].mxu0
  %v921 = vadd.f32 %v414, %v920
  %v922 = vpop.f32.mrb[0].mxu0
  %923 = vmatprep.mubr.f32.mxu0 %v265
  %924 = vmatmul.mubr.f32.gmra.mrb[0].mxu0 %v264
  %v925 = vpop.f32.mrb[0].mxu0
  %v926 = vadd.f32 %v414, %v925
  %v927 = vpop.f32.mrb[0].mxu0
  %928 = vmatprep.mubr.f32.mxu0 %v270
  %929 = vmatmul.mubr.f32.gmra.mrb[0].mxu0 %v269
  %v930 = vpop.f32.mrb[0].mxu0
  %v931 = vadd.f32 %v414, %v930
  %v932 = vpop.f32.mrb[0].mxu0
  %933 = vmatprep.mubr.f32.mxu0 %v275
  %934 = vmatmul.mubr.f32.gmra.mrb[0].mxu0 %v274
  %v935 = vpop.f32.mrb[0].mxu0
  %v936 = vadd.f32 %v414, %v935
  %v937 = vpop.f32.mrb[0].mxu0
  %938 = vmatprep.mubr.f32.mxu0 %v280
  %939 = vmatmul.mubr.f32.gmra.mrb[0].mxu0 %v279
  %v940 = vpop.f32.mrb[0].mxu0
  %v941 = vadd.f32 %v414, %v940
  %v942 = vpop.f32.mrb[0].mxu0
  %943 = vmatprep.mubr.f32.mxu0 %v285
  %944 = vmatmul.mubr.f32.gmra.mrb[0].mxu0 %v284
  %v945 = vpop.f32.mrb[0].mxu0
  %v946 = vadd.f32 %v414, %v945
  %v947 = vpop.f32.mrb[0].mxu0
  %948 = vmatprep.mubr.f32.mxu0 %v290
  %949 = vmatmul.mubr.f32.gmra.mrb[0].mxu0 %v289
  %v950 = vpop.f32.mrb[0].mxu0
  %v951 = vadd.f32 %v414, %v950
  %v952 = vpop.f32.mrb[0].mxu0
  %953 = vmatprep.mubr.f32.mxu0 %v295
  %954 = vmatmul.mubr.f32.gmra.mrb[0].mxu0 %v294
  %v955 = vpop.f32.mrb[0].mxu0
  %v956 = vadd.f32 %v414, %v955
  %v957 = vpop.f32.mrb[0].mxu0
  %958 = vmatprep.mubr.f32.mxu0 %v300
  %959 = vmatmul.mubr.f32.gmra.mrb[0].mxu0 %v299
  %v960 = vpop.f32.mrb[0].mxu0
  %v961 = vadd.f32 %v414, %v960
  %v962 = vpop.f32.mrb[0].mxu0
  %963 = vmatprep.mubr.f32.mxu0 %v305
  %964 = vmatmul.mubr.f32.gmra.mrb[0].mxu0 %v304
  %v965 = vpop.f32.mrb[0].mxu0
  %v966 = vadd.f32 %v414, %v965
  %v967 = vpop.f32.mrb[0].mxu0
  %968 = vmatprep.mubr.f32.mxu0 %v310
  %969 = vmatmul.mubr.f32.gmra.mrb[0].mxu0 %v309
  %v970 = vpop.f32.mrb[0].mxu0
  %v971 = vadd.f32 %v414, %v970
  %v972 = vpop.f32.mrb[0].mxu0
  %973 = vmatprep.mubr.f32.mxu0 %v315
  %974 = vmatmul.mubr.f32.gmra.mrb[0].mxu0 %v314
  %v975 = vpop.f32.mrb[0].mxu0
  %v976 = vadd.f32 %v414, %v975
  %v977 = vpop.f32.mrb[0].mxu0
  %978 = vmatprep.mubr.f32.mxu0 %v320
  %979 = vmatmul.mubr.f32.gmra.mrb[0].mxu0 %v319
  %v980 = vpop.f32.mrb[0].mxu0
  %v981 = vadd.f32 %v414, %v980
  %v982 = vpop.f32.mrb[0].mxu0
  %983 = vmatprep.mubr.f32.mxu0 %v325
  %984 = vmatmul.mubr.f32.gmra.mrb[0].mxu0 %v324
  %v985 = vpop.f32.mrb[0].mxu0
  %v986 = vadd.f32 %v414, %v985
  %v987 = vpop.f32.mrb[0].mxu0
  %988 = vmatprep.mubr.f32.mxu0 %v330
  %989 = vmatmul.mubr.f32.gmra.mrb[0].mxu0 %v329
  %v990 = vpop.f32.mrb[0].mxu0
  %v991 = vadd.f32 %v414, %v990
  %v992 = vpop.f32.mrb[0].mxu0
  %993 = vdwg.mxu0
  %994 = vmatprep.subr.mxu0 0.0
  %995 = vmatpush1.msra.mxu0 %v366
  %996 = vmatprep.subr.mxu0 0.0
  %997 = vmatpush1.msra.mxu0 %v367
  %998 = vmatprep.subr.mxu0 0.0
  %999 = vmatpush1.msra.mxu0 %v368
  %1000 = vmatprep.subr.mxu0 0.0
  %1001 = vmatpush1.msra.mxu0 %v369
  %1002 = vmatprep.subr.mxu0 0.0
  %1003 = vmatpush1.msra.mxu0 %v370
  %1004 = vmatprep.subr.mxu0 0.0
  %1005 = vmatpush1.msra.mxu0 %v371
  %1006 = vmatprep.subr.mxu0 0.0
  %1007 = vmatpush1.msra.mxu0 %v372
  %1008 = vmatprep.subr.mxu0 0.0
  %1009 = vmatpush1.msra.mxu0 %v373
  %1010 = vmatprep.subr.mxu0 0.0
  %1011 = vmatpush1.msra.mxu0 %v374
  %1012 = vmatprep.subr.mxu0 0.0
  %1013 = vmatpush1.msra.mxu0 %v375
  %1014 = vmatprep.subr.mxu0 0.0
  %1015 = vmatpush1.msra.mxu0 %v376
  %1016 = vmatprep.subr.mxu0 0.0
  %1017 = vmatpush1.msra.mxu0 %v377
  %1018 = vmatprep.subr.mxu0 0.0
  %1019 = vmatpush1.msra.mxu0 %v378
  %1020 = vmatprep.subr.mxu0 0.0
  %1021 = vmatpush1.msra.mxu0 %v379
  %1022 = vmatprep.subr.mxu0 0.0
  %1023 = vmatpush1.msra.mxu0 %v380
  %1024 = vmatprep.subr.mxu0 0.0
  %1025 = vmatpush1.msra.mxu0 %v381
  %1026 = vmatprep.subr.mxu0 0.0
  %1027 = vmatpush1.msra.mxu0 %v382
  %1028 = vmatprep.subr.mxu0 0.0
  %1029 = vmatpush1.msra.mxu0 %v383
  %1030 = vmatprep.subr.mxu0 0.0
  %1031 = vmatpush1.msra.mxu0 %v384
  %1032 = vmatprep.subr.mxu0 0.0
  %1033 = vmatpush1.msra.mxu0 %v385
  %1034 = vmatprep.subr.mxu0 0.0
  %1035 = vmatpush1.msra.mxu0 %v386
  %1036 = vmatprep.subr.mxu0 0.0
  %1037 = vmatpush1.msra.mxu0 %v387
  %1038 = vmatprep.subr.mxu0 0.0
  %1039 = vmatpush1.msra.mxu0 %v388
  %1040 = vmatprep.subr.mxu0 0.0
  %1041 = vmatpush1.msra.mxu0 %v389
  %1042 = vmatprep.subr.mxu0 0.0
  %1043 = vmatpush1.msra.mxu0 %v390
  %1044 = vmatprep.subr.mxu0 0.0
  %1045 = vmatpush1.msra.mxu0 %v391
  %1046 = vmatprep.subr.mxu0 0.0
  %1047 = vmatpush1.msra.mxu0 %v392
  %1048 = vmatprep.subr.mxu0 0.0
  %1049 = vmatpush1.msra.mxu0 %v393
  %1050 = vmatprep.subr.mxu0 0.0
  %1051 = vmatpush1.msra.mxu0 %v394
  %1052 = vmatprep.subr.mxu0 0.0
  %1053 = vmatpush1.msra.mxu0 %v395
  %1054 = vmatprep.subr.mxu0 0.0
  %1055 = vmatpush1.msra.mxu0 %v396
  %1056 = vmatprep.subr.mxu0 0.0
  %1057 = vmatpush1.msra.mxu0 %v397
  %1058 = vmatprep.mubr.f32.mxu0 %v17
  %1059 = vmatmul.mubr.f32.gmra.mrb[0].mxu0 %v16
  %v1060 = vpop.f32.mrb[0].mxu0
  %v1061 = vadd.f32 %v676, %v1060
  %v1062 = vpop.f32.mrb[0].mxu0
  %1063 = vmatprep.mubr.f32.mxu0 %v22
  %1064 = vmatmul.mubr.f32.gmra.mrb[0].mxu0 %v21
  %v1065 = vpop.f32.mrb[0].mxu0
  %v1066 = vadd.f32 %v681, %v1065
  %v1067 = vpop.f32.mrb[0].mxu0
  %1068 = vmatprep.mubr.f32.mxu0 %v27
  %1069 = vmatmul.mubr.f32.gmra.mrb[0].mxu0 %v26
  %v1070 = vpop.f32.mrb[0].mxu0
  %v1071 = vadd.f32 %v686, %v1070
  %v1072 = vpop.f32.mrb[0].mxu0
  %1073 = vmatprep.mubr.f32.mxu0 %v32
  %1074 = vmatmul.mubr.f32.gmra.mrb[0].mxu0 %v31
  %v1075 = vpop.f32.mrb[0].mxu0
  %v1076 = vadd.f32 %v691, %v1075
  %v1077 = vpop.f32.mrb[0].mxu0
  %1078 = vmatprep.mubr.f32.mxu0 %v37
  %1079 = vmatmul.mubr.f32.gmra.mrb[0].mxu0 %v36
  %v1080 = vpop.f32.mrb[0].mxu0
  %v1081 = vadd.f32 %v696, %v1080
  %v1082 = vpop.f32.mrb[0].mxu0
  %1083 = vmatprep.mubr.f32.mxu0 %v42
  %1084 = vmatmul.mubr.f32.gmra.mrb[0].mxu0 %v41
  %v1085 = vpop.f32.mrb[0].mxu0
  %v1086 = vadd.f32 %v701, %v1085
  %v1087 = vpop.f32.mrb[0].mxu0
  %1088 = vmatprep.mubr.f32.mxu0 %v47
  %1089 = vmatmul.mubr.f32.gmra.mrb[0].mxu0 %v46
  %v1090 = vpop.f32.mrb[0].mxu0
  %v1091 = vadd.f32 %v706, %v1090
  %v1092 = vpop.f32.mrb[0].mxu0
  %1093 = vmatprep.mubr.f32.mxu0 %v52
  %1094 = vmatmul.mubr.f32.gmra.mrb[0].mxu0 %v51
  %v1095 = vpop.f32.mrb[0].mxu0
  %v1096 = vadd.f32 %v711, %v1095
  %v1097 = vpop.f32.mrb[0].mxu0
  %1098 = vmatprep.mubr.f32.mxu0 %v57
  %1099 = vmatmul.mubr.f32.gmra.mrb[0].mxu0 %v56
  %v1100 = vpop.f32.mrb[0].mxu0
  %v1101 = vadd.f32 %v716, %v1100
  %v1102 = vpop.f32.mrb[0].mxu0
  %1103 = vmatprep.mubr.f32.mxu0 %v62
  %1104 = vmatmul.mubr.f32.gmra.mrb[0].mxu0 %v61
  %v1105 = vpop.f32.mrb[0].mxu0
  %v1106 = vadd.f32 %v721, %v1105
  %v1107 = vpop.f32.mrb[0].mxu0
  %1108 = vmatprep.mubr.f32.mxu0 %v67
  %1109 = vmatmul.mubr.f32.gmra.mrb[0].mxu0 %v66
  %v1110 = vpop.f32.mrb[0].mxu0
  %v1111 = vadd.f32 %v726, %v1110
  %v1112 = vpop.f32.mrb[0].mxu0
  %1113 = vmatprep.mubr.f32.mxu0 %v72
  %1114 = vmatmul.mubr.f32.gmra.mrb[0].mxu0 %v71
  %v1115 = vpop.f32.mrb[0].mxu0
  %v1116 = vadd.f32 %v731, %v1115
  %v1117 = vpop.f32.mrb[0].mxu0
  %1118 = vmatprep.mubr.f32.mxu0 %v77
  %1119 = vmatmul.mubr.f32.gmra.mrb[0].mxu0 %v76
  %v1120 = vpop.f32.mrb[0].mxu0
  %v1121 = vadd.f32 %v736, %v1120
  %v1122 = vpop.f32.mrb[0].mxu0
  %1123 = vmatprep.mubr.f32.mxu0 %v82
  %1124 = vmatmul.mubr.f32.gmra.mrb[0].mxu0 %v81
  %v1125 = vpop.f32.mrb[0].mxu0
  %v1126 = vadd.f32 %v741, %v1125
  %v1127 = vpop.f32.mrb[0].mxu0
  %1128 = vmatprep.mubr.f32.mxu0 %v87
  %1129 = vmatmul.mubr.f32.gmra.mrb[0].mxu0 %v86
  %v1130 = vpop.f32.mrb[0].mxu0
  %v1131 = vadd.f32 %v746, %v1130
  %v1132 = vpop.f32.mrb[0].mxu0
  %1133 = vmatprep.mubr.f32.mxu0 %v92
  %1134 = vmatmul.mubr.f32.gmra.mrb[0].mxu0 %v91
  %v1135 = vpop.f32.mrb[0].mxu0
  %v1136 = vadd.f32 %v751, %v1135
  %v1137 = vpop.f32.mrb[0].mxu0
  %1138 = vmatprep.mubr.f32.mxu0 %v97
  %1139 = vmatmul.mubr.f32.gmra.mrb[0].mxu0 %v96
  %v1140 = vpop.f32.mrb[0].mxu0
  %v1141 = vadd.f32 %v756, %v1140
  %v1142 = vpop.f32.mrb[0].mxu0
  %1143 = vmatprep.mubr.f32.mxu0 %v102
  %1144 = vmatmul.mubr.f32.gmra.mrb[0].mxu0 %v101
  %v1145 = vpop.f32.mrb[0].mxu0
  %v1146 = vadd.f32 %v761, %v1145
  %v1147 = vpop.f32.mrb[0].mxu0
  %1148 = vmatprep.mubr.f32.mxu0 %v107
  %1149 = vmatmul.mubr.f32.gmra.mrb[0].mxu0 %v106
  %v1150 = vpop.f32.mrb[0].mxu0
  %v1151 = vadd.f32 %v766, %v1150
  %v1152 = vpop.f32.mrb[0].mxu0
  %1153 = vmatprep.mubr.f32.mxu0 %v112
  %1154 = vmatmul.mubr.f32.gmra.mrb[0].mxu0 %v111
  %v1155 = vpop.f32.mrb[0].mxu0
  %v1156 = vadd.f32 %v771, %v1155
  %v1157 = vpop.f32.mrb[0].mxu0
  %1158 = vmatprep.mubr.f32.mxu0 %v117
  %1159 = vmatmul.mubr.f32.gmra.mrb[0].mxu0 %v116
  %v1160 = vpop.f32.mrb[0].mxu0
  %v1161 = vadd.f32 %v776, %v1160
  %v1162 = vpop.f32.mrb[0].mxu0
  %1163 = vmatprep.mubr.f32.mxu0 %v122
  %1164 = vmatmul.mubr.f32.gmra.mrb[0].mxu0 %v121
  %v1165 = vpop.f32.mrb[0].mxu0
  %v1166 = vadd.f32 %v781, %v1165
  %v1167 = vpop.f32.mrb[0].mxu0
  %1168 = vmatprep.mubr.f32.mxu0 %v127
  %1169 = vmatmul.mubr.f32.gmra.mrb[0].mxu0 %v126
  %v1170 = vpop.f32.mrb[0].mxu0
  %v1171 = vadd.f32 %v786, %v1170
  %v1172 = vpop.f32.mrb[0].mxu0
  %1173 = vmatprep.mubr.f32.mxu0 %v132
  %1174 = vmatmul.mubr.f32.gmra.mrb[0].mxu0 %v131
  %v1175 = vpop.f32.mrb[0].mxu0
  %v1176 = vadd.f32 %v791, %v1175
  %v1177 = vpop.f32.mrb[0].mxu0
  %1178 = vmatprep.mubr.f32.mxu0 %v137
  %1179 = vmatmul.mubr.f32.gmra.mrb[0].mxu0 %v136
  %v1180 = vpop.f32.mrb[0].mxu0
  %v1181 = vadd.f32 %v796, %v1180
  %v1182 = vpop.f32.mrb[0].mxu0
  %1183 = vmatprep.mubr.f32.mxu0 %v142
  %1184 = vmatmul.mubr.f32.gmra.mrb[0].mxu0 %v141
  %v1185 = vpop.f32.mrb[0].mxu0
  %v1186 = vadd.f32 %v801, %v1185
  %v1187 = vpop.f32.mrb[0].mxu0
  %1188 = vmatprep.mubr.f32.mxu0 %v147
  %1189 = vmatmul.mubr.f32.gmra.mrb[0].mxu0 %v146
  %v1190 = vpop.f32.mrb[0].mxu0
  %v1191 = vadd.f32 %v806, %v1190
  %v1192 = vpop.f32.mrb[0].mxu0
  %1193 = vmatprep.mubr.f32.mxu0 %v152
  %1194 = vmatmul.mubr.f32.gmra.mrb[0].mxu0 %v151
  %v1195 = vpop.f32.mrb[0].mxu0
  %v1196 = vadd.f32 %v811, %v1195
  %v1197 = vpop.f32.mrb[0].mxu0
  %1198 = vmatprep.mubr.f32.mxu0 %v157
  %1199 = vmatmul.mubr.f32.gmra.mrb[0].mxu0 %v156
  %v1200 = vpop.f32.mrb[0].mxu0
  %v1201 = vadd.f32 %v816, %v1200
  %v1202 = vpop.f32.mrb[0].mxu0
  %1203 = vmatprep.mubr.f32.mxu0 %v162
  %1204 = vmatmul.mubr.f32.gmra.mrb[0].mxu0 %v161
  %v1205 = vpop.f32.mrb[0].mxu0
  %v1206 = vadd.f32 %v821, %v1205
  %v1207 = vpop.f32.mrb[0].mxu0
  %1208 = vmatprep.mubr.f32.mxu0 %v167
  %1209 = vmatmul.mubr.f32.gmra.mrb[0].mxu0 %v166
  %v1210 = vpop.f32.mrb[0].mxu0
  %v1211 = vadd.f32 %v826, %v1210
  %v1212 = vpop.f32.mrb[0].mxu0
  %1213 = vmatprep.mubr.f32.mxu0 %v172
  %1214 = vmatmul.mubr.f32.gmra.mrb[0].mxu0 %v171
  %v1215 = vpop.f32.mrb[0].mxu0
  %v1216 = vadd.f32 %v831, %v1215
  %v1217 = vpop.f32.mrb[0].mxu0
  %1218 = vmatprep.mubr.f32.mxu0 %v177
  %1219 = vmatmul.mubr.f32.gmra.mrb[0].mxu0 %v176
  %v1220 = vpop.f32.mrb[0].mxu0
  %v1221 = vadd.f32 %v836, %v1220
  %v1222 = vpop.f32.mrb[0].mxu0
  %1223 = vmatprep.mubr.f32.mxu0 %v182
  %1224 = vmatmul.mubr.f32.gmra.mrb[0].mxu0 %v181
  %v1225 = vpop.f32.mrb[0].mxu0
  %v1226 = vadd.f32 %v841, %v1225
  %v1227 = vpop.f32.mrb[0].mxu0
  %1228 = vmatprep.mubr.f32.mxu0 %v187
  %1229 = vmatmul.mubr.f32.gmra.mrb[0].mxu0 %v186
  %v1230 = vpop.f32.mrb[0].mxu0
  %v1231 = vadd.f32 %v846, %v1230
  %v1232 = vpop.f32.mrb[0].mxu0
  %1233 = vmatprep.mubr.f32.mxu0 %v192
  %1234 = vmatmul.mubr.f32.gmra.mrb[0].mxu0 %v191
  %v1235 = vpop.f32.mrb[0].mxu0
  %v1236 = vadd.f32 %v851, %v1235
  %v1237 = vpop.f32.mrb[0].mxu0
  %1238 = vmatprep.mubr.f32.mxu0 %v197
  %1239 = vmatmul.mubr.f32.gmra.mrb[0].mxu0 %v196
  %v1240 = vpop.f32.mrb[0].mxu0
  %v1241 = vadd.f32 %v856, %v1240
  %v1242 = vpop.f32.mrb[0].mxu0
  %1243 = vmatprep.mubr.f32.mxu0 %v202
  %1244 = vmatmul.mubr.f32.gmra.mrb[0].mxu0 %v201
  %v1245 = vpop.f32.mrb[0].mxu0
  %v1246 = vadd.f32 %v861, %v1245
  %v1247 = vpop.f32.mrb[0].mxu0
  %1248 = vmatprep.mubr.f32.mxu0 %v207
  %1249 = vmatmul.mubr.f32.gmra.mrb[0].mxu0 %v206
  %v1250 = vpop.f32.mrb[0].mxu0
  %v1251 = vadd.f32 %v866, %v1250
  %v1252 = vpop.f32.mrb[0].mxu0
  %1253 = vmatprep.mubr.f32.mxu0 %v212
  %1254 = vmatmul.mubr.f32.gmra.mrb[0].mxu0 %v211
  %v1255 = vpop.f32.mrb[0].mxu0
  %v1256 = vadd.f32 %v871, %v1255
  %v1257 = vpop.f32.mrb[0].mxu0
  %1258 = vmatprep.mubr.f32.mxu0 %v217
  %1259 = vmatmul.mubr.f32.gmra.mrb[0].mxu0 %v216
  %v1260 = vpop.f32.mrb[0].mxu0
  %v1261 = vadd.f32 %v876, %v1260
  %v1262 = vpop.f32.mrb[0].mxu0
  %1263 = vmatprep.mubr.f32.mxu0 %v222
  %1264 = vmatmul.mubr.f32.gmra.mrb[0].mxu0 %v221
  %v1265 = vpop.f32.mrb[0].mxu0
  %v1266 = vadd.f32 %v881, %v1265
  %v1267 = vpop.f32.mrb[0].mxu0
  %1268 = vmatprep.mubr.f32.mxu0 %v227
  %1269 = vmatmul.mubr.f32.gmra.mrb[0].mxu0 %v226
  %v1270 = vpop.f32.mrb[0].mxu0
  %v1271 = vadd.f32 %v886, %v1270
  %v1272 = vpop.f32.mrb[0].mxu0
  %1273 = vmatprep.mubr.f32.mxu0 %v232
  %1274 = vmatmul.mubr.f32.gmra.mrb[0].mxu0 %v231
  %v1275 = vpop.f32.mrb[0].mxu0
  %v1276 = vadd.f32 %v891, %v1275
  %v1277 = vpop.f32.mrb[0].mxu0
  %1278 = vmatprep.mubr.f32.mxu0 %v237
  %1279 = vmatmul.mubr.f32.gmra.mrb[0].mxu0 %v236
  %v1280 = vpop.f32.mrb[0].mxu0
  %v1281 = vadd.f32 %v896, %v1280
  %v1282 = vpop.f32.mrb[0].mxu0
  %1283 = vmatprep.mubr.f32.mxu0 %v242
  %1284 = vmatmul.mubr.f32.gmra.mrb[0].mxu0 %v241
  %v1285 = vpop.f32.mrb[0].mxu0
  %v1286 = vadd.f32 %v901, %v1285
  %v1287 = vpop.f32.mrb[0].mxu0
  %1288 = vmatprep.mubr.f32.mxu0 %v247
  %1289 = vmatmul.mubr.f32.gmra.mrb[0].mxu0 %v246
  %v1290 = vpop.f32.mrb[0].mxu0
  %v1291 = vadd.f32 %v906, %v1290
  %v1292 = vpop.f32.mrb[0].mxu0
  %1293 = vmatprep.mubr.f32.mxu0 %v252
  %1294 = vmatmul.mubr.f32.gmra.mrb[0].mxu0 %v251
  %v1295 = vpop.f32.mrb[0].mxu0
  %v1296 = vadd.f32 %v911, %v1295
  %v1297 = vpop.f32.mrb[0].mxu0
  %1298 = vmatprep.mubr.f32.mxu0 %v257
  %1299 = vmatmul.mubr.f32.gmra.mrb[0].mxu0 %v256
  %v1300 = vpop.f32.mrb[0].mxu0
  %v1301 = vadd.f32 %v916, %v1300
  %v1302 = vpop.f32.mrb[0].mxu0
  %1303 = vmatprep.mubr.f32.mxu0 %v262
  %1304 = vmatmul.mubr.f32.gmra.mrb[0].mxu0 %v261
  %v1305 = vpop.f32.mrb[0].mxu0
  %v1306 = vadd.f32 %v921, %v1305
  %v1307 = vpop.f32.mrb[0].mxu0
  %1308 = vmatprep.mubr.f32.mxu0 %v267
  %1309 = vmatmul.mubr.f32.gmra.mrb[0].mxu0 %v266
  %v1310 = vpop.f32.mrb[0].mxu0
  %v1311 = vadd.f32 %v926, %v1310
  %v1312 = vpop.f32.mrb[0].mxu0
  %1313 = vmatprep.mubr.f32.mxu0 %v272
  %1314 = vmatmul.mubr.f32.gmra.mrb[0].mxu0 %v271
  %v1315 = vpop.f32.mrb[0].mxu0
  %v1316 = vadd.f32 %v931, %v1315
  %v1317 = vpop.f32.mrb[0].mxu0
  %1318 = vmatprep.mubr.f32.mxu0 %v277
  %1319 = vmatmul.mubr.f32.gmra.mrb[0].mxu0 %v276
  %v1320 = vpop.f32.mrb[0].mxu0
  %v1321 = vadd.f32 %v936, %v1320
  %v1322 = vpop.f32.mrb[0].mxu0
  %1323 = vmatprep.mubr.f32.mxu0 %v282
  %1324 = vmatmul.mubr.f32.gmra.mrb[0].mxu0 %v281
  %v1325 = vpop.f32.mrb[0].mxu0
  %v1326 = vadd.f32 %v941, %v1325
  %v1327 = vpop.f32.mrb[0].mxu0
  %1328 = vmatprep.mubr.f32.mxu0 %v287
  %1329 = vmatmul.mubr.f32.gmra.mrb[0].mxu0 %v286
  %v1330 = vpop.f32.mrb[0].mxu0
  %v1331 = vadd.f32 %v946, %v1330
  %v1332 = vpop.f32.mrb[0].mxu0
  %1333 = vmatprep.mubr.f32.mxu0 %v292
  %1334 = vmatmul.mubr.f32.gmra.mrb[0].mxu0 %v291
  %v1335 = vpop.f32.mrb[0].mxu0
  %v1336 = vadd.f32 %v951, %v1335
  %v1337 = vpop.f32.mrb[0].mxu0
  %1338 = vmatprep.mubr.f32.mxu0 %v297
  %1339 = vmatmul.mubr.f32.gmra.mrb[0].mxu0 %v296
  %v1340 = vpop.f32.mrb[0].mxu0
  %v1341 = vadd.f32 %v956, %v1340
  %v1342 = vpop.f32.mrb[0].mxu0
  %1343 = vmatprep.mubr.f32.mxu0 %v302
  %1344 = vmatmul.mubr.f32.gmra.mrb[0].mxu0 %v301
  %v1345 = vpop.f32.mrb[0].mxu0
  %v1346 = vadd.f32 %v961, %v1345
  %v1347 = vpop.f32.mrb[0].mxu0
  %1348 = vmatprep.mubr.f32.mxu0 %v307
  %1349 = vmatmul.mubr.f32.gmra.mrb[0].mxu0 %v306
  %v1350 = vpop.f32.mrb[0].mxu0
  %v1351 = vadd.f32 %v966, %v1350
  %v1352 = vpop.f32.mrb[0].mxu0
  %1353 = vmatprep.mubr.f32.mxu0 %v312
  %1354 = vmatmul.mubr.f32.gmra.mrb[0].mxu0 %v311
  %v1355 = vpop.f32.mrb[0].mxu0
  %v1356 = vadd.f32 %v971, %v1355
  %v1357 = vpop.f32.mrb[0].mxu0
  %1358 = vmatprep.mubr.f32.mxu0 %v317
  %1359 = vmatmul.mubr.f32.gmra.mrb[0].mxu0 %v316
  %v1360 = vpop.f32.mrb[0].mxu0
  %v1361 = vadd.f32 %v976, %v1360
  %v1362 = vpop.f32.mrb[0].mxu0
  %1363 = vmatprep.mubr.f32.mxu0 %v322
  %1364 = vmatmul.mubr.f32.gmra.mrb[0].mxu0 %v321
  %v1365 = vpop.f32.mrb[0].mxu0
  %v1366 = vadd.f32 %v981, %v1365
  %v1367 = vpop.f32.mrb[0].mxu0
  %1368 = vmatprep.mubr.f32.mxu0 %v327
  %1369 = vmatmul.mubr.f32.gmra.mrb[0].mxu0 %v326
  %v1370 = vpop.f32.mrb[0].mxu0
  %v1371 = vadd.f32 %v986, %v1370
  %v1372 = vpop.f32.mrb[0].mxu0
  %1373 = vmatprep.mubr.f32.mxu0 %v332
  %1374 = vmatmul.mubr.f32.gmra.mrb[0].mxu0 %v331
  %v1375 = vpop.f32.mrb[0].mxu0
  %v1376 = vadd.f32 %v991, %v1375
  %v1377 = vpop.f32.mrb[0].mxu0
  %1378 = vdwg.mxu0
  %1379 = vmatprep.subr.mxu0 0.0
  %1380 = vmatpush1.msra.mxu0 %v398
  %1381 = vmatprep.subr.mxu0 0.0
  %1382 = vmatpush1.msra.mxu0 %v399
  %1383 = vmatprep.subr.mxu0 0.0
  %1384 = vmatpush1.msra.mxu0 %v400
  %1385 = vmatprep.subr.mxu0 0.0
  %1386 = vmatpush1.msra.mxu0 %v401
  %1387 = vmatprep.subr.mxu0 0.0
  %1388 = vmatpush1.msra.mxu0 %v402
  %1389 = vmatprep.subr.mxu0 0.0
  %1390 = vmatpush1.msra.mxu0 %v403
  %1391 = vmatprep.subr.mxu0 0.0
  %1392 = vmatpush1.msra.mxu0 %v404
  %1393 = vmatprep.subr.mxu0 0.0
  %1394 = vmatpush1.msra.mxu0 %v405
  %1395 = vmatprep.subr.mxu0 0.0
  %1396 = vmatpush1.msra.mxu0 %v406
  %1397 = vmatprep.subr.mxu0 0.0
  %1398 = vmatpush1.msra.mxu0 %v407
  %1399 = vmatprep.subr.mxu0 0.0
  %1400 = vmatpush1.msra.mxu0 %v408
  %1401 = vmatprep.subr.mxu0 0.0
  %1402 = vmatpush1.msra.mxu0 0.0
  %1403 = vmatprep.subr.mxu0 0.0
  %1404 = vmatpush1.msra.mxu0 0.0
  %1405 = vmatprep.subr.mxu0 0.0
  %1406 = vmatpush1.msra.mxu0 0.0
  %1407 = vmatprep.subr.mxu0 0.0
  %1408 = vmatpush1.msra.mxu0 0.0
  %1409 = vmatprep.subr.mxu0 0.0
  %1410 = vmatpush1.msra.mxu0 0.0
  %1411 = vmatprep.subr.mxu0 0.0
  %1412 = vmatpush1.msra.mxu0 0.0
  %1413 = vmatprep.subr.mxu0 0.0
  %1414 = vmatpush1.msra.mxu0 0.0
  %1415 = vmatprep.subr.mxu0 0.0
  %1416 = vmatpush1.msra.mxu0 0.0
  %1417 = vmatprep.subr.mxu0 0.0
  %1418 = vmatpush1.msra.mxu0 0.0
  %1419 = vmatprep.subr.mxu0 0.0
  %1420 = vmatpush1.msra.mxu0 0.0
  %1421 = vmatprep.subr.mxu0 0.0
  %1422 = vmatpush1.msra.mxu0 0.0
  %1423 = vmatprep.subr.mxu0 0.0
  %1424 = vmatpush1.msra.mxu0 0.0
  %1425 = vmatprep.subr.mxu0 0.0
  %1426 = vmatpush1.msra.mxu0 0.0
  %1427 = vmatprep.subr.mxu0 0.0
  %1428 = vmatpush1.msra.mxu0 0.0
  %1429 = vmatprep.subr.mxu0 0.0
  %1430 = vmatpush1.msra.mxu0 0.0
  %1431 = vmatprep.subr.mxu0 0.0
  %1432 = vmatpush1.msra.mxu0 0.0
  %1433 = vmatprep.subr.mxu0 0.0
  %1434 = vmatpush1.msra.mxu0 0.0
  %1435 = vmatprep.subr.mxu0 0.0
  %1436 = vmatpush1.msra.mxu0 0.0
  %1437 = vmatprep.subr.mxu0 0.0
  %1438 = vmatpush1.msra.mxu0 0.0
  %1439 = vmatprep.subr.mxu0 0.0
  %1440 = vmatpush1.msra.mxu0 0.0
  %1441 = vmatprep.subr.mxu0 0.0
  %1442 = vmatpush1.msra.mxu0 0.0
  %1443 = vmatprep.mubr.f32.mxu0 0.0
  %1444 = vmatmul.mubr.f32.gmra.mrb[0].mxu0 %v418
  %v1445 = vpop.f32.mrb[0].mxu0
  %v1446 = vadd.f32 %v1061, %v1445
  %v1447 = vpop.f32.mrb[0].mxu0
  %1448 = vmatprep.mubr.f32.mxu0 0.0
  %1449 = vmatmul.mubr.f32.gmra.mrb[0].mxu0 %v421
  %v1450 = vpop.f32.mrb[0].mxu0
  %v1451 = vadd.f32 %v1066, %v1450
  %v1452 = vpop.f32.mrb[0].mxu0
  %1453 = vmatprep.mubr.f32.mxu0 0.0
  %1454 = vmatmul.mubr.f32.gmra.mrb[0].mxu0 %v424
  %v1455 = vpop.f32.mrb[0].mxu0
  %v1456 = vadd.f32 %v1071, %v1455
  %v1457 = vpop.f32.mrb[0].mxu0
  %1458 = vmatprep.mubr.f32.mxu0 0.0
  %1459 = vmatmul.mubr.f32.gmra.mrb[0].mxu0 %v427
  %v1460 = vpop.f32.mrb[0].mxu0
  %v1461 = vadd.f32 %v1076, %v1460
  %v1462 = vpop.f32.mrb[0].mxu0
  %1463 = vmatprep.mubr.f32.mxu0 0.0
  %1464 = vmatmul.mubr.f32.gmra.mrb[0].mxu0 %v430
  %v1465 = vpop.f32.mrb[0].mxu0
  %v1466 = vadd.f32 %v1081, %v1465
  %v1467 = vpop.f32.mrb[0].mxu0
  %1468 = vmatprep.mubr.f32.mxu0 0.0
  %1469 = vmatmul.mubr.f32.gmra.mrb[0].mxu0 %v433
  %v1470 = vpop.f32.mrb[0].mxu0
  %v1471 = vadd.f32 %v1086, %v1470
  %v1472 = vpop.f32.mrb[0].mxu0
  %1473 = vmatprep.mubr.f32.mxu0 0.0
  %1474 = vmatmul.mubr.f32.gmra.mrb[0].mxu0 %v436
  %v1475 = vpop.f32.mrb[0].mxu0
  %v1476 = vadd.f32 %v1091, %v1475
  %v1477 = vpop.f32.mrb[0].mxu0
  %1478 = vmatprep.mubr.f32.mxu0 0.0
  %1479 = vmatmul.mubr.f32.gmra.mrb[0].mxu0 %v439
  %v1480 = vpop.f32.mrb[0].mxu0
  %v1481 = vadd.f32 %v1096, %v1480
  %v1482 = vpop.f32.mrb[0].mxu0
  %1483 = vmatprep.mubr.f32.mxu0 0.0
  %1484 = vmatmul.mubr.f32.gmra.mrb[0].mxu0 %v442
  %v1485 = vpop.f32.mrb[0].mxu0
  %v1486 = vadd.f32 %v1101, %v1485
  %v1487 = vpop.f32.mrb[0].mxu0
  %1488 = vmatprep.mubr.f32.mxu0 0.0
  %1489 = vmatmul.mubr.f32.gmra.mrb[0].mxu0 %v445
  %v1490 = vpop.f32.mrb[0].mxu0
  %v1491 = vadd.f32 %v1106, %v1490
  %v1492 = vpop.f32.mrb[0].mxu0
  %1493 = vmatprep.mubr.f32.mxu0 0.0
  %1494 = vmatmul.mubr.f32.gmra.mrb[0].mxu0 %v448
  %v1495 = vpop.f32.mrb[0].mxu0
  %v1496 = vadd.f32 %v1111, %v1495
  %v1497 = vpop.f32.mrb[0].mxu0
  %1498 = vmatprep.mubr.f32.mxu0 0.0
  %1499 = vmatmul.mubr.f32.gmra.mrb[0].mxu0 %v451
  %v1500 = vpop.f32.mrb[0].mxu0
  %v1501 = vadd.f32 %v1116, %v1500
  %v1502 = vpop.f32.mrb[0].mxu0
  %1503 = vmatprep.mubr.f32.mxu0 0.0
  %1504 = vmatmul.mubr.f32.gmra.mrb[0].mxu0 %v454
  %v1505 = vpop.f32.mrb[0].mxu0
  %v1506 = vadd.f32 %v1121, %v1505
  %v1507 = vpop.f32.mrb[0].mxu0
  %1508 = vmatprep.mubr.f32.mxu0 0.0
  %1509 = vmatmul.mubr.f32.gmra.mrb[0].mxu0 %v457
  %v1510 = vpop.f32.mrb[0].mxu0
  %v1511 = vadd.f32 %v1126, %v1510
  %v1512 = vpop.f32.mrb[0].mxu0
  %1513 = vmatprep.mubr.f32.mxu0 0.0
  %1514 = vmatmul.mubr.f32.gmra.mrb[0].mxu0 %v460
  %v1515 = vpop.f32.mrb[0].mxu0
  %v1516 = vadd.f32 %v1131, %v1515
  %v1517 = vpop.f32.mrb[0].mxu0
  %1518 = vmatprep.mubr.f32.mxu0 0.0
  %1519 = vmatmul.mubr.f32.gmra.mrb[0].mxu0 %v463
  %v1520 = vpop.f32.mrb[0].mxu0
  %v1521 = vadd.f32 %v1136, %v1520
  %v1522 = vpop.f32.mrb[0].mxu0
  %1523 = vmatprep.mubr.f32.mxu0 0.0
  %1524 = vmatmul.mubr.f32.gmra.mrb[0].mxu0 %v466
  %v1525 = vpop.f32.mrb[0].mxu0
  %v1526 = vadd.f32 %v1141, %v1525
  %v1527 = vpop.f32.mrb[0].mxu0
  %1528 = vmatprep.mubr.f32.mxu0 0.0
  %1529 = vmatmul.mubr.f32.gmra.mrb[0].mxu0 %v469
  %v1530 = vpop.f32.mrb[0].mxu0
  %v1531 = vadd.f32 %v1146, %v1530
  %v1532 = vpop.f32.mrb[0].mxu0
  %1533 = vmatprep.mubr.f32.mxu0 0.0
  %1534 = vmatmul.mubr.f32.gmra.mrb[0].mxu0 %v472
  %v1535 = vpop.f32.mrb[0].mxu0
  %v1536 = vadd.f32 %v1151, %v1535
  %v1537 = vpop.f32.mrb[0].mxu0
  %1538 = vmatprep.mubr.f32.mxu0 0.0
  %1539 = vmatmul.mubr.f32.gmra.mrb[0].mxu0 %v475
  %v1540 = vpop.f32.mrb[0].mxu0
  %v1541 = vadd.f32 %v1156, %v1540
  %v1542 = vpop.f32.mrb[0].mxu0
  %1543 = vmatprep.mubr.f32.mxu0 0.0
  %1544 = vmatmul.mubr.f32.gmra.mrb[0].mxu0 %v478
  %v1545 = vpop.f32.mrb[0].mxu0
  %v1546 = vadd.f32 %v1161, %v1545
  %v1547 = vpop.f32.mrb[0].mxu0
  %1548 = vmatprep.mubr.f32.mxu0 0.0
  %1549 = vmatmul.mubr.f32.gmra.mrb[0].mxu0 %v481
  %v1550 = vpop.f32.mrb[0].mxu0
  %v1551 = vadd.f32 %v1166, %v1550
  %v1552 = vpop.f32.mrb[0].mxu0
  %1553 = vmatprep.mubr.f32.mxu0 0.0
  %1554 = vmatmul.mubr.f32.gmra.mrb[0].mxu0 %v484
  %v1555 = vpop.f32.mrb[0].mxu0
  %v1556 = vadd.f32 %v1171, %v1555
  %v1557 = vpop.f32.mrb[0].mxu0
  %1558 = vmatprep.mubr.f32.mxu0 0.0
  %1559 = vmatmul.mubr.f32.gmra.mrb[0].mxu0 %v487
  %v1560 = vpop.f32.mrb[0].mxu0
  %v1561 = vadd.f32 %v1176, %v1560
  %v1562 = vpop.f32.mrb[0].mxu0
  %1563 = vmatprep.mubr.f32.mxu0 0.0
  %1564 = vmatmul.mubr.f32.gmra.mrb[0].mxu0 %v490
  %v1565 = vpop.f32.mrb[0].mxu0
  %v1566 = vadd.f32 %v1181, %v1565
  %v1567 = vpop.f32.mrb[0].mxu0
  %1568 = vmatprep.mubr.f32.mxu0 0.0
  %1569 = vmatmul.mubr.f32.gmra.mrb[0].mxu0 %v493
  %v1570 = vpop.f32.mrb[0].mxu0
  %v1571 = vadd.f32 %v1186, %v1570
  %v1572 = vpop.f32.mrb[0].mxu0
  %1573 = vmatprep.mubr.f32.mxu0 0.0
  %1574 = vmatmul.mubr.f32.gmra.mrb[0].mxu0 %v496
  %v1575 = vpop.f32.mrb[0].mxu0
  %v1576 = vadd.f32 %v1191, %v1575
  %v1577 = vpop.f32.mrb[0].mxu0
  %1578 = vmatprep.mubr.f32.mxu0 0.0
  %1579 = vmatmul.mubr.f32.gmra.mrb[0].mxu0 %v499
  %v1580 = vpop.f32.mrb[0].mxu0
  %v1581 = vadd.f32 %v1196, %v1580
  %v1582 = vpop.f32.mrb[0].mxu0
  %1583 = vmatprep.mubr.f32.mxu0 0.0
  %1584 = vmatmul.mubr.f32.gmra.mrb[0].mxu0 %v502
  %v1585 = vpop.f32.mrb[0].mxu0
  %v1586 = vadd.f32 %v1201, %v1585
  %v1587 = vpop.f32.mrb[0].mxu0
  %1588 = vmatprep.mubr.f32.mxu0 0.0
  %1589 = vmatmul.mubr.f32.gmra.mrb[0].mxu0 %v505
  %v1590 = vpop.f32.mrb[0].mxu0
  %v1591 = vadd.f32 %v1206, %v1590
  %v1592 = vpop.f32.mrb[0].mxu0
  %1593 = vmatprep.mubr.f32.mxu0 0.0
  %1594 = vmatmul.mubr.f32.gmra.mrb[0].mxu0 %v508
  %v1595 = vpop.f32.mrb[0].mxu0
  %v1596 = vadd.f32 %v1211, %v1595
  %v1597 = vpop.f32.mrb[0].mxu0
  %1598 = vmatprep.mubr.f32.mxu0 0.0
  %1599 = vmatmul.mubr.f32.gmra.mrb[0].mxu0 %v511
  %v1600 = vpop.f32.mrb[0].mxu0
  %v1601 = vadd.f32 %v1216, %v1600
  %v1602 = vpop.f32.mrb[0].mxu0
  %1603 = vmatprep.mubr.f32.mxu0 0.0
  %1604 = vmatmul.mubr.f32.gmra.mrb[0].mxu0 %v514
  %v1605 = vpop.f32.mrb[0].mxu0
  %v1606 = vadd.f32 %v1221, %v1605
  %v1607 = vpop.f32.mrb[0].mxu0
  %1608 = vmatprep.mubr.f32.mxu0 0.0
  %1609 = vmatmul.mubr.f32.gmra.mrb[0].mxu0 %v517
  %v1610 = vpop.f32.mrb[0].mxu0
  %v1611 = vadd.f32 %v1226, %v1610
  %v1612 = vpop.f32.mrb[0].mxu0
  %1613 = vmatprep.mubr.f32.mxu0 0.0
  %1614 = vmatmul.mubr.f32.gmra.mrb[0].mxu0 %v520
  %v1615 = vpop.f32.mrb[0].mxu0
  %v1616 = vadd.f32 %v1231, %v1615
  %v1617 = vpop.f32.mrb[0].mxu0
  %1618 = vmatprep.mubr.f32.mxu0 0.0
  %1619 = vmatmul.mubr.f32.gmra.mrb[0].mxu0 %v523
  %v1620 = vpop.f32.mrb[0].mxu0
  %v1621 = vadd.f32 %v1236, %v1620
  %v1622 = vpop.f32.mrb[0].mxu0
  %1623 = vmatprep.mubr.f32.mxu0 0.0
  %1624 = vmatmul.mubr.f32.gmra.mrb[0].mxu0 %v526
  %v1625 = vpop.f32.mrb[0].mxu0
  %v1626 = vadd.f32 %v1241, %v1625
  %v1627 = vpop.f32.mrb[0].mxu0
  %1628 = vmatprep.mubr.f32.mxu0 0.0
  %1629 = vmatmul.mubr.f32.gmra.mrb[0].mxu0 %v529
  %v1630 = vpop.f32.mrb[0].mxu0
  %v1631 = vadd.f32 %v1246, %v1630
  %v1632 = vpop.f32.mrb[0].mxu0
  %1633 = vmatprep.mubr.f32.mxu0 0.0
  %1634 = vmatmul.mubr.f32.gmra.mrb[0].mxu0 %v532
  %v1635 = vpop.f32.mrb[0].mxu0
  %v1636 = vadd.f32 %v1251, %v1635
  %v1637 = vpop.f32.mrb[0].mxu0
  %1638 = vmatprep.mubr.f32.mxu0 0.0
  %1639 = vmatmul.mubr.f32.gmra.mrb[0].mxu0 %v535
  %v1640 = vpop.f32.mrb[0].mxu0
  %v1641 = vadd.f32 %v1256, %v1640
  %v1642 = vpop.f32.mrb[0].mxu0
  %1643 = vmatprep.mubr.f32.mxu0 0.0
  %1644 = vmatmul.mubr.f32.gmra.mrb[0].mxu0 %v538
  %v1645 = vpop.f32.mrb[0].mxu0
  %v1646 = vadd.f32 %v1261, %v1645
  %v1647 = vpop.f32.mrb[0].mxu0
  %1648 = vmatprep.mubr.f32.mxu0 0.0
  %1649 = vmatmul.mubr.f32.gmra.mrb[0].mxu0 %v541
  %v1650 = vpop.f32.mrb[0].mxu0
  %v1651 = vadd.f32 %v1266, %v1650
  %v1652 = vpop.f32.mrb[0].mxu0
  %1653 = vmatprep.mubr.f32.mxu0 0.0
  %1654 = vmatmul.mubr.f32.gmra.mrb[0].mxu0 %v544
  %v1655 = vpop.f32.mrb[0].mxu0
  %v1656 = vadd.f32 %v1271, %v1655
  %v1657 = vpop.f32.mrb[0].mxu0
  %1658 = vmatprep.mubr.f32.mxu0 0.0
  %1659 = vmatmul.mubr.f32.gmra.mrb[0].mxu0 %v547
  %v1660 = vpop.f32.mrb[0].mxu0
  %v1661 = vadd.f32 %v1276, %v1660
  %v1662 = vpop.f32.mrb[0].mxu0
  %1663 = vmatprep.mubr.f32.mxu0 0.0
  %1664 = vmatmul.mubr.f32.gmra.mrb[0].mxu0 %v550
  %v1665 = vpop.f32.mrb[0].mxu0
  %v1666 = vadd.f32 %v1281, %v1665
  %v1667 = vpop.f32.mrb[0].mxu0
  %1668 = vmatprep.mubr.f32.mxu0 0.0
  %1669 = vmatmul.mubr.f32.gmra.mrb[0].mxu0 %v553
  %v1670 = vpop.f32.mrb[0].mxu0
  %v1671 = vadd.f32 %v1286, %v1670
  %v1672 = vpop.f32.mrb[0].mxu0
  %1673 = vmatprep.mubr.f32.mxu0 0.0
  %1674 = vmatmul.mubr.f32.gmra.mrb[0].mxu0 %v556
  %v1675 = vpop.f32.mrb[0].mxu0
  %v1676 = vadd.f32 %v1291, %v1675
  %v1677 = vpop.f32.mrb[0].mxu0
  %1678 = vmatprep.mubr.f32.mxu0 0.0
  %1679 = vmatmul.mubr.f32.gmra.mrb[0].mxu0 %v559
  %v1680 = vpop.f32.mrb[0].mxu0
  %v1681 = vadd.f32 %v1296, %v1680
  %v1682 = vpop.f32.mrb[0].mxu0
  %1683 = vmatprep.mubr.f32.mxu0 0.0
  %1684 = vmatmul.mubr.f32.gmra.mrb[0].mxu0 %v562
  %v1685 = vpop.f32.mrb[0].mxu0
  %v1686 = vadd.f32 %v1301, %v1685
  %v1687 = vpop.f32.mrb[0].mxu0
  %1688 = vmatprep.mubr.f32.mxu0 0.0
  %1689 = vmatmul.mubr.f32.gmra.mrb[0].mxu0 %v565
  %v1690 = vpop.f32.mrb[0].mxu0
  %v1691 = vadd.f32 %v1306, %v1690
  %v1692 = vpop.f32.mrb[0].mxu0
  %1693 = vmatprep.mubr.f32.mxu0 0.0
  %1694 = vmatmul.mubr.f32.gmra.mrb[0].mxu0 %v568
  %v1695 = vpop.f32.mrb[0].mxu0
  %v1696 = vadd.f32 %v1311, %v1695
  %v1697 = vpop.f32.mrb[0].mxu0
  %1698 = vmatprep.mubr.f32.mxu0 0.0
  %1699 = vmatmul.mubr.f32.gmra.mrb[0].mxu0 %v571
  %v1700 = vpop.f32.mrb[0].mxu0
  %v1701 = vadd.f32 %v1316, %v1700
  %v1702 = vpop.f32.mrb[0].mxu0
  %1703 = vmatprep.mubr.f32.mxu0 0.0
  %1704 = vmatmul.mubr.f32.gmra.mrb[0].mxu0 %v574
  %v1705 = vpop.f32.mrb[0].mxu0
  %v1706 = vadd.f32 %v1321, %v1705
  %v1707 = vpop.f32.mrb[0].mxu0
  %1708 = vmatprep.mubr.f32.mxu0 0.0
  %1709 = vmatmul.mubr.f32.gmra.mrb[0].mxu0 %v577
  %v1710 = vpop.f32.mrb[0].mxu0
  %v1711 = vadd.f32 %v1326, %v1710
  %v1712 = vpop.f32.mrb[0].mxu0
  %1713 = vmatprep.mubr.f32.mxu0 0.0
  %1714 = vmatmul.mubr.f32.gmra.mrb[0].mxu0 %v580
  %v1715 = vpop.f32.mrb[0].mxu0
  %v1716 = vadd.f32 %v1331, %v1715
  %v1717 = vpop.f32.mrb[0].mxu0
  %1718 = vmatprep.mubr.f32.mxu0 0.0
  %1719 = vmatmul.mubr.f32.gmra.mrb[0].mxu0 %v583
  %v1720 = vpop.f32.mrb[0].mxu0
  %v1721 = vadd.f32 %v1336, %v1720
  %v1722 = vpop.f32.mrb[0].mxu0
  %1723 = vmatprep.mubr.f32.mxu0 0.0
  %1724 = vmatmul.mubr.f32.gmra.mrb[0].mxu0 %v586
  %v1725 = vpop.f32.mrb[0].mxu0
  %v1726 = vadd.f32 %v1341, %v1725
  %v1727 = vpop.f32.mrb[0].mxu0
  %1728 = vmatprep.mubr.f32.mxu0 0.0
  %1729 = vmatmul.mubr.f32.gmra.mrb[0].mxu0 %v589
  %v1730 = vpop.f32.mrb[0].mxu0
  %v1731 = vadd.f32 %v1346, %v1730
  %v1732 = vpop.f32.mrb[0].mxu0
  %1733 = vmatprep.mubr.f32.mxu0 0.0
  %1734 = vmatmul.mubr.f32.gmra.mrb[0].mxu0 %v592
  %v1735 = vpop.f32.mrb[0].mxu0
  %v1736 = vadd.f32 %v1351, %v1735
  %v1737 = vpop.f32.mrb[0].mxu0
  %1738 = vmatprep.mubr.f32.mxu0 0.0
  %1739 = vmatmul.mubr.f32.gmra.mrb[0].mxu0 %v595
  %v1740 = vpop.f32.mrb[0].mxu0
  %v1741 = vadd.f32 %v1356, %v1740
  %v1742 = vpop.f32.mrb[0].mxu0
  %1743 = vmatprep.mubr.f32.mxu0 0.0
  %1744 = vmatmul.mubr.f32.gmra.mrb[0].mxu0 %v598
  %v1745 = vpop.f32.mrb[0].mxu0
  %v1746 = vadd.f32 %v1361, %v1745
  %v1747 = vpop.f32.mrb[0].mxu0
  %1748 = vmatprep.mubr.f32.mxu0 0.0
  %1749 = vmatmul.mubr.f32.gmra.mrb[0].mxu0 %v601
  %v1750 = vpop.f32.mrb[0].mxu0
  %v1751 = vadd.f32 %v1366, %v1750
  %v1752 = vpop.f32.mrb[0].mxu0
  %1753 = vmatprep.mubr.f32.mxu0 0.0
  %1754 = vmatmul.mubr.f32.gmra.mrb[0].mxu0 %v604
  %v1755 = vpop.f32.mrb[0].mxu0
  %v1756 = vadd.f32 %v1371, %v1755
  %v1757 = vpop.f32.mrb[0].mxu0
  %1758 = vmatprep.mubr.f32.mxu0 0.0
  %1759 = vmatmul.mubr.f32.gmra.mrb[0].mxu0 %v607
  %v1760 = vpop.f32.mrb[0].mxu0
  %v1761 = vadd.f32 %v1376, %v1760
  %v1762 = vpop.f32.mrb[0].mxu0
  %1763 = vdwg.mxu0
  %v1764 = vmax.f32 %v1446, 0.0
  %v1765 = vmax.f32 %v1451, 0.0
  %v1766 = vmax.f32 %v1456, 0.0
  %v1767 = vmax.f32 %v1461, 0.0
  %v1768 = vmax.f32 %v1466, 0.0
  %v1769 = vmax.f32 %v1471, 0.0
  %v1770 = vmax.f32 %v1476, 0.0
  %v1771 = vmax.f32 %v1481, 0.0
  %v1772 = vmax.f32 %v1486, 0.0
  %v1773 = vmax.f32 %v1491, 0.0
  %v1774 = vmax.f32 %v1496, 0.0
  %v1775 = vmax.f32 %v1501, 0.0
  %v1776 = vmax.f32 %v1506, 0.0
  %v1777 = vmax.f32 %v1511, 0.0
  %v1778 = vmax.f32 %v1516, 0.0
  %v1779 = vmax.f32 %v1521, 0.0
  %v1780 = vmax.f32 %v1526, 0.0
  %v1781 = vmax.f32 %v1531, 0.0
  %v1782 = vmax.f32 %v1536, 0.0
  %v1783 = vmax.f32 %v1541, 0.0
  %v1784 = vmax.f32 %v1546, 0.0
  %v1785 = vmax.f32 %v1551, 0.0
  %v1786 = vmax.f32 %v1556, 0.0
  %v1787 = vmax.f32 %v1561, 0.0
  %v1788 = vmax.f32 %v1566, 0.0
  %v1789 = vmax.f32 %v1571, 0.0
  %v1790 = vmax.f32 %v1576, 0.0
  %v1791 = vmax.f32 %v1581, 0.0
  %v1792 = vmax.f32 %v1586, 0.0
  %v1793 = vmax.f32 %v1591, 0.0
  %v1794 = vmax.f32 %v1596, 0.0
  %v1795 = vmax.f32 %v1601, 0.0
  %v1796 = vmax.f32 %v1606, 0.0
  %v1797 = vmax.f32 %v1611, 0.0
  %v1798 = vmax.f32 %v1616, 0.0
  %v1799 = vmax.f32 %v1621, 0.0
  %v1800 = vmax.f32 %v1626, 0.0
  %v1801 = vmax.f32 %v1631, 0.0
  %v1802 = vmax.f32 %v1636, 0.0
  %v1803 = vmax.f32 %v1641, 0.0
  %v1804 = vmax.f32 %v1646, 0.0
  %v1805 = vmax.f32 %v1651, 0.0
  %v1806 = vmax.f32 %v1656, 0.0
  %v1807 = vmax.f32 %v1661, 0.0
  %v1808 = vmax.f32 %v1666, 0.0
  %v1809 = vmax.f32 %v1671, 0.0
  %v1810 = vmax.f32 %v1676, 0.0
  %v1811 = vmax.f32 %v1681, 0.0
  %v1812 = vmax.f32 %v1686, 0.0
  %v1813 = vmax.f32 %v1691, 0.0
  %v1814 = vmax.f32 %v1696, 0.0
  %v1815 = vmax.f32 %v1701, 0.0
  %v1816 = vmax.f32 %v1706, 0.0
  %v1817 = vmax.f32 %v1711, 0.0
  %v1818 = vmax.f32 %v1716, 0.0
  %v1819 = vmax.f32 %v1721, 0.0
  %v1820 = vmax.f32 %v1726, 0.0
  %v1821 = vmax.f32 %v1731, 0.0
  %v1822 = vmax.f32 %v1736, 0.0
  %v1823 = vmax.f32 %v1741, 0.0
  %v1824 = vmax.f32 %v1746, 0.0
  %v1825 = vmax.f32 %v1751, 0.0
  %v1826 = vmax.f32 %v1756, 0.0
  %v1827 = vmax.f32 %v1761, 0.0
  %1828 = vst [vmem:[%s3] sm:$0xff] %v1764
  %1829 = vst [vmem:[%s3 + $0x8] sm:$0xff] %v1765
  %1830 = vst [vmem:[%s3 + $0x10] sm:$0xff] %v1766
  %1831 = vst [vmem:[%s3 + $0x18] sm:$0xff] %v1767
  %1832 = vst [vmem:[%s3 + $0x20] sm:$0xff] %v1768
  %1833 = vst [vmem:[%s3 + $0x28] sm:$0xff] %v1769
  %1834 = vst [vmem:[%s3 + $0x30] sm:$0xff] %v1770
  %1835 = vst [vmem:[%s3 + $0x38] sm:$0xff] %v1771
  %1836 = vst [vmem:[%s3 + $0x40] sm:$0xff] %v1772
  %1837 = vst [vmem:[%s3 + $0x48] sm:$0xff] %v1773
  %1838 = vst [vmem:[%s3 + $0x50] sm:$0xff] %v1774
  %1839 = vst [vmem:[%s3 + $0x58] sm:$0xff] %v1775
  %1840 = vst [vmem:[%s3 + $0x60] sm:$0xff] %v1776
  %1841 = vst [vmem:[%s3 + $0x68] sm:$0xff] %v1777
  %1842 = vst [vmem:[%s3 + $0x70] sm:$0xff] %v1778
  %1843 = vst [vmem:[%s3 + $0x78] sm:$0xff] %v1779
  %1844 = vst [vmem:[%s3 + $0x80] sm:$0xff] %v1780
  %1845 = vst [vmem:[%s3 + $0x88] sm:$0xff] %v1781
  %1846 = vst [vmem:[%s3 + $0x90] sm:$0xff] %v1782
  %1847 = vst [vmem:[%s3 + $0x98] sm:$0xff] %v1783
  %1848 = vst [vmem:[%s3 + $0xa0] sm:$0xff] %v1784
  %1849 = vst [vmem:[%s3 + $0xa8] sm:$0xff] %v1785
  %1850 = vst [vmem:[%s3 + $0xb0] sm:$0xff] %v1786
  %1851 = vst [vmem:[%s3 + $0xb8] sm:$0xff] %v1787
  %1852 = vst [vmem:[%s3 + $0xc0] sm:$0xff] %v1788
  %1853 = vst [vmem:[%s3 + $0xc8] sm:$0xff] %v1789
  %1854 = vst [vmem:[%s3 + $0xd0] sm:$0xff] %v1790
  %1855 = vst [vmem:[%s3 + $0xd8] sm:$0xff] %v1791
  %1856 = vst [vmem:[%s3 + $0xe0] sm:$0xff] %v1792
  %1857 = vst [vmem:[%s3 + $0xe8] sm:$0xff] %v1793
  %1858 = vst [vmem:[%s3 + $0xf0] sm:$0xff] %v1794
  %1859 = vst [vmem:[%s3 + $0xf8] sm:$0xff] %v1795
  %1860 = vst [vmem:[%s3 + $0x100] sm:$0xff] %v1796
  %1861 = vst [vmem:[%s3 + $0x108] sm:$0xff] %v1797
  %1862 = vst [vmem:[%s3 + $0x110] sm:$0xff] %v1798
  %1863 = vst [vmem:[%s3 + $0x118] sm:$0xff] %v1799
  %1864 = vst [vmem:[%s3 + $0x120] sm:$0xff] %v1800
  %1865 = vst [vmem:[%s3 + $0x128] sm:$0xff] %v1801
  %1866 = vst [vmem:[%s3 + $0x130] sm:$0xff] %v1802
  %1867 = vst [vmem:[%s3 + $0x138] sm:$0xff] %v1803
  %1868 = vst [vmem:[%s3 + $0x140] sm:$0xff] %v1804
  %1869 = vst [vmem:[%s3 + $0x148] sm:$0xff] %v1805
  %1870 = vst [vmem:[%s3 + $0x150] sm:$0xff] %v1806
  %1871 = vst [vmem:[%s3 + $0x158] sm:$0xff] %v1807
  %1872 = vst [vmem:[%s3 + $0x160] sm:$0xff] %v1808
  %1873 = vst [vmem:[%s3 + $0x168] sm:$0xff] %v1809
  %1874 = vst [vmem:[%s3 + $0x170] sm:$0xff] %v1810
  %1875 = vst [vmem:[%s3 + $0x178] sm:$0xff] %v1811
  %1876 = vst [vmem:[%s3 + $0x180] sm:$0xff] %v1812
  %1877 = vst [vmem:[%s3 + $0x188] sm:$0xff] %v1813
  %1878 = vst [vmem:[%s3 + $0x190] sm:$0xff] %v1814
  %1879 = vst [vmem:[%s3 + $0x198] sm:$0xff] %v1815
  %1880 = vst [vmem:[%s3 + $0x1a0] sm:$0xff] %v1816
  %1881 = vst [vmem:[%s3 + $0x1a8] sm:$0xff] %v1817
  %1882 = vst [vmem:[%s3 + $0x1b0] sm:$0xff] %v1818
  %1883 = vst [vmem:[%s3 + $0x1b8] sm:$0xff] %v1819
  %1884 = vst [vmem:[%s3 + $0x1c0] sm:$0xff] %v1820
  %1885 = vst [vmem:[%s3 + $0x1c8] sm:$0xff] %v1821
  %1886 = vst [vmem:[%s3 + $0x1d0] sm:$0xff] %v1822
  %1887 = vst [vmem:[%s3 + $0x1d8] sm:$0xff] %v1823
  %1888 = vst [vmem:[%s3 + $0x1e0] sm:$0xff] %v1824
  %1889 = vst [vmem:[%s3 + $0x1e8] sm:$0xff] %v1825
  %1890 = vst [vmem:[%s3 + $0x1f0] sm:$0xff] %v1826
  %1891 = vst [vmem:[%s3 + $0x1f8] sm:$0xff] %v1827
  // Predicated region
  $region14: #{pilotnet_forward.6} parent=0 // pred_check
    _
  $region15: #{pilotnet_forward.6} parent=0 // pred_check_branch
    %1893 = sbr.rel (0) target = $region17
  $region16: #{pilotnet_forward.6} parent=0 // pred_region
    _
  $region17: #{pilotnet_forward.6} parent=0 // pred_fallthru
    _
  // Predicated region
  $region18: #{pilotnet_forward.6} parent=0 // pred_check
    _
  $region19: #{pilotnet_forward.6} parent=0 // pred_check_branch
    %1895 = sbr.rel (0) target = $region21
  $region20: #{pilotnet_forward.6} parent=0 // pred_region
    _
  $region21: #{pilotnet_forward.6} parent=0 // pred_fallthru
    _

// kernel: pilotnet_forward.7
$region0: #{pilotnet_forward.7}
  #allocation0 [shape = 'u32[]', space=smem, size = 0x4, offset = 0x4, fixed_abs, tag = 'smem constant byte address 0x4 - core index']
  #allocation1 [shape = 'u32[144,128]{1,0:T(1,128)}', space=vmem, size = 0x12000, scoped, tag = 'internal scratch']
  %s0 = inlined_call_operand.vmem [shape: f32[128,904], index: 0, kind: input, shape index: {}]
  %s1 = inlined_call_operand.vmem [shape: f32[904,128], index: 1, kind: input, shape index: {}]
  %s2 = inlined_call_operand.vmem [shape: f32[1,128], index: 2, kind: input, shape index: {}]
  %s3 = inlined_call_operand.vmem [shape: f32[128,128], index: 3, kind: output, shape index: {}]
  %s4 = sld [smem:[#allocation0]]
  $region22: #{pilotnet_forward.7} parent=0
    _
  %s6 = ssub.s32 1, %s4
  %s7 = scalar_select 0, %s6, %s4
  // Predicated region
  $region2: #{pilotnet_forward.7} parent=0 // pred_check
    _
  $region3: #{pilotnet_forward.7} parent=0 // pred_check_branch
    %9 = sbr.rel (0) target = $region5
  $region4: #{pilotnet_forward.7} parent=0 // pred_region
    _
  $region5: #{pilotnet_forward.7} parent=0 // pred_fallthru
    _
  // Predicated region
  $region6: #{pilotnet_forward.7} parent=0 // pred_check
    _
  $region7: #{pilotnet_forward.7} parent=0 // pred_check_branch
    %11 = sbr.rel (0) target = $region9
  $region8: #{pilotnet_forward.7} parent=0 // pred_region
    _
  $region9: #{pilotnet_forward.7} parent=0 // pred_fallthru
    _
  // Predicated region
  $region10: #{pilotnet_forward.7} parent=0 // pred_check
    _
  $region11: #{pilotnet_forward.7} parent=0 // pred_check_branch
    %13 = sbr.rel (0) target = $region13
  $region12: #{pilotnet_forward.7} parent=0 // pred_region
    _
  $region13: #{pilotnet_forward.7} parent=0 // pred_fallthru
    _
  %v14 = vld [vmem:[%s0] sm:$0xff]
  %v15 = vld [vmem:[%s0 + $0x8] sm:$0xff]
  %v16 = vld [vmem:[%s0 + $0x10] sm:$0xff]
  %v17 = vld [vmem:[%s0 + $0x18] sm:$0xff]
  %v18 = vld [vmem:[%s0 + $0x20] sm:$0xff]
  %v19 = vld [vmem:[%s0 + $0x28] sm:$0xff]
  %v20 = vld [vmem:[%s0 + $0x30] sm:$0xff]
  %v21 = vld [vmem:[%s0 + $0x38] sm:$0xff]
  %v22 = vld [vmem:[%s0 + $0x40] sm:$0xff]
  %v23 = vld [vmem:[%s0 + $0x48] sm:$0xff]
  %v24 = vld [vmem:[%s0 + $0x50] sm:$0xff]
  %v25 = vld [vmem:[%s0 + $0x58] sm:$0xff]
  %v26 = vld [vmem:[%s0 + $0x60] sm:$0xff]
  %v27 = vld [vmem:[%s0 + $0x68] sm:$0xff]
  %v28 = vld [vmem:[%s0 + $0x70] sm:$0xff]
  %v29 = vld [vmem:[%s0 + $0x78] sm:$0xff]
  %v30 = vld [vmem:[%s0 + $0x80] sm:$0xff]
  %v31 = vld [vmem:[%s0 + $0x88] sm:$0xff]
  %v32 = vld [vmem:[%s0 + $0x90] sm:$0xff]
  %v33 = vld [vmem:[%s0 + $0x98] sm:$0xff]
  %v34 = vld [vmem:[%s0 + $0xa0] sm:$0xff]
  %v35 = vld [vmem:[%s0 + $0xa8] sm:$0xff]
  %v36 = vld [vmem:[%s0 + $0xb0] sm:$0xff]
  %v37 = vld [vmem:[%s0 + $0xb8] sm:$0xff]
  %v38 = vld [vmem:[%s0 + $0xc0] sm:$0xff]
  %v39 = vld [vmem:[%s0 + $0xc8] sm:$0xff]
  %v40 = vld [vmem:[%s0 + $0xd0] sm:$0xff]
  %v41 = vld [vmem:[%s0 + $0xd8] sm:$0xff]
  %v42 = vld [vmem:[%s0 + $0xe0] sm:$0xff]
  %v43 = vld [vmem:[%s0 + $0xe8] sm:$0xff]
  %v44 = vld [vmem:[%s0 + $0xf0] sm:$0xff]
  %v45 = vld [vmem:[%s0 + $0xf8] sm:$0xff]
  %v46 = vld [vmem:[%s0 + $0x100] sm:$0xff]
  %v47 = vld [vmem:[%s0 + $0x108] sm:$0xff]
  %v48 = vld [vmem:[%s0 + $0x110] sm:$0xff]
  %v49 = vld [vmem:[%s0 + $0x118] sm:$0xff]
  %v50 = vld [vmem:[%s0 + $0x120] sm:$0xff]
  %v51 = vld [vmem:[%s0 + $0x128] sm:$0xff]
  %v52 = vld [vmem:[%s0 + $0x130] sm:$0xff]
  %v53 = vld [vmem:[%s0 + $0x138] sm:$0xff]
  %v54 = vld [vmem:[%s0 + $0x140] sm:$0xff]
  %v55 = vld [vmem:[%s0 + $0x148] sm:$0xff]
  %v56 = vld [vmem:[%s0 + $0x150] sm:$0xff]
  %v57 = vld [vmem:[%s0 + $0x158] sm:$0xff]
  %v58 = vld [vmem:[%s0 + $0x160] sm:$0xff]
  %v59 = vld [vmem:[%s0 + $0x168] sm:$0xff]
  %v60 = vld [vmem:[%s0 + $0x170] sm:$0xff]
  %v61 = vld [vmem:[%s0 + $0x178] sm:$0xff]
  %v62 = vld [vmem:[%s0 + $0x180] sm:$0xff]
  %v63 = vld [vmem:[%s0 + $0x188] sm:$0xff]
  %v64 = vld [vmem:[%s0 + $0x190] sm:$0xff]
  %v65 = vld [vmem:[%s0 + $0x198] sm:$0xff]
  %v66 = vld [vmem:[%s0 + $0x1a0] sm:$0xff]
  %v67 = vld [vmem:[%s0 + $0x1a8] sm:$0xff]
  %v68 = vld [vmem:[%s0 + $0x1b0] sm:$0xff]
  %v69 = vld [vmem:[%s0 + $0x1b8] sm:$0xff]
  %v70 = vld [vmem:[%s0 + $0x1c0] sm:$0xff]
  %v71 = vld [vmem:[%s0 + $0x1c8] sm:$0xff]
  %v72 = vld [vmem:[%s0 + $0x1d0] sm:$0xff]
  %v73 = vld [vmem:[%s0 + $0x1d8] sm:$0xff]
  %v74 = vld [vmem:[%s0 + $0x1e0] sm:$0xff]
  %v75 = vld [vmem:[%s0 + $0x1e8] sm:$0xff]
  %v76 = vld [vmem:[%s0 + $0x1f0] sm:$0xff]
  %v77 = vld [vmem:[%s0 + $0x1f8] sm:$0xff]
  %v78 = vld [vmem:[%s0 + $0x200] sm:$0xff]
  %v79 = vld [vmem:[%s0 + $0x208] sm:$0xff]
  %v80 = vld [vmem:[%s0 + $0x210] sm:$0xff]
  %v81 = vld [vmem:[%s0 + $0x218] sm:$0xff]
  %v82 = vld [vmem:[%s0 + $0x220] sm:$0xff]
  %v83 = vld [vmem:[%s0 + $0x228] sm:$0xff]
  %v84 = vld [vmem:[%s0 + $0x230] sm:$0xff]
  %v85 = vld [vmem:[%s0 + $0x238] sm:$0xff]
  %v86 = vld [vmem:[%s0 + $0x240] sm:$0xff]
  %v87 = vld [vmem:[%s0 + $0x248] sm:$0xff]
  %v88 = vld [vmem:[%s0 + $0x250] sm:$0xff]
  %v89 = vld [vmem:[%s0 + $0x258] sm:$0xff]
  %v90 = vld [vmem:[%s0 + $0x260] sm:$0xff]
  %v91 = vld [vmem:[%s0 + $0x268] sm:$0xff]
  %v92 = vld [vmem:[%s0 + $0x270] sm:$0xff]
  %v93 = vld [vmem:[%s0 + $0x278] sm:$0xff]
  %v94 = vld [vmem:[%s0 + $0x280] sm:$0xff]
  %v95 = vld [vmem:[%s0 + $0x288] sm:$0xff]
  %v96 = vld [vmem:[%s0 + $0x290] sm:$0xff]
  %v97 = vld [vmem:[%s0 + $0x298] sm:$0xff]
  %v98 = vld [vmem:[%s0 + $0x2a0] sm:$0xff]
  %v99 = vld [vmem:[%s0 + $0x2a8] sm:$0xff]
  %v100 = vld [vmem:[%s0 + $0x2b0] sm:$0xff]
  %v101 = vld [vmem:[%s0 + $0x2b8] sm:$0xff]
  %v102 = vld [vmem:[%s0 + $0x2c0] sm:$0xff]
  %v103 = vld [vmem:[%s0 + $0x2c8] sm:$0xff]
  %v104 = vld [vmem:[%s0 + $0x2d0] sm:$0xff]
  %v105 = vld [vmem:[%s0 + $0x2d8] sm:$0xff]
  %v106 = vld [vmem:[%s0 + $0x2e0] sm:$0xff]
  %v107 = vld [vmem:[%s0 + $0x2e8] sm:$0xff]
  %v108 = vld [vmem:[%s0 + $0x2f0] sm:$0xff]
  %v109 = vld [vmem:[%s0 + $0x2f8] sm:$0xff]
  %v110 = vld [vmem:[%s0 + $0x300] sm:$0xff]
  %v111 = vld [vmem:[%s0 + $0x308] sm:$0xff]
  %v112 = vld [vmem:[%s0 + $0x310] sm:$0xff]
  %v113 = vld [vmem:[%s0 + $0x318] sm:$0xff]
  %v114 = vld [vmem:[%s0 + $0x320] sm:$0xff]
  %v115 = vld [vmem:[%s0 + $0x328] sm:$0xff]
  %v116 = vld [vmem:[%s0 + $0x330] sm:$0xff]
  %v117 = vld [vmem:[%s0 + $0x338] sm:$0xff]
  %v118 = vld [vmem:[%s0 + $0x340] sm:$0xff]
  %v119 = vld [vmem:[%s0 + $0x348] sm:$0xff]
  %v120 = vld [vmem:[%s0 + $0x350] sm:$0xff]
  %v121 = vld [vmem:[%s0 + $0x358] sm:$0xff]
  %v122 = vld [vmem:[%s0 + $0x360] sm:$0xff]
  %v123 = vld [vmem:[%s0 + $0x368] sm:$0xff]
  %v124 = vld [vmem:[%s0 + $0x370] sm:$0xff]
  %v125 = vld [vmem:[%s0 + $0x378] sm:$0xff]
  %v126 = vld [vmem:[%s0 + $0x380] sm:$0xff]
  %v127 = vld [vmem:[%s0 + $0x388] sm:$0xff]
  %v128 = vld [vmem:[%s0 + $0x390] sm:$0xff]
  %v129 = vld [vmem:[%s0 + $0x398] sm:$0xff]
  %v130 = vld [vmem:[%s0 + $0x3a0] sm:$0xff]
  %v131 = vld [vmem:[%s0 + $0x3a8] sm:$0xff]
  %v132 = vld [vmem:[%s0 + $0x3b0] sm:$0xff]
  %v133 = vld [vmem:[%s0 + $0x3b8] sm:$0xff]
  %v134 = vld [vmem:[%s0 + $0x3c0] sm:$0xff]
  %v135 = vld [vmem:[%s0 + $0x3c8] sm:$0xff]
  %v136 = vld [vmem:[%s0 + $0x3d0] sm:$0xff]
  %v137 = vld [vmem:[%s0 + $0x3d8] sm:$0xff]
  %v138 = vld [vmem:[%s0 + $0x3e0] sm:$0xff]
  %v139 = vld [vmem:[%s0 + $0x3e8] sm:$0xff]
  %v140 = vld [vmem:[%s0 + $0x3f0] sm:$0xff]
  %v141 = vld [vmem:[%s0 + $0x3f8] sm:$0xff]
  %v142 = vld [vmem:[%s1] sm:$0xff]
  %v143 = vld [vmem:[%s1 + $0x8] sm:$0xff]
  %v144 = vld [vmem:[%s1 + $0x10] sm:$0xff]
  %v145 = vld [vmem:[%s1 + $0x18] sm:$0xff]
  %v146 = vld [vmem:[%s1 + $0x20] sm:$0xff]
  %v147 = vld [vmem:[%s1 + $0x28] sm:$0xff]
  %v148 = vld [vmem:[%s1 + $0x30] sm:$0xff]
  %v149 = vld [vmem:[%s1 + $0x38] sm:$0xff]
  %v150 = vld [vmem:[%s1 + $0x40] sm:$0xff]
  %v151 = vld [vmem:[%s1 + $0x48] sm:$0xff]
  %v152 = vld [vmem:[%s1 + $0x50] sm:$0xff]
  %v153 = vld [vmem:[%s1 + $0x58] sm:$0xff]
  %v154 = vld [vmem:[%s1 + $0x60] sm:$0xff]
  %v155 = vld [vmem:[%s1 + $0x68] sm:$0xff]
  %v156 = vld [vmem:[%s1 + $0x70] sm:$0xff]
  %v157 = vld [vmem:[%s1 + $0x78] sm:$0xff]
  %v158 = vld [vmem:[%s1 + $0x80] sm:$0xff]
  %v159 = vld [vmem:[%s1 + $0x88] sm:$0xff]
  %v160 = vld [vmem:[%s1 + $0x90] sm:$0xff]
  %v161 = vld [vmem:[%s1 + $0x98] sm:$0xff]
  %v162 = vld [vmem:[%s1 + $0xa0] sm:$0xff]
  %v163 = vld [vmem:[%s1 + $0xa8] sm:$0xff]
  %v164 = vld [vmem:[%s1 + $0xb0] sm:$0xff]
  %v165 = vld [vmem:[%s1 + $0xb8] sm:$0xff]
  %v166 = vld [vmem:[%s1 + $0xc0] sm:$0xff]
  %v167 = vld [vmem:[%s1 + $0xc8] sm:$0xff]
  %v168 = vld [vmem:[%s1 + $0xd0] sm:$0xff]
  %v169 = vld [vmem:[%s1 + $0xd8] sm:$0xff]
  %v170 = vld [vmem:[%s1 + $0xe0] sm:$0xff]
  %v171 = vld [vmem:[%s1 + $0xe8] sm:$0xff]
  %v172 = vld [vmem:[%s1 + $0xf0] sm:$0xff]
  %v173 = vld [vmem:[%s1 + $0xf8] sm:$0xff]
  %v174 = vld [vmem:[%s1 + $0x100] sm:$0xff]
  %v175 = vld [vmem:[%s1 + $0x108] sm:$0xff]
  %v176 = vld [vmem:[%s1 + $0x110] sm:$0xff]
  %v177 = vld [vmem:[%s1 + $0x118] sm:$0xff]
  %v178 = vld [vmem:[%s1 + $0x120] sm:$0xff]
  %v179 = vld [vmem:[%s1 + $0x128] sm:$0xff]
  %v180 = vld [vmem:[%s1 + $0x130] sm:$0xff]
  %v181 = vld [vmem:[%s1 + $0x138] sm:$0xff]
  %v182 = vld [vmem:[%s1 + $0x140] sm:$0xff]
  %v183 = vld [vmem:[%s1 + $0x148] sm:$0xff]
  %v184 = vld [vmem:[%s1 + $0x150] sm:$0xff]
  %v185 = vld [vmem:[%s1 + $0x158] sm:$0xff]
  %v186 = vld [vmem:[%s1 + $0x160] sm:$0xff]
  %v187 = vld [vmem:[%s1 + $0x168] sm:$0xff]
  %v188 = vld [vmem:[%s1 + $0x170] sm:$0xff]
  %v189 = vld [vmem:[%s1 + $0x178] sm:$0xff]
  %v190 = vld [vmem:[%s1 + $0x180] sm:$0xff]
  %v191 = vld [vmem:[%s1 + $0x188] sm:$0xff]
  %v192 = vld [vmem:[%s1 + $0x190] sm:$0xff]
  %v193 = vld [vmem:[%s1 + $0x198] sm:$0xff]
  %v194 = vld [vmem:[%s1 + $0x1a0] sm:$0xff]
  %v195 = vld [vmem:[%s1 + $0x1a8] sm:$0xff]
  %v196 = vld [vmem:[%s1 + $0x1b0] sm:$0xff]
  %v197 = vld [vmem:[%s1 + $0x1b8] sm:$0xff]
  %v198 = vld [vmem:[%s1 + $0x1c0] sm:$0xff]
  %v199 = vld [vmem:[%s1 + $0x1c8] sm:$0xff]
  %v200 = vld [vmem:[%s1 + $0x1d0] sm:$0xff]
  %v201 = vld [vmem:[%s1 + $0x1d8] sm:$0xff]
  %v202 = vld [vmem:[%s1 + $0x1e0] sm:$0xff]
  %v203 = vld [vmem:[%s1 + $0x1e8] sm:$0xff]
  %v204 = vld [vmem:[%s1 + $0x1f0] sm:$0xff]
  %v205 = vld [vmem:[%s1 + $0x1f8] sm:$0xff]
  %v206 = vld [vmem:[%s1 + $0x200] sm:$0xff]
  %v207 = vld [vmem:[%s1 + $0x208] sm:$0xff]
  %v208 = vld [vmem:[%s1 + $0x210] sm:$0xff]
  %v209 = vld [vmem:[%s1 + $0x218] sm:$0xff]
  %v210 = vld [vmem:[%s1 + $0x220] sm:$0xff]
  %v211 = vld [vmem:[%s1 + $0x228] sm:$0xff]
  %v212 = vld [vmem:[%s1 + $0x230] sm:$0xff]
  %v213 = vld [vmem:[%s1 + $0x238] sm:$0xff]
  %v214 = vld [vmem:[%s1 + $0x240] sm:$0xff]
  %v215 = vld [vmem:[%s1 + $0x248] sm:$0xff]
  %v216 = vld [vmem:[%s1 + $0x250] sm:$0xff]
  %v217 = vld [vmem:[%s1 + $0x258] sm:$0xff]
  %v218 = vld [vmem:[%s1 + $0x260] sm:$0xff]
  %v219 = vld [vmem:[%s1 + $0x268] sm:$0xff]
  %v220 = vld [vmem:[%s1 + $0x270] sm:$0xff]
  %v221 = vld [vmem:[%s1 + $0x278] sm:$0xff]
  %v222 = vld [vmem:[%s1 + $0x280] sm:$0xff]
  %v223 = vld [vmem:[%s1 + $0x288] sm:$0xff]
  %v224 = vld [vmem:[%s1 + $0x290] sm:$0xff]
  %v225 = vld [vmem:[%s1 + $0x298] sm:$0xff]
  %v226 = vld [vmem:[%s1 + $0x2a0] sm:$0xff]
  %v227 = vld [vmem:[%s1 + $0x2a8] sm:$0xff]
  %v228 = vld [vmem:[%s1 + $0x2b0] sm:$0xff]
  %v229 = vld [vmem:[%s1 + $0x2b8] sm:$0xff]
  %v230 = vld [vmem:[%s1 + $0x2c0] sm:$0xff]
  %v231 = vld [vmem:[%s1 + $0x2c8] sm:$0xff]
  %v232 = vld [vmem:[%s1 + $0x2d0] sm:$0xff]
  %v233 = vld [vmem:[%s1 + $0x2d8] sm:$0xff]
  %v234 = vld [vmem:[%s1 + $0x2e0] sm:$0xff]
  %v235 = vld [vmem:[%s1 + $0x2e8] sm:$0xff]
  %v236 = vld [vmem:[%s1 + $0x2f0] sm:$0xff]
  %v237 = vld [vmem:[%s1 + $0x2f8] sm:$0xff]
  %v238 = vld [vmem:[%s1 + $0x300] sm:$0xff]
  %v239 = vld [vmem:[%s1 + $0x308] sm:$0xff]
  %v240 = vld [vmem:[%s1 + $0x310] sm:$0xff]
  %v241 = vld [vmem:[%s1 + $0x318] sm:$0xff]
  %v242 = vld [vmem:[%s1 + $0x320] sm:$0xff]
  %v243 = vld [vmem:[%s1 + $0x328] sm:$0xff]
  %v244 = vld [vmem:[%s1 + $0x330] sm:$0xff]
  %v245 = vld [vmem:[%s1 + $0x338] sm:$0xff]
  %v246 = vld [vmem:[%s1 + $0x340] sm:$0xff]
  %v247 = vld [vmem:[%s1 + $0x348] sm:$0xff]
  %v248 = vld [vmem:[%s1 + $0x350] sm:$0xff]
  %v249 = vld [vmem:[%s1 + $0x358] sm:$0xff]
  %v250 = vld [vmem:[%s1 + $0x360] sm:$0xff]
  %v251 = vld [vmem:[%s1 + $0x368] sm:$0xff]
  %v252 = vld [vmem:[%s1 + $0x370] sm:$0xff]
  %v253 = vld [vmem:[%s1 + $0x378] sm:$0xff]
  %v254 = vld [vmem:[%s1 + $0x380] sm:$0xff]
  %v255 = vld [vmem:[%s2] sm:$0x1]
  %v257 = vlaneseq
  %v258 = vshrl.u32 %v257, 7
  %v259 = vsub.s32 0, %v258
  %v260 = vrot.slane %v255, %v259
  %vm262 = vcmask 64512
  %v264 = vsel %vm262, %v21, 0
  %v267 = vsel %vm262, %v29, 0
  %v270 = vsel %vm262, %v37, 0
  %v273 = vsel %vm262, %v45, 0
  %v276 = vsel %vm262, %v53, 0
  %v279 = vsel %vm262, %v61, 0
  %v282 = vsel %vm262, %v69, 0
  %v285 = vsel %vm262, %v77, 0
  %v288 = vsel %vm262, %v85, 0
  %v291 = vsel %vm262, %v93, 0
  %v294 = vsel %vm262, %v101, 0
  %v297 = vsel %vm262, %v109, 0
  %v300 = vsel %vm262, %v117, 0
  %v303 = vsel %vm262, %v125, 0
  %v306 = vsel %vm262, %v133, 0
  %v309 = vsel %vm262, %v141, 0
  %311 = vmatprep.subr.mxu0 0.0
  %312 = vmatpush1.msra.mxu0 %v142
  %313 = vmatprep.subr.mxu0 0.0
  %314 = vmatpush1.msra.mxu0 %v143
  %315 = vmatprep.subr.mxu0 0.0
  %316 = vmatpush1.msra.mxu0 %v144
  %317 = vmatprep.subr.mxu0 0.0
  %318 = vmatpush1.msra.mxu0 %v145
  %319 = vmatprep.subr.mxu0 0.0
  %320 = vmatpush1.msra.mxu0 %v146
  %321 = vmatprep.subr.mxu0 0.0
  %322 = vmatpush1.msra.mxu0 %v147
  %323 = vmatprep.subr.mxu0 0.0
  %324 = vmatpush1.msra.mxu0 %v148
  %325 = vmatprep.subr.mxu0 0.0
  %326 = vmatpush1.msra.mxu0 %v149
  %327 = vmatprep.subr.mxu0 0.0
  %328 = vmatpush1.msra.mxu0 %v150
  %329 = vmatprep.subr.mxu0 0.0
  %330 = vmatpush1.msra.mxu0 %v151
  %331 = vmatprep.subr.mxu0 0.0
  %332 = vmatpush1.msra.mxu0 %v152
  %333 = vmatprep.subr.mxu0 0.0
  %334 = vmatpush1.msra.mxu0 %v153
  %335 = vmatprep.subr.mxu0 0.0
  %336 = vmatpush1.msra.mxu0 %v154
  %337 = vmatprep.subr.mxu0 0.0
  %338 = vmatpush1.msra.mxu0 %v155
  %339 = vmatprep.subr.mxu0 0.0
  %340 = vmatpush1.msra.mxu0 %v156
  %341 = vmatprep.subr.mxu0 0.0
  %342 = vmatpush1.msra.mxu0 %v157
  %343 = vmatprep.subr.mxu0 0.0
  %344 = vmatpush1.msra.mxu0 %v158
  %345 = vmatprep.subr.mxu0 0.0
  %346 = vmatpush1.msra.mxu0 %v159
  %347 = vmatprep.subr.mxu0 0.0
  %348 = vmatpush1.msra.mxu0 %v160
  %349 = vmatprep.subr.mxu0 0.0
  %350 = vmatpush1.msra.mxu0 %v161
  %351 = vmatprep.subr.mxu0 0.0
  %352 = vmatpush1.msra.mxu0 %v162
  %353 = vmatprep.subr.mxu0 0.0
  %354 = vmatpush1.msra.mxu0 %v163
  %355 = vmatprep.subr.mxu0 0.0
  %356 = vmatpush1.msra.mxu0 %v164
  %357 = vmatprep.subr.mxu0 0.0
  %358 = vmatpush1.msra.mxu0 %v165
  %359 = vmatprep.subr.mxu0 0.0
  %360 = vmatpush1.msra.mxu0 %v166
  %361 = vmatprep.subr.mxu0 0.0
  %362 = vmatpush1.msra.mxu0 %v167
  %363 = vmatprep.subr.mxu0 0.0
  %364 = vmatpush1.msra.mxu0 %v168
  %365 = vmatprep.subr.mxu0 0.0
  %366 = vmatpush1.msra.mxu0 %v169
  %367 = vmatprep.subr.mxu0 0.0
  %368 = vmatpush1.msra.mxu0 %v170
  %369 = vmatprep.subr.mxu0 0.0
  %370 = vmatpush1.msra.mxu0 %v171
  %371 = vmatprep.subr.mxu0 0.0
  %372 = vmatpush1.msra.mxu0 %v172
  %373 = vmatprep.subr.mxu0 0.0
  %374 = vmatpush1.msra.mxu0 %v173
  %375 = vmatprep.mubr.f32.mxu0 %v15
  %376 = vmatmul.mubr.f32.gmra.mrb[0].mxu0 %v14
  %v377 = vpop.f32.mrb[0].mxu0
  %v378 = vadd.f32 %v260, %v377
  %v379 = vpop.f32.mrb[0].mxu0
  %380 = vmatprep.mubr.f32.mxu0 %v23
  %381 = vmatmul.mubr.f32.gmra.mrb[0].mxu0 %v22
  %v382 = vpop.f32.mrb[0].mxu0
  %v383 = vadd.f32 %v260, %v382
  %v384 = vpop.f32.mrb[0].mxu0
  %385 = vmatprep.mubr.f32.mxu0 %v31
  %386 = vmatmul.mubr.f32.gmra.mrb[0].mxu0 %v30
  %v387 = vpop.f32.mrb[0].mxu0
  %v388 = vadd.f32 %v260, %v387
  %v389 = vpop.f32.mrb[0].mxu0
  %390 = vmatprep.mubr.f32.mxu0 %v39
  %391 = vmatmul.mubr.f32.gmra.mrb[0].mxu0 %v38
  %v392 = vpop.f32.mrb[0].mxu0
  %v393 = vadd.f32 %v260, %v392
  %v394 = vpop.f32.mrb[0].mxu0
  %395 = vmatprep.mubr.f32.mxu0 %v47
  %396 = vmatmul.mubr.f32.gmra.mrb[0].mxu0 %v46
  %v397 = vpop.f32.mrb[0].mxu0
  %v398 = vadd.f32 %v260, %v397
  %v399 = vpop.f32.mrb[0].mxu0
  %400 = vmatprep.mubr.f32.mxu0 %v55
  %401 = vmatmul.mubr.f32.gmra.mrb[0].mxu0 %v54
  %v402 = vpop.f32.mrb[0].mxu0
  %v403 = vadd.f32 %v260, %v402
  %v404 = vpop.f32.mrb[0].mxu0
  %405 = vmatprep.mubr.f32.mxu0 %v63
  %406 = vmatmul.mubr.f32.gmra.mrb[0].mxu0 %v62
  %v407 = vpop.f32.mrb[0].mxu0
  %v408 = vadd.f32 %v260, %v407
  %v409 = vpop.f32.mrb[0].mxu0
  %410 = vmatprep.mubr.f32.mxu0 %v71
  %411 = vmatmul.mubr.f32.gmra.mrb[0].mxu0 %v70
  %v412 = vpop.f32.mrb[0].mxu0
  %v413 = vadd.f32 %v260, %v412
  %v414 = vpop.f32.mrb[0].mxu0
  %415 = vmatprep.mubr.f32.mxu0 %v79
  %416 = vmatmul.mubr.f32.gmra.mrb[0].mxu0 %v78
  %v417 = vpop.f32.mrb[0].mxu0
  %v418 = vadd.f32 %v260, %v417
  %v419 = vpop.f32.mrb[0].mxu0
  %420 = vmatprep.mubr.f32.mxu0 %v87
  %421 = vmatmul.mubr.f32.gmra.mrb[0].mxu0 %v86
  %v422 = vpop.f32.mrb[0].mxu0
  %v423 = vadd.f32 %v260, %v422
  %v424 = vpop.f32.mrb[0].mxu0
  %425 = vmatprep.mubr.f32.mxu0 %v95
  %426 = vmatmul.mubr.f32.gmra.mrb[0].mxu0 %v94
  %v427 = vpop.f32.mrb[0].mxu0
  %v428 = vadd.f32 %v260, %v427
  %v429 = vpop.f32.mrb[0].mxu0
  %430 = vmatprep.mubr.f32.mxu0 %v103
  %431 = vmatmul.mubr.f32.gmra.mrb[0].mxu0 %v102
  %v432 = vpop.f32.mrb[0].mxu0
  %v433 = vadd.f32 %v260, %v432
  %v434 = vpop.f32.mrb[0].mxu0
  %435 = vmatprep.mubr.f32.mxu0 %v111
  %436 = vmatmul.mubr.f32.gmra.mrb[0].mxu0 %v110
  %v437 = vpop.f32.mrb[0].mxu0
  %v438 = vadd.f32 %v260, %v437
  %v439 = vpop.f32.mrb[0].mxu0
  %440 = vmatprep.mubr.f32.mxu0 %v119
  %441 = vmatmul.mubr.f32.gmra.mrb[0].mxu0 %v118
  %v442 = vpop.f32.mrb[0].mxu0
  %v443 = vadd.f32 %v260, %v442
  %v444 = vpop.f32.mrb[0].mxu0
  %445 = vmatprep.mubr.f32.mxu0 %v127
  %446 = vmatmul.mubr.f32.gmra.mrb[0].mxu0 %v126
  %v447 = vpop.f32.mrb[0].mxu0
  %v448 = vadd.f32 %v260, %v447
  %v449 = vpop.f32.mrb[0].mxu0
  %450 = vmatprep.mubr.f32.mxu0 %v135
  %451 = vmatmul.mubr.f32.gmra.mrb[0].mxu0 %v134
  %v452 = vpop.f32.mrb[0].mxu0
  %v453 = vadd.f32 %v260, %v452
  %v454 = vpop.f32.mrb[0].mxu0
  %455 = vdwg.mxu0
  %456 = vmatprep.subr.mxu0 0.0
  %457 = vmatpush1.msra.mxu0 %v174
  %458 = vmatprep.subr.mxu0 0.0
  %459 = vmatpush1.msra.mxu0 %v175
  %460 = vmatprep.subr.mxu0 0.0
  %461 = vmatpush1.msra.mxu0 %v176
  %462 = vmatprep.subr.mxu0 0.0
  %463 = vmatpush1.msra.mxu0 %v177
  %464 = vmatprep.subr.mxu0 0.0
  %465 = vmatpush1.msra.mxu0 %v178
  %466 = vmatprep.subr.mxu0 0.0
  %467 = vmatpush1.msra.mxu0 %v179
  %468 = vmatprep.subr.mxu0 0.0
  %469 = vmatpush1.msra.mxu0 %v180
  %470 = vmatprep.subr.mxu0 0.0
  %471 = vmatpush1.msra.mxu0 %v181
  %472 = vmatprep.subr.mxu0 0.0
  %473 = vmatpush1.msra.mxu0 %v182
  %474 = vmatprep.subr.mxu0 0.0
  %475 = vmatpush1.msra.mxu0 %v183
  %476 = vmatprep.subr.mxu0 0.0
  %477 = vmatpush1.msra.mxu0 %v184
  %478 = vmatprep.subr.mxu0 0.0
  %479 = vmatpush1.msra.mxu0 %v185
  %480 = vmatprep.subr.mxu0 0.0
  %481 = vmatpush1.msra.mxu0 %v186
  %482 = vmatprep.subr.mxu0 0.0
  %483 = vmatpush1.msra.mxu0 %v187
  %484 = vmatprep.subr.mxu0 0.0
  %485 = vmatpush1.msra.mxu0 %v188
  %486 = vmatprep.subr.mxu0 0.0
  %487 = vmatpush1.msra.mxu0 %v189
  %488 = vmatprep.subr.mxu0 0.0
  %489 = vmatpush1.msra.mxu0 %v190
  %490 = vmatprep.subr.mxu0 0.0
  %491 = vmatpush1.msra.mxu0 %v191
  %492 = vmatprep.subr.mxu0 0.0
  %493 = vmatpush1.msra.mxu0 %v192
  %494 = vmatprep.subr.mxu0 0.0
  %495 = vmatpush1.msra.mxu0 %v193
  %496 = vmatprep.subr.mxu0 0.0
  %497 = vmatpush1.msra.mxu0 %v194
  %498 = vmatprep.subr.mxu0 0.0
  %499 = vmatpush1.msra.mxu0 %v195
  %500 = vmatprep.subr.mxu0 0.0
  %501 = vmatpush1.msra.mxu0 %v196
  %502 = vmatprep.subr.mxu0 0.0
  %503 = vmatpush1.msra.mxu0 %v197
  %504 = vmatprep.subr.mxu0 0.0
  %505 = vmatpush1.msra.mxu0 %v198
  %506 = vmatprep.subr.mxu0 0.0
  %507 = vmatpush1.msra.mxu0 %v199
  %508 = vmatprep.subr.mxu0 0.0
  %509 = vmatpush1.msra.mxu0 %v200
  %510 = vmatprep.subr.mxu0 0.0
  %511 = vmatpush1.msra.mxu0 %v201
  %512 = vmatprep.subr.mxu0 0.0
  %513 = vmatpush1.msra.mxu0 %v202
  %514 = vmatprep.subr.mxu0 0.0
  %515 = vmatpush1.msra.mxu0 %v203
  %516 = vmatprep.subr.mxu0 0.0
  %517 = vmatpush1.msra.mxu0 %v204
  %518 = vmatprep.subr.mxu0 0.0
  %519 = vmatpush1.msra.mxu0 %v205
  %520 = vmatprep.mubr.f32.mxu0 %v17
  %521 = vmatmul.mubr.f32.gmra.mrb[0].mxu0 %v16
  %v522 = vpop.f32.mrb[0].mxu0
  %v523 = vadd.f32 %v378, %v522
  %v524 = vpop.f32.mrb[0].mxu0
  %525 = vmatprep.mubr.f32.mxu0 %v25
  %526 = vmatmul.mubr.f32.gmra.mrb[0].mxu0 %v24
  %v527 = vpop.f32.mrb[0].mxu0
  %v528 = vadd.f32 %v383, %v527
  %v529 = vpop.f32.mrb[0].mxu0
  %530 = vmatprep.mubr.f32.mxu0 %v33
  %531 = vmatmul.mubr.f32.gmra.mrb[0].mxu0 %v32
  %v532 = vpop.f32.mrb[0].mxu0
  %v533 = vadd.f32 %v388, %v532
  %v534 = vpop.f32.mrb[0].mxu0
  %535 = vmatprep.mubr.f32.mxu0 %v41
  %536 = vmatmul.mubr.f32.gmra.mrb[0].mxu0 %v40
  %v537 = vpop.f32.mrb[0].mxu0
  %v538 = vadd.f32 %v393, %v537
  %v539 = vpop.f32.mrb[0].mxu0
  %540 = vmatprep.mubr.f32.mxu0 %v49
  %541 = vmatmul.mubr.f32.gmra.mrb[0].mxu0 %v48
  %v542 = vpop.f32.mrb[0].mxu0
  %v543 = vadd.f32 %v398, %v542
  %v544 = vpop.f32.mrb[0].mxu0
  %545 = vmatprep.mubr.f32.mxu0 %v57
  %546 = vmatmul.mubr.f32.gmra.mrb[0].mxu0 %v56
  %v547 = vpop.f32.mrb[0].mxu0
  %v548 = vadd.f32 %v403, %v547
  %v549 = vpop.f32.mrb[0].mxu0
  %550 = vmatprep.mubr.f32.mxu0 %v65
  %551 = vmatmul.mubr.f32.gmra.mrb[0].mxu0 %v64
  %v552 = vpop.f32.mrb[0].mxu0
  %v553 = vadd.f32 %v408, %v552
  %v554 = vpop.f32.mrb[0].mxu0
  %555 = vmatprep.mubr.f32.mxu0 %v73
  %556 = vmatmul.mubr.f32.gmra.mrb[0].mxu0 %v72
  %v557 = vpop.f32.mrb[0].mxu0
  %v558 = vadd.f32 %v413, %v557
  %v559 = vpop.f32.mrb[0].mxu0
  %560 = vmatprep.mubr.f32.mxu0 %v81
  %561 = vmatmul.mubr.f32.gmra.mrb[0].mxu0 %v80
  %v562 = vpop.f32.mrb[0].mxu0
  %v563 = vadd.f32 %v418, %v562
  %v564 = vpop.f32.mrb[0].mxu0
  %565 = vmatprep.mubr.f32.mxu0 %v89
  %566 = vmatmul.mubr.f32.gmra.mrb[0].mxu0 %v88
  %v567 = vpop.f32.mrb[0].mxu0
  %v568 = vadd.f32 %v423, %v567
  %v569 = vpop.f32.mrb[0].mxu0
  %570 = vmatprep.mubr.f32.mxu0 %v97
  %571 = vmatmul.mubr.f32.gmra.mrb[0].mxu0 %v96
  %v572 = vpop.f32.mrb[0].mxu0
  %v573 = vadd.f32 %v428, %v572
  %v574 = vpop.f32.mrb[0].mxu0
  %575 = vmatprep.mubr.f32.mxu0 %v105
  %576 = vmatmul.mubr.f32.gmra.mrb[0].mxu0 %v104
  %v577 = vpop.f32.mrb[0].mxu0
  %v578 = vadd.f32 %v433, %v577
  %v579 = vpop.f32.mrb[0].mxu0
  %580 = vmatprep.mubr.f32.mxu0 %v113
  %581 = vmatmul.mubr.f32.gmra.mrb[0].mxu0 %v112
  %v582 = vpop.f32.mrb[0].mxu0
  %v583 = vadd.f32 %v438, %v582
  %v584 = vpop.f32.mrb[0].mxu0
  %585 = vmatprep.mubr.f32.mxu0 %v121
  %586 = vmatmul.mubr.f32.gmra.mrb[0].mxu0 %v120
  %v587 = vpop.f32.mrb[0].mxu0
  %v588 = vadd.f32 %v443, %v587
  %v589 = vpop.f32.mrb[0].mxu0
  %590 = vmatprep.mubr.f32.mxu0 %v129
  %591 = vmatmul.mubr.f32.gmra.mrb[0].mxu0 %v128
  %v592 = vpop.f32.mrb[0].mxu0
  %v593 = vadd.f32 %v448, %v592
  %v594 = vpop.f32.mrb[0].mxu0
  %595 = vmatprep.mubr.f32.mxu0 %v137
  %596 = vmatmul.mubr.f32.gmra.mrb[0].mxu0 %v136
  %v597 = vpop.f32.mrb[0].mxu0
  %v598 = vadd.f32 %v453, %v597
  %v599 = vpop.f32.mrb[0].mxu0
  %600 = vdwg.mxu0
  %601 = vmatprep.subr.mxu0 0.0
  %602 = vmatpush1.msra.mxu0 %v206
  %603 = vmatprep.subr.mxu0 0.0
  %604 = vmatpush1.msra.mxu0 %v207
  %605 = vmatprep.subr.mxu0 0.0
  %606 = vmatpush1.msra.mxu0 %v208
  %607 = vmatprep.subr.mxu0 0.0
  %608 = vmatpush1.msra.mxu0 %v209
  %609 = vmatprep.subr.mxu0 0.0
  %610 = vmatpush1.msra.mxu0 %v210
  %611 = vmatprep.subr.mxu0 0.0
  %612 = vmatpush1.msra.mxu0 %v211
  %613 = vmatprep.subr.mxu0 0.0
  %614 = vmatpush1.msra.mxu0 %v212
  %615 = vmatprep.subr.mxu0 0.0
  %616 = vmatpush1.msra.mxu0 %v213
  %617 = vmatprep.subr.mxu0 0.0
  %618 = vmatpush1.msra.mxu0 %v214
  %619 = vmatprep.subr.mxu0 0.0
  %620 = vmatpush1.msra.mxu0 %v215
  %621 = vmatprep.subr.mxu0 0.0
  %622 = vmatpush1.msra.mxu0 %v216
  %623 = vmatprep.subr.mxu0 0.0
  %624 = vmatpush1.msra.mxu0 %v217
  %625 = vmatprep.subr.mxu0 0.0
  %626 = vmatpush1.msra.mxu0 %v218
  %627 = vmatprep.subr.mxu0 0.0
  %628 = vmatpush1.msra.mxu0 %v219
  %629 = vmatprep.subr.mxu0 0.0
  %630 = vmatpush1.msra.mxu0 %v220
  %631 = vmatprep.subr.mxu0 0.0
  %632 = vmatpush1.msra.mxu0 %v221
  %633 = vmatprep.subr.mxu0 0.0
  %634 = vmatpush1.msra.mxu0 %v222
  %635 = vmatprep.subr.mxu0 0.0
  %636 = vmatpush1.msra.mxu0 %v223
  %637 = vmatprep.subr.mxu0 0.0
  %638 = vmatpush1.msra.mxu0 %v224
  %639 = vmatprep.subr.mxu0 0.0
  %640 = vmatpush1.msra.mxu0 %v225
  %641 = vmatprep.subr.mxu0 0.0
  %642 = vmatpush1.msra.mxu0 %v226
  %643 = vmatprep.subr.mxu0 0.0
  %644 = vmatpush1.msra.mxu0 %v227
  %645 = vmatprep.subr.mxu0 0.0
  %646 = vmatpush1.msra.mxu0 %v228
  %647 = vmatprep.subr.mxu0 0.0
  %648 = vmatpush1.msra.mxu0 %v229
  %649 = vmatprep.subr.mxu0 0.0
  %650 = vmatpush1.msra.mxu0 %v230
  %651 = vmatprep.subr.mxu0 0.0
  %652 = vmatpush1.msra.mxu0 %v231
  %653 = vmatprep.subr.mxu0 0.0
  %654 = vmatpush1.msra.mxu0 %v232
  %655 = vmatprep.subr.mxu0 0.0
  %656 = vmatpush1.msra.mxu0 %v233
  %657 = vmatprep.subr.mxu0 0.0
  %658 = vmatpush1.msra.mxu0 %v234
  %659 = vmatprep.subr.mxu0 0.0
  %660 = vmatpush1.msra.mxu0 %v235
  %661 = vmatprep.subr.mxu0 0.0
  %662 = vmatpush1.msra.mxu0 %v236
  %663 = vmatprep.subr.mxu0 0.0
  %664 = vmatpush1.msra.mxu0 %v237
  %665 = vmatprep.mubr.f32.mxu0 %v19
  %666 = vmatmul.mubr.f32.gmra.mrb[0].mxu0 %v18
  %v667 = vpop.f32.mrb[0].mxu0
  %v668 = vadd.f32 %v523, %v667
  %v669 = vpop.f32.mrb[0].mxu0
  %670 = vmatprep.mubr.f32.mxu0 %v27
  %671 = vmatmul.mubr.f32.gmra.mrb[0].mxu0 %v26
  %v672 = vpop.f32.mrb[0].mxu0
  %v673 = vadd.f32 %v528, %v672
  %v674 = vpop.f32.mrb[0].mxu0
  %675 = vmatprep.mubr.f32.mxu0 %v35
  %676 = vmatmul.mubr.f32.gmra.mrb[0].mxu0 %v34
  %v677 = vpop.f32.mrb[0].mxu0
  %v678 = vadd.f32 %v533, %v677
  %v679 = vpop.f32.mrb[0].mxu0
  %680 = vmatprep.mubr.f32.mxu0 %v43
  %681 = vmatmul.mubr.f32.gmra.mrb[0].mxu0 %v42
  %v682 = vpop.f32.mrb[0].mxu0
  %v683 = vadd.f32 %v538, %v682
  %v684 = vpop.f32.mrb[0].mxu0
  %685 = vmatprep.mubr.f32.mxu0 %v51
  %686 = vmatmul.mubr.f32.gmra.mrb[0].mxu0 %v50
  %v687 = vpop.f32.mrb[0].mxu0
  %v688 = vadd.f32 %v543, %v687
  %v689 = vpop.f32.mrb[0].mxu0
  %690 = vmatprep.mubr.f32.mxu0 %v59
  %691 = vmatmul.mubr.f32.gmra.mrb[0].mxu0 %v58
  %v692 = vpop.f32.mrb[0].mxu0
  %v693 = vadd.f32 %v548, %v692
  %v694 = vpop.f32.mrb[0].mxu0
  %695 = vmatprep.mubr.f32.mxu0 %v67
  %696 = vmatmul.mubr.f32.gmra.mrb[0].mxu0 %v66
  %v697 = vpop.f32.mrb[0].mxu0
  %v698 = vadd.f32 %v553, %v697
  %v699 = vpop.f32.mrb[0].mxu0
  %700 = vmatprep.mubr.f32.mxu0 %v75
  %701 = vmatmul.mubr.f32.gmra.mrb[0].mxu0 %v74
  %v702 = vpop.f32.mrb[0].mxu0
  %v703 = vadd.f32 %v558, %v702
  %v704 = vpop.f32.mrb[0].mxu0
  %705 = vmatprep.mubr.f32.mxu0 %v83
  %706 = vmatmul.mubr.f32.gmra.mrb[0].mxu0 %v82
  %v707 = vpop.f32.mrb[0].mxu0
  %v708 = vadd.f32 %v563, %v707
  %v709 = vpop.f32.mrb[0].mxu0
  %710 = vmatprep.mubr.f32.mxu0 %v91
  %711 = vmatmul.mubr.f32.gmra.mrb[0].mxu0 %v90
  %v712 = vpop.f32.mrb[0].mxu0
  %v713 = vadd.f32 %v568, %v712
  %v714 = vpop.f32.mrb[0].mxu0
  %715 = vmatprep.mubr.f32.mxu0 %v99
  %716 = vmatmul.mubr.f32.gmra.mrb[0].mxu0 %v98
  %v717 = vpop.f32.mrb[0].mxu0
  %v718 = vadd.f32 %v573, %v717
  %v719 = vpop.f32.mrb[0].mxu0
  %720 = vmatprep.mubr.f32.mxu0 %v107
  %721 = vmatmul.mubr.f32.gmra.mrb[0].mxu0 %v106
  %v722 = vpop.f32.mrb[0].mxu0
  %v723 = vadd.f32 %v578, %v722
  %v724 = vpop.f32.mrb[0].mxu0
  %725 = vmatprep.mubr.f32.mxu0 %v115
  %726 = vmatmul.mubr.f32.gmra.mrb[0].mxu0 %v114
  %v727 = vpop.f32.mrb[0].mxu0
  %v728 = vadd.f32 %v583, %v727
  %v729 = vpop.f32.mrb[0].mxu0
  %730 = vmatprep.mubr.f32.mxu0 %v123
  %731 = vmatmul.mubr.f32.gmra.mrb[0].mxu0 %v122
  %v732 = vpop.f32.mrb[0].mxu0
  %v733 = vadd.f32 %v588, %v732
  %v734 = vpop.f32.mrb[0].mxu0
  %735 = vmatprep.mubr.f32.mxu0 %v131
  %736 = vmatmul.mubr.f32.gmra.mrb[0].mxu0 %v130
  %v737 = vpop.f32.mrb[0].mxu0
  %v738 = vadd.f32 %v593, %v737
  %v739 = vpop.f32.mrb[0].mxu0
  %740 = vmatprep.mubr.f32.mxu0 %v139
  %741 = vmatmul.mubr.f32.gmra.mrb[0].mxu0 %v138
  %v742 = vpop.f32.mrb[0].mxu0
  %v743 = vadd.f32 %v598, %v742
  %v744 = vpop.f32.mrb[0].mxu0
  %745 = vdwg.mxu0
  %746 = vmatprep.subr.mxu0 0.0
  %747 = vmatpush1.msra.mxu0 %v238
  %748 = vmatprep.subr.mxu0 0.0
  %749 = vmatpush1.msra.mxu0 %v239
  %750 = vmatprep.subr.mxu0 0.0
  %751 = vmatpush1.msra.mxu0 %v240
  %752 = vmatprep.subr.mxu0 0.0
  %753 = vmatpush1.msra.mxu0 %v241
  %754 = vmatprep.subr.mxu0 0.0
  %755 = vmatpush1.msra.mxu0 %v242
  %756 = vmatprep.subr.mxu0 0.0
  %757 = vmatpush1.msra.mxu0 %v243
  %758 = vmatprep.subr.mxu0 0.0
  %759 = vmatpush1.msra.mxu0 %v244
  %760 = vmatprep.subr.mxu0 0.0
  %761 = vmatpush1.msra.mxu0 %v245
  %762 = vmatprep.subr.mxu0 0.0
  %763 = vmatpush1.msra.mxu0 %v246
  %764 = vmatprep.subr.mxu0 0.0
  %765 = vmatpush1.msra.mxu0 %v247
  %766 = vmatprep.subr.mxu0 0.0
  %767 = vmatpush1.msra.mxu0 %v248
  %768 = vmatprep.subr.mxu0 0.0
  %769 = vmatpush1.msra.mxu0 %v249
  %770 = vmatprep.subr.mxu0 0.0
  %771 = vmatpush1.msra.mxu0 %v250
  %772 = vmatprep.subr.mxu0 0.0
  %773 = vmatpush1.msra.mxu0 %v251
  %774 = vmatprep.subr.mxu0 0.0
  %775 = vmatpush1.msra.mxu0 %v252
  %776 = vmatprep.subr.mxu0 0.0
  %777 = vmatpush1.msra.mxu0 %v253
  %778 = vmatprep.subr.mxu0 0.0
  %779 = vmatpush1.msra.mxu0 %v254
  %780 = vmatprep.subr.mxu0 0.0
  %781 = vmatpush1.msra.mxu0 0.0
  %782 = vmatprep.subr.mxu0 0.0
  %783 = vmatpush1.msra.mxu0 0.0
  %784 = vmatprep.subr.mxu0 0.0
  %785 = vmatpush1.msra.mxu0 0.0
  %786 = vmatprep.subr.mxu0 0.0
  %787 = vmatpush1.msra.mxu0 0.0
  %788 = vmatprep.subr.mxu0 0.0
  %789 = vmatpush1.msra.mxu0 0.0
  %790 = vmatprep.subr.mxu0 0.0
  %791 = vmatpush1.msra.mxu0 0.0
  %792 = vmatprep.subr.mxu0 0.0
  %793 = vmatpush1.msra.mxu0 0.0
  %794 = vmatprep.subr.mxu0 0.0
  %795 = vmatpush1.msra.mxu0 0.0
  %796 = vmatprep.subr.mxu0 0.0
  %797 = vmatpush1.msra.mxu0 0.0
  %798 = vmatprep.subr.mxu0 0.0
  %799 = vmatpush1.msra.mxu0 0.0
  %800 = vmatprep.subr.mxu0 0.0
  %801 = vmatpush1.msra.mxu0 0.0
  %802 = vmatprep.subr.mxu0 0.0
  %803 = vmatpush1.msra.mxu0 0.0
  %804 = vmatprep.subr.mxu0 0.0
  %805 = vmatpush1.msra.mxu0 0.0
  %806 = vmatprep.subr.mxu0 0.0
  %807 = vmatpush1.msra.mxu0 0.0
  %808 = vmatprep.subr.mxu0 0.0
  %809 = vmatpush1.msra.mxu0 0.0
  %810 = vmatprep.mubr.f32.mxu0 %v264
  %811 = vmatmul.mubr.f32.gmra.mrb[0].mxu0 %v20
  %v812 = vpop.f32.mrb[0].mxu0
  %v813 = vadd.f32 %v668, %v812
  %v814 = vpop.f32.mrb[0].mxu0
  %815 = vmatprep.mubr.f32.mxu0 %v267
  %816 = vmatmul.mubr.f32.gmra.mrb[0].mxu0 %v28
  %v817 = vpop.f32.mrb[0].mxu0
  %v818 = vadd.f32 %v673, %v817
  %v819 = vpop.f32.mrb[0].mxu0
  %820 = vmatprep.mubr.f32.mxu0 %v270
  %821 = vmatmul.mubr.f32.gmra.mrb[0].mxu0 %v36
  %v822 = vpop.f32.mrb[0].mxu0
  %v823 = vadd.f32 %v678, %v822
  %v824 = vpop.f32.mrb[0].mxu0
  %825 = vmatprep.mubr.f32.mxu0 %v273
  %826 = vmatmul.mubr.f32.gmra.mrb[0].mxu0 %v44
  %v827 = vpop.f32.mrb[0].mxu0
  %v828 = vadd.f32 %v683, %v827
  %v829 = vpop.f32.mrb[0].mxu0
  %830 = vmatprep.mubr.f32.mxu0 %v276
  %831 = vmatmul.mubr.f32.gmra.mrb[0].mxu0 %v52
  %v832 = vpop.f32.mrb[0].mxu0
  %v833 = vadd.f32 %v688, %v832
  %v834 = vpop.f32.mrb[0].mxu0
  %835 = vmatprep.mubr.f32.mxu0 %v279
  %836 = vmatmul.mubr.f32.gmra.mrb[0].mxu0 %v60
  %v837 = vpop.f32.mrb[0].mxu0
  %v838 = vadd.f32 %v693, %v837
  %v839 = vpop.f32.mrb[0].mxu0
  %840 = vmatprep.mubr.f32.mxu0 %v282
  %841 = vmatmul.mubr.f32.gmra.mrb[0].mxu0 %v68
  %v842 = vpop.f32.mrb[0].mxu0
  %v843 = vadd.f32 %v698, %v842
  %v844 = vpop.f32.mrb[0].mxu0
  %845 = vmatprep.mubr.f32.mxu0 %v285
  %846 = vmatmul.mubr.f32.gmra.mrb[0].mxu0 %v76
  %v847 = vpop.f32.mrb[0].mxu0
  %v848 = vadd.f32 %v703, %v847
  %v849 = vpop.f32.mrb[0].mxu0
  %850 = vmatprep.mubr.f32.mxu0 %v288
  %851 = vmatmul.mubr.f32.gmra.mrb[0].mxu0 %v84
  %v852 = vpop.f32.mrb[0].mxu0
  %v853 = vadd.f32 %v708, %v852
  %v854 = vpop.f32.mrb[0].mxu0
  %855 = vmatprep.mubr.f32.mxu0 %v291
  %856 = vmatmul.mubr.f32.gmra.mrb[0].mxu0 %v92
  %v857 = vpop.f32.mrb[0].mxu0
  %v858 = vadd.f32 %v713, %v857
  %v859 = vpop.f32.mrb[0].mxu0
  %860 = vmatprep.mubr.f32.mxu0 %v294
  %861 = vmatmul.mubr.f32.gmra.mrb[0].mxu0 %v100
  %v862 = vpop.f32.mrb[0].mxu0
  %v863 = vadd.f32 %v718, %v862
  %v864 = vpop.f32.mrb[0].mxu0
  %865 = vmatprep.mubr.f32.mxu0 %v297
  %866 = vmatmul.mubr.f32.gmra.mrb[0].mxu0 %v108
  %v867 = vpop.f32.mrb[0].mxu0
  %v868 = vadd.f32 %v723, %v867
  %v869 = vpop.f32.mrb[0].mxu0
  %870 = vmatprep.mubr.f32.mxu0 %v300
  %871 = vmatmul.mubr.f32.gmra.mrb[0].mxu0 %v116
  %v872 = vpop.f32.mrb[0].mxu0
  %v873 = vadd.f32 %v728, %v872
  %v874 = vpop.f32.mrb[0].mxu0
  %875 = vmatprep.mubr.f32.mxu0 %v303
  %876 = vmatmul.mubr.f32.gmra.mrb[0].mxu0 %v124
  %v877 = vpop.f32.mrb[0].mxu0
  %v878 = vadd.f32 %v733, %v877
  %v879 = vpop.f32.mrb[0].mxu0
  %880 = vmatprep.mubr.f32.mxu0 %v306
  %881 = vmatmul.mubr.f32.gmra.mrb[0].mxu0 %v132
  %v882 = vpop.f32.mrb[0].mxu0
  %v883 = vadd.f32 %v738, %v882
  %v884 = vpop.f32.mrb[0].mxu0
  %885 = vmatprep.mubr.f32.mxu0 %v309
  %886 = vmatmul.mubr.f32.gmra.mrb[0].mxu0 %v140
  %v887 = vpop.f32.mrb[0].mxu0
  %v888 = vadd.f32 %v743, %v887
  %v889 = vpop.f32.mrb[0].mxu0
  %890 = vdwg.mxu0
  %v891 = vmax.f32 %v813, 0.0
  %v892 = vmax.f32 %v818, 0.0
  %v893 = vmax.f32 %v823, 0.0
  %v894 = vmax.f32 %v828, 0.0
  %v895 = vmax.f32 %v833, 0.0
  %v896 = vmax.f32 %v838, 0.0
  %v897 = vmax.f32 %v843, 0.0
  %v898 = vmax.f32 %v848, 0.0
  %v899 = vmax.f32 %v853, 0.0
  %v900 = vmax.f32 %v858, 0.0
  %v901 = vmax.f32 %v863, 0.0
  %v902 = vmax.f32 %v868, 0.0
  %v903 = vmax.f32 %v873, 0.0
  %v904 = vmax.f32 %v878, 0.0
  %v905 = vmax.f32 %v883, 0.0
  %v906 = vmax.f32 %v888, 0.0
  %907 = vst [vmem:[%s3] sm:$0xff] %v891
  %908 = vst [vmem:[%s3 + $0x8] sm:$0xff] %v892
  %909 = vst [vmem:[%s3 + $0x10] sm:$0xff] %v893
  %910 = vst [vmem:[%s3 + $0x18] sm:$0xff] %v894
  %911 = vst [vmem:[%s3 + $0x20] sm:$0xff] %v895
  %912 = vst [vmem:[%s3 + $0x28] sm:$0xff] %v896
  %913 = vst [vmem:[%s3 + $0x30] sm:$0xff] %v897
  %914 = vst [vmem:[%s3 + $0x38] sm:$0xff] %v898
  %915 = vst [vmem:[%s3 + $0x40] sm:$0xff] %v899
  %916 = vst [vmem:[%s3 + $0x48] sm:$0xff] %v900
  %917 = vst [vmem:[%s3 + $0x50] sm:$0xff] %v901
  %918 = vst [vmem:[%s3 + $0x58] sm:$0xff] %v902
  %919 = vst [vmem:[%s3 + $0x60] sm:$0xff] %v903
  %920 = vst [vmem:[%s3 + $0x68] sm:$0xff] %v904
  %921 = vst [vmem:[%s3 + $0x70] sm:$0xff] %v905
  %922 = vst [vmem:[%s3 + $0x78] sm:$0xff] %v906
  // Predicated region
  $region14: #{pilotnet_forward.7} parent=0 // pred_check
    _
  $region15: #{pilotnet_forward.7} parent=0 // pred_check_branch
    %924 = sbr.rel (0) target = $region17
  $region16: #{pilotnet_forward.7} parent=0 // pred_region
    _
  $region17: #{pilotnet_forward.7} parent=0 // pred_fallthru
    _
  // Predicated region
  $region18: #{pilotnet_forward.7} parent=0 // pred_check
    _
  $region19: #{pilotnet_forward.7} parent=0 // pred_check_branch
    %926 = sbr.rel (0) target = $region21
  $region20: #{pilotnet_forward.7} parent=0 // pred_region
    _
  $region21: #{pilotnet_forward.7} parent=0 // pred_fallthru
    _

// kernel: pilotnet_forward.9
$region0: #{pilotnet_forward.9}
  #allocation0 [shape = 'u32[]', space=smem, size = 0x4, offset = 0x4, fixed_abs, tag = 'smem constant byte address 0x4 - core index']
  #allocation1 [shape = 'u32[144,128]{1,0:T(1,128)}', space=vmem, size = 0x12000, scoped, tag = 'internal scratch']
  %s0 = inlined_call_operand.vmem [shape: f32[8,4096], index: 0, kind: input, shape index: {}]
  %s1 = inlined_call_operand.vmem [shape: f32[4096,128], index: 1, kind: input, shape index: {}]
  %s2 = inlined_call_operand.vmem [shape: f32[1,128], index: 2, kind: input, shape index: {}]
  %s3 = inlined_call_operand.vmem [shape: f32[128,128], index: 3, kind: input, shape index: {}]
  %s4 = inlined_call_operand.vmem [shape: f32[1,128], index: 4, kind: input, shape index: {}]
  %s5 = inlined_call_operand.vmem [shape: f32[128,128], index: 5, kind: input, shape index: {}]
  %s6 = inlined_call_operand.vmem [shape: f32[1,128], index: 6, kind: input, shape index: {}]
  %s7 = inlined_call_operand.vmem [shape: f32[8,128], index: 7, kind: output, shape index: {}]
  %s8 = sld [smem:[#allocation0]]
  $region38: #{pilotnet_forward.9} parent=0
    _
  %s10 = ssub.s32 1, %s8
  %s11 = scalar_select 0, %s10, %s8
  // Predicated region
  $region2: #{pilotnet_forward.9} parent=0 // pred_check
    _
  $region3: #{pilotnet_forward.9} parent=0 // pred_check_branch
    %13 = sbr.rel (0) target = $region5
  $region4: #{pilotnet_forward.9} parent=0 // pred_region
    _
  $region5: #{pilotnet_forward.9} parent=0 // pred_fallthru
    _
  // Predicated region
  $region6: #{pilotnet_forward.9} parent=0 // pred_check
    _
  $region7: #{pilotnet_forward.9} parent=0 // pred_check_branch
    %15 = sbr.rel (0) target = $region9
  $region8: #{pilotnet_forward.9} parent=0 // pred_region
    _
  $region9: #{pilotnet_forward.9} parent=0 // pred_fallthru
    _
  // Predicated region
  $region10: #{pilotnet_forward.9} parent=0 // pred_check
    _
  $region11: #{pilotnet_forward.9} parent=0 // pred_check_branch
    %17 = sbr.rel (0) target = $region13
  $region12: #{pilotnet_forward.9} parent=0 // pred_region
    _
  $region13: #{pilotnet_forward.9} parent=0 // pred_fallthru
    _
  // Predicated region
  $region14: #{pilotnet_forward.9} parent=0 // pred_check
    _
  $region15: #{pilotnet_forward.9} parent=0 // pred_check_branch
    %19 = sbr.rel (0) target = $region17
  $region16: #{pilotnet_forward.9} parent=0 // pred_region
    _
  $region17: #{pilotnet_forward.9} parent=0 // pred_fallthru
    _
  // Predicated region
  $region18: #{pilotnet_forward.9} parent=0 // pred_check
    _
  $region19: #{pilotnet_forward.9} parent=0 // pred_check_branch
    %21 = sbr.rel (0) target = $region21
  $region20: #{pilotnet_forward.9} parent=0 // pred_region
    _
  $region21: #{pilotnet_forward.9} parent=0 // pred_fallthru
    _
  // Predicated region
  $region22: #{pilotnet_forward.9} parent=0 // pred_check
    _
  $region23: #{pilotnet_forward.9} parent=0 // pred_check_branch
    %23 = sbr.rel (0) target = $region25
  $region24: #{pilotnet_forward.9} parent=0 // pred_region
    _
  $region25: #{pilotnet_forward.9} parent=0 // pred_fallthru
    _
  // Predicated region
  $region26: #{pilotnet_forward.9} parent=0 // pred_check
    _
  $region27: #{pilotnet_forward.9} parent=0 // pred_check_branch
    %25 = sbr.rel (0) target = $region29
  $region28: #{pilotnet_forward.9} parent=0 // pred_region
    _
  $region29: #{pilotnet_forward.9} parent=0 // pred_fallthru
    _
  %v26 = vld [vmem:[%s0] sm:$0xff]
  %v27 = vld [vmem:[%s0 + $0x8] sm:$0xff]
  %v28 = vld [vmem:[%s0 + $0x10] sm:$0xff]
  %v29 = vld [vmem:[%s0 + $0x18] sm:$0xff]
  %v30 = vld [vmem:[%s0 + $0x20] sm:$0xff]
  %v31 = vld [vmem:[%s0 + $0x28] sm:$0xff]
  %v32 = vld [vmem:[%s0 + $0x30] sm:$0xff]
  %v33 = vld [vmem:[%s0 + $0x38] sm:$0xff]
  %v34 = vld [vmem:[%s0 + $0x40] sm:$0xff]
  %v35 = vld [vmem:[%s0 + $0x48] sm:$0xff]
  %v36 = vld [vmem:[%s0 + $0x50] sm:$0xff]
  %v37 = vld [vmem:[%s0 + $0x58] sm:$0xff]
  %v38 = vld [vmem:[%s0 + $0x60] sm:$0xff]
  %v39 = vld [vmem:[%s0 + $0x68] sm:$0xff]
  %v40 = vld [vmem:[%s0 + $0x70] sm:$0xff]
  %v41 = vld [vmem:[%s0 + $0x78] sm:$0xff]
  %v42 = vld [vmem:[%s0 + $0x80] sm:$0xff]
  %v43 = vld [vmem:[%s0 + $0x88] sm:$0xff]
  %v44 = vld [vmem:[%s0 + $0x90] sm:$0xff]
  %v45 = vld [vmem:[%s0 + $0x98] sm:$0xff]
  %v46 = vld [vmem:[%s0 + $0xa0] sm:$0xff]
  %v47 = vld [vmem:[%s0 + $0xa8] sm:$0xff]
  %v48 = vld [vmem:[%s0 + $0xb0] sm:$0xff]
  %v49 = vld [vmem:[%s0 + $0xb8] sm:$0xff]
  %v50 = vld [vmem:[%s0 + $0xc0] sm:$0xff]
  %v51 = vld [vmem:[%s0 + $0xc8] sm:$0xff]
  %v52 = vld [vmem:[%s0 + $0xd0] sm:$0xff]
  %v53 = vld [vmem:[%s0 + $0xd8] sm:$0xff]
  %v54 = vld [vmem:[%s0 + $0xe0] sm:$0xff]
  %v55 = vld [vmem:[%s0 + $0xe8] sm:$0xff]
  %v56 = vld [vmem:[%s0 + $0xf0] sm:$0xff]
  %v57 = vld [vmem:[%s0 + $0xf8] sm:$0xff]
  %v58 = vld [vmem:[%s1] sm:$0xff]
  %v59 = vld [vmem:[%s1 + $0x8] sm:$0xff]
  %v60 = vld [vmem:[%s1 + $0x10] sm:$0xff]
  %v61 = vld [vmem:[%s1 + $0x18] sm:$0xff]
  %v62 = vld [vmem:[%s1 + $0x20] sm:$0xff]
  %v63 = vld [vmem:[%s1 + $0x28] sm:$0xff]
  %v64 = vld [vmem:[%s1 + $0x30] sm:$0xff]
  %v65 = vld [vmem:[%s1 + $0x38] sm:$0xff]
  %v66 = vld [vmem:[%s1 + $0x40] sm:$0xff]
  %v67 = vld [vmem:[%s1 + $0x48] sm:$0xff]
  %v68 = vld [vmem:[%s1 + $0x50] sm:$0xff]
  %v69 = vld [vmem:[%s1 + $0x58] sm:$0xff]
  %v70 = vld [vmem:[%s1 + $0x60] sm:$0xff]
  %v71 = vld [vmem:[%s1 + $0x68] sm:$0xff]
  %v72 = vld [vmem:[%s1 + $0x70] sm:$0xff]
  %v73 = vld [vmem:[%s1 + $0x78] sm:$0xff]
  %v74 = vld [vmem:[%s1 + $0x80] sm:$0xff]
  %v75 = vld [vmem:[%s1 + $0x88] sm:$0xff]
  %v76 = vld [vmem:[%s1 + $0x90] sm:$0xff]
  %v77 = vld [vmem:[%s1 + $0x98] sm:$0xff]
  %v78 = vld [vmem:[%s1 + $0xa0] sm:$0xff]
  %v79 = vld [vmem:[%s1 + $0xa8] sm:$0xff]
  %v80 = vld [vmem:[%s1 + $0xb0] sm:$0xff]
  %v81 = vld [vmem:[%s1 + $0xb8] sm:$0xff]
  %v82 = vld [vmem:[%s1 + $0xc0] sm:$0xff]
  %v83 = vld [vmem:[%s1 + $0xc8] sm:$0xff]
  %v84 = vld [vmem:[%s1 + $0xd0] sm:$0xff]
  %v85 = vld [vmem:[%s1 + $0xd8] sm:$0xff]
  %v86 = vld [vmem:[%s1 + $0xe0] sm:$0xff]
  %v87 = vld [vmem:[%s1 + $0xe8] sm:$0xff]
  %v88 = vld [vmem:[%s1 + $0xf0] sm:$0xff]
  %v89 = vld [vmem:[%s1 + $0xf8] sm:$0xff]
  %v90 = vld [vmem:[%s1 + $0x100] sm:$0xff]
  %v91 = vld [vmem:[%s1 + $0x108] sm:$0xff]
  %v92 = vld [vmem:[%s1 + $0x110] sm:$0xff]
  %v93 = vld [vmem:[%s1 + $0x118] sm:$0xff]
  %v94 = vld [vmem:[%s1 + $0x120] sm:$0xff]
  %v95 = vld [vmem:[%s1 + $0x128] sm:$0xff]
  %v96 = vld [vmem:[%s1 + $0x130] sm:$0xff]
  %v97 = vld [vmem:[%s1 + $0x138] sm:$0xff]
  %v98 = vld [vmem:[%s1 + $0x140] sm:$0xff]
  %v99 = vld [vmem:[%s1 + $0x148] sm:$0xff]
  %v100 = vld [vmem:[%s1 + $0x150] sm:$0xff]
  %v101 = vld [vmem:[%s1 + $0x158] sm:$0xff]
  %v102 = vld [vmem:[%s1 + $0x160] sm:$0xff]
  %v103 = vld [vmem:[%s1 + $0x168] sm:$0xff]
  %v104 = vld [vmem:[%s1 + $0x170] sm:$0xff]
  %v105 = vld [vmem:[%s1 + $0x178] sm:$0xff]
  %v106 = vld [vmem:[%s1 + $0x180] sm:$0xff]
  %v107 = vld [vmem:[%s1 + $0x188] sm:$0xff]
  %v108 = vld [vmem:[%s1 + $0x190] sm:$0xff]
  %v109 = vld [vmem:[%s1 + $0x198] sm:$0xff]
  %v110 = vld [vmem:[%s1 + $0x1a0] sm:$0xff]
  %v111 = vld [vmem:[%s1 + $0x1a8] sm:$0xff]
  %v112 = vld [vmem:[%s1 + $0x1b0] sm:$0xff]
  %v113 = vld [vmem:[%s1 + $0x1b8] sm:$0xff]
  %v114 = vld [vmem:[%s1 + $0x1c0] sm:$0xff]
  %v115 = vld [vmem:[%s1 + $0x1c8] sm:$0xff]
  %v116 = vld [vmem:[%s1 + $0x1d0] sm:$0xff]
  %v117 = vld [vmem:[%s1 + $0x1d8] sm:$0xff]
  %v118 = vld [vmem:[%s1 + $0x1e0] sm:$0xff]
  %v119 = vld [vmem:[%s1 + $0x1e8] sm:$0xff]
  %v120 = vld [vmem:[%s1 + $0x1f0] sm:$0xff]
  %v121 = vld [vmem:[%s1 + $0x1f8] sm:$0xff]
  %v122 = vld [vmem:[%s1 + $0x200] sm:$0xff]
  %v123 = vld [vmem:[%s1 + $0x208] sm:$0xff]
  %v124 = vld [vmem:[%s1 + $0x210] sm:$0xff]
  %v125 = vld [vmem:[%s1 + $0x218] sm:$0xff]
  %v126 = vld [vmem:[%s1 + $0x220] sm:$0xff]
  %v127 = vld [vmem:[%s1 + $0x228] sm:$0xff]
  %v128 = vld [vmem:[%s1 + $0x230] sm:$0xff]
  %v129 = vld [vmem:[%s1 + $0x238] sm:$0xff]
  %v130 = vld [vmem:[%s1 + $0x240] sm:$0xff]
  %v131 = vld [vmem:[%s1 + $0x248] sm:$0xff]
  %v132 = vld [vmem:[%s1 + $0x250] sm:$0xff]
  %v133 = vld [vmem:[%s1 + $0x258] sm:$0xff]
  %v134 = vld [vmem:[%s1 + $0x260] sm:$0xff]
  %v135 = vld [vmem:[%s1 + $0x268] sm:$0xff]
  %v136 = vld [vmem:[%s1 + $0x270] sm:$0xff]
  %v137 = vld [vmem:[%s1 + $0x278] sm:$0xff]
  %v138 = vld [vmem:[%s1 + $0x280] sm:$0xff]
  %v139 = vld [vmem:[%s1 + $0x288] sm:$0xff]
  %v140 = vld [vmem:[%s1 + $0x290] sm:$0xff]
  %v141 = vld [vmem:[%s1 + $0x298] sm:$0xff]
  %v142 = vld [vmem:[%s1 + $0x2a0] sm:$0xff]
  %v143 = vld [vmem:[%s1 + $0x2a8] sm:$0xff]
  %v144 = vld [vmem:[%s1 + $0x2b0] sm:$0xff]
  %v145 = vld [vmem:[%s1 + $0x2b8] sm:$0xff]
  %v146 = vld [vmem:[%s1 + $0x2c0] sm:$0xff]
  %v147 = vld [vmem:[%s1 + $0x2c8] sm:$0xff]
  %v148 = vld [vmem:[%s1 + $0x2d0] sm:$0xff]
  %v149 = vld [vmem:[%s1 + $0x2d8] sm:$0xff]
  %v150 = vld [vmem:[%s1 + $0x2e0] sm:$0xff]
  %v151 = vld [vmem:[%s1 + $0x2e8] sm:$0xff]
  %v152 = vld [vmem:[%s1 + $0x2f0] sm:$0xff]
  %v153 = vld [vmem:[%s1 + $0x2f8] sm:$0xff]
  %v154 = vld [vmem:[%s1 + $0x300] sm:$0xff]
  %v155 = vld [vmem:[%s1 + $0x308] sm:$0xff]
  %v156 = vld [vmem:[%s1 + $0x310] sm:$0xff]
  %v157 = vld [vmem:[%s1 + $0x318] sm:$0xff]
  %v158 = vld [vmem:[%s1 + $0x320] sm:$0xff]
  %v159 = vld [vmem:[%s1 + $0x328] sm:$0xff]
  %v160 = vld [vmem:[%s1 + $0x330] sm:$0xff]
  %v161 = vld [vmem:[%s1 + $0x338] sm:$0xff]
  %v162 = vld [vmem:[%s1 + $0x340] sm:$0xff]
  %v163 = vld [vmem:[%s1 + $0x348] sm:$0xff]
  %v164 = vld [vmem:[%s1 + $0x350] sm:$0xff]
  %v165 = vld [vmem:[%s1 + $0x358] sm:$0xff]
  %v166 = vld [vmem:[%s1 + $0x360] sm:$0xff]
  %v167 = vld [vmem:[%s1 + $0x368] sm:$0xff]
  %v168 = vld [vmem:[%s1 + $0x370] sm:$0xff]
  %v169 = vld [vmem:[%s1 + $0x378] sm:$0xff]
  %v170 = vld [vmem:[%s1 + $0x380] sm:$0xff]
  %v171 = vld [vmem:[%s1 + $0x388] sm:$0xff]
  %v172 = vld [vmem:[%s1 + $0x390] sm:$0xff]
  %v173 = vld [vmem:[%s1 + $0x398] sm:$0xff]
  %v174 = vld [vmem:[%s1 + $0x3a0] sm:$0xff]
  %v175 = vld [vmem:[%s1 + $0x3a8] sm:$0xff]
  %v176 = vld [vmem:[%s1 + $0x3b0] sm:$0xff]
  %v177 = vld [vmem:[%s1 + $0x3b8] sm:$0xff]
  %v178 = vld [vmem:[%s1 + $0x3c0] sm:$0xff]
  %v179 = vld [vmem:[%s1 + $0x3c8] sm:$0xff]
  %v180 = vld [vmem:[%s1 + $0x3d0] sm:$0xff]
  %v181 = vld [vmem:[%s1 + $0x3d8] sm:$0xff]
  %v182 = vld [vmem:[%s1 + $0x3e0] sm:$0xff]
  %v183 = vld [vmem:[%s1 + $0x3e8] sm:$0xff]
  %v184 = vld [vmem:[%s1 + $0x3f0] sm:$0xff]
  %v185 = vld [vmem:[%s1 + $0x3f8] sm:$0xff]
  %v186 = vld [vmem:[%s1 + $0x400] sm:$0xff]
  %v187 = vld [vmem:[%s1 + $0x408] sm:$0xff]
  %v188 = vld [vmem:[%s1 + $0x410] sm:$0xff]
  %v189 = vld [vmem:[%s1 + $0x418] sm:$0xff]
  %v190 = vld [vmem:[%s1 + $0x420] sm:$0xff]
  %v191 = vld [vmem:[%s1 + $0x428] sm:$0xff]
  %v192 = vld [vmem:[%s1 + $0x430] sm:$0xff]
  %v193 = vld [vmem:[%s1 + $0x438] sm:$0xff]
  %v194 = vld [vmem:[%s1 + $0x440] sm:$0xff]
  %v195 = vld [vmem:[%s1 + $0x448] sm:$0xff]
  %v196 = vld [vmem:[%s1 + $0x450] sm:$0xff]
  %v197 = vld [vmem:[%s1 + $0x458] sm:$0xff]
  %v198 = vld [vmem:[%s1 + $0x460] sm:$0xff]
  %v199 = vld [vmem:[%s1 + $0x468] sm:$0xff]
  %v200 = vld [vmem:[%s1 + $0x470] sm:$0xff]
  %v201 = vld [vmem:[%s1 + $0x478] sm:$0xff]
  %v202 = vld [vmem:[%s1 + $0x480] sm:$0xff]
  %v203 = vld [vmem:[%s1 + $0x488] sm:$0xff]
  %v204 = vld [vmem:[%s1 + $0x490] sm:$0xff]
  %v205 = vld [vmem:[%s1 + $0x498] sm:$0xff]
  %v206 = vld [vmem:[%s1 + $0x4a0] sm:$0xff]
  %v207 = vld [vmem:[%s1 + $0x4a8] sm:$0xff]
  %v208 = vld [vmem:[%s1 + $0x4b0] sm:$0xff]
  %v209 = vld [vmem:[%s1 + $0x4b8] sm:$0xff]
  %v210 = vld [vmem:[%s1 + $0x4c0] sm:$0xff]
  %v211 = vld [vmem:[%s1 + $0x4c8] sm:$0xff]
  %v212 = vld [vmem:[%s1 + $0x4d0] sm:$0xff]
  %v213 = vld [vmem:[%s1 + $0x4d8] sm:$0xff]
  %v214 = vld [vmem:[%s1 + $0x4e0] sm:$0xff]
  %v215 = vld [vmem:[%s1 + $0x4e8] sm:$0xff]
  %v216 = vld [vmem:[%s1 + $0x4f0] sm:$0xff]
  %v217 = vld [vmem:[%s1 + $0x4f8] sm:$0xff]
  %v218 = vld [vmem:[%s1 + $0x500] sm:$0xff]
  %v219 = vld [vmem:[%s1 + $0x508] sm:$0xff]
  %v220 = vld [vmem:[%s1 + $0x510] sm:$0xff]
  %v221 = vld [vmem:[%s1 + $0x518] sm:$0xff]
  %v222 = vld [vmem:[%s1 + $0x520] sm:$0xff]
  %v223 = vld [vmem:[%s1 + $0x528] sm:$0xff]
  %v224 = vld [vmem:[%s1 + $0x530] sm:$0xff]
  %v225 = vld [vmem:[%s1 + $0x538] sm:$0xff]
  %v226 = vld [vmem:[%s1 + $0x540] sm:$0xff]
  %v227 = vld [vmem:[%s1 + $0x548] sm:$0xff]
  %v228 = vld [vmem:[%s1 + $0x550] sm:$0xff]
  %v229 = vld [vmem:[%s1 + $0x558] sm:$0xff]
  %v230 = vld [vmem:[%s1 + $0x560] sm:$0xff]
  %v231 = vld [vmem:[%s1 + $0x568] sm:$0xff]
  %v232 = vld [vmem:[%s1 + $0x570] sm:$0xff]
  %v233 = vld [vmem:[%s1 + $0x578] sm:$0xff]
  %v234 = vld [vmem:[%s1 + $0x580] sm:$0xff]
  %v235 = vld [vmem:[%s1 + $0x588] sm:$0xff]
  %v236 = vld [vmem:[%s1 + $0x590] sm:$0xff]
  %v237 = vld [vmem:[%s1 + $0x598] sm:$0xff]
  %v238 = vld [vmem:[%s1 + $0x5a0] sm:$0xff]
  %v239 = vld [vmem:[%s1 + $0x5a8] sm:$0xff]
  %v240 = vld [vmem:[%s1 + $0x5b0] sm:$0xff]
  %v241 = vld [vmem:[%s1 + $0x5b8] sm:$0xff]
  %v242 = vld [vmem:[%s1 + $0x5c0] sm:$0xff]
  %v243 = vld [vmem:[%s1 + $0x5c8] sm:$0xff]
  %v244 = vld [vmem:[%s1 + $0x5d0] sm:$0xff]
  %v245 = vld [vmem:[%s1 + $0x5d8] sm:$0xff]
  %v246 = vld [vmem:[%s1 + $0x5e0] sm:$0xff]
  %v247 = vld [vmem:[%s1 + $0x5e8] sm:$0xff]
  %v248 = vld [vmem:[%s1 + $0x5f0] sm:$0xff]
  %v249 = vld [vmem:[%s1 + $0x5f8] sm:$0xff]
  %v250 = vld [vmem:[%s1 + $0x600] sm:$0xff]
  %v251 = vld [vmem:[%s1 + $0x608] sm:$0xff]
  %v252 = vld [vmem:[%s1 + $0x610] sm:$0xff]
  %v253 = vld [vmem:[%s1 + $0x618] sm:$0xff]
  %v254 = vld [vmem:[%s1 + $0x620] sm:$0xff]
  %v255 = vld [vmem:[%s1 + $0x628] sm:$0xff]
  %v256 = vld [vmem:[%s1 + $0x630] sm:$0xff]
  %v257 = vld [vmem:[%s1 + $0x638] sm:$0xff]
  %v258 = vld [vmem:[%s1 + $0x640] sm:$0xff]
  %v259 = vld [vmem:[%s1 + $0x648] sm:$0xff]
  %v260 = vld [vmem:[%s1 + $0x650] sm:$0xff]
  %v261 = vld [vmem:[%s1 + $0x658] sm:$0xff]
  %v262 = vld [vmem:[%s1 + $0x660] sm:$0xff]
  %v263 = vld [vmem:[%s1 + $0x668] sm:$0xff]
  %v264 = vld [vmem:[%s1 + $0x670] sm:$0xff]
  %v265 = vld [vmem:[%s1 + $0x678] sm:$0xff]
  %v266 = vld [vmem:[%s1 + $0x680] sm:$0xff]
  %v267 = vld [vmem:[%s1 + $0x688] sm:$0xff]
  %v268 = vld [vmem:[%s1 + $0x690] sm:$0xff]
  %v269 = vld [vmem:[%s1 + $0x698] sm:$0xff]
  %v270 = vld [vmem:[%s1 + $0x6a0] sm:$0xff]
  %v271 = vld [vmem:[%s1 + $0x6a8] sm:$0xff]
  %v272 = vld [vmem:[%s1 + $0x6b0] sm:$0xff]
  %v273 = vld [vmem:[%s1 + $0x6b8] sm:$0xff]
  %v274 = vld [vmem:[%s1 + $0x6c0] sm:$0xff]
  %v275 = vld [vmem:[%s1 + $0x6c8] sm:$0xff]
  %v276 = vld [vmem:[%s1 + $0x6d0] sm:$0xff]
  %v277 = vld [vmem:[%s1 + $0x6d8] sm:$0xff]
  %v278 = vld [vmem:[%s1 + $0x6e0] sm:$0xff]
  %v279 = vld [vmem:[%s1 + $0x6e8] sm:$0xff]
  %v280 = vld [vmem:[%s1 + $0x6f0] sm:$0xff]
  %v281 = vld [vmem:[%s1 + $0x6f8] sm:$0xff]
  %v282 = vld [vmem:[%s1 + $0x700] sm:$0xff]
  %v283 = vld [vmem:[%s1 + $0x708] sm:$0xff]
  %v284 = vld [vmem:[%s1 + $0x710] sm:$0xff]
  %v285 = vld [vmem:[%s1 + $0x718] sm:$0xff]
  %v286 = vld [vmem:[%s1 + $0x720] sm:$0xff]
  %v287 = vld [vmem:[%s1 + $0x728] sm:$0xff]
  %v288 = vld [vmem:[%s1 + $0x730] sm:$0xff]
  %v289 = vld [vmem:[%s1 + $0x738] sm:$0xff]
  %v290 = vld [vmem:[%s1 + $0x740] sm:$0xff]
  %v291 = vld [vmem:[%s1 + $0x748] sm:$0xff]
  %v292 = vld [vmem:[%s1 + $0x750] sm:$0xff]
  %v293 = vld [vmem:[%s1 + $0x758] sm:$0xff]
  %v294 = vld [vmem:[%s1 + $0x760] sm:$0xff]
  %v295 = vld [vmem:[%s1 + $0x768] sm:$0xff]
  %v296 = vld [vmem:[%s1 + $0x770] sm:$0xff]
  %v297 = vld [vmem:[%s1 + $0x778] sm:$0xff]
  %v298 = vld [vmem:[%s1 + $0x780] sm:$0xff]
  %v299 = vld [vmem:[%s1 + $0x788] sm:$0xff]
  %v300 = vld [vmem:[%s1 + $0x790] sm:$0xff]
  %v301 = vld [vmem:[%s1 + $0x798] sm:$0xff]
  %v302 = vld [vmem:[%s1 + $0x7a0] sm:$0xff]
  %v303 = vld [vmem:[%s1 + $0x7a8] sm:$0xff]
  %v304 = vld [vmem:[%s1 + $0x7b0] sm:$0xff]
  %v305 = vld [vmem:[%s1 + $0x7b8] sm:$0xff]
  %v306 = vld [vmem:[%s1 + $0x7c0] sm:$0xff]
  %v307 = vld [vmem:[%s1 + $0x7c8] sm:$0xff]
  %v308 = vld [vmem:[%s1 + $0x7d0] sm:$0xff]
  %v309 = vld [vmem:[%s1 + $0x7d8] sm:$0xff]
  %v310 = vld [vmem:[%s1 + $0x7e0] sm:$0xff]
  %v311 = vld [vmem:[%s1 + $0x7e8] sm:$0xff]
  %v312 = vld [vmem:[%s1 + $0x7f0] sm:$0xff]
  %v313 = vld [vmem:[%s1 + $0x7f8] sm:$0xff]
  %v314 = vld [vmem:[%s1 + $0x800] sm:$0xff]
  %v315 = vld [vmem:[%s1 + $0x808] sm:$0xff]
  %v316 = vld [vmem:[%s1 + $0x810] sm:$0xff]
  %v317 = vld [vmem:[%s1 + $0x818] sm:$0xff]
  %v318 = vld [vmem:[%s1 + $0x820] sm:$0xff]
  %v319 = vld [vmem:[%s1 + $0x828] sm:$0xff]
  %v320 = vld [vmem:[%s1 + $0x830] sm:$0xff]
  %v321 = vld [vmem:[%s1 + $0x838] sm:$0xff]
  %v322 = vld [vmem:[%s1 + $0x840] sm:$0xff]
  %v323 = vld [vmem:[%s1 + $0x848] sm:$0xff]
  %v324 = vld [vmem:[%s1 + $0x850] sm:$0xff]
  %v325 = vld [vmem:[%s1 + $0x858] sm:$0xff]
  %v326 = vld [vmem:[%s1 + $0x860] sm:$0xff]
  %v327 = vld [vmem:[%s1 + $0x868] sm:$0xff]
  %v328 = vld [vmem:[%s1 + $0x870] sm:$0xff]
  %v329 = vld [vmem:[%s1 + $0x878] sm:$0xff]
  %v330 = vld [vmem:[%s1 + $0x880] sm:$0xff]
  %v331 = vld [vmem:[%s1 + $0x888] sm:$0xff]
  %v332 = vld [vmem:[%s1 + $0x890] sm:$0xff]
  %v333 = vld [vmem:[%s1 + $0x898] sm:$0xff]
  %v334 = vld [vmem:[%s1 + $0x8a0] sm:$0xff]
  %v335 = vld [vmem:[%s1 + $0x8a8] sm:$0xff]
  %v336 = vld [vmem:[%s1 + $0x8b0] sm:$0xff]
  %v337 = vld [vmem:[%s1 + $0x8b8] sm:$0xff]
  %v338 = vld [vmem:[%s1 + $0x8c0] sm:$0xff]
  %v339 = vld [vmem:[%s1 + $0x8c8] sm:$0xff]
  %v340 = vld [vmem:[%s1 + $0x8d0] sm:$0xff]
  %v341 = vld [vmem:[%s1 + $0x8d8] sm:$0xff]
  %v342 = vld [vmem:[%s1 + $0x8e0] sm:$0xff]
  %v343 = vld [vmem:[%s1 + $0x8e8] sm:$0xff]
  %v344 = vld [vmem:[%s1 + $0x8f0] sm:$0xff]
  %v345 = vld [vmem:[%s1 + $0x8f8] sm:$0xff]
  %v346 = vld [vmem:[%s1 + $0x900] sm:$0xff]
  %v347 = vld [vmem:[%s1 + $0x908] sm:$0xff]
  %v348 = vld [vmem:[%s1 + $0x910] sm:$0xff]
  %v349 = vld [vmem:[%s1 + $0x918] sm:$0xff]
  %v350 = vld [vmem:[%s1 + $0x920] sm:$0xff]
  %v351 = vld [vmem:[%s1 + $0x928] sm:$0xff]
  %v352 = vld [vmem:[%s1 + $0x930] sm:$0xff]
  %v353 = vld [vmem:[%s1 + $0x938] sm:$0xff]
  %v354 = vld [vmem:[%s1 + $0x940] sm:$0xff]
  %v355 = vld [vmem:[%s1 + $0x948] sm:$0xff]
  %v356 = vld [vmem:[%s1 + $0x950] sm:$0xff]
  %v357 = vld [vmem:[%s1 + $0x958] sm:$0xff]
  %v358 = vld [vmem:[%s1 + $0x960] sm:$0xff]
  %v359 = vld [vmem:[%s1 + $0x968] sm:$0xff]
  %v360 = vld [vmem:[%s1 + $0x970] sm:$0xff]
  %v361 = vld [vmem:[%s1 + $0x978] sm:$0xff]
  %v362 = vld [vmem:[%s1 + $0x980] sm:$0xff]
  %v363 = vld [vmem:[%s1 + $0x988] sm:$0xff]
  %v364 = vld [vmem:[%s1 + $0x990] sm:$0xff]
  %v365 = vld [vmem:[%s1 + $0x998] sm:$0xff]
  %v366 = vld [vmem:[%s1 + $0x9a0] sm:$0xff]
  %v367 = vld [vmem:[%s1 + $0x9a8] sm:$0xff]
  %v368 = vld [vmem:[%s1 + $0x9b0] sm:$0xff]
  %v369 = vld [vmem:[%s1 + $0x9b8] sm:$0xff]
  %v370 = vld [vmem:[%s1 + $0x9c0] sm:$0xff]
  %v371 = vld [vmem:[%s1 + $0x9c8] sm:$0xff]
  %v372 = vld [vmem:[%s1 + $0x9d0] sm:$0xff]
  %v373 = vld [vmem:[%s1 + $0x9d8] sm:$0xff]
  %v374 = vld [vmem:[%s1 + $0x9e0] sm:$0xff]
  %v375 = vld [vmem:[%s1 + $0x9e8] sm:$0xff]
  %v376 = vld [vmem:[%s1 + $0x9f0] sm:$0xff]
  %v377 = vld [vmem:[%s1 + $0x9f8] sm:$0xff]
  %v378 = vld [vmem:[%s1 + $0xa00] sm:$0xff]
  %v379 = vld [vmem:[%s1 + $0xa08] sm:$0xff]
  %v380 = vld [vmem:[%s1 + $0xa10] sm:$0xff]
  %v381 = vld [vmem:[%s1 + $0xa18] sm:$0xff]
  %v382 = vld [vmem:[%s1 + $0xa20] sm:$0xff]
  %v383 = vld [vmem:[%s1 + $0xa28] sm:$0xff]
  %v384 = vld [vmem:[%s1 + $0xa30] sm:$0xff]
  %v385 = vld [vmem:[%s1 + $0xa38] sm:$0xff]
  %v386 = vld [vmem:[%s1 + $0xa40] sm:$0xff]
  %v387 = vld [vmem:[%s1 + $0xa48] sm:$0xff]
  %v388 = vld [vmem:[%s1 + $0xa50] sm:$0xff]
  %v389 = vld [vmem:[%s1 + $0xa58] sm:$0xff]
  %v390 = vld [vmem:[%s1 + $0xa60] sm:$0xff]
  %v391 = vld [vmem:[%s1 + $0xa68] sm:$0xff]
  %v392 = vld [vmem:[%s1 + $0xa70] sm:$0xff]
  %v393 = vld [vmem:[%s1 + $0xa78] sm:$0xff]
  %v394 = vld [vmem:[%s1 + $0xa80] sm:$0xff]
  %v395 = vld [vmem:[%s1 + $0xa88] sm:$0xff]
  %v396 = vld [vmem:[%s1 + $0xa90] sm:$0xff]
  %v397 = vld [vmem:[%s1 + $0xa98] sm:$0xff]
  %v398 = vld [vmem:[%s1 + $0xaa0] sm:$0xff]
  %v399 = vld [vmem:[%s1 + $0xaa8] sm:$0xff]
  %v400 = vld [vmem:[%s1 + $0xab0] sm:$0xff]
  %v401 = vld [vmem:[%s1 + $0xab8] sm:$0xff]
  %v402 = vld [vmem:[%s1 + $0xac0] sm:$0xff]
  %v403 = vld [vmem:[%s1 + $0xac8] sm:$0xff]
  %v404 = vld [vmem:[%s1 + $0xad0] sm:$0xff]
  %v405 = vld [vmem:[%s1 + $0xad8] sm:$0xff]
  %v406 = vld [vmem:[%s1 + $0xae0] sm:$0xff]
  %v407 = vld [vmem:[%s1 + $0xae8] sm:$0xff]
  %v408 = vld [vmem:[%s1 + $0xaf0] sm:$0xff]
  %v409 = vld [vmem:[%s1 + $0xaf8] sm:$0xff]
  %v410 = vld [vmem:[%s1 + $0xb00] sm:$0xff]
  %v411 = vld [vmem:[%s1 + $0xb08] sm:$0xff]
  %v412 = vld [vmem:[%s1 + $0xb10] sm:$0xff]
  %v413 = vld [vmem:[%s1 + $0xb18] sm:$0xff]
  %v414 = vld [vmem:[%s1 + $0xb20] sm:$0xff]
  %v415 = vld [vmem:[%s1 + $0xb28] sm:$0xff]
  %v416 = vld [vmem:[%s1 + $0xb30] sm:$0xff]
  %v417 = vld [vmem:[%s1 + $0xb38] sm:$0xff]
  %v418 = vld [vmem:[%s1 + $0xb40] sm:$0xff]
  %v419 = vld [vmem:[%s1 + $0xb48] sm:$0xff]
  %v420 = vld [vmem:[%s1 + $0xb50] sm:$0xff]
  %v421 = vld [vmem:[%s1 + $0xb58] sm:$0xff]
  %v422 = vld [vmem:[%s1 + $0xb60] sm:$0xff]
  %v423 = vld [vmem:[%s1 + $0xb68] sm:$0xff]
  %v424 = vld [vmem:[%s1 + $0xb70] sm:$0xff]
  %v425 = vld [vmem:[%s1 + $0xb78] sm:$0xff]
  %v426 = vld [vmem:[%s1 + $0xb80] sm:$0xff]
  %v427 = vld [vmem:[%s1 + $0xb88] sm:$0xff]
  %v428 = vld [vmem:[%s1 + $0xb90] sm:$0xff]
  %v429 = vld [vmem:[%s1 + $0xb98] sm:$0xff]
  %v430 = vld [vmem:[%s1 + $0xba0] sm:$0xff]
  %v431 = vld [vmem:[%s1 + $0xba8] sm:$0xff]
  %v432 = vld [vmem:[%s1 + $0xbb0] sm:$0xff]
  %v433 = vld [vmem:[%s1 + $0xbb8] sm:$0xff]
  %v434 = vld [vmem:[%s1 + $0xbc0] sm:$0xff]
  %v435 = vld [vmem:[%s1 + $0xbc8] sm:$0xff]
  %v436 = vld [vmem:[%s1 + $0xbd0] sm:$0xff]
  %v437 = vld [vmem:[%s1 + $0xbd8] sm:$0xff]
  %v438 = vld [vmem:[%s1 + $0xbe0] sm:$0xff]
  %v439 = vld [vmem:[%s1 + $0xbe8] sm:$0xff]
  %v440 = vld [vmem:[%s1 + $0xbf0] sm:$0xff]
  %v441 = vld [vmem:[%s1 + $0xbf8] sm:$0xff]
  %v442 = vld [vmem:[%s1 + $0xc00] sm:$0xff]
  %v443 = vld [vmem:[%s1 + $0xc08] sm:$0xff]
  %v444 = vld [vmem:[%s1 + $0xc10] sm:$0xff]
  %v445 = vld [vmem:[%s1 + $0xc18] sm:$0xff]
  %v446 = vld [vmem:[%s1 + $0xc20] sm:$0xff]
  %v447 = vld [vmem:[%s1 + $0xc28] sm:$0xff]
  %v448 = vld [vmem:[%s1 + $0xc30] sm:$0xff]
  %v449 = vld [vmem:[%s1 + $0xc38] sm:$0xff]
  %v450 = vld [vmem:[%s1 + $0xc40] sm:$0xff]
  %v451 = vld [vmem:[%s1 + $0xc48] sm:$0xff]
  %v452 = vld [vmem:[%s1 + $0xc50] sm:$0xff]
  %v453 = vld [vmem:[%s1 + $0xc58] sm:$0xff]
  %v454 = vld [vmem:[%s1 + $0xc60] sm:$0xff]
  %v455 = vld [vmem:[%s1 + $0xc68] sm:$0xff]
  %v456 = vld [vmem:[%s1 + $0xc70] sm:$0xff]
  %v457 = vld [vmem:[%s1 + $0xc78] sm:$0xff]
  %v458 = vld [vmem:[%s1 + $0xc80] sm:$0xff]
  %v459 = vld [vmem:[%s1 + $0xc88] sm:$0xff]
  %v460 = vld [vmem:[%s1 + $0xc90] sm:$0xff]
  %v461 = vld [vmem:[%s1 + $0xc98] sm:$0xff]
  %v462 = vld [vmem:[%s1 + $0xca0] sm:$0xff]
  %v463 = vld [vmem:[%s1 + $0xca8] sm:$0xff]
  %v464 = vld [vmem:[%s1 + $0xcb0] sm:$0xff]
  %v465 = vld [vmem:[%s1 + $0xcb8] sm:$0xff]
  %v466 = vld [vmem:[%s1 + $0xcc0] sm:$0xff]
  %v467 = vld [vmem:[%s1 + $0xcc8] sm:$0xff]
  %v468 = vld [vmem:[%s1 + $0xcd0] sm:$0xff]
  %v469 = vld [vmem:[%s1 + $0xcd8] sm:$0xff]
  %v470 = vld [vmem:[%s1 + $0xce0] sm:$0xff]
  %v471 = vld [vmem:[%s1 + $0xce8] sm:$0xff]
  %v472 = vld [vmem:[%s1 + $0xcf0] sm:$0xff]
  %v473 = vld [vmem:[%s1 + $0xcf8] sm:$0xff]
  %v474 = vld [vmem:[%s1 + $0xd00] sm:$0xff]
  %v475 = vld [vmem:[%s1 + $0xd08] sm:$0xff]
  %v476 = vld [vmem:[%s1 + $0xd10] sm:$0xff]
  %v477 = vld [vmem:[%s1 + $0xd18] sm:$0xff]
  %v478 = vld [vmem:[%s1 + $0xd20] sm:$0xff]
  %v479 = vld [vmem:[%s1 + $0xd28] sm:$0xff]
  %v480 = vld [vmem:[%s1 + $0xd30] sm:$0xff]
  %v481 = vld [vmem:[%s1 + $0xd38] sm:$0xff]
  %v482 = vld [vmem:[%s1 + $0xd40] sm:$0xff]
  %v483 = vld [vmem:[%s1 + $0xd48] sm:$0xff]
  %v484 = vld [vmem:[%s1 + $0xd50] sm:$0xff]
  %v485 = vld [vmem:[%s1 + $0xd58] sm:$0xff]
  %v486 = vld [vmem:[%s1 + $0xd60] sm:$0xff]
  %v487 = vld [vmem:[%s1 + $0xd68] sm:$0xff]
  %v488 = vld [vmem:[%s1 + $0xd70] sm:$0xff]
  %v489 = vld [vmem:[%s1 + $0xd78] sm:$0xff]
  %v490 = vld [vmem:[%s1 + $0xd80] sm:$0xff]
  %v491 = vld [vmem:[%s1 + $0xd88] sm:$0xff]
  %v492 = vld [vmem:[%s1 + $0xd90] sm:$0xff]
  %v493 = vld [vmem:[%s1 + $0xd98] sm:$0xff]
  %v494 = vld [vmem:[%s1 + $0xda0] sm:$0xff]
  %v495 = vld [vmem:[%s1 + $0xda8] sm:$0xff]
  %v496 = vld [vmem:[%s1 + $0xdb0] sm:$0xff]
  %v497 = vld [vmem:[%s1 + $0xdb8] sm:$0xff]
  %v498 = vld [vmem:[%s1 + $0xdc0] sm:$0xff]
  %v499 = vld [vmem:[%s1 + $0xdc8] sm:$0xff]
  %v500 = vld [vmem:[%s1 + $0xdd0] sm:$0xff]
  %v501 = vld [vmem:[%s1 + $0xdd8] sm:$0xff]
  %v502 = vld [vmem:[%s1 + $0xde0] sm:$0xff]
  %v503 = vld [vmem:[%s1 + $0xde8] sm:$0xff]
  %v504 = vld [vmem:[%s1 + $0xdf0] sm:$0xff]
  %v505 = vld [vmem:[%s1 + $0xdf8] sm:$0xff]
  %v506 = vld [vmem:[%s1 + $0xe00] sm:$0xff]
  %v507 = vld [vmem:[%s1 + $0xe08] sm:$0xff]
  %v508 = vld [vmem:[%s1 + $0xe10] sm:$0xff]
  %v509 = vld [vmem:[%s1 + $0xe18] sm:$0xff]
  %v510 = vld [vmem:[%s1 + $0xe20] sm:$0xff]
  %v511 = vld [vmem:[%s1 + $0xe28] sm:$0xff]
  %v512 = vld [vmem:[%s1 + $0xe30] sm:$0xff]
  %v513 = vld [vmem:[%s1 + $0xe38] sm:$0xff]
  %v514 = vld [vmem:[%s1 + $0xe40] sm:$0xff]
  %v515 = vld [vmem:[%s1 + $0xe48] sm:$0xff]
  %v516 = vld [vmem:[%s1 + $0xe50] sm:$0xff]
  %v517 = vld [vmem:[%s1 + $0xe58] sm:$0xff]
  %v518 = vld [vmem:[%s1 + $0xe60] sm:$0xff]
  %v519 = vld [vmem:[%s1 + $0xe68] sm:$0xff]
  %v520 = vld [vmem:[%s1 + $0xe70] sm:$0xff]
  %v521 = vld [vmem:[%s1 + $0xe78] sm:$0xff]
  %v522 = vld [vmem:[%s1 + $0xe80] sm:$0xff]
  %v523 = vld [vmem:[%s1 + $0xe88] sm:$0xff]
  %v524 = vld [vmem:[%s1 + $0xe90] sm:$0xff]
  %v525 = vld [vmem:[%s1 + $0xe98] sm:$0xff]
  %v526 = vld [vmem:[%s1 + $0xea0] sm:$0xff]
  %v527 = vld [vmem:[%s1 + $0xea8] sm:$0xff]
  %v528 = vld [vmem:[%s1 + $0xeb0] sm:$0xff]
  %v529 = vld [vmem:[%s1 + $0xeb8] sm:$0xff]
  %v530 = vld [vmem:[%s1 + $0xec0] sm:$0xff]
  %v531 = vld [vmem:[%s1 + $0xec8] sm:$0xff]
  %v532 = vld [vmem:[%s1 + $0xed0] sm:$0xff]
  %v533 = vld [vmem:[%s1 + $0xed8] sm:$0xff]
  %v534 = vld [vmem:[%s1 + $0xee0] sm:$0xff]
  %v535 = vld [vmem:[%s1 + $0xee8] sm:$0xff]
  %v536 = vld [vmem:[%s1 + $0xef0] sm:$0xff]
  %v537 = vld [vmem:[%s1 + $0xef8] sm:$0xff]
  %v538 = vld [vmem:[%s1 + $0xf00] sm:$0xff]
  %v539 = vld [vmem:[%s1 + $0xf08] sm:$0xff]
  %v540 = vld [vmem:[%s1 + $0xf10] sm:$0xff]
  %v541 = vld [vmem:[%s1 + $0xf18] sm:$0xff]
  %v542 = vld [vmem:[%s1 + $0xf20] sm:$0xff]
  %v543 = vld [vmem:[%s1 + $0xf28] sm:$0xff]
  %v544 = vld [vmem:[%s1 + $0xf30] sm:$0xff]
  %v545 = vld [vmem:[%s1 + $0xf38] sm:$0xff]
  %v546 = vld [vmem:[%s1 + $0xf40] sm:$0xff]
  %v547 = vld [vmem:[%s1 + $0xf48] sm:$0xff]
  %v548 = vld [vmem:[%s1 + $0xf50] sm:$0xff]
  %v549 = vld [vmem:[%s1 + $0xf58] sm:$0xff]
  %v550 = vld [vmem:[%s1 + $0xf60] sm:$0xff]
  %v551 = vld [vmem:[%s1 + $0xf68] sm:$0xff]
  %v552 = vld [vmem:[%s1 + $0xf70] sm:$0xff]
  %v553 = vld [vmem:[%s1 + $0xf78] sm:$0xff]
  %v554 = vld [vmem:[%s1 + $0xf80] sm:$0xff]
  %v555 = vld [vmem:[%s1 + $0xf88] sm:$0xff]
  %v556 = vld [vmem:[%s1 + $0xf90] sm:$0xff]
  %v557 = vld [vmem:[%s1 + $0xf98] sm:$0xff]
  %v558 = vld [vmem:[%s1 + $0xfa0] sm:$0xff]
  %v559 = vld [vmem:[%s1 + $0xfa8] sm:$0xff]
  %v560 = vld [vmem:[%s1 + $0xfb0] sm:$0xff]
  %v561 = vld [vmem:[%s1 + $0xfb8] sm:$0xff]
  %v562 = vld [vmem:[%s1 + $0xfc0] sm:$0xff]
  %v563 = vld [vmem:[%s1 + $0xfc8] sm:$0xff]
  %v564 = vld [vmem:[%s1 + $0xfd0] sm:$0xff]
  %v565 = vld [vmem:[%s1 + $0xfd8] sm:$0xff]
  %v566 = vld [vmem:[%s1 + $0xfe0] sm:$0xff]
  %v567 = vld [vmem:[%s1 + $0xfe8] sm:$0xff]
  %v568 = vld [vmem:[%s1 + $0xff0] sm:$0xff]
  %v569 = vld [vmem:[%s1 + $0xff8] sm:$0xff]
  %v570 = vld [vmem:[%s2] sm:$0x1]
  %v572 = vlaneseq
  %v573 = vshrl.u32 %v572, 7
  %v574 = vsub.s32 0, %v573
  %v575 = vrot.slane %v570, %v574
  %577 = vmatprep.subr.mxu0 0.0
  %578 = vmatpush1.msra.mxu0 %v58
  %579 = vmatprep.subr.mxu0 0.0
  %580 = vmatpush1.msra.mxu0 %v59
  %581 = vmatprep.subr.mxu0 0.0
  %582 = vmatpush1.msra.mxu0 %v60
  %583 = vmatprep.subr.mxu0 0.0
  %584 = vmatpush1.msra.mxu0 %v61
  %585 = vmatprep.subr.mxu0 0.0
  %586 = vmatpush1.msra.mxu0 %v62
  %587 = vmatprep.subr.mxu0 0.0
  %588 = vmatpush1.msra.mxu0 %v63
  %589 = vmatprep.subr.mxu0 0.0
  %590 = vmatpush1.msra.mxu0 %v64
  %591 = vmatprep.subr.mxu0 0.0
  %592 = vmatpush1.msra.mxu0 %v65
  %593 = vmatprep.subr.mxu0 0.0
  %594 = vmatpush1.msra.mxu0 %v66
  %595 = vmatprep.subr.mxu0 0.0
  %596 = vmatpush1.msra.mxu0 %v67
  %597 = vmatprep.subr.mxu0 0.0
  %598 = vmatpush1.msra.mxu0 %v68
  %599 = vmatprep.subr.mxu0 0.0
  %600 = vmatpush1.msra.mxu0 %v69
  %601 = vmatprep.subr.mxu0 0.0
  %602 = vmatpush1.msra.mxu0 %v70
  %603 = vmatprep.subr.mxu0 0.0
  %604 = vmatpush1.msra.mxu0 %v71
  %605 = vmatprep.subr.mxu0 0.0
  %606 = vmatpush1.msra.mxu0 %v72
  %607 = vmatprep.subr.mxu0 0.0
  %608 = vmatpush1.msra.mxu0 %v73
  %609 = vmatprep.subr.mxu0 0.0
  %610 = vmatpush1.msra.mxu0 %v74
  %611 = vmatprep.subr.mxu0 0.0
  %612 = vmatpush1.msra.mxu0 %v75
  %613 = vmatprep.subr.mxu0 0.0
  %614 = vmatpush1.msra.mxu0 %v76
  %615 = vmatprep.subr.mxu0 0.0
  %616 = vmatpush1.msra.mxu0 %v77
  %617 = vmatprep.subr.mxu0 0.0
  %618 = vmatpush1.msra.mxu0 %v78
  %619 = vmatprep.subr.mxu0 0.0
  %620 = vmatpush1.msra.mxu0 %v79
  %621 = vmatprep.subr.mxu0 0.0
  %622 = vmatpush1.msra.mxu0 %v80
  %623 = vmatprep.subr.mxu0 0.0
  %624 = vmatpush1.msra.mxu0 %v81
  %625 = vmatprep.subr.mxu0 0.0
  %626 = vmatpush1.msra.mxu0 %v82
  %627 = vmatprep.subr.mxu0 0.0
  %628 = vmatpush1.msra.mxu0 %v83
  %629 = vmatprep.subr.mxu0 0.0
  %630 = vmatpush1.msra.mxu0 %v84
  %631 = vmatprep.subr.mxu0 0.0
  %632 = vmatpush1.msra.mxu0 %v85
  %633 = vmatprep.subr.mxu0 0.0
  %634 = vmatpush1.msra.mxu0 %v86
  %635 = vmatprep.subr.mxu0 0.0
  %636 = vmatpush1.msra.mxu0 %v87
  %637 = vmatprep.subr.mxu0 0.0
  %638 = vmatpush1.msra.mxu0 %v88
  %639 = vmatprep.subr.mxu0 0.0
  %640 = vmatpush1.msra.mxu0 %v89
  %641 = vmatprep.mubr.f32.mxu0 %v27
  %642 = vmatmul.mubr.f32.gmra.mrb[0].mxu0 %v26
  %v643 = vpop.f32.mrb[0].mxu0
  %v644 = vadd.f32 %v575, %v643
  %v645 = vpop.f32.mrb[0].mxu0
  %646 = vdwg.mxu0
  %647 = vmatprep.subr.mxu0 0.0
  %648 = vmatpush1.msra.mxu0 %v90
  %649 = vmatprep.subr.mxu0 0.0
  %650 = vmatpush1.msra.mxu0 %v91
  %651 = vmatprep.subr.mxu0 0.0
  %652 = vmatpush1.msra.mxu0 %v92
  %653 = vmatprep.subr.mxu0 0.0
  %654 = vmatpush1.msra.mxu0 %v93
  %655 = vmatprep.subr.mxu0 0.0
  %656 = vmatpush1.msra.mxu0 %v94
  %657 = vmatprep.subr.mxu0 0.0
  %658 = vmatpush1.msra.mxu0 %v95
  %659 = vmatprep.subr.mxu0 0.0
  %660 = vmatpush1.msra.mxu0 %v96
  %661 = vmatprep.subr.mxu0 0.0
  %662 = vmatpush1.msra.mxu0 %v97
  %663 = vmatprep.subr.mxu0 0.0
  %664 = vmatpush1.msra.mxu0 %v98
  %665 = vmatprep.subr.mxu0 0.0
  %666 = vmatpush1.msra.mxu0 %v99
  %667 = vmatprep.subr.mxu0 0.0
  %668 = vmatpush1.msra.mxu0 %v100
  %669 = vmatprep.subr.mxu0 0.0
  %670 = vmatpush1.msra.mxu0 %v101
  %671 = vmatprep.subr.mxu0 0.0
  %672 = vmatpush1.msra.mxu0 %v102
  %673 = vmatprep.subr.mxu0 0.0
  %674 = vmatpush1.msra.mxu0 %v103
  %675 = vmatprep.subr.mxu0 0.0
  %676 = vmatpush1.msra.mxu0 %v104
  %677 = vmatprep.subr.mxu0 0.0
  %678 = vmatpush1.msra.mxu0 %v105
  %679 = vmatprep.subr.mxu0 0.0
  %680 = vmatpush1.msra.mxu0 %v106
  %681 = vmatprep.subr.mxu0 0.0
  %682 = vmatpush1.msra.mxu0 %v107
  %683 = vmatprep.subr.mxu0 0.0
  %684 = vmatpush1.msra.mxu0 %v108
  %685 = vmatprep.subr.mxu0 0.0
  %686 = vmatpush1.msra.mxu0 %v109
  %687 = vmatprep.subr.mxu0 0.0
  %688 = vmatpush1.msra.mxu0 %v110
  %689 = vmatprep.subr.mxu0 0.0
  %690 = vmatpush1.msra.mxu0 %v111
  %691 = vmatprep.subr.mxu0 0.0
  %692 = vmatpush1.msra.mxu0 %v112
  %693 = vmatprep.subr.mxu0 0.0
  %694 = vmatpush1.msra.mxu0 %v113
  %695 = vmatprep.subr.mxu0 0.0
  %696 = vmatpush1.msra.mxu0 %v114
  %697 = vmatprep.subr.mxu0 0.0
  %698 = vmatpush1.msra.mxu0 %v115
  %699 = vmatprep.subr.mxu0 0.0
  %700 = vmatpush1.msra.mxu0 %v116
  %701 = vmatprep.subr.mxu0 0.0
  %702 = vmatpush1.msra.mxu0 %v117
  %703 = vmatprep.subr.mxu0 0.0
  %704 = vmatpush1.msra.mxu0 %v118
  %705 = vmatprep.subr.mxu0 0.0
  %706 = vmatpush1.msra.mxu0 %v119
  %707 = vmatprep.subr.mxu0 0.0
  %708 = vmatpush1.msra.mxu0 %v120
  %709 = vmatprep.subr.mxu0 0.0
  %710 = vmatpush1.msra.mxu0 %v121
  %711 = vmatprep.mubr.f32.mxu0 %v29
  %712 = vmatmul.mubr.f32.gmra.mrb[0].mxu0 %v28
  %v713 = vpop.f32.mrb[0].mxu0
  %v714 = vadd.f32 %v644, %v713
  %v715 = vpop.f32.mrb[0].mxu0
  %716 = vdwg.mxu0
  %717 = vmatprep.subr.mxu0 0.0
  %718 = vmatpush1.msra.mxu0 %v122
  %719 = vmatprep.subr.mxu0 0.0
  %720 = vmatpush1.msra.mxu0 %v123
  %721 = vmatprep.subr.mxu0 0.0
  %722 = vmatpush1.msra.mxu0 %v124
  %723 = vmatprep.subr.mxu0 0.0
  %724 = vmatpush1.msra.mxu0 %v125
  %725 = vmatprep.subr.mxu0 0.0
  %726 = vmatpush1.msra.mxu0 %v126
  %727 = vmatprep.subr.mxu0 0.0
  %728 = vmatpush1.msra.mxu0 %v127
  %729 = vmatprep.subr.mxu0 0.0
  %730 = vmatpush1.msra.mxu0 %v128
  %731 = vmatprep.subr.mxu0 0.0
  %732 = vmatpush1.msra.mxu0 %v129
  %733 = vmatprep.subr.mxu0 0.0
  %734 = vmatpush1.msra.mxu0 %v130
  %735 = vmatprep.subr.mxu0 0.0
  %736 = vmatpush1.msra.mxu0 %v131
  %737 = vmatprep.subr.mxu0 0.0
  %738 = vmatpush1.msra.mxu0 %v132
  %739 = vmatprep.subr.mxu0 0.0
  %740 = vmatpush1.msra.mxu0 %v133
  %741 = vmatprep.subr.mxu0 0.0
  %742 = vmatpush1.msra.mxu0 %v134
  %743 = vmatprep.subr.mxu0 0.0
  %744 = vmatpush1.msra.mxu0 %v135
  %745 = vmatprep.subr.mxu0 0.0
  %746 = vmatpush1.msra.mxu0 %v136
  %747 = vmatprep.subr.mxu0 0.0
  %748 = vmatpush1.msra.mxu0 %v137
  %749 = vmatprep.subr.mxu0 0.0
  %750 = vmatpush1.msra.mxu0 %v138
  %751 = vmatprep.subr.mxu0 0.0
  %752 = vmatpush1.msra.mxu0 %v139
  %753 = vmatprep.subr.mxu0 0.0
  %754 = vmatpush1.msra.mxu0 %v140
  %755 = vmatprep.subr.mxu0 0.0
  %756 = vmatpush1.msra.mxu0 %v141
  %757 = vmatprep.subr.mxu0 0.0
  %758 = vmatpush1.msra.mxu0 %v142
  %759 = vmatprep.subr.mxu0 0.0
  %760 = vmatpush1.msra.mxu0 %v143
  %761 = vmatprep.subr.mxu0 0.0
  %762 = vmatpush1.msra.mxu0 %v144
  %763 = vmatprep.subr.mxu0 0.0
  %764 = vmatpush1.msra.mxu0 %v145
  %765 = vmatprep.subr.mxu0 0.0
  %766 = vmatpush1.msra.mxu0 %v146
  %767 = vmatprep.subr.mxu0 0.0
  %768 = vmatpush1.msra.mxu0 %v147
  %769 = vmatprep.subr.mxu0 0.0
  %770 = vmatpush1.msra.mxu0 %v148
  %771 = vmatprep.subr.mxu0 0.0
  %772 = vmatpush1.msra.mxu0 %v149
  %773 = vmatprep.subr.mxu0 0.0
  %774 = vmatpush1.msra.mxu0 %v150
  %775 = vmatprep.subr.mxu0 0.0
  %776 = vmatpush1.msra.mxu0 %v151
  %777 = vmatprep.subr.mxu0 0.0
  %778 = vmatpush1.msra.mxu0 %v152
  %779 = vmatprep.subr.mxu0 0.0
  %780 = vmatpush1.msra.mxu0 %v153
  %781 = vmatprep.mubr.f32.mxu0 %v31
  %782 = vmatmul.mubr.f32.gmra.mrb[0].mxu0 %v30
  %v783 = vpop.f32.mrb[0].mxu0
  %v784 = vadd.f32 %v714, %v783
  %v785 = vpop.f32.mrb[0].mxu0
  %786 = vdwg.mxu0
  %787 = vmatprep.subr.mxu0 0.0
  %788 = vmatpush1.msra.mxu0 %v154
  %789 = vmatprep.subr.mxu0 0.0
  %790 = vmatpush1.msra.mxu0 %v155
  %791 = vmatprep.subr.mxu0 0.0
  %792 = vmatpush1.msra.mxu0 %v156
  %793 = vmatprep.subr.mxu0 0.0
  %794 = vmatpush1.msra.mxu0 %v157
  %795 = vmatprep.subr.mxu0 0.0
  %796 = vmatpush1.msra.mxu0 %v158
  %797 = vmatprep.subr.mxu0 0.0
  %798 = vmatpush1.msra.mxu0 %v159
  %799 = vmatprep.subr.mxu0 0.0
  %800 = vmatpush1.msra.mxu0 %v160
  %801 = vmatprep.subr.mxu0 0.0
  %802 = vmatpush1.msra.mxu0 %v161
  %803 = vmatprep.subr.mxu0 0.0
  %804 = vmatpush1.msra.mxu0 %v162
  %805 = vmatprep.subr.mxu0 0.0
  %806 = vmatpush1.msra.mxu0 %v163
  %807 = vmatprep.subr.mxu0 0.0
  %808 = vmatpush1.msra.mxu0 %v164
  %809 = vmatprep.subr.mxu0 0.0
  %810 = vmatpush1.msra.mxu0 %v165
  %811 = vmatprep.subr.mxu0 0.0
  %812 = vmatpush1.msra.mxu0 %v166
  %813 = vmatprep.subr.mxu0 0.0
  %814 = vmatpush1.msra.mxu0 %v167
  %815 = vmatprep.subr.mxu0 0.0
  %816 = vmatpush1.msra.mxu0 %v168
  %817 = vmatprep.subr.mxu0 0.0
  %818 = vmatpush1.msra.mxu0 %v169
  %819 = vmatprep.subr.mxu0 0.0
  %820 = vmatpush1.msra.mxu0 %v170
  %821 = vmatprep.subr.mxu0 0.0
  %822 = vmatpush1.msra.mxu0 %v171
  %823 = vmatprep.subr.mxu0 0.0
  %824 = vmatpush1.msra.mxu0 %v172
  %825 = vmatprep.subr.mxu0 0.0
  %826 = vmatpush1.msra.mxu0 %v173
  %827 = vmatprep.subr.mxu0 0.0
  %828 = vmatpush1.msra.mxu0 %v174
  %829 = vmatprep.subr.mxu0 0.0
  %830 = vmatpush1.msra.mxu0 %v175
  %831 = vmatprep.subr.mxu0 0.0
  %832 = vmatpush1.msra.mxu0 %v176
  %833 = vmatprep.subr.mxu0 0.0
  %834 = vmatpush1.msra.mxu0 %v177
  %835 = vmatprep.subr.mxu0 0.0
  %836 = vmatpush1.msra.mxu0 %v178
  %837 = vmatprep.subr.mxu0 0.0
  %838 = vmatpush1.msra.mxu0 %v179
  %839 = vmatprep.subr.mxu0 0.0
  %840 = vmatpush1.msra.mxu0 %v180
  %841 = vmatprep.subr.mxu0 0.0
  %842 = vmatpush1.msra.mxu0 %v181
  %843 = vmatprep.subr.mxu0 0.0
  %844 = vmatpush1.msra.mxu0 %v182
  %845 = vmatprep.subr.mxu0 0.0
  %846 = vmatpush1.msra.mxu0 %v183
  %847 = vmatprep.subr.mxu0 0.0
  %848 = vmatpush1.msra.mxu0 %v184
  %849 = vmatprep.subr.mxu0 0.0
  %850 = vmatpush1.msra.mxu0 %v185
  %851 = vmatprep.mubr.f32.mxu0 %v33
  %852 = vmatmul.mubr.f32.gmra.mrb[0].mxu0 %v32
  %v853 = vpop.f32.mrb[0].mxu0
  %v854 = vadd.f32 %v784, %v853
  %v855 = vpop.f32.mrb[0].mxu0
  %856 = vdwg.mxu0
  %857 = vmatprep.subr.mxu0 0.0
  %858 = vmatpush1.msra.mxu0 %v186
  %859 = vmatprep.subr.mxu0 0.0
  %860 = vmatpush1.msra.mxu0 %v187
  %861 = vmatprep.subr.mxu0 0.0
  %862 = vmatpush1.msra.mxu0 %v188
  %863 = vmatprep.subr.mxu0 0.0
  %864 = vmatpush1.msra.mxu0 %v189
  %865 = vmatprep.subr.mxu0 0.0
  %866 = vmatpush1.msra.mxu0 %v190
  %867 = vmatprep.subr.mxu0 0.0
  %868 = vmatpush1.msra.mxu0 %v191
  %869 = vmatprep.subr.mxu0 0.0
  %870 = vmatpush1.msra.mxu0 %v192
  %871 = vmatprep.subr.mxu0 0.0
  %872 = vmatpush1.msra.mxu0 %v193
  %873 = vmatprep.subr.mxu0 0.0
  %874 = vmatpush1.msra.mxu0 %v194
  %875 = vmatprep.subr.mxu0 0.0
  %876 = vmatpush1.msra.mxu0 %v195
  %877 = vmatprep.subr.mxu0 0.0
  %878 = vmatpush1.msra.mxu0 %v196
  %879 = vmatprep.subr.mxu0 0.0
  %880 = vmatpush1.msra.mxu0 %v197
  %881 = vmatprep.subr.mxu0 0.0
  %882 = vmatpush1.msra.mxu0 %v198
  %883 = vmatprep.subr.mxu0 0.0
  %884 = vmatpush1.msra.mxu0 %v199
  %885 = vmatprep.subr.mxu0 0.0
  %886 = vmatpush1.msra.mxu0 %v200
  %887 = vmatprep.subr.mxu0 0.0
  %888 = vmatpush1.msra.mxu0 %v201
  %889 = vmatprep.subr.mxu0 0.0
  %890 = vmatpush1.msra.mxu0 %v202
  %891 = vmatprep.subr.mxu0 0.0
  %892 = vmatpush1.msra.mxu0 %v203
  %893 = vmatprep.subr.mxu0 0.0
  %894 = vmatpush1.msra.mxu0 %v204
  %895 = vmatprep.subr.mxu0 0.0
  %896 = vmatpush1.msra.mxu0 %v205
  %897 = vmatprep.subr.mxu0 0.0
  %898 = vmatpush1.msra.mxu0 %v206
  %899 = vmatprep.subr.mxu0 0.0
  %900 = vmatpush1.msra.mxu0 %v207
  %901 = vmatprep.subr.mxu0 0.0
  %902 = vmatpush1.msra.mxu0 %v208
  %903 = vmatprep.subr.mxu0 0.0
  %904 = vmatpush1.msra.mxu0 %v209
  %905 = vmatprep.subr.mxu0 0.0
  %906 = vmatpush1.msra.mxu0 %v210
  %907 = vmatprep.subr.mxu0 0.0
  %908 = vmatpush1.msra.mxu0 %v211
  %909 = vmatprep.subr.mxu0 0.0
  %910 = vmatpush1.msra.mxu0 %v212
  %911 = vmatprep.subr.mxu0 0.0
  %912 = vmatpush1.msra.mxu0 %v213
  %913 = vmatprep.subr.mxu0 0.0
  %914 = vmatpush1.msra.mxu0 %v214
  %915 = vmatprep.subr.mxu0 0.0
  %916 = vmatpush1.msra.mxu0 %v215
  %917 = vmatprep.subr.mxu0 0.0
  %918 = vmatpush1.msra.mxu0 %v216
  %919 = vmatprep.subr.mxu0 0.0
  %920 = vmatpush1.msra.mxu0 %v217
  %921 = vmatprep.mubr.f32.mxu0 %v35
  %922 = vmatmul.mubr.f32.gmra.mrb[0].mxu0 %v34
  %v923 = vpop.f32.mrb[0].mxu0
  %v924 = vadd.f32 %v854, %v923
  %v925 = vpop.f32.mrb[0].mxu0
  %926 = vdwg.mxu0
  %927 = vmatprep.subr.mxu0 0.0
  %928 = vmatpush1.msra.mxu0 %v218
  %929 = vmatprep.subr.mxu0 0.0
  %930 = vmatpush1.msra.mxu0 %v219
  %931 = vmatprep.subr.mxu0 0.0
  %932 = vmatpush1.msra.mxu0 %v220
  %933 = vmatprep.subr.mxu0 0.0
  %934 = vmatpush1.msra.mxu0 %v221
  %935 = vmatprep.subr.mxu0 0.0
  %936 = vmatpush1.msra.mxu0 %v222
  %937 = vmatprep.subr.mxu0 0.0
  %938 = vmatpush1.msra.mxu0 %v223
  %939 = vmatprep.subr.mxu0 0.0
  %940 = vmatpush1.msra.mxu0 %v224
  %941 = vmatprep.subr.mxu0 0.0
  %942 = vmatpush1.msra.mxu0 %v225
  %943 = vmatprep.subr.mxu0 0.0
  %944 = vmatpush1.msra.mxu0 %v226
  %945 = vmatprep.subr.mxu0 0.0
  %946 = vmatpush1.msra.mxu0 %v227
  %947 = vmatprep.subr.mxu0 0.0
  %948 = vmatpush1.msra.mxu0 %v228
  %949 = vmatprep.subr.mxu0 0.0
  %950 = vmatpush1.msra.mxu0 %v229
  %951 = vmatprep.subr.mxu0 0.0
  %952 = vmatpush1.msra.mxu0 %v230
  %953 = vmatprep.subr.mxu0 0.0
  %954 = vmatpush1.msra.mxu0 %v231
  %955 = vmatprep.subr.mxu0 0.0
  %956 = vmatpush1.msra.mxu0 %v232
  %957 = vmatprep.subr.mxu0 0.0
  %958 = vmatpush1.msra.mxu0 %v233
  %959 = vmatprep.subr.mxu0 0.0
  %960 = vmatpush1.msra.mxu0 %v234
  %961 = vmatprep.subr.mxu0 0.0
  %962 = vmatpush1.msra.mxu0 %v235
  %963 = vmatprep.subr.mxu0 0.0
  %964 = vmatpush1.msra.mxu0 %v236
  %965 = vmatprep.subr.mxu0 0.0
  %966 = vmatpush1.msra.mxu0 %v237
  %967 = vmatprep.subr.mxu0 0.0
  %968 = vmatpush1.msra.mxu0 %v238
  %969 = vmatprep.subr.mxu0 0.0
  %970 = vmatpush1.msra.mxu0 %v239
  %971 = vmatprep.subr.mxu0 0.0
  %972 = vmatpush1.msra.mxu0 %v240
  %973 = vmatprep.subr.mxu0 0.0
  %974 = vmatpush1.msra.mxu0 %v241
  %975 = vmatprep.subr.mxu0 0.0
  %976 = vmatpush1.msra.mxu0 %v242
  %977 = vmatprep.subr.mxu0 0.0
  %978 = vmatpush1.msra.mxu0 %v243
  %979 = vmatprep.subr.mxu0 0.0
  %980 = vmatpush1.msra.mxu0 %v244
  %981 = vmatprep.subr.mxu0 0.0
  %982 = vmatpush1.msra.mxu0 %v245
  %983 = vmatprep.subr.mxu0 0.0
  %984 = vmatpush1.msra.mxu0 %v246
  %985 = vmatprep.subr.mxu0 0.0
  %986 = vmatpush1.msra.mxu0 %v247
  %987 = vmatprep.subr.mxu0 0.0
  %988 = vmatpush1.msra.mxu0 %v248
  %989 = vmatprep.subr.mxu0 0.0
  %990 = vmatpush1.msra.mxu0 %v249
  %991 = vmatprep.mubr.f32.mxu0 %v37
  %992 = vmatmul.mubr.f32.gmra.mrb[0].mxu0 %v36
  %v993 = vpop.f32.mrb[0].mxu0
  %v994 = vadd.f32 %v924, %v993
  %v995 = vpop.f32.mrb[0].mxu0
  %996 = vdwg.mxu0
  %997 = vmatprep.subr.mxu0 0.0
  %998 = vmatpush1.msra.mxu0 %v250
  %999 = vmatprep.subr.mxu0 0.0
  %1000 = vmatpush1.msra.mxu0 %v251
  %1001 = vmatprep.subr.mxu0 0.0
  %1002 = vmatpush1.msra.mxu0 %v252
  %1003 = vmatprep.subr.mxu0 0.0
  %1004 = vmatpush1.msra.mxu0 %v253
  %1005 = vmatprep.subr.mxu0 0.0
  %1006 = vmatpush1.msra.mxu0 %v254
  %1007 = vmatprep.subr.mxu0 0.0
  %1008 = vmatpush1.msra.mxu0 %v255
  %1009 = vmatprep.subr.mxu0 0.0
  %1010 = vmatpush1.msra.mxu0 %v256
  %1011 = vmatprep.subr.mxu0 0.0
  %1012 = vmatpush1.msra.mxu0 %v257
  %1013 = vmatprep.subr.mxu0 0.0
  %1014 = vmatpush1.msra.mxu0 %v258
  %1015 = vmatprep.subr.mxu0 0.0
  %1016 = vmatpush1.msra.mxu0 %v259
  %1017 = vmatprep.subr.mxu0 0.0
  %1018 = vmatpush1.msra.mxu0 %v260
  %1019 = vmatprep.subr.mxu0 0.0
  %1020 = vmatpush1.msra.mxu0 %v261
  %1021 = vmatprep.subr.mxu0 0.0
  %1022 = vmatpush1.msra.mxu0 %v262
  %1023 = vmatprep.subr.mxu0 0.0
  %1024 = vmatpush1.msra.mxu0 %v263
  %1025 = vmatprep.subr.mxu0 0.0
  %1026 = vmatpush1.msra.mxu0 %v264
  %1027 = vmatprep.subr.mxu0 0.0
  %1028 = vmatpush1.msra.mxu0 %v265
  %1029 = vmatprep.subr.mxu0 0.0
  %1030 = vmatpush1.msra.mxu0 %v266
  %1031 = vmatprep.subr.mxu0 0.0
  %1032 = vmatpush1.msra.mxu0 %v267
  %1033 = vmatprep.subr.mxu0 0.0
  %1034 = vmatpush1.msra.mxu0 %v268
  %1035 = vmatprep.subr.mxu0 0.0
  %1036 = vmatpush1.msra.mxu0 %v269
  %1037 = vmatprep.subr.mxu0 0.0
  %1038 = vmatpush1.msra.mxu0 %v270
  %1039 = vmatprep.subr.mxu0 0.0
  %1040 = vmatpush1.msra.mxu0 %v271
  %1041 = vmatprep.subr.mxu0 0.0
  %1042 = vmatpush1.msra.mxu0 %v272
  %1043 = vmatprep.subr.mxu0 0.0
  %1044 = vmatpush1.msra.mxu0 %v273
  %1045 = vmatprep.subr.mxu0 0.0
  %1046 = vmatpush1.msra.mxu0 %v274
  %1047 = vmatprep.subr.mxu0 0.0
  %1048 = vmatpush1.msra.mxu0 %v275
  %1049 = vmatprep.subr.mxu0 0.0
  %1050 = vmatpush1.msra.mxu0 %v276
  %1051 = vmatprep.subr.mxu0 0.0
  %1052 = vmatpush1.msra.mxu0 %v277
  %1053 = vmatprep.subr.mxu0 0.0
  %1054 = vmatpush1.msra.mxu0 %v278
  %1055 = vmatprep.subr.mxu0 0.0
  %1056 = vmatpush1.msra.mxu0 %v279
  %1057 = vmatprep.subr.mxu0 0.0
  %1058 = vmatpush1.msra.mxu0 %v280
  %1059 = vmatprep.subr.mxu0 0.0
  %1060 = vmatpush1.msra.mxu0 %v281
  %1061 = vmatprep.mubr.f32.mxu0 %v39
  %1062 = vmatmul.mubr.f32.gmra.mrb[0].mxu0 %v38
  %v1063 = vpop.f32.mrb[0].mxu0
  %v1064 = vadd.f32 %v994, %v1063
  %v1065 = vpop.f32.mrb[0].mxu0
  %1066 = vdwg.mxu0
  %1067 = vmatprep.subr.mxu0 0.0
  %1068 = vmatpush1.msra.mxu0 %v282
  %1069 = vmatprep.subr.mxu0 0.0
  %1070 = vmatpush1.msra.mxu0 %v283
  %1071 = vmatprep.subr.mxu0 0.0
  %1072 = vmatpush1.msra.mxu0 %v284
  %1073 = vmatprep.subr.mxu0 0.0
  %1074 = vmatpush1.msra.mxu0 %v285
  %1075 = vmatprep.subr.mxu0 0.0
  %1076 = vmatpush1.msra.mxu0 %v286
  %1077 = vmatprep.subr.mxu0 0.0
  %1078 = vmatpush1.msra.mxu0 %v287
  %1079 = vmatprep.subr.mxu0 0.0
  %1080 = vmatpush1.msra.mxu0 %v288
  %1081 = vmatprep.subr.mxu0 0.0
  %1082 = vmatpush1.msra.mxu0 %v289
  %1083 = vmatprep.subr.mxu0 0.0
  %1084 = vmatpush1.msra.mxu0 %v290
  %1085 = vmatprep.subr.mxu0 0.0
  %1086 = vmatpush1.msra.mxu0 %v291
  %1087 = vmatprep.subr.mxu0 0.0
  %1088 = vmatpush1.msra.mxu0 %v292
  %1089 = vmatprep.subr.mxu0 0.0
  %1090 = vmatpush1.msra.mxu0 %v293
  %1091 = vmatprep.subr.mxu0 0.0
  %1092 = vmatpush1.msra.mxu0 %v294
  %1093 = vmatprep.subr.mxu0 0.0
  %1094 = vmatpush1.msra.mxu0 %v295
  %1095 = vmatprep.subr.mxu0 0.0
  %1096 = vmatpush1.msra.mxu0 %v296
  %1097 = vmatprep.subr.mxu0 0.0
  %1098 = vmatpush1.msra.mxu0 %v297
  %1099 = vmatprep.subr.mxu0 0.0
  %1100 = vmatpush1.msra.mxu0 %v298
  %1101 = vmatprep.subr.mxu0 0.0
  %1102 = vmatpush1.msra.mxu0 %v299
  %1103 = vmatprep.subr.mxu0 0.0
  %1104 = vmatpush1.msra.mxu0 %v300
  %1105 = vmatprep.subr.mxu0 0.0
  %1106 = vmatpush1.msra.mxu0 %v301
  %1107 = vmatprep.subr.mxu0 0.0
  %1108 = vmatpush1.msra.mxu0 %v302
  %1109 = vmatprep.subr.mxu0 0.0
  %1110 = vmatpush1.msra.mxu0 %v303
  %1111 = vmatprep.subr.mxu0 0.0
  %1112 = vmatpush1.msra.mxu0 %v304
  %1113 = vmatprep.subr.mxu0 0.0
  %1114 = vmatpush1.msra.mxu0 %v305
  %1115 = vmatprep.subr.mxu0 0.0
  %1116 = vmatpush1.msra.mxu0 %v306
  %1117 = vmatprep.subr.mxu0 0.0
  %1118 = vmatpush1.msra.mxu0 %v307
  %1119 = vmatprep.subr.mxu0 0.0
  %1120 = vmatpush1.msra.mxu0 %v308
  %1121 = vmatprep.subr.mxu0 0.0
  %1122 = vmatpush1.msra.mxu0 %v309
  %1123 = vmatprep.subr.mxu0 0.0
  %1124 = vmatpush1.msra.mxu0 %v310
  %1125 = vmatprep.subr.mxu0 0.0
  %1126 = vmatpush1.msra.mxu0 %v311
  %1127 = vmatprep.subr.mxu0 0.0
  %1128 = vmatpush1.msra.mxu0 %v312
  %1129 = vmatprep.subr.mxu0 0.0
  %1130 = vmatpush1.msra.mxu0 %v313
  %1131 = vmatprep.mubr.f32.mxu0 %v41
  %1132 = vmatmul.mubr.f32.gmra.mrb[0].mxu0 %v40
  %v1133 = vpop.f32.mrb[0].mxu0
  %v1134 = vadd.f32 %v1064, %v1133
  %v1135 = vpop.f32.mrb[0].mxu0
  %1136 = vdwg.mxu0
  %1137 = vmatprep.subr.mxu0 0.0
  %1138 = vmatpush1.msra.mxu0 %v314
  %1139 = vmatprep.subr.mxu0 0.0
  %1140 = vmatpush1.msra.mxu0 %v315
  %1141 = vmatprep.subr.mxu0 0.0
  %1142 = vmatpush1.msra.mxu0 %v316
  %1143 = vmatprep.subr.mxu0 0.0
  %1144 = vmatpush1.msra.mxu0 %v317
  %1145 = vmatprep.subr.mxu0 0.0
  %1146 = vmatpush1.msra.mxu0 %v318
  %1147 = vmatprep.subr.mxu0 0.0
  %1148 = vmatpush1.msra.mxu0 %v319
  %1149 = vmatprep.subr.mxu0 0.0
  %1150 = vmatpush1.msra.mxu0 %v320
  %1151 = vmatprep.subr.mxu0 0.0
  %1152 = vmatpush1.msra.mxu0 %v321
  %1153 = vmatprep.subr.mxu0 0.0
  %1154 = vmatpush1.msra.mxu0 %v322
  %1155 = vmatprep.subr.mxu0 0.0
  %1156 = vmatpush1.msra.mxu0 %v323
  %1157 = vmatprep.subr.mxu0 0.0
  %1158 = vmatpush1.msra.mxu0 %v324
  %1159 = vmatprep.subr.mxu0 0.0
  %1160 = vmatpush1.msra.mxu0 %v325
  %1161 = vmatprep.subr.mxu0 0.0
  %1162 = vmatpush1.msra.mxu0 %v326
  %1163 = vmatprep.subr.mxu0 0.0
  %1164 = vmatpush1.msra.mxu0 %v327
  %1165 = vmatprep.subr.mxu0 0.0
  %1166 = vmatpush1.msra.mxu0 %v328
  %1167 = vmatprep.subr.mxu0 0.0
  %1168 = vmatpush1.msra.mxu0 %v329
  %1169 = vmatprep.subr.mxu0 0.0
  %1170 = vmatpush1.msra.mxu0 %v330
  %1171 = vmatprep.subr.mxu0 0.0
  %1172 = vmatpush1.msra.mxu0 %v331
  %1173 = vmatprep.subr.mxu0 0.0
  %1174 = vmatpush1.msra.mxu0 %v332
  %1175 = vmatprep.subr.mxu0 0.0
  %1176 = vmatpush1.msra.mxu0 %v333
  %1177 = vmatprep.subr.mxu0 0.0
  %1178 = vmatpush1.msra.mxu0 %v334
  %1179 = vmatprep.subr.mxu0 0.0
  %1180 = vmatpush1.msra.mxu0 %v335
  %1181 = vmatprep.subr.mxu0 0.0
  %1182 = vmatpush1.msra.mxu0 %v336
  %1183 = vmatprep.subr.mxu0 0.0
  %1184 = vmatpush1.msra.mxu0 %v337
  %1185 = vmatprep.subr.mxu0 0.0
  %1186 = vmatpush1.msra.mxu0 %v338
  %1187 = vmatprep.subr.mxu0 0.0
  %1188 = vmatpush1.msra.mxu0 %v339
  %1189 = vmatprep.subr.mxu0 0.0
  %1190 = vmatpush1.msra.mxu0 %v340
  %1191 = vmatprep.subr.mxu0 0.0
  %1192 = vmatpush1.msra.mxu0 %v341
  %1193 = vmatprep.subr.mxu0 0.0
  %1194 = vmatpush1.msra.mxu0 %v342
  %1195 = vmatprep.subr.mxu0 0.0
  %1196 = vmatpush1.msra.mxu0 %v343
  %1197 = vmatprep.subr.mxu0 0.0
  %1198 = vmatpush1.msra.mxu0 %v344
  %1199 = vmatprep.subr.mxu0 0.0
  %1200 = vmatpush1.msra.mxu0 %v345
  %1201 = vmatprep.mubr.f32.mxu0 %v43
  %1202 = vmatmul.mubr.f32.gmra.mrb[0].mxu0 %v42
  %v1203 = vpop.f32.mrb[0].mxu0
  %v1204 = vadd.f32 %v1134, %v1203
  %v1205 = vpop.f32.mrb[0].mxu0
  %1206 = vdwg.mxu0
  %1207 = vmatprep.subr.mxu0 0.0
  %1208 = vmatpush1.msra.mxu0 %v346
  %1209 = vmatprep.subr.mxu0 0.0
  %1210 = vmatpush1.msra.mxu0 %v347
  %1211 = vmatprep.subr.mxu0 0.0
  %1212 = vmatpush1.msra.mxu0 %v348
  %1213 = vmatprep.subr.mxu0 0.0
  %1214 = vmatpush1.msra.mxu0 %v349
  %1215 = vmatprep.subr.mxu0 0.0
  %1216 = vmatpush1.msra.mxu0 %v350
  %1217 = vmatprep.subr.mxu0 0.0
  %1218 = vmatpush1.msra.mxu0 %v351
  %1219 = vmatprep.subr.mxu0 0.0
  %1220 = vmatpush1.msra.mxu0 %v352
  %1221 = vmatprep.subr.mxu0 0.0
  %1222 = vmatpush1.msra.mxu0 %v353
  %1223 = vmatprep.subr.mxu0 0.0
  %1224 = vmatpush1.msra.mxu0 %v354
  %1225 = vmatprep.subr.mxu0 0.0
  %1226 = vmatpush1.msra.mxu0 %v355
  %1227 = vmatprep.subr.mxu0 0.0
  %1228 = vmatpush1.msra.mxu0 %v356
  %1229 = vmatprep.subr.mxu0 0.0
  %1230 = vmatpush1.msra.mxu0 %v357
  %1231 = vmatprep.subr.mxu0 0.0
  %1232 = vmatpush1.msra.mxu0 %v358
  %1233 = vmatprep.subr.mxu0 0.0
  %1234 = vmatpush1.msra.mxu0 %v359
  %1235 = vmatprep.subr.mxu0 0.0
  %1236 = vmatpush1.msra.mxu0 %v360
  %1237 = vmatprep.subr.mxu0 0.0
  %1238 = vmatpush1.msra.mxu0 %v361
  %1239 = vmatprep.subr.mxu0 0.0
  %1240 = vmatpush1.msra.mxu0 %v362
  %1241 = vmatprep.subr.mxu0 0.0
  %1242 = vmatpush1.msra.mxu0 %v363
  %1243 = vmatprep.subr.mxu0 0.0
  %1244 = vmatpush1.msra.mxu0 %v364
  %1245 = vmatprep.subr.mxu0 0.0
  %1246 = vmatpush1.msra.mxu0 %v365
  %1247 = vmatprep.subr.mxu0 0.0
  %1248 = vmatpush1.msra.mxu0 %v366
  %1249 = vmatprep.subr.mxu0 0.0
  %1250 = vmatpush1.msra.mxu0 %v367
  %1251 = vmatprep.subr.mxu0 0.0
  %1252 = vmatpush1.msra.mxu0 %v368
  %1253 = vmatprep.subr.mxu0 0.0
  %1254 = vmatpush1.msra.mxu0 %v369
  %1255 = vmatprep.subr.mxu0 0.0
  %1256 = vmatpush1.msra.mxu0 %v370
  %1257 = vmatprep.subr.mxu0 0.0
  %1258 = vmatpush1.msra.mxu0 %v371
  %1259 = vmatprep.subr.mxu0 0.0
  %1260 = vmatpush1.msra.mxu0 %v372
  %1261 = vmatprep.subr.mxu0 0.0
  %1262 = vmatpush1.msra.mxu0 %v373
  %1263 = vmatprep.subr.mxu0 0.0
  %1264 = vmatpush1.msra.mxu0 %v374
  %1265 = vmatprep.subr.mxu0 0.0
  %1266 = vmatpush1.msra.mxu0 %v375
  %1267 = vmatprep.subr.mxu0 0.0
  %1268 = vmatpush1.msra.mxu0 %v376
  %1269 = vmatprep.subr.mxu0 0.0
  %1270 = vmatpush1.msra.mxu0 %v377
  %1271 = vmatprep.mubr.f32.mxu0 %v45
  %1272 = vmatmul.mubr.f32.gmra.mrb[0].mxu0 %v44
  %v1273 = vpop.f32.mrb[0].mxu0
  %v1274 = vadd.f32 %v1204, %v1273
  %v1275 = vpop.f32.mrb[0].mxu0
  %1276 = vdwg.mxu0
  %1277 = vmatprep.subr.mxu0 0.0
  %1278 = vmatpush1.msra.mxu0 %v378
  %1279 = vmatprep.subr.mxu0 0.0
  %1280 = vmatpush1.msra.mxu0 %v379
  %1281 = vmatprep.subr.mxu0 0.0
  %1282 = vmatpush1.msra.mxu0 %v380
  %1283 = vmatprep.subr.mxu0 0.0
  %1284 = vmatpush1.msra.mxu0 %v381
  %1285 = vmatprep.subr.mxu0 0.0
  %1286 = vmatpush1.msra.mxu0 %v382
  %1287 = vmatprep.subr.mxu0 0.0
  %1288 = vmatpush1.msra.mxu0 %v383
  %1289 = vmatprep.subr.mxu0 0.0
  %1290 = vmatpush1.msra.mxu0 %v384
  %1291 = vmatprep.subr.mxu0 0.0
  %1292 = vmatpush1.msra.mxu0 %v385
  %1293 = vmatprep.subr.mxu0 0.0
  %1294 = vmatpush1.msra.mxu0 %v386
  %1295 = vmatprep.subr.mxu0 0.0
  %1296 = vmatpush1.msra.mxu0 %v387
  %1297 = vmatprep.subr.mxu0 0.0
  %1298 = vmatpush1.msra.mxu0 %v388
  %1299 = vmatprep.subr.mxu0 0.0
  %1300 = vmatpush1.msra.mxu0 %v389
  %1301 = vmatprep.subr.mxu0 0.0
  %1302 = vmatpush1.msra.mxu0 %v390
  %1303 = vmatprep.subr.mxu0 0.0
  %1304 = vmatpush1.msra.mxu0 %v391
  %1305 = vmatprep.subr.mxu0 0.0
  %1306 = vmatpush1.msra.mxu0 %v392
  %1307 = vmatprep.subr.mxu0 0.0
  %1308 = vmatpush1.msra.mxu0 %v393
  %1309 = vmatprep.subr.mxu0 0.0
  %1310 = vmatpush1.msra.mxu0 %v394
  %1311 = vmatprep.subr.mxu0 0.0
  %1312 = vmatpush1.msra.mxu0 %v395
  %1313 = vmatprep.subr.mxu0 0.0
  %1314 = vmatpush1.msra.mxu0 %v396
  %1315 = vmatprep.subr.mxu0 0.0
  %1316 = vmatpush1.msra.mxu0 %v397
  %1317 = vmatprep.subr.mxu0 0.0
  %1318 = vmatpush1.msra.mxu0 %v398
  %1319 = vmatprep.subr.mxu0 0.0
  %1320 = vmatpush1.msra.mxu0 %v399
  %1321 = vmatprep.subr.mxu0 0.0
  %1322 = vmatpush1.msra.mxu0 %v400
  %1323 = vmatprep.subr.mxu0 0.0
  %1324 = vmatpush1.msra.mxu0 %v401
  %1325 = vmatprep.subr.mxu0 0.0
  %1326 = vmatpush1.msra.mxu0 %v402
  %1327 = vmatprep.subr.mxu0 0.0
  %1328 = vmatpush1.msra.mxu0 %v403
  %1329 = vmatprep.subr.mxu0 0.0
  %1330 = vmatpush1.msra.mxu0 %v404
  %1331 = vmatprep.subr.mxu0 0.0
  %1332 = vmatpush1.msra.mxu0 %v405
  %1333 = vmatprep.subr.mxu0 0.0
  %1334 = vmatpush1.msra.mxu0 %v406
  %1335 = vmatprep.subr.mxu0 0.0
  %1336 = vmatpush1.msra.mxu0 %v407
  %1337 = vmatprep.subr.mxu0 0.0
  %1338 = vmatpush1.msra.mxu0 %v408
  %1339 = vmatprep.subr.mxu0 0.0
  %1340 = vmatpush1.msra.mxu0 %v409
  %1341 = vmatprep.mubr.f32.mxu0 %v47
  %1342 = vmatmul.mubr.f32.gmra.mrb[0].mxu0 %v46
  %v1343 = vpop.f32.mrb[0].mxu0
  %v1344 = vadd.f32 %v1274, %v1343
  %v1345 = vpop.f32.mrb[0].mxu0
  %1346 = vdwg.mxu0
  %1347 = vmatprep.subr.mxu0 0.0
  %1348 = vmatpush1.msra.mxu0 %v410
  %1349 = vmatprep.subr.mxu0 0.0
  %1350 = vmatpush1.msra.mxu0 %v411
  %1351 = vmatprep.subr.mxu0 0.0
  %1352 = vmatpush1.msra.mxu0 %v412
  %1353 = vmatprep.subr.mxu0 0.0
  %1354 = vmatpush1.msra.mxu0 %v413
  %1355 = vmatprep.subr.mxu0 0.0
  %1356 = vmatpush1.msra.mxu0 %v414
  %1357 = vmatprep.subr.mxu0 0.0
  %1358 = vmatpush1.msra.mxu0 %v415
  %1359 = vmatprep.subr.mxu0 0.0
  %1360 = vmatpush1.msra.mxu0 %v416
  %1361 = vmatprep.subr.mxu0 0.0
  %1362 = vmatpush1.msra.mxu0 %v417
  %1363 = vmatprep.subr.mxu0 0.0
  %1364 = vmatpush1.msra.mxu0 %v418
  %1365 = vmatprep.subr.mxu0 0.0
  %1366 = vmatpush1.msra.mxu0 %v419
  %1367 = vmatprep.subr.mxu0 0.0
  %1368 = vmatpush1.msra.mxu0 %v420
  %1369 = vmatprep.subr.mxu0 0.0
  %1370 = vmatpush1.msra.mxu0 %v421
  %1371 = vmatprep.subr.mxu0 0.0
  %1372 = vmatpush1.msra.mxu0 %v422
  %1373 = vmatprep.subr.mxu0 0.0
  %1374 = vmatpush1.msra.mxu0 %v423
  %1375 = vmatprep.subr.mxu0 0.0
  %1376 = vmatpush1.msra.mxu0 %v424
  %1377 = vmatprep.subr.mxu0 0.0
  %1378 = vmatpush1.msra.mxu0 %v425
  %1379 = vmatprep.subr.mxu0 0.0
  %1380 = vmatpush1.msra.mxu0 %v426
  %1381 = vmatprep.subr.mxu0 0.0
  %1382 = vmatpush1.msra.mxu0 %v427
  %1383 = vmatprep.subr.mxu0 0.0
  %1384 = vmatpush1.msra.mxu0 %v428
  %1385 = vmatprep.subr.mxu0 0.0
  %1386 = vmatpush1.msra.mxu0 %v429
  %1387 = vmatprep.subr.mxu0 0.0
  %1388 = vmatpush1.msra.mxu0 %v430
  %1389 = vmatprep.subr.mxu0 0.0
  %1390 = vmatpush1.msra.mxu0 %v431
  %1391 = vmatprep.subr.mxu0 0.0
  %1392 = vmatpush1.msra.mxu0 %v432
  %1393 = vmatprep.subr.mxu0 0.0
  %1394 = vmatpush1.msra.mxu0 %v433
  %1395 = vmatprep.subr.mxu0 0.0
  %1396 = vmatpush1.msra.mxu0 %v434
  %1397 = vmatprep.subr.mxu0 0.0
  %1398 = vmatpush1.msra.mxu0 %v435
  %1399 = vmatprep.subr.mxu0 0.0
  %1400 = vmatpush1.msra.mxu0 %v436
  %1401 = vmatprep.subr.mxu0 0.0
  %1402 = vmatpush1.msra.mxu0 %v437
  %1403 = vmatprep.subr.mxu0 0.0
  %1404 = vmatpush1.msra.mxu0 %v438
  %1405 = vmatprep.subr.mxu0 0.0
  %1406 = vmatpush1.msra.mxu0 %v439
  %1407 = vmatprep.subr.mxu0 0.0
  %1408 = vmatpush1.msra.mxu0 %v440
  %1409 = vmatprep.subr.mxu0 0.0
  %1410 = vmatpush1.msra.mxu0 %v441
  %1411 = vmatprep.mubr.f32.mxu0 %v49
  %1412 = vmatmul.mubr.f32.gmra.mrb[0].mxu0 %v48
  %v1413 = vpop.f32.mrb[0].mxu0
  %v1414 = vadd.f32 %v1344, %v1413
  %v1415 = vpop.f32.mrb[0].mxu0
  %1416 = vdwg.mxu0
  %1417 = vmatprep.subr.mxu0 0.0
  %1418 = vmatpush1.msra.mxu0 %v442
  %1419 = vmatprep.subr.mxu0 0.0
  %1420 = vmatpush1.msra.mxu0 %v443
  %1421 = vmatprep.subr.mxu0 0.0
  %1422 = vmatpush1.msra.mxu0 %v444
  %1423 = vmatprep.subr.mxu0 0.0
  %1424 = vmatpush1.msra.mxu0 %v445
  %1425 = vmatprep.subr.mxu0 0.0
  %1426 = vmatpush1.msra.mxu0 %v446
  %1427 = vmatprep.subr.mxu0 0.0
  %1428 = vmatpush1.msra.mxu0 %v447
  %1429 = vmatprep.subr.mxu0 0.0
  %1430 = vmatpush1.msra.mxu0 %v448
  %1431 = vmatprep.subr.mxu0 0.0
  %1432 = vmatpush1.msra.mxu0 %v449
  %1433 = vmatprep.subr.mxu0 0.0
  %1434 = vmatpush1.msra.mxu0 %v450
  %1435 = vmatprep.subr.mxu0 0.0
  %1436 = vmatpush1.msra.mxu0 %v451
  %1437 = vmatprep.subr.mxu0 0.0
  %1438 = vmatpush1.msra.mxu0 %v452
  %1439 = vmatprep.subr.mxu0 0.0
  %1440 = vmatpush1.msra.mxu0 %v453
  %1441 = vmatprep.subr.mxu0 0.0
  %1442 = vmatpush1.msra.mxu0 %v454
  %1443 = vmatprep.subr.mxu0 0.0
  %1444 = vmatpush1.msra.mxu0 %v455
  %1445 = vmatprep.subr.mxu0 0.0
  %1446 = vmatpush1.msra.mxu0 %v456
  %1447 = vmatprep.subr.mxu0 0.0
  %1448 = vmatpush1.msra.mxu0 %v457
  %1449 = vmatprep.subr.mxu0 0.0
  %1450 = vmatpush1.msra.mxu0 %v458
  %1451 = vmatprep.subr.mxu0 0.0
  %1452 = vmatpush1.msra.mxu0 %v459
  %1453 = vmatprep.subr.mxu0 0.0
  %1454 = vmatpush1.msra.mxu0 %v460
  %1455 = vmatprep.subr.mxu0 0.0
  %1456 = vmatpush1.msra.mxu0 %v461
  %1457 = vmatprep.subr.mxu0 0.0
  %1458 = vmatpush1.msra.mxu0 %v462
  %1459 = vmatprep.subr.mxu0 0.0
  %1460 = vmatpush1.msra.mxu0 %v463
  %1461 = vmatprep.subr.mxu0 0.0
  %1462 = vmatpush1.msra.mxu0 %v464
  %1463 = vmatprep.subr.mxu0 0.0
  %1464 = vmatpush1.msra.mxu0 %v465
  %1465 = vmatprep.subr.mxu0 0.0
  %1466 = vmatpush1.msra.mxu0 %v466
  %1467 = vmatprep.subr.mxu0 0.0
  %1468 = vmatpush1.msra.mxu0 %v467
  %1469 = vmatprep.subr.mxu0 0.0
  %1470 = vmatpush1.msra.mxu0 %v468
  %1471 = vmatprep.subr.mxu0 0.0
  %1472 = vmatpush1.msra.mxu0 %v469
  %1473 = vmatprep.subr.mxu0 0.0
  %1474 = vmatpush1.msra.mxu0 %v470
  %1475 = vmatprep.subr.mxu0 0.0
  %1476 = vmatpush1.msra.mxu0 %v471
  %1477 = vmatprep.subr.mxu0 0.0
  %1478 = vmatpush1.msra.mxu0 %v472
  %1479 = vmatprep.subr.mxu0 0.0
  %1480 = vmatpush1.msra.mxu0 %v473
  %1481 = vmatprep.mubr.f32.mxu0 %v51
  %1482 = vmatmul.mubr.f32.gmra.mrb[0].mxu0 %v50
  %v1483 = vpop.f32.mrb[0].mxu0
  %v1484 = vadd.f32 %v1414, %v1483
  %v1485 = vpop.f32.mrb[0].mxu0
  %1486 = vdwg.mxu0
  %1487 = vmatprep.subr.mxu0 0.0
  %1488 = vmatpush1.msra.mxu0 %v474
  %1489 = vmatprep.subr.mxu0 0.0
  %1490 = vmatpush1.msra.mxu0 %v475
  %1491 = vmatprep.subr.mxu0 0.0
  %1492 = vmatpush1.msra.mxu0 %v476
  %1493 = vmatprep.subr.mxu0 0.0
  %1494 = vmatpush1.msra.mxu0 %v477
  %1495 = vmatprep.subr.mxu0 0.0
  %1496 = vmatpush1.msra.mxu0 %v478
  %1497 = vmatprep.subr.mxu0 0.0
  %1498 = vmatpush1.msra.mxu0 %v479
  %1499 = vmatprep.subr.mxu0 0.0
  %1500 = vmatpush1.msra.mxu0 %v480
  %1501 = vmatprep.subr.mxu0 0.0
  %1502 = vmatpush1.msra.mxu0 %v481
  %1503 = vmatprep.subr.mxu0 0.0
  %1504 = vmatpush1.msra.mxu0 %v482
  %1505 = vmatprep.subr.mxu0 0.0
  %1506 = vmatpush1.msra.mxu0 %v483
  %1507 = vmatprep.subr.mxu0 0.0
  %1508 = vmatpush1.msra.mxu0 %v484
  %1509 = vmatprep.subr.mxu0 0.0
  %1510 = vmatpush1.msra.mxu0 %v485
  %1511 = vmatprep.subr.mxu0 0.0
  %1512 = vmatpush1.msra.mxu0 %v486
  %1513 = vmatprep.subr.mxu0 0.0
  %1514 = vmatpush1.msra.mxu0 %v487
  %1515 = vmatprep.subr.mxu0 0.0
  %1516 = vmatpush1.msra.mxu0 %v488
  %1517 = vmatprep.subr.mxu0 0.0
  %1518 = vmatpush1.msra.mxu0 %v489
  %1519 = vmatprep.subr.mxu0 0.0
  %1520 = vmatpush1.msra.mxu0 %v490
  %1521 = vmatprep.subr.mxu0 0.0
  %1522 = vmatpush1.msra.mxu0 %v491
  %1523 = vmatprep.subr.mxu0 0.0
  %1524 = vmatpush1.msra.mxu0 %v492
  %1525 = vmatprep.subr.mxu0 0.0
  %1526 = vmatpush1.msra.mxu0 %v493
  %1527 = vmatprep.subr.mxu0 0.0
  %1528 = vmatpush1.msra.mxu0 %v494
  %1529 = vmatprep.subr.mxu0 0.0
  %1530 = vmatpush1.msra.mxu0 %v495
  %1531 = vmatprep.subr.mxu0 0.0
  %1532 = vmatpush1.msra.mxu0 %v496
  %1533 = vmatprep.subr.mxu0 0.0
  %1534 = vmatpush1.msra.mxu0 %v497
  %1535 = vmatprep.subr.mxu0 0.0
  %1536 = vmatpush1.msra.mxu0 %v498
  %1537 = vmatprep.subr.mxu0 0.0
  %1538 = vmatpush1.msra.mxu0 %v499
  %1539 = vmatprep.subr.mxu0 0.0
  %1540 = vmatpush1.msra.mxu0 %v500
  %1541 = vmatprep.subr.mxu0 0.0
  %1542 = vmatpush1.msra.mxu0 %v501
  %1543 = vmatprep.subr.mxu0 0.0
  %1544 = vmatpush1.msra.mxu0 %v502
  %1545 = vmatprep.subr.mxu0 0.0
  %1546 = vmatpush1.msra.mxu0 %v503
  %1547 = vmatprep.subr.mxu0 0.0
  %1548 = vmatpush1.msra.mxu0 %v504
  %1549 = vmatprep.subr.mxu0 0.0
  %1550 = vmatpush1.msra.mxu0 %v505
  %1551 = vmatprep.mubr.f32.mxu0 %v53
  %1552 = vmatmul.mubr.f32.gmra.mrb[0].mxu0 %v52
  %v1553 = vpop.f32.mrb[0].mxu0
  %v1554 = vadd.f32 %v1484, %v1553
  %v1555 = vpop.f32.mrb[0].mxu0
  %1556 = vdwg.mxu0
  %1557 = vmatprep.subr.mxu0 0.0
  %1558 = vmatpush1.msra.mxu0 %v506
  %1559 = vmatprep.subr.mxu0 0.0
  %1560 = vmatpush1.msra.mxu0 %v507
  %1561 = vmatprep.subr.mxu0 0.0
  %1562 = vmatpush1.msra.mxu0 %v508
  %1563 = vmatprep.subr.mxu0 0.0
  %1564 = vmatpush1.msra.mxu0 %v509
  %1565 = vmatprep.subr.mxu0 0.0
  %1566 = vmatpush1.msra.mxu0 %v510
  %1567 = vmatprep.subr.mxu0 0.0
  %1568 = vmatpush1.msra.mxu0 %v511
  %1569 = vmatprep.subr.mxu0 0.0
  %1570 = vmatpush1.msra.mxu0 %v512
  %1571 = vmatprep.subr.mxu0 0.0
  %1572 = vmatpush1.msra.mxu0 %v513
  %1573 = vmatprep.subr.mxu0 0.0
  %1574 = vmatpush1.msra.mxu0 %v514
  %1575 = vmatprep.subr.mxu0 0.0
  %1576 = vmatpush1.msra.mxu0 %v515
  %1577 = vmatprep.subr.mxu0 0.0
  %1578 = vmatpush1.msra.mxu0 %v516
  %1579 = vmatprep.subr.mxu0 0.0
  %1580 = vmatpush1.msra.mxu0 %v517
  %1581 = vmatprep.subr.mxu0 0.0
  %1582 = vmatpush1.msra.mxu0 %v518
  %1583 = vmatprep.subr.mxu0 0.0
  %1584 = vmatpush1.msra.mxu0 %v519
  %1585 = vmatprep.subr.mxu0 0.0
  %1586 = vmatpush1.msra.mxu0 %v520
  %1587 = vmatprep.subr.mxu0 0.0
  %1588 = vmatpush1.msra.mxu0 %v521
  %1589 = vmatprep.subr.mxu0 0.0
  %1590 = vmatpush1.msra.mxu0 %v522
  %1591 = vmatprep.subr.mxu0 0.0
  %1592 = vmatpush1.msra.mxu0 %v523
  %1593 = vmatprep.subr.mxu0 0.0
  %1594 = vmatpush1.msra.mxu0 %v524
  %1595 = vmatprep.subr.mxu0 0.0
  %1596 = vmatpush1.msra.mxu0 %v525
  %1597 = vmatprep.subr.mxu0 0.0
  %1598 = vmatpush1.msra.mxu0 %v526
  %1599 = vmatprep.subr.mxu0 0.0
  %1600 = vmatpush1.msra.mxu0 %v527
  %1601 = vmatprep.subr.mxu0 0.0
  %1602 = vmatpush1.msra.mxu0 %v528
  %1603 = vmatprep.subr.mxu0 0.0
  %1604 = vmatpush1.msra.mxu0 %v529
  %1605 = vmatprep.subr.mxu0 0.0
  %1606 = vmatpush1.msra.mxu0 %v530
  %1607 = vmatprep.subr.mxu0 0.0
  %1608 = vmatpush1.msra.mxu0 %v531
  %1609 = vmatprep.subr.mxu0 0.0
  %1610 = vmatpush1.msra.mxu0 %v532
  %1611 = vmatprep.subr.mxu0 0.0
  %1612 = vmatpush1.msra.mxu0 %v533
  %1613 = vmatprep.subr.mxu0 0.0
  %1614 = vmatpush1.msra.mxu0 %v534
  %1615 = vmatprep.subr.mxu0 0.0
  %1616 = vmatpush1.msra.mxu0 %v535
  %1617 = vmatprep.subr.mxu0 0.0
  %1618 = vmatpush1.msra.mxu0 %v536
  %1619 = vmatprep.subr.mxu0 0.0
  %1620 = vmatpush1.msra.mxu0 %v537
  %1621 = vmatprep.mubr.f32.mxu0 %v55
  %1622 = vmatmul.mubr.f32.gmra.mrb[0].mxu0 %v54
  %v1623 = vpop.f32.mrb[0].mxu0
  %v1624 = vadd.f32 %v1554, %v1623
  %v1625 = vpop.f32.mrb[0].mxu0
  %1626 = vdwg.mxu0
  %1627 = vmatprep.subr.mxu0 0.0
  %1628 = vmatpush1.msra.mxu0 %v538
  %1629 = vmatprep.subr.mxu0 0.0
  %1630 = vmatpush1.msra.mxu0 %v539
  %1631 = vmatprep.subr.mxu0 0.0
  %1632 = vmatpush1.msra.mxu0 %v540
  %1633 = vmatprep.subr.mxu0 0.0
  %1634 = vmatpush1.msra.mxu0 %v541
  %1635 = vmatprep.subr.mxu0 0.0
  %1636 = vmatpush1.msra.mxu0 %v542
  %1637 = vmatprep.subr.mxu0 0.0
  %1638 = vmatpush1.msra.mxu0 %v543
  %1639 = vmatprep.subr.mxu0 0.0
  %1640 = vmatpush1.msra.mxu0 %v544
  %1641 = vmatprep.subr.mxu0 0.0
  %1642 = vmatpush1.msra.mxu0 %v545
  %1643 = vmatprep.subr.mxu0 0.0
  %1644 = vmatpush1.msra.mxu0 %v546
  %1645 = vmatprep.subr.mxu0 0.0
  %1646 = vmatpush1.msra.mxu0 %v547
  %1647 = vmatprep.subr.mxu0 0.0
  %1648 = vmatpush1.msra.mxu0 %v548
  %1649 = vmatprep.subr.mxu0 0.0
  %1650 = vmatpush1.msra.mxu0 %v549
  %1651 = vmatprep.subr.mxu0 0.0
  %1652 = vmatpush1.msra.mxu0 %v550
  %1653 = vmatprep.subr.mxu0 0.0
  %1654 = vmatpush1.msra.mxu0 %v551
  %1655 = vmatprep.subr.mxu0 0.0
  %1656 = vmatpush1.msra.mxu0 %v552
  %1657 = vmatprep.subr.mxu0 0.0
  %1658 = vmatpush1.msra.mxu0 %v553
  %1659 = vmatprep.subr.mxu0 0.0
  %1660 = vmatpush1.msra.mxu0 %v554
  %1661 = vmatprep.subr.mxu0 0.0
  %1662 = vmatpush1.msra.mxu0 %v555
  %1663 = vmatprep.subr.mxu0 0.0
  %1664 = vmatpush1.msra.mxu0 %v556
  %1665 = vmatprep.subr.mxu0 0.0
  %1666 = vmatpush1.msra.mxu0 %v557
  %1667 = vmatprep.subr.mxu0 0.0
  %1668 = vmatpush1.msra.mxu0 %v558
  %1669 = vmatprep.subr.mxu0 0.0
  %1670 = vmatpush1.msra.mxu0 %v559
  %1671 = vmatprep.subr.mxu0 0.0
  %1672 = vmatpush1.msra.mxu0 %v560
  %1673 = vmatprep.subr.mxu0 0.0
  %1674 = vmatpush1.msra.mxu0 %v561
  %1675 = vmatprep.subr.mxu0 0.0
  %1676 = vmatpush1.msra.mxu0 %v562
  %1677 = vmatprep.subr.mxu0 0.0
  %1678 = vmatpush1.msra.mxu0 %v563
  %1679 = vmatprep.subr.mxu0 0.0
  %1680 = vmatpush1.msra.mxu0 %v564
  %1681 = vmatprep.subr.mxu0 0.0
  %1682 = vmatpush1.msra.mxu0 %v565
  %1683 = vmatprep.subr.mxu0 0.0
  %1684 = vmatpush1.msra.mxu0 %v566
  %1685 = vmatprep.subr.mxu0 0.0
  %1686 = vmatpush1.msra.mxu0 %v567
  %1687 = vmatprep.subr.mxu0 0.0
  %1688 = vmatpush1.msra.mxu0 %v568
  %1689 = vmatprep.subr.mxu0 0.0
  %1690 = vmatpush1.msra.mxu0 %v569
  %1691 = vmatprep.mubr.f32.mxu0 %v57
  %1692 = vmatmul.mubr.f32.gmra.mrb[0].mxu0 %v56
  %v1693 = vpop.f32.mrb[0].mxu0
  %v1694 = vadd.f32 %v1624, %v1693
  %v1695 = vpop.f32.mrb[0].mxu0
  %1696 = vdwg.mxu0
  %v1697 = vmax.f32 %v1694, 0.0
  %v1698 = vld [vmem:[%s3] sm:$0xff]
  %v1699 = vld [vmem:[%s3 + $0x8] sm:$0xff]
  %v1700 = vld [vmem:[%s3 + $0x10] sm:$0xff]
  %v1701 = vld [vmem:[%s3 + $0x18] sm:$0xff]
  %v1702 = vld [vmem:[%s3 + $0x20] sm:$0xff]
  %v1703 = vld [vmem:[%s3 + $0x28] sm:$0xff]
  %v1704 = vld [vmem:[%s3 + $0x30] sm:$0xff]
  %v1705 = vld [vmem:[%s3 + $0x38] sm:$0xff]
  %v1706 = vld [vmem:[%s3 + $0x40] sm:$0xff]
  %v1707 = vld [vmem:[%s3 + $0x48] sm:$0xff]
  %v1708 = vld [vmem:[%s3 + $0x50] sm:$0xff]
  %v1709 = vld [vmem:[%s3 + $0x58] sm:$0xff]
  %v1710 = vld [vmem:[%s3 + $0x60] sm:$0xff]
  %v1711 = vld [vmem:[%s3 + $0x68] sm:$0xff]
  %v1712 = vld [vmem:[%s3 + $0x70] sm:$0xff]
  %v1713 = vld [vmem:[%s3 + $0x78] sm:$0xff]
  %v1714 = vld [vmem:[%s4] sm:$0x1]
  %v1716 = vlaneseq
  %v1717 = vshrl.u32 %v1716, 7
  %v1718 = vsub.s32 0, %v1717
  %v1719 = vrot.slane %v1714, %v1718
  %1721 = vmatprep.subr.mxu0 0.0
  %1722 = vmatpush1.msra.mxu0 %v1698
  %1723 = vmatprep.subr.mxu0 0.0
  %1724 = vmatpush1.msra.mxu0 %v1699
  %1725 = vmatprep.subr.mxu0 0.0
  %1726 = vmatpush1.msra.mxu0 %v1700
  %1727 = vmatprep.subr.mxu0 0.0
  %1728 = vmatpush1.msra.mxu0 %v1701
  %1729 = vmatprep.subr.mxu0 0.0
  %1730 = vmatpush1.msra.mxu0 %v1702
  %1731 = vmatprep.subr.mxu0 0.0
  %1732 = vmatpush1.msra.mxu0 %v1703
  %1733 = vmatprep.subr.mxu0 0.0
  %1734 = vmatpush1.msra.mxu0 %v1704
  %1735 = vmatprep.subr.mxu0 0.0
  %1736 = vmatpush1.msra.mxu0 %v1705
  %1737 = vmatprep.subr.mxu0 0.0
  %1738 = vmatpush1.msra.mxu0 %v1706
  %1739 = vmatprep.subr.mxu0 0.0
  %1740 = vmatpush1.msra.mxu0 %v1707
  %1741 = vmatprep.subr.mxu0 0.0
  %1742 = vmatpush1.msra.mxu0 %v1708
  %1743 = vmatprep.subr.mxu0 0.0
  %1744 = vmatpush1.msra.mxu0 %v1709
  %1745 = vmatprep.subr.mxu0 0.0
  %1746 = vmatpush1.msra.mxu0 %v1710
  %1747 = vmatprep.subr.mxu0 0.0
  %1748 = vmatpush1.msra.mxu0 %v1711
  %1749 = vmatprep.subr.mxu0 0.0
  %1750 = vmatpush1.msra.mxu0 %v1712
  %1751 = vmatprep.subr.mxu0 0.0
  %1752 = vmatpush1.msra.mxu0 %v1713
  %1753 = vmatprep.subr.mxu0 0.0
  %1754 = vmatpush1.msra.mxu0 0.0
  %1755 = vmatprep.subr.mxu0 0.0
  %1756 = vmatpush1.msra.mxu0 0.0
  %1757 = vmatprep.subr.mxu0 0.0
  %1758 = vmatpush1.msra.mxu0 0.0
  %1759 = vmatprep.subr.mxu0 0.0
  %1760 = vmatpush1.msra.mxu0 0.0
  %1761 = vmatprep.subr.mxu0 0.0
  %1762 = vmatpush1.msra.mxu0 0.0
  %1763 = vmatprep.subr.mxu0 0.0
  %1764 = vmatpush1.msra.mxu0 0.0
  %1765 = vmatprep.subr.mxu0 0.0
  %1766 = vmatpush1.msra.mxu0 0.0
  %1767 = vmatprep.subr.mxu0 0.0
  %1768 = vmatpush1.msra.mxu0 0.0
  %1769 = vmatprep.subr.mxu0 0.0
  %1770 = vmatpush1.msra.mxu0 0.0
  %1771 = vmatprep.subr.mxu0 0.0
  %1772 = vmatpush1.msra.mxu0 0.0
  %1773 = vmatprep.subr.mxu0 0.0
  %1774 = vmatpush1.msra.mxu0 0.0
  %1775 = vmatprep.subr.mxu0 0.0
  %1776 = vmatpush1.msra.mxu0 0.0
  %1777 = vmatprep.subr.mxu0 0.0
  %1778 = vmatpush1.msra.mxu0 0.0
  %1779 = vmatprep.subr.mxu0 0.0
  %1780 = vmatpush1.msra.mxu0 0.0
  %1781 = vmatprep.subr.mxu0 0.0
  %1782 = vmatpush1.msra.mxu0 0.0
  %1783 = vmatprep.subr.mxu0 0.0
  %1784 = vmatpush1.msra.mxu0 0.0
  %1785 = vmatprep.mubr.f32.mxu0 0.0
  %1786 = vmatmul.mubr.f32.gmra.mrb[0].mxu0 %v1697
  %v1787 = vpop.f32.mrb[0].mxu0
  %v1788 = vadd.f32 %v1719, %v1787
  %v1789 = vpop.f32.mrb[0].mxu0
  %1790 = vdwg.mxu0
  %v1791 = vmax.f32 %v1788, 0.0
  %v1792 = vld [vmem:[%s5] sm:$0xff]
  %v1793 = vld [vmem:[%s5 + $0x8] sm:$0xff]
  %v1794 = vld [vmem:[%s5 + $0x10] sm:$0xff]
  %v1795 = vld [vmem:[%s5 + $0x18] sm:$0xff]
  %v1796 = vld [vmem:[%s5 + $0x20] sm:$0xff]
  %v1797 = vld [vmem:[%s5 + $0x28] sm:$0xff]
  %v1798 = vld [vmem:[%s5 + $0x30] sm:$0xff]
  %v1799 = vld [vmem:[%s5 + $0x38] sm:$0xff]
  %v1800 = vld [vmem:[%s5 + $0x40] sm:$0xff]
  %v1801 = vld [vmem:[%s5 + $0x48] sm:$0xff]
  %v1802 = vld [vmem:[%s5 + $0x50] sm:$0xff]
  %v1803 = vld [vmem:[%s5 + $0x58] sm:$0xff]
  %v1804 = vld [vmem:[%s5 + $0x60] sm:$0xff]
  %v1805 = vld [vmem:[%s5 + $0x68] sm:$0xff]
  %v1806 = vld [vmem:[%s5 + $0x70] sm:$0xff]
  %v1807 = vld [vmem:[%s5 + $0x78] sm:$0xff]
  %v1808 = vld [vmem:[%s6] sm:$0x1]
  %v1810 = vlaneseq
  %v1811 = vshrl.u32 %v1810, 7
  %v1812 = vsub.s32 0, %v1811
  %v1813 = vrot.slane %v1808, %v1812
  %1815 = vmatprep.subr.mxu0 0.0
  %1816 = vmatpush1.msra.mxu0 %v1792
  %1817 = vmatprep.subr.mxu0 0.0
  %1818 = vmatpush1.msra.mxu0 %v1793
  %1819 = vmatprep.subr.mxu0 0.0
  %1820 = vmatpush1.msra.mxu0 %v1794
  %1821 = vmatprep.subr.mxu0 0.0
  %1822 = vmatpush1.msra.mxu0 %v1795
  %1823 = vmatprep.subr.mxu0 0.0
  %1824 = vmatpush1.msra.mxu0 %v1796
  %1825 = vmatprep.subr.mxu0 0.0
  %1826 = vmatpush1.msra.mxu0 %v1797
  %1827 = vmatprep.subr.mxu0 0.0
  %1828 = vmatpush1.msra.mxu0 %v1798
  %1829 = vmatprep.subr.mxu0 0.0
  %1830 = vmatpush1.msra.mxu0 %v1799
  %1831 = vmatprep.subr.mxu0 0.0
  %1832 = vmatpush1.msra.mxu0 %v1800
  %1833 = vmatprep.subr.mxu0 0.0
  %1834 = vmatpush1.msra.mxu0 %v1801
  %1835 = vmatprep.subr.mxu0 0.0
  %1836 = vmatpush1.msra.mxu0 %v1802
  %1837 = vmatprep.subr.mxu0 0.0
  %1838 = vmatpush1.msra.mxu0 %v1803
  %1839 = vmatprep.subr.mxu0 0.0
  %1840 = vmatpush1.msra.mxu0 %v1804
  %1841 = vmatprep.subr.mxu0 0.0
  %1842 = vmatpush1.msra.mxu0 %v1805
  %1843 = vmatprep.subr.mxu0 0.0
  %1844 = vmatpush1.msra.mxu0 %v1806
  %1845 = vmatprep.subr.mxu0 0.0
  %1846 = vmatpush1.msra.mxu0 %v1807
  %1847 = vmatprep.subr.mxu0 0.0
  %1848 = vmatpush1.msra.mxu0 0.0
  %1849 = vmatprep.subr.mxu0 0.0
  %1850 = vmatpush1.msra.mxu0 0.0
  %1851 = vmatprep.subr.mxu0 0.0
  %1852 = vmatpush1.msra.mxu0 0.0
  %1853 = vmatprep.subr.mxu0 0.0
  %1854 = vmatpush1.msra.mxu0 0.0
  %1855 = vmatprep.subr.mxu0 0.0
  %1856 = vmatpush1.msra.mxu0 0.0
  %1857 = vmatprep.subr.mxu0 0.0
  %1858 = vmatpush1.msra.mxu0 0.0
  %1859 = vmatprep.subr.mxu0 0.0
  %1860 = vmatpush1.msra.mxu0 0.0
  %1861 = vmatprep.subr.mxu0 0.0
  %1862 = vmatpush1.msra.mxu0 0.0
  %1863 = vmatprep.subr.mxu0 0.0
  %1864 = vmatpush1.msra.mxu0 0.0
  %1865 = vmatprep.subr.mxu0 0.0
  %1866 = vmatpush1.msra.mxu0 0.0
  %1867 = vmatprep.subr.mxu0 0.0
  %1868 = vmatpush1.msra.mxu0 0.0
  %1869 = vmatprep.subr.mxu0 0.0
  %1870 = vmatpush1.msra.mxu0 0.0
  %1871 = vmatprep.subr.mxu0 0.0
  %1872 = vmatpush1.msra.mxu0 0.0
  %1873 = vmatprep.subr.mxu0 0.0
  %1874 = vmatpush1.msra.mxu0 0.0
  %1875 = vmatprep.subr.mxu0 0.0
  %1876 = vmatpush1.msra.mxu0 0.0
  %1877 = vmatprep.subr.mxu0 0.0
  %1878 = vmatpush1.msra.mxu0 0.0
  %1879 = vmatprep.mubr.f32.mxu0 0.0
  %1880 = vmatmul.mubr.f32.gmra.mrb[0].mxu0 %v1791
  %v1881 = vpop.f32.mrb[0].mxu0
  %v1882 = vadd.f32 %v1813, %v1881
  %v1883 = vpop.f32.mrb[0].mxu0
  %1884 = vdwg.mxu0
  %1885 = vst [vmem:[%s7] sm:$0xff] %v1882
  // Predicated region
  $region30: #{pilotnet_forward.9} parent=0 // pred_check
    _
  $region31: #{pilotnet_forward.9} parent=0 // pred_check_branch
    %1887 = sbr.rel (0) target = $region33
  $region32: #{pilotnet_forward.9} parent=0 // pred_region
    _
  $region33: #{pilotnet_forward.9} parent=0 // pred_fallthru
    _
  // Predicated region
  $region34: #{pilotnet_forward.9} parent=0 // pred_check
    _
  $region35: #{pilotnet_forward.9} parent=0 // pred_check_branch
    %1889 = sbr.rel (0) target = $region37
  $region36: #{pilotnet_forward.9} parent=0 // pred_region
    _
  $region37: #{pilotnet_forward.9} parent=0 // pred_fallthru
    _

// kernel: pilotnet_forward.8
$region0: #{pilotnet_forward.8}
  #allocation0 [shape = 'u32[]', space=smem, size = 0x4, offset = 0x4, fixed_abs, tag = 'smem constant byte address 0x4 - core index']
  #allocation1 [shape = 'u32[144,128]{1,0:T(1,128)}', space=vmem, size = 0x12000, scoped, tag = 'internal scratch']
  %s0 = inlined_call_operand.vmem [shape: f32[128,128], index: 0, kind: input, shape index: {}]
  %s1 = inlined_call_operand.vmem [shape: f32[9,128,64], index: 1, kind: input, shape index: {}]
  %s2 = inlined_call_operand.vmem [shape: f32[1,64], index: 2, kind: input, shape index: {}]
  %s3 = inlined_call_operand.vmem [shape: f32[9,64,64], index: 3, kind: input, shape index: {}]
  %s4 = inlined_call_operand.vmem [shape: f32[1,64], index: 4, kind: input, shape index: {}]
  %s5 = inlined_call_operand.vmem [shape: f32[128,64], index: 5, kind: output, shape index: {}]
  %s6 = sld [smem:[#allocation0]]
  $region53: #{pilotnet_forward.8} parent=0
    _
  %s8 = ssub.s32 1, %s6
  %s9 = scalar_select 0, %s8, %s6
  loop: start=0, step=1, limit=4
  $region2: #{pilotnet_forward.8} parent=0 // loop_pre_header
    _
  $region3: #{pilotnet_forward.8} parent=0 // loop_header
    %s11 = sphi 0, %s15
    %p12 = scmp.ge.s32.totalorder %s11, 4
    %s21 = sphi 0, %s23
    %s24 = sphi 0, %s21
    %s25 = sphi 0, %s24
    %s41 = sphi 0, %s25
    %s45 = sphi 0, %s45
    %s47 = sphi 0, %s45
    %s48 = sphi 0, %s47
    %s62 = sphi 0, %s48
    %s66 = sphi 0, %s66
    %s68 = sphi 0, %s66
    %s69 = sphi 0, %s68
    %s83 = sphi 0, %s69
    %s87 = sphi 0, %s87
    %s89 = sphi 0, %s87
    %s90 = sphi 0, %s89
    %s104 = sphi 0, %s90
    %s108 = sphi 0, %s108
    %s110 = sphi 0, %s108
    %s111 = sphi 0, %s110
    %s125 = sphi 0, %s111
    %s131 = sphi 0, %s133
    %s134 = sphi 0, %s131
    %s135 = sphi 0, %s134
    %s151 = sphi 0, %s135
  $region4: #{pilotnet_forward.8} parent=0 // loop_header_branch
    %14 = sbr.rel (%p12) target = $region8
  $region5: #{pilotnet_forward.8} parent=0 // loop_body
    %s16 = ssub.s32 %s11, 1
    %s17 = ssub.s32 %s11, 2
    %s18 = sadd.s32 %s11, 1
    %s19 = ssub.s32 %s11, %s18
    %p20 = scmp.eq.s32.totalorder %s19, 0
    %s22 = sadd.s32 %s21, 1
    %s23 = scalar_select %p20, %s21, %s22
    %p26 = pneg %p20
    %p27 = scmp.eq.s32.totalorder %s11, 1
    %p28 = por %p26, %p27
    %p29 = scmp.ne.s32.totalorder %s21, %s24
    %p30 = scmp.eq.s32.totalorder %s11, 0
    %p31 = por %p29, %p30
    %p32 = scmp.ne.s32.totalorder %s21, %s24
    %p33 = scmp.eq.s32.totalorder %s16, 1
    %p34 = por %p32, %p33
    %p35 = scmp.ne.s32.totalorder %s24, %s25
    %p36 = scmp.eq.s32.totalorder %s16, 0
    %p37 = por %p35, %p36
    %p38 = scmp.ne.s32.totalorder %s24, %s25
    %p39 = scmp.eq.s32.totalorder %s17, 1
    %p40 = por %p38, %p39
    %p42 = scmp.ne.s32.totalorder %s25, %s41
    %p43 = scmp.eq.s32.totalorder %s17, 0
    %p44 = por %p42, %p43
    %s46 = sadd.s32 %s45, 1
    %p49 = scmp.eq.s32.totalorder %s11, 1
    %p50 = scmp.ne.s32.totalorder %s45, %s47
    %p51 = scmp.eq.s32.totalorder %s11, 0
    %p52 = por %p50, %p51
    %p53 = scmp.ne.s32.totalorder %s45, %s47
    %p54 = scmp.eq.s32.totalorder %s16, 1
    %p55 = por %p53, %p54
    %p56 = scmp.ne.s32.totalorder %s47, %s48
    %p57 = scmp.eq.s32.totalorder %s16, 0
    %p58 = por %p56, %p57
    %p59 = scmp.ne.s32.totalorder %s47, %s48
    %p60 = scmp.eq.s32.totalorder %s17, 1
    %p61 = por %p59, %p60
    %p63 = scmp.ne.s32.totalorder %s48, %s62
    %p64 = scmp.eq.s32.totalorder %s17, 0
    %p65 = por %p63, %p64
    %s67 = sadd.s32 %s66, 1
    %p70 = scmp.eq.s32.totalorder %s11, 1
    %p71 = scmp.ne.s32.totalorder %s66, %s68
    %p72 = scmp.eq.s32.totalorder %s11, 0
    %p73 = por %p71, %p72
    %p74 = scmp.ne.s32.totalorder %s66, %s68
    %p75 = scmp.eq.s32.totalorder %s16, 1
    %p76 = por %p74, %p75
    %p77 = scmp.ne.s32.totalorder %s68, %s69
    %p78 = scmp.eq.s32.totalorder %s16, 0
    %p79 = por %p77, %p78
    %p80 = scmp.ne.s32.totalorder %s68, %s69
    %p81 = scmp.eq.s32.totalorder %s17, 1
    %p82 = por %p80, %p81
    %p84 = scmp.ne.s32.totalorder %s69, %s83
    %p85 = scmp.eq.s32.totalorder %s17, 0
    %p86 = por %p84, %p85
    %s88 = sadd.s32 %s87, 1
    %p91 = scmp.eq.s32.totalorder %s11, 1
    %p92 = scmp.ne.s32.totalorder %s87, %s89
    %p93 = scmp.eq.s32.totalorder %s11, 0
    %p94 = por %p92, %p93
    %p95 = scmp.ne.s32.totalorder %s87, %s89
    %p96 = scmp.eq.s32.totalorder %s16, 1
    %p97 = por %p95, %p96
    %p98 = scmp.ne.s32.totalorder %s89, %s90
    %p99 = scmp.eq.s32.totalorder %s16, 0
    %p100 = por %p98, %p99
    %p101 = scmp.ne.s32.totalorder %s89, %s90
    %p102 = scmp.eq.s32.totalorder %s17, 1
    %p103 = por %p101, %p102
    %p105 = scmp.ne.s32.totalorder %s90, %s104
    %p106 = scmp.eq.s32.totalorder %s17, 0
    %p107 = por %p105, %p106
    %s109 = sadd.s32 %s108, 1
    %p112 = scmp.eq.s32.totalorder %s11, 1
    %p113 = scmp.ne.s32.totalorder %s108, %s110
    %p114 = scmp.eq.s32.totalorder %s11, 0
    %p115 = por %p113, %p114
    %p116 = scmp.ne.s32.totalorder %s108, %s110
    %p117 = scmp.eq.s32.totalorder %s16, 1
    %p118 = por %p116, %p117
    %p119 = scmp.ne.s32.totalorder %s110, %s111
    %p120 = scmp.eq.s32.totalorder %s16, 0
    %p121 = por %p119, %p120
    %p122 = scmp.ne.s32.totalorder %s110, %s111
    %p123 = scmp.eq.s32.totalorder %s17, 1
    %p124 = por %p122, %p123
    %p126 = scmp.ne.s32.totalorder %s111, %s125
    %p127 = scmp.eq.s32.totalorder %s17, 0
    %p128 = por %p126, %p127
    %s129 = ssub.s32 %s11, %s18
    %p130 = scmp.eq.s32.totalorder %s129, 0
    %s132 = sadd.s32 %s131, 1
    %s133 = scalar_select %p130, %s131, %s132
    %p136 = pneg %p130
    %p137 = scmp.eq.s32.totalorder %s11, 1
    %p138 = por %p136, %p137
    %p139 = scmp.ne.s32.totalorder %s131, %s134
    %p140 = scmp.eq.s32.totalorder %s11, 0
    %p141 = por %p139, %p140
    %p142 = scmp.ne.s32.totalorder %s131, %s134
    %p143 = scmp.eq.s32.totalorder %s16, 1
    %p144 = por %p142, %p143
    %p145 = scmp.ne.s32.totalorder %s134, %s135
    %p146 = scmp.eq.s32.totalorder %s16, 0
    %p147 = por %p145, %p146
    %p148 = scmp.ne.s32.totalorder %s134, %s135
    %p149 = scmp.eq.s32.totalorder %s17, 1
    %p150 = por %p148, %p149
    %p152 = scmp.ne.s32.totalorder %s135, %s151
    %p153 = scmp.eq.s32.totalorder %s17, 0
    %p154 = por %p152, %p153
    %p155 = scmp.le.s32.totalorder 1, %s11
    %p156 = scmp.lt.s32.totalorder %s11, 3
    %p157 = pnand %p155, %p156
    %p158 = pneg %p157
    // Predicated region
    $region9: #{pilotnet_forward.8} parent=5 // pred_check
      _
    $region10: #{pilotnet_forward.8} parent=5 // pred_check_branch
      %160 = sbr.rel (%p157) target = $region12
    $region11: #{pilotnet_forward.8} parent=5 // pred_region
      %s161 = ssub.s32 %s11, 1
      // Predicated region
      $region13: #{pilotnet_forward.8} parent=11 // pred_check
        %p162 = pneg %p58
      $region14: #{pilotnet_forward.8} parent=11 // pred_check_branch
        %164 = sbr.rel (%p162) target = $region16
      $region15: #{pilotnet_forward.8} parent=11 // pred_region
        _
      $region16: #{pilotnet_forward.8} parent=11 // pred_fallthru
        _
      // Predicated region
      $region17: #{pilotnet_forward.8} parent=11 // pred_check
        %p165 = pneg %p79
      $region18: #{pilotnet_forward.8} parent=11 // pred_check_branch
        %167 = sbr.rel (%p165) target = $region20
      $region19: #{pilotnet_forward.8} parent=11 // pred_region
        _
      $region20: #{pilotnet_forward.8} parent=11 // pred_fallthru
        _
      // Predicated region
      $region21: #{pilotnet_forward.8} parent=11 // pred_check
        %p168 = pneg %p100
      $region22: #{pilotnet_forward.8} parent=11 // pred_check_branch
        %170 = sbr.rel (%p168) target = $region24
      $region23: #{pilotnet_forward.8} parent=11 // pred_region
        _
      $region24: #{pilotnet_forward.8} parent=11 // pred_fallthru
        _
      // Predicated region
      $region25: #{pilotnet_forward.8} parent=11 // pred_check
        %p171 = pneg %p121
      $region26: #{pilotnet_forward.8} parent=11 // pred_check_branch
        %173 = sbr.rel (%p171) target = $region28
      $region27: #{pilotnet_forward.8} parent=11 // pred_region
        _
      $region28: #{pilotnet_forward.8} parent=11 // pred_fallthru
        _
    $region12: #{pilotnet_forward.8} parent=5 // pred_fallthru
      _
    %p174 = scmp.lt.s32.totalorder %s11, 2
    // Predicated region
    $region29: #{pilotnet_forward.8} parent=5 // pred_check
      %p175 = pneg %p174
    $region30: #{pilotnet_forward.8} parent=5 // pred_check_branch
      %177 = sbr.rel (%p175) target = $region32
    $region31: #{pilotnet_forward.8} parent=5 // pred_region
      // Predicated region
      $region33: #{pilotnet_forward.8} parent=31 // pred_check
        %p178 = pneg %p31
      $region34: #{pilotnet_forward.8} parent=31 // pred_check_branch
        %180 = sbr.rel (%p178) target = $region36
      $region35: #{pilotnet_forward.8} parent=31 // pred_region
        %s181 = smul.u32 8, %s11
        %p182 = scmp.lt.s32.totalorder %s181, 15
        %s183 = scalar_select %p182, %s181, 15
        %s184 = smul.addr %s183, 8
        %s185 = scalar_lea.vmem %s0, %s184
        %s186 = smul.u32 8, %s11
      $region36: #{pilotnet_forward.8} parent=31 // pred_fallthru
        _
    $region32: #{pilotnet_forward.8} parent=5 // pred_fallthru
      _
    %p187 = scmp.le.s32.totalorder 1, %s11
    %p188 = scmp.lt.s32.totalorder %s11, 3
    %p189 = pnand %p187, %p188
    %p190 = pneg %p189
    // Predicated region
    $region37: #{pilotnet_forward.8} parent=5 // pred_check
      _
    $region38: #{pilotnet_forward.8} parent=5 // pred_check_branch
      %192 = sbr.rel (%p189) target = $region40
    $region39: #{pilotnet_forward.8} parent=5 // pred_region
      %s193 = ssub.s32 %s11, 1
      %s194 = smul.u32 8, %s16
      %p195 = scmp.lt.s32.totalorder %s194, 15
      %s196 = scalar_select %p195, %s194, 15
      %s197 = smul.addr %s196, 8
      %s198 = scalar_lea.vmem %s0, %s197
      %p199 = pneg %p37
      %p200 = pneg %p34
      %p201 = pneg %p58
      %p202 = pneg %p55
      %p203 = pneg %p79
      %p204 = pneg %p76
      %p205 = pneg %p100
      %p206 = pneg %p97
      %p207 = pneg %p121
      %p208 = pneg %p118
      %p209 = pneg %p147
      %p210 = pneg %p144
      %s211 = smul.u32 8, %s16
      %p212 = scmp.lt.s32.totalorder %s211, 15
      %s213 = scalar_select %p212, %s211, 15
      %s214 = smul.addr %s213, 8
      %s215 = scalar_lea.vmem %s5, %s214
      %s216 = smul.u32 8, %s16
      %p217 = scmp.lt.s32.totalorder %s216, 15
      %s218 = scalar_select %p217, %s216, 15
      %s219 = smul.addr %s218, 8
      %s220 = scalar_lea.vmem %s0, %s219
      %s221 = smul.u32 8, %s16
      %s222 = smul.u32 8, %s16
      %p223 = scmp.lt.s32.totalorder %s222, 15
      %s224 = scalar_select %p223, %s222, 15
      %s225 = smul.addr %s224, 8
      %s226 = scalar_lea.vmem %s5, %s225
      %s227 = smul.u32 8, %s16
      %v228 = vlaneseq
      %v229 = vshrl.u32 %v228, 7
      %v230 = vadd.s32 %v229, 8
      %v231 = vadd.s32 %v229, 16
      %v232 = vadd.s32 %v229, 24
      %v233 = vadd.s32 %v229, 32
      %v234 = vadd.s32 %v229, 40
      %v235 = vadd.s32 %v229, 48
      %v236 = vadd.s32 %v229, 56
      %vm237 = vcmp.lt.s32.totalorder %v229, 0
      %v238 = vsub.s32 0, %v229
      %v239 = vsel %vm237, %v238, %v229
      %v240 = vshrl.u32 %v239, 3
      %v241 = vand.u32 %v239, 7
      %v242 = vsub.s32 0, %v241
      %v243 = vsel %vm237, %v242, %v241
      %vm244 = vcmp.lt.s32.totalorder %v230, 0
      %v245 = vsub.s32 0, %v230
      %v246 = vsel %vm244, %v245, %v230
      %v247 = vshrl.u32 %v246, 3
      %v248 = vand.u32 %v246, 7
      %v249 = vsub.s32 0, %v248
      %v250 = vsel %vm244, %v249, %v248
      %vm251 = vcmp.lt.s32.totalorder %v231, 0
      %v252 = vsub.s32 0, %v231
      %v253 = vsel %vm251, %v252, %v231
      %v254 = vshrl.u32 %v253, 3
      %v255 = vand.u32 %v253, 7
      %v256 = vsub.s32 0, %v255
      %v257 = vsel %vm251, %v256, %v255
      %vm258 = vcmp.lt.s32.totalorder %v232, 0
      %v259 = vsub.s32 0, %v232
      %v260 = vsel %vm258, %v259, %v232
      %v261 = vshrl.u32 %v260, 3
      %v262 = vand.u32 %v260, 7
      %v263 = vsub.s32 0, %v262
      %v264 = vsel %vm258, %v263, %v262
      %vm265 = vcmp.lt.s32.totalorder %v233, 0
      %v266 = vsub.s32 0, %v233
      %v267 = vsel %vm265, %v266, %v233
      %v268 = vshrl.u32 %v267, 3
      %v269 = vand.u32 %v267, 7
      %v270 = vsub.s32 0, %v269
      %v271 = vsel %vm265, %v270, %v269
      %vm272 = vcmp.lt.s32.totalorder %v234, 0
      %v273 = vsub.s32 0, %v234
      %v274 = vsel %vm272, %v273, %v234
      %v275 = vshrl.u32 %v274, 3
      %v276 = vand.u32 %v274, 7
      %v277 = vsub.s32 0, %v276
      %v278 = vsel %vm272, %v277, %v276
      %vm279 = vcmp.lt.s32.totalorder %v235, 0
      %v280 = vsub.s32 0, %v235
      %v281 = vsel %vm279, %v280, %v235
      %v282 = vshrl.u32 %v281, 3
      %v283 = vand.u32 %v281, 7
      %v284 = vsub.s32 0, %v283
      %v285 = vsel %vm279, %v284, %v283
      %vm286 = vcmp.lt.s32.totalorder %v236, 0
      %v287 = vsub.s32 0, %v236
      %v288 = vsel %vm286, %v287, %v236
      %v289 = vshrl.u32 %v288, 3
      %v290 = vand.u32 %v288, 7
      %v291 = vsub.s32 0, %v290
      %v292 = vsel %vm286, %v291, %v290
      %vm293 = vcmp.ne.s32.totalorder %v243, 0
      %vm294 = vcmp.ne.s32.totalorder %v250, 0
      %vm295 = vcmp.ne.s32.totalorder %v257, 0
      %vm296 = vcmp.ne.s32.totalorder %v264, 0
      %vm297 = vcmp.ne.s32.totalorder %v271, 0
      %vm298 = vcmp.ne.s32.totalorder %v278, 0
      %vm299 = vcmp.ne.s32.totalorder %v285, 0
      %vm300 = vcmp.ne.s32.totalorder %v292, 0
      %vm301 = vcmp.lt.s32.totalorder %v243, 0
      %vm302 = vcmp.lt.s32.totalorder %v250, 0
      %vm303 = vcmp.lt.s32.totalorder %v257, 0
      %vm304 = vcmp.lt.s32.totalorder %v264, 0
      %vm305 = vcmp.lt.s32.totalorder %v271, 0
      %vm306 = vcmp.lt.s32.totalorder %v278, 0
      %vm307 = vcmp.lt.s32.totalorder %v285, 0
      %vm308 = vcmp.lt.s32.totalorder %v292, 0
      %vm309 = vmand %vm301, %vm293
      %vm310 = vmand %vm302, %vm294
      %vm311 = vmand %vm303, %vm295
      %vm312 = vmand %vm304, %vm296
      %vm313 = vmand %vm305, %vm297
      %vm314 = vmand %vm306, %vm298
      %vm315 = vmand %vm307, %vm299
      %vm316 = vmand %vm308, %vm300
      %v317 = vadd.s32 %v243, 8
      %v318 = vadd.s32 %v250, 8
      %v319 = vadd.s32 %v257, 8
      %v320 = vadd.s32 %v264, 8
      %v321 = vadd.s32 %v271, 8
      %v322 = vadd.s32 %v278, 8
      %v323 = vadd.s32 %v285, 8
      %v324 = vadd.s32 %v292, 8
      %v325 = vsel %vm309, %v317, %v243
      %v326 = vsel %vm310, %v318, %v250
      %v327 = vsel %vm311, %v319, %v257
      %v328 = vsel %vm312, %v320, %v264
      %v329 = vsel %vm313, %v321, %v271
      %v330 = vsel %vm314, %v322, %v278
      %v331 = vsel %vm315, %v323, %v285
      %v332 = vsel %vm316, %v324, %v292
      %v333 = vld [vmem:[%s220] sm:$0xff]
      %v334 = vld [vmem:[%s220 + $0x8] sm:$0xff]
      %v335 = vld [vmem:[%s220 + $0x10] sm:$0xff]
      %v336 = vld [vmem:[%s220 + $0x18] sm:$0xff]
      %v337 = vld [vmem:[%s220 + $0x20] sm:$0xff]
      %v338 = vld [vmem:[%s220 + $0x28] sm:$0xff]
      %v339 = vld [vmem:[%s220 + $0x30] sm:$0xff]
      %v340 = vld [vmem:[%s220 + $0x38] sm:$0xff]
      %v341 = vadd.s32 %v325, 4294967295
      %v342 = vadd.s32 %v326, 4294967295
      %v343 = vadd.s32 %v327, 4294967295
      %v344 = vadd.s32 %v328, 4294967295
      %v345 = vadd.s32 %v329, 4294967295
      %v346 = vadd.s32 %v330, 4294967295
      %v347 = vadd.s32 %v331, 4294967295
      %v348 = vadd.s32 %v332, 4294967295
      %vm349 = vcmp.ge.s32.totalorder %v341, 0
      %vm350 = vcmp.ge.s32.totalorder %v342, 0
      %vm351 = vcmp.ge.s32.totalorder %v343, 0
      %vm352 = vcmp.ge.s32.totalorder %v344, 0
      %vm353 = vcmp.ge.s32.totalorder %v345, 0
      %vm354 = vcmp.ge.s32.totalorder %v346, 0
      %vm355 = vcmp.ge.s32.totalorder %v347, 0
      %vm356 = vcmp.ge.s32.totalorder %v348, 0
      %vm357 = vcmp.le.s32.totalorder %v341, 7
      %vm358 = vcmp.le.s32.totalorder %v342, 7
      %vm359 = vcmp.le.s32.totalorder %v343, 7
      %vm360 = vcmp.le.s32.totalorder %v344, 7
      %vm361 = vcmp.le.s32.totalorder %v345, 7
      %vm362 = vcmp.le.s32.totalorder %v346, 7
      %vm363 = vcmp.le.s32.totalorder %v347, 7
      %vm364 = vcmp.le.s32.totalorder %v348, 7
      %vm365 = vmand %vm349, %vm357
      %vm366 = vmand %vm350, %vm358
      %vm367 = vmand %vm351, %vm359
      %vm368 = vmand %vm352, %vm360
      %vm369 = vmand %vm353, %vm361
      %vm370 = vmand %vm354, %vm362
      %vm371 = vmand %vm355, %vm363
      %vm372 = vmand %vm356, %vm364
      %v373 = vsel %vm365, 1, 0
      %v374 = vsel %vm366, 1, 0
      %v375 = vsel %vm367, 1, 0
      %v376 = vsel %vm368, 1, 0
      %v377 = vsel %vm369, 1, 0
      %v378 = vsel %vm370, 1, 0
      %v379 = vsel %vm371, 1, 0
      %v380 = vsel %vm372, 1, 0
      %vm381 = vcmp.eq.s32.totalorder %v373, 1
      %vm382 = vcmp.eq.s32.totalorder %v374, 1
      %vm383 = vcmp.eq.s32.totalorder %v375, 1
      %vm384 = vcmp.eq.s32.totalorder %v376, 1
      %vm385 = vcmp.eq.s32.totalorder %v377, 1
      %vm386 = vcmp.eq.s32.totalorder %v378, 1
      %vm387 = vcmp.eq.s32.totalorder %v379, 1
      %vm388 = vcmp.eq.s32.totalorder %v380, 1
      %vm397 = vcmask 1040384
      %v398 = vrot.slane 0.0, 7
      %v399 = vsel %vm397, %v398, %v398
      %v400 = vrot.slane %v333, 7
      %v401 = vsel %vm397, %v398, %v400
      %v402 = vrot.slane %v334, 7
      %v403 = vsel %vm397, %v400, %v402
      %v404 = vrot.slane %v335, 7
      %v405 = vsel %vm397, %v402, %v404
      %v406 = vrot.slane %v336, 7
      %v407 = vsel %vm397, %v404, %v406
      %v408 = vrot.slane %v337, 7
      %v409 = vsel %vm397, %v406, %v408
      %v410 = vrot.slane %v338, 7
      %v411 = vsel %vm397, %v408, %v410
      %v412 = vrot.slane %v339, 7
      %v413 = vsel %vm397, %v410, %v412
      %v422 = vsel %vm381, %v399, 0.0
      %v423 = vsel %vm382, %v401, 0.0
      %v424 = vsel %vm383, %v403, 0.0
      %v425 = vsel %vm384, %v405, 0.0
      %v426 = vsel %vm385, %v407, 0.0
      %v427 = vsel %vm386, %v409, 0.0
      %v428 = vsel %vm387, %v411, 0.0
      %v429 = vsel %vm388, %v413, 0.0
      %v430 = vld [vmem:[%s1] sm:$0xff]
      %v431 = vld [vmem:[%s1 + $0x8] sm:$0xff]
      %v432 = vld [vmem:[%s1 + $0x10] sm:$0xff]
      %v433 = vld [vmem:[%s1 + $0x18] sm:$0xff]
      %v434 = vld [vmem:[%s1 + $0x20] sm:$0xff]
      %v435 = vld [vmem:[%s1 + $0x28] sm:$0xff]
      %v436 = vld [vmem:[%s1 + $0x30] sm:$0xff]
      %v437 = vld [vmem:[%s1 + $0x38] sm:$0xff]
      %v438 = vld [vmem:[%s1 + $0x40] sm:$0xff]
      %v439 = vld [vmem:[%s1 + $0x48] sm:$0xff]
      %v440 = vld [vmem:[%s1 + $0x50] sm:$0xff]
      %v441 = vld [vmem:[%s1 + $0x58] sm:$0xff]
      %v442 = vld [vmem:[%s1 + $0x60] sm:$0xff]
      %v443 = vld [vmem:[%s1 + $0x68] sm:$0xff]
      %v444 = vld [vmem:[%s1 + $0x70] sm:$0xff]
      %v445 = vld [vmem:[%s1 + $0x78] sm:$0xff]
      %s446 = scalar_lea.vmem %s1, 128
      %v447 = vld [vmem:[%s446] sm:$0xff]
      %v448 = vld [vmem:[%s446 + $0x8] sm:$0xff]
      %v449 = vld [vmem:[%s446 + $0x10] sm:$0xff]
      %v450 = vld [vmem:[%s446 + $0x18] sm:$0xff]
      %v451 = vld [vmem:[%s446 + $0x20] sm:$0xff]
      %v452 = vld [vmem:[%s446 + $0x28] sm:$0xff]
      %v453 = vld [vmem:[%s446 + $0x30] sm:$0xff]
      %v454 = vld [vmem:[%s446 + $0x38] sm:$0xff]
      %v455 = vld [vmem:[%s446 + $0x40] sm:$0xff]
      %v456 = vld [vmem:[%s446 + $0x48] sm:$0xff]
      %v457 = vld [vmem:[%s446 + $0x50] sm:$0xff]
      %v458 = vld [vmem:[%s446 + $0x58] sm:$0xff]
      %v459 = vld [vmem:[%s446 + $0x60] sm:$0xff]
      %v460 = vld [vmem:[%s446 + $0x68] sm:$0xff]
      %v461 = vld [vmem:[%s446 + $0x70] sm:$0xff]
      %v462 = vld [vmem:[%s446 + $0x78] sm:$0xff]
      %463 = vmatprep.subr.mxu0 0.0
      %464 = vmatpush1.msra.mxu0 %v447
      %465 = vmatprep.subr.mxu0 0.0
      %466 = vmatpush1.msra.mxu0 %v448
      %467 = vmatprep.subr.mxu0 0.0
      %468 = vmatpush1.msra.mxu0 %v449
      %469 = vmatprep.subr.mxu0 0.0
      %470 = vmatpush1.msra.mxu0 %v450
      %471 = vmatprep.subr.mxu0 0.0
      %472 = vmatpush1.msra.mxu0 %v451
      %473 = vmatprep.subr.mxu0 0.0
      %474 = vmatpush1.msra.mxu0 %v452
      %475 = vmatprep.subr.mxu0 0.0
      %476 = vmatpush1.msra.mxu0 %v453
      %477 = vmatprep.subr.mxu0 0.0
      %478 = vmatpush1.msra.mxu0 %v454
      %479 = vmatprep.subr.mxu0 0.0
      %480 = vmatpush1.msra.mxu0 %v455
      %481 = vmatprep.subr.mxu0 0.0
      %482 = vmatpush1.msra.mxu0 %v456
      %483 = vmatprep.subr.mxu0 0.0
      %484 = vmatpush1.msra.mxu0 %v457
      %485 = vmatprep.subr.mxu0 0.0
      %486 = vmatpush1.msra.mxu0 %v458
      %487 = vmatprep.subr.mxu0 0.0
      %488 = vmatpush1.msra.mxu0 %v459
      %489 = vmatprep.subr.mxu0 0.0
      %490 = vmatpush1.msra.mxu0 %v460
      %491 = vmatprep.subr.mxu0 0.0
      %492 = vmatpush1.msra.mxu0 %v461
      %493 = vmatprep.subr.mxu0 0.0
      %494 = vmatpush1.msra.mxu0 %v462
      %495 = vmatprep.subr.mxu0 0.0
      %496 = vmatpush1.msra.mxu0 0.0
      %497 = vmatprep.subr.mxu0 0.0
      %498 = vmatpush1.msra.mxu0 0.0
      %499 = vmatprep.subr.mxu0 0.0
      %500 = vmatpush1.msra.mxu0 0.0
      %501 = vmatprep.subr.mxu0 0.0
      %502 = vmatpush1.msra.mxu0 0.0
      %503 = vmatprep.subr.mxu0 0.0
      %504 = vmatpush1.msra.mxu0 0.0
      %505 = vmatprep.subr.mxu0 0.0
      %506 = vmatpush1.msra.mxu0 0.0
      %507 = vmatprep.subr.mxu0 0.0
      %508 = vmatpush1.msra.mxu0 0.0
      %509 = vmatprep.subr.mxu0 0.0
      %510 = vmatpush1.msra.mxu0 0.0
      %511 = vmatprep.subr.mxu0 0.0
      %512 = vmatpush1.msra.mxu0 0.0
      %513 = vmatprep.subr.mxu0 0.0
      %514 = vmatpush1.msra.mxu0 0.0
      %515 = vmatprep.subr.mxu0 0.0
      %516 = vmatpush1.msra.mxu0 0.0
      %517 = vmatprep.subr.mxu0 0.0
      %518 = vmatpush1.msra.mxu0 0.0
      %519 = vmatprep.subr.mxu0 0.0
      %520 = vmatpush1.msra.mxu0 0.0
      %521 = vmatprep.subr.mxu0 0.0
      %522 = vmatpush1.msra.mxu0 0.0
      %523 = vmatprep.subr.mxu0 0.0
      %524 = vmatpush1.msra.mxu0 0.0
      %525 = vmatprep.subr.mxu0 0.0
      %526 = vmatpush1.msra.mxu0 0.0
      %527 = vmatprep.mubr.f32.mxu0 0.0
      %528 = vmatmul.mubr.f32.gmra.mrb[0].mxu0 0.0
      %v529 = vpop.f32.mrb[0].mxu0
      %v530 = vadd.f32 0.0, %v529
      %v531 = vpop.f32.mrb[0].mxu0
      %532 = vmatprep.mubr.f32.mxu0 0.0
      %533 = vmatmul.mubr.f32.gmra.mrb[0].mxu0 %v333
      %v534 = vpop.f32.mrb[0].mxu0
      %v535 = vadd.f32 0.0, %v534
      %v536 = vpop.f32.mrb[0].mxu0
      %537 = vmatprep.mubr.f32.mxu0 0.0
      %538 = vmatmul.mubr.f32.gmra.mrb[0].mxu0 %v334
      %v539 = vpop.f32.mrb[0].mxu0
      %v540 = vadd.f32 0.0, %v539
      %v541 = vpop.f32.mrb[0].mxu0
      %542 = vmatprep.mubr.f32.mxu0 0.0
      %543 = vmatmul.mubr.f32.gmra.mrb[0].mxu0 %v335
      %v544 = vpop.f32.mrb[0].mxu0
      %v545 = vadd.f32 0.0, %v544
      %v546 = vpop.f32.mrb[0].mxu0
      %547 = vmatprep.mubr.f32.mxu0 0.0
      %548 = vmatmul.mubr.f32.gmra.mrb[0].mxu0 %v336
      %v549 = vpop.f32.mrb[0].mxu0
      %v550 = vadd.f32 0.0, %v549
      %v551 = vpop.f32.mrb[0].mxu0
      %552 = vmatprep.mubr.f32.mxu0 0.0
      %553 = vmatmul.mubr.f32.gmra.mrb[0].mxu0 %v337
      %v554 = vpop.f32.mrb[0].mxu0
      %v555 = vadd.f32 0.0, %v554
      %v556 = vpop.f32.mrb[0].mxu0
      %557 = vmatprep.mubr.f32.mxu0 0.0
      %558 = vmatmul.mubr.f32.gmra.mrb[0].mxu0 %v338
      %v559 = vpop.f32.mrb[0].mxu0
      %v560 = vadd.f32 0.0, %v559
      %v561 = vpop.f32.mrb[0].mxu0
      %562 = vmatprep.mubr.f32.mxu0 0.0
      %563 = vmatmul.mubr.f32.gmra.mrb[0].mxu0 %v339
      %v564 = vpop.f32.mrb[0].mxu0
      %v565 = vadd.f32 0.0, %v564
      %v566 = vpop.f32.mrb[0].mxu0
      %567 = vdwg.mxu0
      %568 = vmatprep.subr.mxu0 0.0
      %569 = vmatpush1.msra.mxu0 %v430
      %570 = vmatprep.subr.mxu0 0.0
      %571 = vmatpush1.msra.mxu0 %v431
      %572 = vmatprep.subr.mxu0 0.0
      %573 = vmatpush1.msra.mxu0 %v432
      %574 = vmatprep.subr.mxu0 0.0
      %575 = vmatpush1.msra.mxu0 %v433
      %576 = vmatprep.subr.mxu0 0.0
      %577 = vmatpush1.msra.mxu0 %v434
      %578 = vmatprep.subr.mxu0 0.0
      %579 = vmatpush1.msra.mxu0 %v435
      %580 = vmatprep.subr.mxu0 0.0
      %581 = vmatpush1.msra.mxu0 %v436
      %582 = vmatprep.subr.mxu0 0.0
      %583 = vmatpush1.msra.mxu0 %v437
      %584 = vmatprep.subr.mxu0 0.0
      %585 = vmatpush1.msra.mxu0 %v438
      %586 = vmatprep.subr.mxu0 0.0
      %587 = vmatpush1.msra.mxu0 %v439
      %588 = vmatprep.subr.mxu0 0.0
      %589 = vmatpush1.msra.mxu0 %v440
      %590 = vmatprep.subr.mxu0 0.0
      %591 = vmatpush1.msra.mxu0 %v441
      %592 = vmatprep.subr.mxu0 0.0
      %593 = vmatpush1.msra.mxu0 %v442
      %594 = vmatprep.subr.mxu0 0.0
      %595 = vmatpush1.msra.mxu0 %v443
      %596 = vmatprep.subr.mxu0 0.0
      %597 = vmatpush1.msra.mxu0 %v444
      %598 = vmatprep.subr.mxu0 0.0
      %599 = vmatpush1.msra.mxu0 %v445
      %600 = vmatprep.subr.mxu0 0.0
      %601 = vmatpush1.msra.mxu0 0.0
      %602 = vmatprep.subr.mxu0 0.0
      %603 = vmatpush1.msra.mxu0 0.0
      %604 = vmatprep.subr.mxu0 0.0
      %605 = vmatpush1.msra.mxu0 0.0
      %606 = vmatprep.subr.mxu0 0.0
      %607 = vmatpush1.msra.mxu0 0.0
      %608 = vmatprep.subr.mxu0 0.0
      %609 = vmatpush1.msra.mxu0 0.0
      %610 = vmatprep.subr.mxu0 0.0
      %611 = vmatpush1.msra.mxu0 0.0
      %612 = vmatprep.subr.mxu0 0.0
      %613 = vmatpush1.msra.mxu0 0.0
      %614 = vmatprep.subr.mxu0 0.0
      %615 = vmatpush1.msra.mxu0 0.0
      %616 = vmatprep.subr.mxu0 0.0
      %617 = vmatpush1.msra.mxu0 0.0
      %618 = vmatprep.subr.mxu0 0.0
      %619 = vmatpush1.msra.mxu0 0.0
      %620 = vmatprep.subr.mxu0 0.0
      %621 = vmatpush1.msra.mxu0 0.0
      %622 = vmatprep.subr.mxu0 0.0
      %623 = vmatpush1.msra.mxu0 0.0
      %624 = vmatprep.subr.mxu0 0.0
      %625 = vmatpush1.msra.mxu0 0.0
      %626 = vmatprep.subr.mxu0 0.0
      %627 = vmatpush1.msra.mxu0 0.0
      %628 = vmatprep.subr.mxu0 0.0
      %629 = vmatpush1.msra.mxu0 0.0
      %630 = vmatprep.subr.mxu0 0.0
      %631 = vmatpush1.msra.mxu0 0.0
      %632 = vmatprep.mubr.f32.mxu0 0.0
      %633 = vmatmul.mubr.f32.gmra.mrb[0].mxu0 %v422
      %v634 = vpop.f32.mrb[0].mxu0
      %v635 = vadd.f32 %v530, %v634
      %v636 = vpop.f32.mrb[0].mxu0
      %637 = vmatprep.mubr.f32.mxu0 0.0
      %638 = vmatmul.mubr.f32.gmra.mrb[0].mxu0 %v423
      %v639 = vpop.f32.mrb[0].mxu0
      %v640 = vadd.f32 %v535, %v639
      %v641 = vpop.f32.mrb[0].mxu0
      %642 = vmatprep.mubr.f32.mxu0 0.0
      %643 = vmatmul.mubr.f32.gmra.mrb[0].mxu0 %v424
      %v644 = vpop.f32.mrb[0].mxu0
      %v645 = vadd.f32 %v540, %v644
      %v646 = vpop.f32.mrb[0].mxu0
      %647 = vmatprep.mubr.f32.mxu0 0.0
      %648 = vmatmul.mubr.f32.gmra.mrb[0].mxu0 %v425
      %v649 = vpop.f32.mrb[0].mxu0
      %v650 = vadd.f32 %v545, %v649
      %v651 = vpop.f32.mrb[0].mxu0
      %652 = vmatprep.mubr.f32.mxu0 0.0
      %653 = vmatmul.mubr.f32.gmra.mrb[0].mxu0 %v426
      %v654 = vpop.f32.mrb[0].mxu0
      %v655 = vadd.f32 %v550, %v654
      %v656 = vpop.f32.mrb[0].mxu0
      %657 = vmatprep.mubr.f32.mxu0 0.0
      %658 = vmatmul.mubr.f32.gmra.mrb[0].mxu0 %v427
      %v659 = vpop.f32.mrb[0].mxu0
      %v660 = vadd.f32 %v555, %v659
      %v661 = vpop.f32.mrb[0].mxu0
      %662 = vmatprep.mubr.f32.mxu0 0.0
      %663 = vmatmul.mubr.f32.gmra.mrb[0].mxu0 %v428
      %v664 = vpop.f32.mrb[0].mxu0
      %v665 = vadd.f32 %v560, %v664
      %v666 = vpop.f32.mrb[0].mxu0
      %667 = vmatprep.mubr.f32.mxu0 0.0
      %668 = vmatmul.mubr.f32.gmra.mrb[0].mxu0 %v429
      %v669 = vpop.f32.mrb[0].mxu0
      %v670 = vadd.f32 %v565, %v669
      %v671 = vpop.f32.mrb[0].mxu0
      %672 = vdwg.mxu0
      %v673 = vadd.s32 %v325, 1
      %v674 = vadd.s32 %v326, 1
      %v675 = vadd.s32 %v327, 1
      %v676 = vadd.s32 %v328, 1
      %v677 = vadd.s32 %v329, 1
      %v678 = vadd.s32 %v330, 1
      %v679 = vadd.s32 %v331, 1
      %v680 = vadd.s32 %v332, 1
      %vm681 = vcmp.ge.s32.totalorder %v673, 0
      %vm682 = vcmp.ge.s32.totalorder %v674, 0
      %vm683 = vcmp.ge.s32.totalorder %v675, 0
      %vm684 = vcmp.ge.s32.totalorder %v676, 0
      %vm685 = vcmp.ge.s32.totalorder %v677, 0
      %vm686 = vcmp.ge.s32.totalorder %v678, 0
      %vm687 = vcmp.ge.s32.totalorder %v679, 0
      %vm688 = vcmp.ge.s32.totalorder %v680, 0
      %vm689 = vcmp.le.s32.totalorder %v673, 7
      %vm690 = vcmp.le.s32.totalorder %v674, 7
      %vm691 = vcmp.le.s32.totalorder %v675, 7
      %vm692 = vcmp.le.s32.totalorder %v676, 7
      %vm693 = vcmp.le.s32.totalorder %v677, 7
      %vm694 = vcmp.le.s32.totalorder %v678, 7
      %vm695 = vcmp.le.s32.totalorder %v679, 7
      %vm696 = vcmp.le.s32.totalorder %v680, 7
      %vm697 = vmand %vm681, %vm689
      %vm698 = vmand %vm682, %vm690
      %vm699 = vmand %vm683, %vm691
      %vm700 = vmand %vm684, %vm692
      %vm701 = vmand %vm685, %vm693
      %vm702 = vmand %vm686, %vm694
      %vm703 = vmand %vm687, %vm695
      %vm704 = vmand %vm688, %vm696
      %v705 = vsel %vm697, 1, 0
      %v706 = vsel %vm698, 1, 0
      %v707 = vsel %vm699, 1, 0
      %v708 = vsel %vm700, 1, 0
      %v709 = vsel %vm701, 1, 0
      %v710 = vsel %vm702, 1, 0
      %v711 = vsel %vm703, 1, 0
      %v712 = vsel %vm704, 1, 0
      %vm713 = vcmp.eq.s32.totalorder %v705, 1
      %vm714 = vcmp.eq.s32.totalorder %v706, 1
      %vm715 = vcmp.eq.s32.totalorder %v707, 1
      %vm716 = vcmp.eq.s32.totalorder %v708, 1
      %vm717 = vcmp.eq.s32.totalorder %v709, 1
      %vm718 = vcmp.eq.s32.totalorder %v710, 1
      %vm719 = vcmp.eq.s32.totalorder %v711, 1
      %vm720 = vcmp.eq.s32.totalorder %v712, 1
      %vm722 = vcmask 1046528
      %v723 = vrot.slane 0.0, 1
      %v724 = vrot.slane %v333, 1
      %v725 = vsel %vm722, %v723, %v724
      %v726 = vrot.slane %v334, 1
      %v727 = vsel %vm722, %v724, %v726
      %v728 = vrot.slane %v335, 1
      %v729 = vsel %vm722, %v726, %v728
      %v730 = vrot.slane %v336, 1
      %v731 = vsel %vm722, %v728, %v730
      %v732 = vrot.slane %v337, 1
      %v733 = vsel %vm722, %v730, %v732
      %v734 = vrot.slane %v338, 1
      %v735 = vsel %vm722, %v732, %v734
      %v736 = vrot.slane %v339, 1
      %v737 = vsel %vm722, %v734, %v736
      %v738 = vrot.slane %v340, 1
      %v739 = vsel %vm722, %v736, %v738
      %v748 = vsel %vm713, %v725, 0.0
      %v749 = vsel %vm714, %v727, 0.0
      %v750 = vsel %vm715, %v729, 0.0
      %v751 = vsel %vm716, %v731, 0.0
      %v752 = vsel %vm717, %v733, 0.0
      %v753 = vsel %vm718, %v735, 0.0
      %v754 = vsel %vm719, %v737, 0.0
      %v755 = vsel %vm720, %v739, 0.0
      %s756 = scalar_lea.vmem %s1, 256
      %v757 = vld [vmem:[%s756] sm:$0xff]
      %v758 = vld [vmem:[%s756 + $0x8] sm:$0xff]
      %v759 = vld [vmem:[%s756 + $0x10] sm:$0xff]
      %v760 = vld [vmem:[%s756 + $0x18] sm:$0xff]
      %v761 = vld [vmem:[%s756 + $0x20] sm:$0xff]
      %v762 = vld [vmem:[%s756 + $0x28] sm:$0xff]
      %v763 = vld [vmem:[%s756 + $0x30] sm:$0xff]
      %v764 = vld [vmem:[%s756 + $0x38] sm:$0xff]
      %v765 = vld [vmem:[%s756 + $0x40] sm:$0xff]
      %v766 = vld [vmem:[%s756 + $0x48] sm:$0xff]
      %v767 = vld [vmem:[%s756 + $0x50] sm:$0xff]
      %v768 = vld [vmem:[%s756 + $0x58] sm:$0xff]
      %v769 = vld [vmem:[%s756 + $0x60] sm:$0xff]
      %v770 = vld [vmem:[%s756 + $0x68] sm:$0xff]
      %v771 = vld [vmem:[%s756 + $0x70] sm:$0xff]
      %v772 = vld [vmem:[%s756 + $0x78] sm:$0xff]
      %773 = vmatprep.subr.mxu0 0.0
      %774 = vmatpush1.msra.mxu0 %v757
      %775 = vmatprep.subr.mxu0 0.0
      %776 = vmatpush1.msra.mxu0 %v758
      %777 = vmatprep.subr.mxu0 0.0
      %778 = vmatpush1.msra.mxu0 %v759
      %779 = vmatprep.subr.mxu0 0.0
      %780 = vmatpush1.msra.mxu0 %v760
      %781 = vmatprep.subr.mxu0 0.0
      %782 = vmatpush1.msra.mxu0 %v761
      %783 = vmatprep.subr.mxu0 0.0
      %784 = vmatpush1.msra.mxu0 %v762
      %785 = vmatprep.subr.mxu0 0.0
      %786 = vmatpush1.msra.mxu0 %v763
      %787 = vmatprep.subr.mxu0 0.0
      %788 = vmatpush1.msra.mxu0 %v764
      %789 = vmatprep.subr.mxu0 0.0
      %790 = vmatpush1.msra.mxu0 %v765
      %791 = vmatprep.subr.mxu0 0.0
      %792 = vmatpush1.msra.mxu0 %v766
      %793 = vmatprep.subr.mxu0 0.0
      %794 = vmatpush1.msra.mxu0 %v767
      %795 = vmatprep.subr.mxu0 0.0
      %796 = vmatpush1.msra.mxu0 %v768
      %797 = vmatprep.subr.mxu0 0.0
      %798 = vmatpush1.msra.mxu0 %v769
      %799 = vmatprep.subr.mxu0 0.0
      %800 = vmatpush1.msra.mxu0 %v770
      %801 = vmatprep.subr.mxu0 0.0
      %802 = vmatpush1.msra.mxu0 %v771
      %803 = vmatprep.subr.mxu0 0.0
      %804 = vmatpush1.msra.mxu0 %v772
      %805 = vmatprep.subr.mxu0 0.0
      %806 = vmatpush1.msra.mxu0 0.0
      %807 = vmatprep.subr.mxu0 0.0
      %808 = vmatpush1.msra.mxu0 0.0
      %809 = vmatprep.subr.mxu0 0.0
      %810 = vmatpush1.msra.mxu0 0.0
      %811 = vmatprep.subr.mxu0 0.0
      %812 = vmatpush1.msra.mxu0 0.0
      %813 = vmatprep.subr.mxu0 0.0
      %814 = vmatpush1.msra.mxu0 0.0
      %815 = vmatprep.subr.mxu0 0.0
      %816 = vmatpush1.msra.mxu0 0.0
      %817 = vmatprep.subr.mxu0 0.0
      %818 = vmatpush1.msra.mxu0 0.0
      %819 = vmatprep.subr.mxu0 0.0
      %820 = vmatpush1.msra.mxu0 0.0
      %821 = vmatprep.subr.mxu0 0.0
      %822 = vmatpush1.msra.mxu0 0.0
      %823 = vmatprep.subr.mxu0 0.0
      %824 = vmatpush1.msra.mxu0 0.0
      %825 = vmatprep.subr.mxu0 0.0
      %826 = vmatpush1.msra.mxu0 0.0
      %827 = vmatprep.subr.mxu0 0.0
      %828 = vmatpush1.msra.mxu0 0.0
      %829 = vmatprep.subr.mxu0 0.0
      %830 = vmatpush1.msra.mxu0 0.0
      %831 = vmatprep.subr.mxu0 0.0
      %832 = vmatpush1.msra.mxu0 0.0
      %833 = vmatprep.subr.mxu0 0.0
      %834 = vmatpush1.msra.mxu0 0.0
      %835 = vmatprep.subr.mxu0 0.0
      %836 = vmatpush1.msra.mxu0 0.0
      %837 = vmatprep.mubr.f32.mxu0 0.0
      %838 = vmatmul.mubr.f32.gmra.mrb[0].mxu0 %v748
      %v839 = vpop.f32.mrb[0].mxu0
      %v840 = vadd.f32 0.0, %v839
      %v841 = vpop.f32.mrb[0].mxu0
      %842 = vmatprep.mubr.f32.mxu0 0.0
      %843 = vmatmul.mubr.f32.gmra.mrb[0].mxu0 %v749
      %v844 = vpop.f32.mrb[0].mxu0
      %v845 = vadd.f32 0.0, %v844
      %v846 = vpop.f32.mrb[0].mxu0
      %847 = vmatprep.mubr.f32.mxu0 0.0
      %848 = vmatmul.mubr.f32.gmra.mrb[0].mxu0 %v750
      %v849 = vpop.f32.mrb[0].mxu0
      %v850 = vadd.f32 0.0, %v849
      %v851 = vpop.f32.mrb[0].mxu0
      %852 = vmatprep.mubr.f32.mxu0 0.0
      %853 = vmatmul.mubr.f32.gmra.mrb[0].mxu0 %v751
      %v854 = vpop.f32.mrb[0].mxu0
      %v855 = vadd.f32 0.0, %v854
      %v856 = vpop.f32.mrb[0].mxu0
      %857 = vmatprep.mubr.f32.mxu0 0.0
      %858 = vmatmul.mubr.f32.gmra.mrb[0].mxu0 %v752
      %v859 = vpop.f32.mrb[0].mxu0
      %v860 = vadd.f32 0.0, %v859
      %v861 = vpop.f32.mrb[0].mxu0
      %862 = vmatprep.mubr.f32.mxu0 0.0
      %863 = vmatmul.mubr.f32.gmra.mrb[0].mxu0 %v753
      %v864 = vpop.f32.mrb[0].mxu0
      %v865 = vadd.f32 0.0, %v864
      %v866 = vpop.f32.mrb[0].mxu0
      %867 = vmatprep.mubr.f32.mxu0 0.0
      %868 = vmatmul.mubr.f32.gmra.mrb[0].mxu0 %v754
      %v869 = vpop.f32.mrb[0].mxu0
      %v870 = vadd.f32 0.0, %v869
      %v871 = vpop.f32.mrb[0].mxu0
      %872 = vmatprep.mubr.f32.mxu0 0.0
      %873 = vmatmul.mubr.f32.gmra.mrb[0].mxu0 %v755
      %v874 = vpop.f32.mrb[0].mxu0
      %v875 = vadd.f32 0.0, %v874
      %v876 = vpop.f32.mrb[0].mxu0
      %877 = vdwg.mxu0
      %v878 = vadd.f32 %v635, %v840
      %v879 = vadd.f32 %v640, %v845
      %v880 = vadd.f32 %v645, %v850
      %v881 = vadd.f32 %v650, %v855
      %v882 = vadd.f32 %v655, %v860
      %v883 = vadd.f32 %v660, %v865
      %v884 = vadd.f32 %v665, %v870
      %v885 = vadd.f32 %v670, %v875
      %v886 = vrot.slane %v340, 7
      %v887 = vsel %vm397, %v412, %v886
      %v889 = vsel %vm381, %v401, 0.0
      %v890 = vsel %vm382, %v403, 0.0
      %v891 = vsel %vm383, %v405, 0.0
      %v892 = vsel %vm384, %v407, 0.0
      %v893 = vsel %vm385, %v409, 0.0
      %v894 = vsel %vm386, %v411, 0.0
      %v895 = vsel %vm387, %v413, 0.0
      %v896 = vsel %vm388, %v887, 0.0
      %s897 = scalar_lea.vmem %s1, 384
      %v898 = vld [vmem:[%s897] sm:$0xff]
      %v899 = vld [vmem:[%s897 + $0x8] sm:$0xff]
      %v900 = vld [vmem:[%s897 + $0x10] sm:$0xff]
      %v901 = vld [vmem:[%s897 + $0x18] sm:$0xff]
      %v902 = vld [vmem:[%s897 + $0x20] sm:$0xff]
      %v903 = vld [vmem:[%s897 + $0x28] sm:$0xff]
      %v904 = vld [vmem:[%s897 + $0x30] sm:$0xff]
      %v905 = vld [vmem:[%s897 + $0x38] sm:$0xff]
      %v906 = vld [vmem:[%s897 + $0x40] sm:$0xff]
      %v907 = vld [vmem:[%s897 + $0x48] sm:$0xff]
      %v908 = vld [vmem:[%s897 + $0x50] sm:$0xff]
      %v909 = vld [vmem:[%s897 + $0x58] sm:$0xff]
      %v910 = vld [vmem:[%s897 + $0x60] sm:$0xff]
      %v911 = vld [vmem:[%s897 + $0x68] sm:$0xff]
      %v912 = vld [vmem:[%s897 + $0x70] sm:$0xff]
      %v913 = vld [vmem:[%s897 + $0x78] sm:$0xff]
      %914 = vmatprep.subr.mxu0 0.0
      %915 = vmatpush1.msra.mxu0 %v898
      %916 = vmatprep.subr.mxu0 0.0
      %917 = vmatpush1.msra.mxu0 %v899
      %918 = vmatprep.subr.mxu0 0.0
      %919 = vmatpush1.msra.mxu0 %v900
      %920 = vmatprep.subr.mxu0 0.0
      %921 = vmatpush1.msra.mxu0 %v901
      %922 = vmatprep.subr.mxu0 0.0
      %923 = vmatpush1.msra.mxu0 %v902
      %924 = vmatprep.subr.mxu0 0.0
      %925 = vmatpush1.msra.mxu0 %v903
      %926 = vmatprep.subr.mxu0 0.0
      %927 = vmatpush1.msra.mxu0 %v904
      %928 = vmatprep.subr.mxu0 0.0
      %929 = vmatpush1.msra.mxu0 %v905
      %930 = vmatprep.subr.mxu0 0.0
      %931 = vmatpush1.msra.mxu0 %v906
      %932 = vmatprep.subr.mxu0 0.0
      %933 = vmatpush1.msra.mxu0 %v907
      %934 = vmatprep.subr.mxu0 0.0
      %935 = vmatpush1.msra.mxu0 %v908
      %936 = vmatprep.subr.mxu0 0.0
      %937 = vmatpush1.msra.mxu0 %v909
      %938 = vmatprep.subr.mxu0 0.0
      %939 = vmatpush1.msra.mxu0 %v910
      %940 = vmatprep.subr.mxu0 0.0
      %941 = vmatpush1.msra.mxu0 %v911
      %942 = vmatprep.subr.mxu0 0.0
      %943 = vmatpush1.msra.mxu0 %v912
      %944 = vmatprep.subr.mxu0 0.0
      %945 = vmatpush1.msra.mxu0 %v913
      %946 = vmatprep.subr.mxu0 0.0
      %947 = vmatpush1.msra.mxu0 0.0
      %948 = vmatprep.subr.mxu0 0.0
      %949 = vmatpush1.msra.mxu0 0.0
      %950 = vmatprep.subr.mxu0 0.0
      %951 = vmatpush1.msra.mxu0 0.0
      %952 = vmatprep.subr.mxu0 0.0
      %953 = vmatpush1.msra.mxu0 0.0
      %954 = vmatprep.subr.mxu0 0.0
      %955 = vmatpush1.msra.mxu0 0.0
      %956 = vmatprep.subr.mxu0 0.0
      %957 = vmatpush1.msra.mxu0 0.0
      %958 = vmatprep.subr.mxu0 0.0
      %959 = vmatpush1.msra.mxu0 0.0
      %960 = vmatprep.subr.mxu0 0.0
      %961 = vmatpush1.msra.mxu0 0.0
      %962 = vmatprep.subr.mxu0 0.0
      %963 = vmatpush1.msra.mxu0 0.0
      %964 = vmatprep.subr.mxu0 0.0
      %965 = vmatpush1.msra.mxu0 0.0
      %966 = vmatprep.subr.mxu0 0.0
      %967 = vmatpush1.msra.mxu0 0.0
      %968 = vmatprep.subr.mxu0 0.0
      %969 = vmatpush1.msra.mxu0 0.0
      %970 = vmatprep.subr.mxu0 0.0
      %971 = vmatpush1.msra.mxu0 0.0
      %972 = vmatprep.subr.mxu0 0.0
      %973 = vmatpush1.msra.mxu0 0.0
      %974 = vmatprep.subr.mxu0 0.0
      %975 = vmatpush1.msra.mxu0 0.0
      %976 = vmatprep.subr.mxu0 0.0
      %977 = vmatpush1.msra.mxu0 0.0
      %978 = vmatprep.mubr.f32.mxu0 0.0
      %979 = vmatmul.mubr.f32.gmra.mrb[0].mxu0 %v889
      %v980 = vpop.f32.mrb[0].mxu0
      %v981 = vadd.f32 0.0, %v980
      %v982 = vpop.f32.mrb[0].mxu0
      %983 = vmatprep.mubr.f32.mxu0 0.0
      %984 = vmatmul.mubr.f32.gmra.mrb[0].mxu0 %v890
      %v985 = vpop.f32.mrb[0].mxu0
      %v986 = vadd.f32 0.0, %v985
      %v987 = vpop.f32.mrb[0].mxu0
      %988 = vmatprep.mubr.f32.mxu0 0.0
      %989 = vmatmul.mubr.f32.gmra.mrb[0].mxu0 %v891
      %v990 = vpop.f32.mrb[0].mxu0
      %v991 = vadd.f32 0.0, %v990
      %v992 = vpop.f32.mrb[0].mxu0
      %993 = vmatprep.mubr.f32.mxu0 0.0
      %994 = vmatmul.mubr.f32.gmra.mrb[0].mxu0 %v892
      %v995 = vpop.f32.mrb[0].mxu0
      %v996 = vadd.f32 0.0, %v995
      %v997 = vpop.f32.mrb[0].mxu0
      %998 = vmatprep.mubr.f32.mxu0 0.0
      %999 = vmatmul.mubr.f32.gmra.mrb[0].mxu0 %v893
      %v1000 = vpop.f32.mrb[0].mxu0
      %v1001 = vadd.f32 0.0, %v1000
      %v1002 = vpop.f32.mrb[0].mxu0
      %1003 = vmatprep.mubr.f32.mxu0 0.0
      %1004 = vmatmul.mubr.f32.gmra.mrb[0].mxu0 %v894
      %v1005 = vpop.f32.mrb[0].mxu0
      %v1006 = vadd.f32 0.0, %v1005
      %v1007 = vpop.f32.mrb[0].mxu0
      %1008 = vmatprep.mubr.f32.mxu0 0.0
      %1009 = vmatmul.mubr.f32.gmra.mrb[0].mxu0 %v895
      %v1010 = vpop.f32.mrb[0].mxu0
      %v1011 = vadd.f32 0.0, %v1010
      %v1012 = vpop.f32.mrb[0].mxu0
      %1013 = vmatprep.mubr.f32.mxu0 0.0
      %1014 = vmatmul.mubr.f32.gmra.mrb[0].mxu0 %v896
      %v1015 = vpop.f32.mrb[0].mxu0
      %v1016 = vadd.f32 0.0, %v1015
      %v1017 = vpop.f32.mrb[0].mxu0
      %1018 = vdwg.mxu0
      %v1019 = vadd.f32 %v878, %v981
      %v1020 = vadd.f32 %v879, %v986
      %v1021 = vadd.f32 %v880, %v991
      %v1022 = vadd.f32 %v881, %v996
      %v1023 = vadd.f32 %v882, %v1001
      %v1024 = vadd.f32 %v883, %v1006
      %v1025 = vadd.f32 %v884, %v1011
      %v1026 = vadd.f32 %v885, %v1016
      %s1027 = scalar_lea.vmem %s1, 512
      %v1028 = vld [vmem:[%s1027] sm:$0xff]
      %v1029 = vld [vmem:[%s1027 + $0x8] sm:$0xff]
      %v1030 = vld [vmem:[%s1027 + $0x10] sm:$0xff]
      %v1031 = vld [vmem:[%s1027 + $0x18] sm:$0xff]
      %v1032 = vld [vmem:[%s1027 + $0x20] sm:$0xff]
      %v1033 = vld [vmem:[%s1027 + $0x28] sm:$0xff]
      %v1034 = vld [vmem:[%s1027 + $0x30] sm:$0xff]
      %v1035 = vld [vmem:[%s1027 + $0x38] sm:$0xff]
      %v1036 = vld [vmem:[%s1027 + $0x40] sm:$0xff]
      %v1037 = vld [vmem:[%s1027 + $0x48] sm:$0xff]
      %v1038 = vld [vmem:[%s1027 + $0x50] sm:$0xff]
      %v1039 = vld [vmem:[%s1027 + $0x58] sm:$0xff]
      %v1040 = vld [vmem:[%s1027 + $0x60] sm:$0xff]
      %v1041 = vld [vmem:[%s1027 + $0x68] sm:$0xff]
      %v1042 = vld [vmem:[%s1027 + $0x70] sm:$0xff]
      %v1043 = vld [vmem:[%s1027 + $0x78] sm:$0xff]
      %1044 = vmatprep.subr.mxu0 0.0
      %1045 = vmatpush1.msra.mxu0 %v1028
      %1046 = vmatprep.subr.mxu0 0.0
      %1047 = vmatpush1.msra.mxu0 %v1029
      %1048 = vmatprep.subr.mxu0 0.0
      %1049 = vmatpush1.msra.mxu0 %v1030
      %1050 = vmatprep.subr.mxu0 0.0
      %1051 = vmatpush1.msra.mxu0 %v1031
      %1052 = vmatprep.subr.mxu0 0.0
      %1053 = vmatpush1.msra.mxu0 %v1032
      %1054 = vmatprep.subr.mxu0 0.0
      %1055 = vmatpush1.msra.mxu0 %v1033
      %1056 = vmatprep.subr.mxu0 0.0
      %1057 = vmatpush1.msra.mxu0 %v1034
      %1058 = vmatprep.subr.mxu0 0.0
      %1059 = vmatpush1.msra.mxu0 %v1035
      %1060 = vmatprep.subr.mxu0 0.0
      %1061 = vmatpush1.msra.mxu0 %v1036
      %1062 = vmatprep.subr.mxu0 0.0
      %1063 = vmatpush1.msra.mxu0 %v1037
      %1064 = vmatprep.subr.mxu0 0.0
      %1065 = vmatpush1.msra.mxu0 %v1038
      %1066 = vmatprep.subr.mxu0 0.0
      %1067 = vmatpush1.msra.mxu0 %v1039
      %1068 = vmatprep.subr.mxu0 0.0
      %1069 = vmatpush1.msra.mxu0 %v1040
      %1070 = vmatprep.subr.mxu0 0.0
      %1071 = vmatpush1.msra.mxu0 %v1041
      %1072 = vmatprep.subr.mxu0 0.0
      %1073 = vmatpush1.msra.mxu0 %v1042
      %1074 = vmatprep.subr.mxu0 0.0
      %1075 = vmatpush1.msra.mxu0 %v1043
      %1076 = vmatprep.subr.mxu0 0.0
      %1077 = vmatpush1.msra.mxu0 0.0
      %1078 = vmatprep.subr.mxu0 0.0
      %1079 = vmatpush1.msra.mxu0 0.0
      %1080 = vmatprep.subr.mxu0 0.0
      %1081 = vmatpush1.msra.mxu0 0.0
      %1082 = vmatprep.subr.mxu0 0.0
      %1083 = vmatpush1.msra.mxu0 0.0
      %1084 = vmatprep.subr.mxu0 0.0
      %1085 = vmatpush1.msra.mxu0 0.0
      %1086 = vmatprep.subr.mxu0 0.0
      %1087 = vmatpush1.msra.mxu0 0.0
      %1088 = vmatprep.subr.mxu0 0.0
      %1089 = vmatpush1.msra.mxu0 0.0
      %1090 = vmatprep.subr.mxu0 0.0
      %1091 = vmatpush1.msra.mxu0 0.0
      %1092 = vmatprep.subr.mxu0 0.0
      %1093 = vmatpush1.msra.mxu0 0.0
      %1094 = vmatprep.subr.mxu0 0.0
      %1095 = vmatpush1.msra.mxu0 0.0
      %1096 = vmatprep.subr.mxu0 0.0
      %1097 = vmatpush1.msra.mxu0 0.0
      %1098 = vmatprep.subr.mxu0 0.0
      %1099 = vmatpush1.msra.mxu0 0.0
      %1100 = vmatprep.subr.mxu0 0.0
      %1101 = vmatpush1.msra.mxu0 0.0
      %1102 = vmatprep.subr.mxu0 0.0
      %1103 = vmatpush1.msra.mxu0 0.0
      %1104 = vmatprep.subr.mxu0 0.0
      %1105 = vmatpush1.msra.mxu0 0.0
      %1106 = vmatprep.subr.mxu0 0.0
      %1107 = vmatpush1.msra.mxu0 0.0
      %1108 = vmatprep.mubr.f32.mxu0 0.0
      %1109 = vmatmul.mubr.f32.gmra.mrb[0].mxu0 %v333
      %v1110 = vpop.f32.mrb[0].mxu0
      %v1111 = vadd.f32 0.0, %v1110
      %v1112 = vpop.f32.mrb[0].mxu0
      %1113 = vmatprep.mubr.f32.mxu0 0.0
      %1114 = vmatmul.mubr.f32.gmra.mrb[0].mxu0 %v334
      %v1115 = vpop.f32.mrb[0].mxu0
      %v1116 = vadd.f32 0.0, %v1115
      %v1117 = vpop.f32.mrb[0].mxu0
      %1118 = vmatprep.mubr.f32.mxu0 0.0
      %1119 = vmatmul.mubr.f32.gmra.mrb[0].mxu0 %v335
      %v1120 = vpop.f32.mrb[0].mxu0
      %v1121 = vadd.f32 0.0, %v1120
      %v1122 = vpop.f32.mrb[0].mxu0
      %1123 = vmatprep.mubr.f32.mxu0 0.0
      %1124 = vmatmul.mubr.f32.gmra.mrb[0].mxu0 %v336
      %v1125 = vpop.f32.mrb[0].mxu0
      %v1126 = vadd.f32 0.0, %v1125
      %v1127 = vpop.f32.mrb[0].mxu0
      %1128 = vmatprep.mubr.f32.mxu0 0.0
      %1129 = vmatmul.mubr.f32.gmra.mrb[0].mxu0 %v337
      %v1130 = vpop.f32.mrb[0].mxu0
      %v1131 = vadd.f32 0.0, %v1130
      %v1132 = vpop.f32.mrb[0].mxu0
      %1133 = vmatprep.mubr.f32.mxu0 0.0
      %1134 = vmatmul.mubr.f32.gmra.mrb[0].mxu0 %v338
      %v1135 = vpop.f32.mrb[0].mxu0
      %v1136 = vadd.f32 0.0, %v1135
      %v1137 = vpop.f32.mrb[0].mxu0
      %1138 = vmatprep.mubr.f32.mxu0 0.0
      %1139 = vmatmul.mubr.f32.gmra.mrb[0].mxu0 %v339
      %v1140 = vpop.f32.mrb[0].mxu0
      %v1141 = vadd.f32 0.0, %v1140
      %v1142 = vpop.f32.mrb[0].mxu0
      %1143 = vmatprep.mubr.f32.mxu0 0.0
      %1144 = vmatmul.mubr.f32.gmra.mrb[0].mxu0 %v340
      %v1145 = vpop.f32.mrb[0].mxu0
      %v1146 = vadd.f32 0.0, %v1145
      %v1147 = vpop.f32.mrb[0].mxu0
      %1148 = vdwg.mxu0
      %v1149 = vadd.f32 %v1019, %v1111
      %v1150 = vadd.f32 %v1020, %v1116
      %v1151 = vadd.f32 %v1021, %v1121
      %v1152 = vadd.f32 %v1022, %v1126
      %v1153 = vadd.f32 %v1023, %v1131
      %v1154 = vadd.f32 %v1024, %v1136
      %v1155 = vadd.f32 %v1025, %v1141
      %v1156 = vadd.f32 %v1026, %v1146
      %v1157 = vsel %vm722, %v738, %v723
      %v1159 = vsel %vm713, %v727, 0.0
      %v1160 = vsel %vm714, %v729, 0.0
      %v1161 = vsel %vm715, %v731, 0.0
      %v1162 = vsel %vm716, %v733, 0.0
      %v1163 = vsel %vm717, %v735, 0.0
      %v1164 = vsel %vm718, %v737, 0.0
      %v1165 = vsel %vm719, %v739, 0.0
      %v1166 = vsel %vm720, %v1157, 0.0
      %s1167 = scalar_lea.vmem %s1, 640
      %v1168 = vld [vmem:[%s1167] sm:$0xff]
      %v1169 = vld [vmem:[%s1167 + $0x8] sm:$0xff]
      %v1170 = vld [vmem:[%s1167 + $0x10] sm:$0xff]
      %v1171 = vld [vmem:[%s1167 + $0x18] sm:$0xff]
      %v1172 = vld [vmem:[%s1167 + $0x20] sm:$0xff]
      %v1173 = vld [vmem:[%s1167 + $0x28] sm:$0xff]
      %v1174 = vld [vmem:[%s1167 + $0x30] sm:$0xff]
      %v1175 = vld [vmem:[%s1167 + $0x38] sm:$0xff]
      %v1176 = vld [vmem:[%s1167 + $0x40] sm:$0xff]
      %v1177 = vld [vmem:[%s1167 + $0x48] sm:$0xff]
      %v1178 = vld [vmem:[%s1167 + $0x50] sm:$0xff]
      %v1179 = vld [vmem:[%s1167 + $0x58] sm:$0xff]
      %v1180 = vld [vmem:[%s1167 + $0x60] sm:$0xff]
      %v1181 = vld [vmem:[%s1167 + $0x68] sm:$0xff]
      %v1182 = vld [vmem:[%s1167 + $0x70] sm:$0xff]
      %v1183 = vld [vmem:[%s1167 + $0x78] sm:$0xff]
      %1184 = vmatprep.subr.mxu0 0.0
      %1185 = vmatpush1.msra.mxu0 %v1168
      %1186 = vmatprep.subr.mxu0 0.0
      %1187 = vmatpush1.msra.mxu0 %v1169
      %1188 = vmatprep.subr.mxu0 0.0
      %1189 = vmatpush1.msra.mxu0 %v1170
      %1190 = vmatprep.subr.mxu0 0.0
      %1191 = vmatpush1.msra.mxu0 %v1171
      %1192 = vmatprep.subr.mxu0 0.0
      %1193 = vmatpush1.msra.mxu0 %v1172
      %1194 = vmatprep.subr.mxu0 0.0
      %1195 = vmatpush1.msra.mxu0 %v1173
      %1196 = vmatprep.subr.mxu0 0.0
      %1197 = vmatpush1.msra.mxu0 %v1174
      %1198 = vmatprep.subr.mxu0 0.0
      %1199 = vmatpush1.msra.mxu0 %v1175
      %1200 = vmatprep.subr.mxu0 0.0
      %1201 = vmatpush1.msra.mxu0 %v1176
      %1202 = vmatprep.subr.mxu0 0.0
      %1203 = vmatpush1.msra.mxu0 %v1177
      %1204 = vmatprep.subr.mxu0 0.0
      %1205 = vmatpush1.msra.mxu0 %v1178
      %1206 = vmatprep.subr.mxu0 0.0
      %1207 = vmatpush1.msra.mxu0 %v1179
      %1208 = vmatprep.subr.mxu0 0.0
      %1209 = vmatpush1.msra.mxu0 %v1180
      %1210 = vmatprep.subr.mxu0 0.0
      %1211 = vmatpush1.msra.mxu0 %v1181
      %1212 = vmatprep.subr.mxu0 0.0
      %1213 = vmatpush1.msra.mxu0 %v1182
      %1214 = vmatprep.subr.mxu0 0.0
      %1215 = vmatpush1.msra.mxu0 %v1183
      %1216 = vmatprep.subr.mxu0 0.0
      %1217 = vmatpush1.msra.mxu0 0.0
      %1218 = vmatprep.subr.mxu0 0.0
      %1219 = vmatpush1.msra.mxu0 0.0
      %1220 = vmatprep.subr.mxu0 0.0
      %1221 = vmatpush1.msra.mxu0 0.0
      %1222 = vmatprep.subr.mxu0 0.0
      %1223 = vmatpush1.msra.mxu0 0.0
      %1224 = vmatprep.subr.mxu0 0.0
      %1225 = vmatpush1.msra.mxu0 0.0
      %1226 = vmatprep.subr.mxu0 0.0
      %1227 = vmatpush1.msra.mxu0 0.0
      %1228 = vmatprep.subr.mxu0 0.0
      %1229 = vmatpush1.msra.mxu0 0.0
      %1230 = vmatprep.subr.mxu0 0.0
      %1231 = vmatpush1.msra.mxu0 0.0
      %1232 = vmatprep.subr.mxu0 0.0
      %1233 = vmatpush1.msra.mxu0 0.0
      %1234 = vmatprep.subr.mxu0 0.0
      %1235 = vmatpush1.msra.mxu0 0.0
      %1236 = vmatprep.subr.mxu0 0.0
      %1237 = vmatpush1.msra.mxu0 0.0
      %1238 = vmatprep.subr.mxu0 0.0
      %1239 = vmatpush1.msra.mxu0 0.0
      %1240 = vmatprep.subr.mxu0 0.0
      %1241 = vmatpush1.msra.mxu0 0.0
      %1242 = vmatprep.subr.mxu0 0.0
      %1243 = vmatpush1.msra.mxu0 0.0
      %1244 = vmatprep.subr.mxu0 0.0
      %1245 = vmatpush1.msra.mxu0 0.0
      %1246 = vmatprep.subr.mxu0 0.0
      %1247 = vmatpush1.msra.mxu0 0.0
      %1248 = vmatprep.mubr.f32.mxu0 0.0
      %1249 = vmatmul.mubr.f32.gmra.mrb[0].mxu0 %v1159
      %v1250 = vpop.f32.mrb[0].mxu0
      %v1251 = vadd.f32 0.0, %v1250
      %v1252 = vpop.f32.mrb[0].mxu0
      %1253 = vmatprep.mubr.f32.mxu0 0.0
      %1254 = vmatmul.mubr.f32.gmra.mrb[0].mxu0 %v1160
      %v1255 = vpop.f32.mrb[0].mxu0
      %v1256 = vadd.f32 0.0, %v1255
      %v1257 = vpop.f32.mrb[0].mxu0
      %1258 = vmatprep.mubr.f32.mxu0 0.0
      %1259 = vmatmul.mubr.f32.gmra.mrb[0].mxu0 %v1161
      %v1260 = vpop.f32.mrb[0].mxu0
      %v1261 = vadd.f32 0.0, %v1260
      %v1262 = vpop.f32.mrb[0].mxu0
      %1263 = vmatprep.mubr.f32.mxu0 0.0
      %1264 = vmatmul.mubr.f32.gmra.mrb[0].mxu0 %v1162
      %v1265 = vpop.f32.mrb[0].mxu0
      %v1266 = vadd.f32 0.0, %v1265
      %v1267 = vpop.f32.mrb[0].mxu0
      %1268 = vmatprep.mubr.f32.mxu0 0.0
      %1269 = vmatmul.mubr.f32.gmra.mrb[0].mxu0 %v1163
      %v1270 = vpop.f32.mrb[0].mxu0
      %v1271 = vadd.f32 0.0, %v1270
      %v1272 = vpop.f32.mrb[0].mxu0
      %1273 = vmatprep.mubr.f32.mxu0 0.0
      %1274 = vmatmul.mubr.f32.gmra.mrb[0].mxu0 %v1164
      %v1275 = vpop.f32.mrb[0].mxu0
      %v1276 = vadd.f32 0.0, %v1275
      %v1277 = vpop.f32.mrb[0].mxu0
      %1278 = vmatprep.mubr.f32.mxu0 0.0
      %1279 = vmatmul.mubr.f32.gmra.mrb[0].mxu0 %v1165
      %v1280 = vpop.f32.mrb[0].mxu0
      %v1281 = vadd.f32 0.0, %v1280
      %v1282 = vpop.f32.mrb[0].mxu0
      %1283 = vmatprep.mubr.f32.mxu0 0.0
      %1284 = vmatmul.mubr.f32.gmra.mrb[0].mxu0 %v1166
      %v1285 = vpop.f32.mrb[0].mxu0
      %v1286 = vadd.f32 0.0, %v1285
      %v1287 = vpop.f32.mrb[0].mxu0
      %1288 = vdwg.mxu0
      %v1289 = vadd.f32 %v1149, %v1251
      %v1290 = vadd.f32 %v1150, %v1256
      %v1291 = vadd.f32 %v1151, %v1261
      %v1292 = vadd.f32 %v1152, %v1266
      %v1293 = vadd.f32 %v1153, %v1271
      %v1294 = vadd.f32 %v1154, %v1276
      %v1295 = vadd.f32 %v1155, %v1281
      %v1296 = vadd.f32 %v1156, %v1286
      %v1297 = vsel %vm397, %v886, %v398
      %v1299 = vsel %vm381, %v403, 0.0
      %v1300 = vsel %vm382, %v405, 0.0
      %v1301 = vsel %vm383, %v407, 0.0
      %v1302 = vsel %vm384, %v409, 0.0
      %v1303 = vsel %vm385, %v411, 0.0
      %v1304 = vsel %vm386, %v413, 0.0
      %v1305 = vsel %vm387, %v887, 0.0
      %v1306 = vsel %vm388, %v1297, 0.0
      %s1307 = scalar_lea.vmem %s1, 768
      %v1308 = vld [vmem:[%s1307] sm:$0xff]
      %v1309 = vld [vmem:[%s1307 + $0x8] sm:$0xff]
      %v1310 = vld [vmem:[%s1307 + $0x10] sm:$0xff]
      %v1311 = vld [vmem:[%s1307 + $0x18] sm:$0xff]
      %v1312 = vld [vmem:[%s1307 + $0x20] sm:$0xff]
      %v1313 = vld [vmem:[%s1307 + $0x28] sm:$0xff]
      %v1314 = vld [vmem:[%s1307 + $0x30] sm:$0xff]
      %v1315 = vld [vmem:[%s1307 + $0x38] sm:$0xff]
      %v1316 = vld [vmem:[%s1307 + $0x40] sm:$0xff]
      %v1317 = vld [vmem:[%s1307 + $0x48] sm:$0xff]
      %v1318 = vld [vmem:[%s1307 + $0x50] sm:$0xff]
      %v1319 = vld [vmem:[%s1307 + $0x58] sm:$0xff]
      %v1320 = vld [vmem:[%s1307 + $0x60] sm:$0xff]
      %v1321 = vld [vmem:[%s1307 + $0x68] sm:$0xff]
      %v1322 = vld [vmem:[%s1307 + $0x70] sm:$0xff]
      %v1323 = vld [vmem:[%s1307 + $0x78] sm:$0xff]
      %1324 = vmatprep.subr.mxu0 0.0
      %1325 = vmatpush1.msra.mxu0 %v1308
      %1326 = vmatprep.subr.mxu0 0.0
      %1327 = vmatpush1.msra.mxu0 %v1309
      %1328 = vmatprep.subr.mxu0 0.0
      %1329 = vmatpush1.msra.mxu0 %v1310
      %1330 = vmatprep.subr.mxu0 0.0
      %1331 = vmatpush1.msra.mxu0 %v1311
      %1332 = vmatprep.subr.mxu0 0.0
      %1333 = vmatpush1.msra.mxu0 %v1312
      %1334 = vmatprep.subr.mxu0 0.0
      %1335 = vmatpush1.msra.mxu0 %v1313
      %1336 = vmatprep.subr.mxu0 0.0
      %1337 = vmatpush1.msra.mxu0 %v1314
      %1338 = vmatprep.subr.mxu0 0.0
      %1339 = vmatpush1.msra.mxu0 %v1315
      %1340 = vmatprep.subr.mxu0 0.0
      %1341 = vmatpush1.msra.mxu0 %v1316
      %1342 = vmatprep.subr.mxu0 0.0
      %1343 = vmatpush1.msra.mxu0 %v1317
      %1344 = vmatprep.subr.mxu0 0.0
      %1345 = vmatpush1.msra.mxu0 %v1318
      %1346 = vmatprep.subr.mxu0 0.0
      %1347 = vmatpush1.msra.mxu0 %v1319
      %1348 = vmatprep.subr.mxu0 0.0
      %1349 = vmatpush1.msra.mxu0 %v1320
      %1350 = vmatprep.subr.mxu0 0.0
      %1351 = vmatpush1.msra.mxu0 %v1321
      %1352 = vmatprep.subr.mxu0 0.0
      %1353 = vmatpush1.msra.mxu0 %v1322
      %1354 = vmatprep.subr.mxu0 0.0
      %1355 = vmatpush1.msra.mxu0 %v1323
      %1356 = vmatprep.subr.mxu0 0.0
      %1357 = vmatpush1.msra.mxu0 0.0
      %1358 = vmatprep.subr.mxu0 0.0
      %1359 = vmatpush1.msra.mxu0 0.0
      %1360 = vmatprep.subr.mxu0 0.0
      %1361 = vmatpush1.msra.mxu0 0.0
      %1362 = vmatprep.subr.mxu0 0.0
      %1363 = vmatpush1.msra.mxu0 0.0
      %1364 = vmatprep.subr.mxu0 0.0
      %1365 = vmatpush1.msra.mxu0 0.0
      %1366 = vmatprep.subr.mxu0 0.0
      %1367 = vmatpush1.msra.mxu0 0.0
      %1368 = vmatprep.subr.mxu0 0.0
      %1369 = vmatpush1.msra.mxu0 0.0
      %1370 = vmatprep.subr.mxu0 0.0
      %1371 = vmatpush1.msra.mxu0 0.0
      %1372 = vmatprep.subr.mxu0 0.0
      %1373 = vmatpush1.msra.mxu0 0.0
      %1374 = vmatprep.subr.mxu0 0.0
      %1375 = vmatpush1.msra.mxu0 0.0
      %1376 = vmatprep.subr.mxu0 0.0
      %1377 = vmatpush1.msra.mxu0 0.0
      %1378 = vmatprep.subr.mxu0 0.0
      %1379 = vmatpush1.msra.mxu0 0.0
      %1380 = vmatprep.subr.mxu0 0.0
      %1381 = vmatpush1.msra.mxu0 0.0
      %1382 = vmatprep.subr.mxu0 0.0
      %1383 = vmatpush1.msra.mxu0 0.0
      %1384 = vmatprep.subr.mxu0 0.0
      %1385 = vmatpush1.msra.mxu0 0.0
      %1386 = vmatprep.subr.mxu0 0.0
      %1387 = vmatpush1.msra.mxu0 0.0
      %1388 = vmatprep.mubr.f32.mxu0 0.0
      %1389 = vmatmul.mubr.f32.gmra.mrb[0].mxu0 %v1299
      %v1390 = vpop.f32.mrb[0].mxu0
      %v1391 = vadd.f32 0.0, %v1390
      %v1392 = vpop.f32.mrb[0].mxu0
      %1393 = vmatprep.mubr.f32.mxu0 0.0
      %1394 = vmatmul.mubr.f32.gmra.mrb[0].mxu0 %v1300
      %v1395 = vpop.f32.mrb[0].mxu0
      %v1396 = vadd.f32 0.0, %v1395
      %v1397 = vpop.f32.mrb[0].mxu0
      %1398 = vmatprep.mubr.f32.mxu0 0.0
      %1399 = vmatmul.mubr.f32.gmra.mrb[0].mxu0 %v1301
      %v1400 = vpop.f32.mrb[0].mxu0
      %v1401 = vadd.f32 0.0, %v1400
      %v1402 = vpop.f32.mrb[0].mxu0
      %1403 = vmatprep.mubr.f32.mxu0 0.0
      %1404 = vmatmul.mubr.f32.gmra.mrb[0].mxu0 %v1302
      %v1405 = vpop.f32.mrb[0].mxu0
      %v1406 = vadd.f32 0.0, %v1405
      %v1407 = vpop.f32.mrb[0].mxu0
      %1408 = vmatprep.mubr.f32.mxu0 0.0
      %1409 = vmatmul.mubr.f32.gmra.mrb[0].mxu0 %v1303
      %v1410 = vpop.f32.mrb[0].mxu0
      %v1411 = vadd.f32 0.0, %v1410
      %v1412 = vpop.f32.mrb[0].mxu0
      %1413 = vmatprep.mubr.f32.mxu0 0.0
      %1414 = vmatmul.mubr.f32.gmra.mrb[0].mxu0 %v1304
      %v1415 = vpop.f32.mrb[0].mxu0
      %v1416 = vadd.f32 0.0, %v1415
      %v1417 = vpop.f32.mrb[0].mxu0
      %1418 = vmatprep.mubr.f32.mxu0 0.0
      %1419 = vmatmul.mubr.f32.gmra.mrb[0].mxu0 %v1305
      %v1420 = vpop.f32.mrb[0].mxu0
      %v1421 = vadd.f32 0.0, %v1420
      %v1422 = vpop.f32.mrb[0].mxu0
      %1423 = vmatprep.mubr.f32.mxu0 0.0
      %1424 = vmatmul.mubr.f32.gmra.mrb[0].mxu0 %v1306
      %v1425 = vpop.f32.mrb[0].mxu0
      %v1426 = vadd.f32 0.0, %v1425
      %v1427 = vpop.f32.mrb[0].mxu0
      %1428 = vdwg.mxu0
      %v1429 = vadd.f32 %v1289, %v1391
      %v1430 = vadd.f32 %v1290, %v1396
      %v1431 = vadd.f32 %v1291, %v1401
      %v1432 = vadd.f32 %v1292, %v1406
      %v1433 = vadd.f32 %v1293, %v1411
      %v1434 = vadd.f32 %v1294, %v1416
      %v1435 = vadd.f32 %v1295, %v1421
      %v1436 = vadd.f32 %v1296, %v1426
      %s1437 = scalar_lea.vmem %s1, 896
      %v1438 = vld [vmem:[%s1437] sm:$0xff]
      %v1439 = vld [vmem:[%s1437 + $0x8] sm:$0xff]
      %v1440 = vld [vmem:[%s1437 + $0x10] sm:$0xff]
      %v1441 = vld [vmem:[%s1437 + $0x18] sm:$0xff]
      %v1442 = vld [vmem:[%s1437 + $0x20] sm:$0xff]
      %v1443 = vld [vmem:[%s1437 + $0x28] sm:$0xff]
      %v1444 = vld [vmem:[%s1437 + $0x30] sm:$0xff]
      %v1445 = vld [vmem:[%s1437 + $0x38] sm:$0xff]
      %v1446 = vld [vmem:[%s1437 + $0x40] sm:$0xff]
      %v1447 = vld [vmem:[%s1437 + $0x48] sm:$0xff]
      %v1448 = vld [vmem:[%s1437 + $0x50] sm:$0xff]
      %v1449 = vld [vmem:[%s1437 + $0x58] sm:$0xff]
      %v1450 = vld [vmem:[%s1437 + $0x60] sm:$0xff]
      %v1451 = vld [vmem:[%s1437 + $0x68] sm:$0xff]
      %v1452 = vld [vmem:[%s1437 + $0x70] sm:$0xff]
      %v1453 = vld [vmem:[%s1437 + $0x78] sm:$0xff]
      %1454 = vmatprep.subr.mxu0 0.0
      %1455 = vmatpush1.msra.mxu0 %v1438
      %1456 = vmatprep.subr.mxu0 0.0
      %1457 = vmatpush1.msra.mxu0 %v1439
      %1458 = vmatprep.subr.mxu0 0.0
      %1459 = vmatpush1.msra.mxu0 %v1440
      %1460 = vmatprep.subr.mxu0 0.0
      %1461 = vmatpush1.msra.mxu0 %v1441
      %1462 = vmatprep.subr.mxu0 0.0
      %1463 = vmatpush1.msra.mxu0 %v1442
      %1464 = vmatprep.subr.mxu0 0.0
      %1465 = vmatpush1.msra.mxu0 %v1443
      %1466 = vmatprep.subr.mxu0 0.0
      %1467 = vmatpush1.msra.mxu0 %v1444
      %1468 = vmatprep.subr.mxu0 0.0
      %1469 = vmatpush1.msra.mxu0 %v1445
      %1470 = vmatprep.subr.mxu0 0.0
      %1471 = vmatpush1.msra.mxu0 %v1446
      %1472 = vmatprep.subr.mxu0 0.0
      %1473 = vmatpush1.msra.mxu0 %v1447
      %1474 = vmatprep.subr.mxu0 0.0
      %1475 = vmatpush1.msra.mxu0 %v1448
      %1476 = vmatprep.subr.mxu0 0.0
      %1477 = vmatpush1.msra.mxu0 %v1449
      %1478 = vmatprep.subr.mxu0 0.0
      %1479 = vmatpush1.msra.mxu0 %v1450
      %1480 = vmatprep.subr.mxu0 0.0
      %1481 = vmatpush1.msra.mxu0 %v1451
      %1482 = vmatprep.subr.mxu0 0.0
      %1483 = vmatpush1.msra.mxu0 %v1452
      %1484 = vmatprep.subr.mxu0 0.0
      %1485 = vmatpush1.msra.mxu0 %v1453
      %1486 = vmatprep.subr.mxu0 0.0
      %1487 = vmatpush1.msra.mxu0 0.0
      %1488 = vmatprep.subr.mxu0 0.0
      %1489 = vmatpush1.msra.mxu0 0.0
      %1490 = vmatprep.subr.mxu0 0.0
      %1491 = vmatpush1.msra.mxu0 0.0
      %1492 = vmatprep.subr.mxu0 0.0
      %1493 = vmatpush1.msra.mxu0 0.0
      %1494 = vmatprep.subr.mxu0 0.0
      %1495 = vmatpush1.msra.mxu0 0.0
      %1496 = vmatprep.subr.mxu0 0.0
      %1497 = vmatpush1.msra.mxu0 0.0
      %1498 = vmatprep.subr.mxu0 0.0
      %1499 = vmatpush1.msra.mxu0 0.0
      %1500 = vmatprep.subr.mxu0 0.0
      %1501 = vmatpush1.msra.mxu0 0.0
      %1502 = vmatprep.subr.mxu0 0.0
      %1503 = vmatpush1.msra.mxu0 0.0
      %1504 = vmatprep.subr.mxu0 0.0
      %1505 = vmatpush1.msra.mxu0 0.0
      %1506 = vmatprep.subr.mxu0 0.0
      %1507 = vmatpush1.msra.mxu0 0.0
      %1508 = vmatprep.subr.mxu0 0.0
      %1509 = vmatpush1.msra.mxu0 0.0
      %1510 = vmatprep.subr.mxu0 0.0
      %1511 = vmatpush1.msra.mxu0 0.0
      %1512 = vmatprep.subr.mxu0 0.0
      %1513 = vmatpush1.msra.mxu0 0.0
      %1514 = vmatprep.subr.mxu0 0.0
      %1515 = vmatpush1.msra.mxu0 0.0
      %1516 = vmatprep.subr.mxu0 0.0
      %1517 = vmatpush1.msra.mxu0 0.0
      %1518 = vmatprep.mubr.f32.mxu0 0.0
      %1519 = vmatmul.mubr.f32.gmra.mrb[0].mxu0 %v334
      %v1520 = vpop.f32.mrb[0].mxu0
      %v1521 = vadd.f32 0.0, %v1520
      %v1522 = vpop.f32.mrb[0].mxu0
      %1523 = vmatprep.mubr.f32.mxu0 0.0
      %1524 = vmatmul.mubr.f32.gmra.mrb[0].mxu0 %v335
      %v1525 = vpop.f32.mrb[0].mxu0
      %v1526 = vadd.f32 0.0, %v1525
      %v1527 = vpop.f32.mrb[0].mxu0
      %1528 = vmatprep.mubr.f32.mxu0 0.0
      %1529 = vmatmul.mubr.f32.gmra.mrb[0].mxu0 %v336
      %v1530 = vpop.f32.mrb[0].mxu0
      %v1531 = vadd.f32 0.0, %v1530
      %v1532 = vpop.f32.mrb[0].mxu0
      %1533 = vmatprep.mubr.f32.mxu0 0.0
      %1534 = vmatmul.mubr.f32.gmra.mrb[0].mxu0 %v337
      %v1535 = vpop.f32.mrb[0].mxu0
      %v1536 = vadd.f32 0.0, %v1535
      %v1537 = vpop.f32.mrb[0].mxu0
      %1538 = vmatprep.mubr.f32.mxu0 0.0
      %1539 = vmatmul.mubr.f32.gmra.mrb[0].mxu0 %v338
      %v1540 = vpop.f32.mrb[0].mxu0
      %v1541 = vadd.f32 0.0, %v1540
      %v1542 = vpop.f32.mrb[0].mxu0
      %1543 = vmatprep.mubr.f32.mxu0 0.0
      %1544 = vmatmul.mubr.f32.gmra.mrb[0].mxu0 %v339
      %v1545 = vpop.f32.mrb[0].mxu0
      %v1546 = vadd.f32 0.0, %v1545
      %v1547 = vpop.f32.mrb[0].mxu0
      %1548 = vmatprep.mubr.f32.mxu0 0.0
      %1549 = vmatmul.mubr.f32.gmra.mrb[0].mxu0 %v340
      %v1550 = vpop.f32.mrb[0].mxu0
      %v1551 = vadd.f32 0.0, %v1550
      %v1552 = vpop.f32.mrb[0].mxu0
      %1553 = vmatprep.mubr.f32.mxu0 0.0
      %1554 = vmatmul.mubr.f32.gmra.mrb[0].mxu0 0.0
      %v1555 = vpop.f32.mrb[0].mxu0
      %v1556 = vadd.f32 0.0, %v1555
      %v1557 = vpop.f32.mrb[0].mxu0
      %1558 = vdwg.mxu0
      %v1559 = vadd.f32 %v1429, %v1521
      %v1560 = vadd.f32 %v1430, %v1526
      %v1561 = vadd.f32 %v1431, %v1531
      %v1562 = vadd.f32 %v1432, %v1536
      %v1563 = vadd.f32 %v1433, %v1541
      %v1564 = vadd.f32 %v1434, %v1546
      %v1565 = vadd.f32 %v1435, %v1551
      %v1566 = vadd.f32 %v1436, %v1556
      %v1567 = vsel %vm722, %v723, %v723
      %v1569 = vsel %vm713, %v729, 0.0
      %v1570 = vsel %vm714, %v731, 0.0
      %v1571 = vsel %vm715, %v733, 0.0
      %v1572 = vsel %vm716, %v735, 0.0
      %v1573 = vsel %vm717, %v737, 0.0
      %v1574 = vsel %vm718, %v739, 0.0
      %v1575 = vsel %vm719, %v1157, 0.0
      %v1576 = vsel %vm720, %v1567, 0.0
      %s1577 = scalar_lea.vmem %s1, 1024
      %v1578 = vld [vmem:[%s1577] sm:$0xff]
      %v1579 = vld [vmem:[%s1577 + $0x8] sm:$0xff]
      %v1580 = vld [vmem:[%s1577 + $0x10] sm:$0xff]
      %v1581 = vld [vmem:[%s1577 + $0x18] sm:$0xff]
      %v1582 = vld [vmem:[%s1577 + $0x20] sm:$0xff]
      %v1583 = vld [vmem:[%s1577 + $0x28] sm:$0xff]
      %v1584 = vld [vmem:[%s1577 + $0x30] sm:$0xff]
      %v1585 = vld [vmem:[%s1577 + $0x38] sm:$0xff]
      %v1586 = vld [vmem:[%s1577 + $0x40] sm:$0xff]
      %v1587 = vld [vmem:[%s1577 + $0x48] sm:$0xff]
      %v1588 = vld [vmem:[%s1577 + $0x50] sm:$0xff]
      %v1589 = vld [vmem:[%s1577 + $0x58] sm:$0xff]
      %v1590 = vld [vmem:[%s1577 + $0x60] sm:$0xff]
      %v1591 = vld [vmem:[%s1577 + $0x68] sm:$0xff]
      %v1592 = vld [vmem:[%s1577 + $0x70] sm:$0xff]
      %v1593 = vld [vmem:[%s1577 + $0x78] sm:$0xff]
      %1594 = vmatprep.subr.mxu0 0.0
      %1595 = vmatpush1.msra.mxu0 %v1578
      %1596 = vmatprep.subr.mxu0 0.0
      %1597 = vmatpush1.msra.mxu0 %v1579
      %1598 = vmatprep.subr.mxu0 0.0
      %1599 = vmatpush1.msra.mxu0 %v1580
      %1600 = vmatprep.subr.mxu0 0.0
      %1601 = vmatpush1.msra.mxu0 %v1581
      %1602 = vmatprep.subr.mxu0 0.0
      %1603 = vmatpush1.msra.mxu0 %v1582
      %1604 = vmatprep.subr.mxu0 0.0
      %1605 = vmatpush1.msra.mxu0 %v1583
      %1606 = vmatprep.subr.mxu0 0.0
      %1607 = vmatpush1.msra.mxu0 %v1584
      %1608 = vmatprep.subr.mxu0 0.0
      %1609 = vmatpush1.msra.mxu0 %v1585
      %1610 = vmatprep.subr.mxu0 0.0
      %1611 = vmatpush1.msra.mxu0 %v1586
      %1612 = vmatprep.subr.mxu0 0.0
      %1613 = vmatpush1.msra.mxu0 %v1587
      %1614 = vmatprep.subr.mxu0 0.0
      %1615 = vmatpush1.msra.mxu0 %v1588
      %1616 = vmatprep.subr.mxu0 0.0
      %1617 = vmatpush1.msra.mxu0 %v1589
      %1618 = vmatprep.subr.mxu0 0.0
      %1619 = vmatpush1.msra.mxu0 %v1590
      %1620 = vmatprep.subr.mxu0 0.0
      %1621 = vmatpush1.msra.mxu0 %v1591
      %1622 = vmatprep.subr.mxu0 0.0
      %1623 = vmatpush1.msra.mxu0 %v1592
      %1624 = vmatprep.subr.mxu0 0.0
      %1625 = vmatpush1.msra.mxu0 %v1593
      %1626 = vmatprep.subr.mxu0 0.0
      %1627 = vmatpush1.msra.mxu0 0.0
      %1628 = vmatprep.subr.mxu0 0.0
      %1629 = vmatpush1.msra.mxu0 0.0
      %1630 = vmatprep.subr.mxu0 0.0
      %1631 = vmatpush1.msra.mxu0 0.0
      %1632 = vmatprep.subr.mxu0 0.0
      %1633 = vmatpush1.msra.mxu0 0.0
      %1634 = vmatprep.subr.mxu0 0.0
      %1635 = vmatpush1.msra.mxu0 0.0
      %1636 = vmatprep.subr.mxu0 0.0
      %1637 = vmatpush1.msra.mxu0 0.0
      %1638 = vmatprep.subr.mxu0 0.0
      %1639 = vmatpush1.msra.mxu0 0.0
      %1640 = vmatprep.subr.mxu0 0.0
      %1641 = vmatpush1.msra.mxu0 0.0
      %1642 = vmatprep.subr.mxu0 0.0
      %1643 = vmatpush1.msra.mxu0 0.0
      %1644 = vmatprep.subr.mxu0 0.0
      %1645 = vmatpush1.msra.mxu0 0.0
      %1646 = vmatprep.subr.mxu0 0.0
      %1647 = vmatpush1.msra.mxu0 0.0
      %1648 = vmatprep.subr.mxu0 0.0
      %1649 = vmatpush1.msra.mxu0 0.0
      %1650 = vmatprep.subr.mxu0 0.0
      %1651 = vmatpush1.msra.mxu0 0.0
      %1652 = vmatprep.subr.mxu0 0.0
      %1653 = vmatpush1.msra.mxu0 0.0
      %1654 = vmatprep.subr.mxu0 0.0
      %1655 = vmatpush1.msra.mxu0 0.0
      %1656 = vmatprep.subr.mxu0 0.0
      %1657 = vmatpush1.msra.mxu0 0.0
      %1658 = vmatprep.mubr.f32.mxu0 0.0
      %1659 = vmatmul.mubr.f32.gmra.mrb[0].mxu0 %v1569
      %v1660 = vpop.f32.mrb[0].mxu0
      %v1661 = vadd.f32 0.0, %v1660
      %v1662 = vpop.f32.mrb[0].mxu0
      %1663 = vmatprep.mubr.f32.mxu0 0.0
      %1664 = vmatmul.mubr.f32.gmra.mrb[0].mxu0 %v1570
      %v1665 = vpop.f32.mrb[0].mxu0
      %v1666 = vadd.f32 0.0, %v1665
      %v1667 = vpop.f32.mrb[0].mxu0
      %1668 = vmatprep.mubr.f32.mxu0 0.0
      %1669 = vmatmul.mubr.f32.gmra.mrb[0].mxu0 %v1571
      %v1670 = vpop.f32.mrb[0].mxu0
      %v1671 = vadd.f32 0.0, %v1670
      %v1672 = vpop.f32.mrb[0].mxu0
      %1673 = vmatprep.mubr.f32.mxu0 0.0
      %1674 = vmatmul.mubr.f32.gmra.mrb[0].mxu0 %v1572
      %v1675 = vpop.f32.mrb[0].mxu0
      %v1676 = vadd.f32 0.0, %v1675
      %v1677 = vpop.f32.mrb[0].mxu0
      %1678 = vmatprep.mubr.f32.mxu0 0.0
      %1679 = vmatmul.mubr.f32.gmra.mrb[0].mxu0 %v1573
      %v1680 = vpop.f32.mrb[0].mxu0
      %v1681 = vadd.f32 0.0, %v1680
      %v1682 = vpop.f32.mrb[0].mxu0
      %1683 = vmatprep.mubr.f32.mxu0 0.0
      %1684 = vmatmul.mubr.f32.gmra.mrb[0].mxu0 %v1574
      %v1685 = vpop.f32.mrb[0].mxu0
      %v1686 = vadd.f32 0.0, %v1685
      %v1687 = vpop.f32.mrb[0].mxu0
      %1688 = vmatprep.mubr.f32.mxu0 0.0
      %1689 = vmatmul.mubr.f32.gmra.mrb[0].mxu0 %v1575
      %v1690 = vpop.f32.mrb[0].mxu0
      %v1691 = vadd.f32 0.0, %v1690
      %v1692 = vpop.f32.mrb[0].mxu0
      %1693 = vmatprep.mubr.f32.mxu0 0.0
      %1694 = vmatmul.mubr.f32.gmra.mrb[0].mxu0 %v1576
      %v1695 = vpop.f32.mrb[0].mxu0
      %v1696 = vadd.f32 0.0, %v1695
      %v1697 = vpop.f32.mrb[0].mxu0
      %1698 = vdwg.mxu0
      %v1699 = vadd.f32 %v1559, %v1661
      %v1700 = vadd.f32 %v1560, %v1666
      %v1701 = vadd.f32 %v1561, %v1671
      %v1702 = vadd.f32 %v1562, %v1676
      %v1703 = vadd.f32 %v1563, %v1681
      %v1704 = vadd.f32 %v1564, %v1686
      %v1705 = vadd.f32 %v1565, %v1691
      %v1706 = vadd.f32 %v1566, %v1696
      %v1707 = vld [vmem:[%s2] sm:$0x1]
      %v1709 = vlaneseq
      %v1710 = vshrl.u32 %v1709, 7
      %v1711 = vsub.s32 0, %v1710
      %v1712 = vrot.slane %v1707, %v1711
      %v1714 = vadd.f32 %v1699, %v1712
      %v1715 = vadd.f32 %v1700, %v1712
      %v1716 = vadd.f32 %v1701, %v1712
      %v1717 = vadd.f32 %v1702, %v1712
      %v1718 = vadd.f32 %v1703, %v1712
      %v1719 = vadd.f32 %v1704, %v1712
      %v1720 = vadd.f32 %v1705, %v1712
      %v1721 = vadd.f32 %v1706, %v1712
      %v1722 = vmax.f32 %v1714, 0.0
      %v1723 = vmax.f32 %v1715, 0.0
      %v1724 = vmax.f32 %v1716, 0.0
      %v1725 = vmax.f32 %v1717, 0.0
      %v1726 = vmax.f32 %v1718, 0.0
      %v1727 = vmax.f32 %v1719, 0.0
      %v1728 = vmax.f32 %v1720, 0.0
      %v1729 = vmax.f32 %v1721, 0.0
      %v1737 = vrot.slane %v1722, 7
      %v1738 = vsel %vm397, %v398, %v1737
      %v1739 = vrot.slane %v1723, 7
      %v1740 = vsel %vm397, %v1737, %v1739
      %v1741 = vrot.slane %v1724, 7
      %v1742 = vsel %vm397, %v1739, %v1741
      %v1743 = vrot.slane %v1725, 7
      %v1744 = vsel %vm397, %v1741, %v1743
      %v1745 = vrot.slane %v1726, 7
      %v1746 = vsel %vm397, %v1743, %v1745
      %v1747 = vrot.slane %v1727, 7
      %v1748 = vsel %vm397, %v1745, %v1747
      %v1749 = vrot.slane %v1728, 7
      %v1750 = vsel %vm397, %v1747, %v1749
      %v1758 = vsel %vm382, %v1738, 0.0
      %v1759 = vsel %vm383, %v1740, 0.0
      %v1760 = vsel %vm384, %v1742, 0.0
      %v1761 = vsel %vm385, %v1744, 0.0
      %v1762 = vsel %vm386, %v1746, 0.0
      %v1763 = vsel %vm387, %v1748, 0.0
      %v1764 = vsel %vm388, %v1750, 0.0
      %v1765 = vld [vmem:[%s3] sm:$0xff]
      %v1766 = vld [vmem:[%s3 + $0x8] sm:$0xff]
      %v1767 = vld [vmem:[%s3 + $0x10] sm:$0xff]
      %v1768 = vld [vmem:[%s3 + $0x18] sm:$0xff]
      %v1769 = vld [vmem:[%s3 + $0x20] sm:$0xff]
      %v1770 = vld [vmem:[%s3 + $0x28] sm:$0xff]
      %v1771 = vld [vmem:[%s3 + $0x30] sm:$0xff]
      %v1772 = vld [vmem:[%s3 + $0x38] sm:$0xff]
      %s1773 = scalar_lea.vmem %s3, 64
      %v1774 = vld [vmem:[%s1773] sm:$0xff]
      %v1775 = vld [vmem:[%s1773 + $0x8] sm:$0xff]
      %v1776 = vld [vmem:[%s1773 + $0x10] sm:$0xff]
      %v1777 = vld [vmem:[%s1773 + $0x18] sm:$0xff]
      %v1778 = vld [vmem:[%s1773 + $0x20] sm:$0xff]
      %v1779 = vld [vmem:[%s1773 + $0x28] sm:$0xff]
      %v1780 = vld [vmem:[%s1773 + $0x30] sm:$0xff]
      %v1781 = vld [vmem:[%s1773 + $0x38] sm:$0xff]
      %vm1782 = vcmask 523264
      %v1783 = vsel %vm1782, 0.0, 0
      %v1785 = vsel %vm1782, %v1722, 0
      %v1787 = vsel %vm1782, %v1723, 0
      %v1789 = vsel %vm1782, %v1724, 0
      %v1791 = vsel %vm1782, %v1725, 0
      %v1793 = vsel %vm1782, %v1726, 0
      %v1795 = vsel %vm1782, %v1727, 0
      %v1797 = vsel %vm1782, %v1728, 0
      %1799 = vmatprep.subr.mxu0 0.0
      %1800 = vmatpush1.msra.mxu0 %v1774
      %1801 = vmatprep.subr.mxu0 0.0
      %1802 = vmatpush1.msra.mxu0 %v1775
      %1803 = vmatprep.subr.mxu0 0.0
      %1804 = vmatpush1.msra.mxu0 %v1776
      %1805 = vmatprep.subr.mxu0 0.0
      %1806 = vmatpush1.msra.mxu0 %v1777
      %1807 = vmatprep.subr.mxu0 0.0
      %1808 = vmatpush1.msra.mxu0 %v1778
      %1809 = vmatprep.subr.mxu0 0.0
      %1810 = vmatpush1.msra.mxu0 %v1779
      %1811 = vmatprep.subr.mxu0 0.0
      %1812 = vmatpush1.msra.mxu0 %v1780
      %1813 = vmatprep.subr.mxu0 0.0
      %1814 = vmatpush1.msra.mxu0 %v1781
      %1815 = vmatprep.subr.mxu0 0.0
      %1816 = vmatpush1.msra.mxu0 0.0
      %1817 = vmatprep.subr.mxu0 0.0
      %1818 = vmatpush1.msra.mxu0 0.0
      %1819 = vmatprep.subr.mxu0 0.0
      %1820 = vmatpush1.msra.mxu0 0.0
      %1821 = vmatprep.subr.mxu0 0.0
      %1822 = vmatpush1.msra.mxu0 0.0
      %1823 = vmatprep.subr.mxu0 0.0
      %1824 = vmatpush1.msra.mxu0 0.0
      %1825 = vmatprep.subr.mxu0 0.0
      %1826 = vmatpush1.msra.mxu0 0.0
      %1827 = vmatprep.subr.mxu0 0.0
      %1828 = vmatpush1.msra.mxu0 0.0
      %1829 = vmatprep.subr.mxu0 0.0
      %1830 = vmatpush1.msra.mxu0 0.0
      %1831 = vmatprep.subr.mxu0 0.0
      %1832 = vmatpush1.msra.mxu0 0.0
      %1833 = vmatprep.subr.mxu0 0.0
      %1834 = vmatpush1.msra.mxu0 0.0
      %1835 = vmatprep.subr.mxu0 0.0
      %1836 = vmatpush1.msra.mxu0 0.0
      %1837 = vmatprep.subr.mxu0 0.0
      %1838 = vmatpush1.msra.mxu0 0.0
      %1839 = vmatprep.subr.mxu0 0.0
      %1840 = vmatpush1.msra.mxu0 0.0
      %1841 = vmatprep.subr.mxu0 0.0
      %1842 = vmatpush1.msra.mxu0 0.0
      %1843 = vmatprep.subr.mxu0 0.0
      %1844 = vmatpush1.msra.mxu0 0.0
      %1845 = vmatprep.subr.mxu0 0.0
      %1846 = vmatpush1.msra.mxu0 0.0
      %1847 = vmatprep.subr.mxu0 0.0
      %1848 = vmatpush1.msra.mxu0 0.0
      %1849 = vmatprep.subr.mxu0 0.0
      %1850 = vmatpush1.msra.mxu0 0.0
      %1851 = vmatprep.subr.mxu0 0.0
      %1852 = vmatpush1.msra.mxu0 0.0
      %1853 = vmatprep.subr.mxu0 0.0
      %1854 = vmatpush1.msra.mxu0 0.0
      %1855 = vmatprep.subr.mxu0 0.0
      %1856 = vmatpush1.msra.mxu0 0.0
      %1857 = vmatprep.subr.mxu0 0.0
      %1858 = vmatpush1.msra.mxu0 0.0
      %1859 = vmatprep.subr.mxu0 0.0
      %1860 = vmatpush1.msra.mxu0 0.0
      %1861 = vmatprep.subr.mxu0 0.0
      %1862 = vmatpush1.msra.mxu0 0.0
      %1863 = vmatprep.mubr.f32.mxu0 0.0
      %1864 = vmatmul.mubr.f32.gmra.mrb[0].mxu0 %v1783
      %v1865 = vpop.f32.mrb[0].mxu0
      %v1866 = vadd.f32 0.0, %v1865
      %v1867 = vpop.f32.mrb[0].mxu0
      %1868 = vmatprep.mubr.f32.mxu0 0.0
      %1869 = vmatmul.mubr.f32.gmra.mrb[0].mxu0 %v1785
      %v1870 = vpop.f32.mrb[0].mxu0
      %v1871 = vadd.f32 0.0, %v1870
      %v1872 = vpop.f32.mrb[0].mxu0
      %1873 = vmatprep.mubr.f32.mxu0 0.0
      %1874 = vmatmul.mubr.f32.gmra.mrb[0].mxu0 %v1787
      %v1875 = vpop.f32.mrb[0].mxu0
      %v1876 = vadd.f32 0.0, %v1875
      %v1877 = vpop.f32.mrb[0].mxu0
      %1878 = vmatprep.mubr.f32.mxu0 0.0
      %1879 = vmatmul.mubr.f32.gmra.mrb[0].mxu0 %v1789
      %v1880 = vpop.f32.mrb[0].mxu0
      %v1881 = vadd.f32 0.0, %v1880
      %v1882 = vpop.f32.mrb[0].mxu0
      %1883 = vmatprep.mubr.f32.mxu0 0.0
      %1884 = vmatmul.mubr.f32.gmra.mrb[0].mxu0 %v1791
      %v1885 = vpop.f32.mrb[0].mxu0
      %v1886 = vadd.f32 0.0, %v1885
      %v1887 = vpop.f32.mrb[0].mxu0
      %1888 = vmatprep.mubr.f32.mxu0 0.0
      %1889 = vmatmul.mubr.f32.gmra.mrb[0].mxu0 %v1793
      %v1890 = vpop.f32.mrb[0].mxu0
      %v1891 = vadd.f32 0.0, %v1890
      %v1892 = vpop.f32.mrb[0].mxu0
      %1893 = vmatprep.mubr.f32.mxu0 0.0
      %1894 = vmatmul.mubr.f32.gmra.mrb[0].mxu0 %v1795
      %v1895 = vpop.f32.mrb[0].mxu0
      %v1896 = vadd.f32 0.0, %v1895
      %v1897 = vpop.f32.mrb[0].mxu0
      %1898 = vmatprep.mubr.f32.mxu0 0.0
      %1899 = vmatmul.mubr.f32.gmra.mrb[0].mxu0 %v1797
      %v1900 = vpop.f32.mrb[0].mxu0
      %v1901 = vadd.f32 0.0, %v1900
      %v1902 = vpop.f32.mrb[0].mxu0
      %1903 = vdwg.mxu0
      %v1905 = vsel %vm1782, %v422, 0
      %v1908 = vsel %vm1782, %v1758, 0
      %v1911 = vsel %vm1782, %v1759, 0
      %v1914 = vsel %vm1782, %v1760, 0
      %v1917 = vsel %vm1782, %v1761, 0
      %v1920 = vsel %vm1782, %v1762, 0
      %v1923 = vsel %vm1782, %v1763, 0
      %v1926 = vsel %vm1782, %v1764, 0
      %1928 = vmatprep.subr.mxu0 0.0
      %1929 = vmatpush1.msra.mxu0 %v1765
      %1930 = vmatprep.subr.mxu0 0.0
      %1931 = vmatpush1.msra.mxu0 %v1766
      %1932 = vmatprep.subr.mxu0 0.0
      %1933 = vmatpush1.msra.mxu0 %v1767
      %1934 = vmatprep.subr.mxu0 0.0
      %1935 = vmatpush1.msra.mxu0 %v1768
      %1936 = vmatprep.subr.mxu0 0.0
      %1937 = vmatpush1.msra.mxu0 %v1769
      %1938 = vmatprep.subr.mxu0 0.0
      %1939 = vmatpush1.msra.mxu0 %v1770
      %1940 = vmatprep.subr.mxu0 0.0
      %1941 = vmatpush1.msra.mxu0 %v1771
      %1942 = vmatprep.subr.mxu0 0.0
      %1943 = vmatpush1.msra.mxu0 %v1772
      %1944 = vmatprep.subr.mxu0 0.0
      %1945 = vmatpush1.msra.mxu0 0.0
      %1946 = vmatprep.subr.mxu0 0.0
      %1947 = vmatpush1.msra.mxu0 0.0
      %1948 = vmatprep.subr.mxu0 0.0
      %1949 = vmatpush1.msra.mxu0 0.0
      %1950 = vmatprep.subr.mxu0 0.0
      %1951 = vmatpush1.msra.mxu0 0.0
      %1952 = vmatprep.subr.mxu0 0.0
      %1953 = vmatpush1.msra.mxu0 0.0
      %1954 = vmatprep.subr.mxu0 0.0
      %1955 = vmatpush1.msra.mxu0 0.0
      %1956 = vmatprep.subr.mxu0 0.0
      %1957 = vmatpush1.msra.mxu0 0.0
      %1958 = vmatprep.subr.mxu0 0.0
      %1959 = vmatpush1.msra.mxu0 0.0
      %1960 = vmatprep.subr.mxu0 0.0
      %1961 = vmatpush1.msra.mxu0 0.0
      %1962 = vmatprep.subr.mxu0 0.0
      %1963 = vmatpush1.msra.mxu0 0.0
      %1964 = vmatprep.subr.mxu0 0.0
      %1965 = vmatpush1.msra.mxu0 0.0
      %1966 = vmatprep.subr.mxu0 0.0
      %1967 = vmatpush1.msra.mxu0 0.0
      %1968 = vmatprep.subr.mxu0 0.0
      %1969 = vmatpush1.msra.mxu0 0.0
      %1970 = vmatprep.subr.mxu0 0.0
      %1971 = vmatpush1.msra.mxu0 0.0
      %1972 = vmatprep.subr.mxu0 0.0
      %1973 = vmatpush1.msra.mxu0 0.0
      %1974 = vmatprep.subr.mxu0 0.0
      %1975 = vmatpush1.msra.mxu0 0.0
      %1976 = vmatprep.subr.mxu0 0.0
      %1977 = vmatpush1.msra.mxu0 0.0
      %1978 = vmatprep.subr.mxu0 0.0
      %1979 = vmatpush1.msra.mxu0 0.0
      %1980 = vmatprep.subr.mxu0 0.0
      %1981 = vmatpush1.msra.mxu0 0.0
      %1982 = vmatprep.subr.mxu0 0.0
      %1983 = vmatpush1.msra.mxu0 0.0
      %1984 = vmatprep.subr.mxu0 0.0
      %1985 = vmatpush1.msra.mxu0 0.0
      %1986 = vmatprep.subr.mxu0 0.0
      %1987 = vmatpush1.msra.mxu0 0.0
      %1988 = vmatprep.subr.mxu0 0.0
      %1989 = vmatpush1.msra.mxu0 0.0
      %1990 = vmatprep.subr.mxu0 0.0
      %1991 = vmatpush1.msra.mxu0 0.0
      %1992 = vmatprep.mubr.f32.mxu0 0.0
      %1993 = vmatmul.mubr.f32.gmra.mrb[0].mxu0 %v1905
      %v1994 = vpop.f32.mrb[0].mxu0
      %v1995 = vadd.f32 %v1866, %v1994
      %v1996 = vpop.f32.mrb[0].mxu0
      %1997 = vmatprep.mubr.f32.mxu0 0.0
      %1998 = vmatmul.mubr.f32.gmra.mrb[0].mxu0 %v1908
      %v1999 = vpop.f32.mrb[0].mxu0
      %v2000 = vadd.f32 %v1871, %v1999
      %v2001 = vpop.f32.mrb[0].mxu0
      %2002 = vmatprep.mubr.f32.mxu0 0.0
      %2003 = vmatmul.mubr.f32.gmra.mrb[0].mxu0 %v1911
      %v2004 = vpop.f32.mrb[0].mxu0
      %v2005 = vadd.f32 %v1876, %v2004
      %v2006 = vpop.f32.mrb[0].mxu0
      %2007 = vmatprep.mubr.f32.mxu0 0.0
      %2008 = vmatmul.mubr.f32.gmra.mrb[0].mxu0 %v1914
      %v2009 = vpop.f32.mrb[0].mxu0
      %v2010 = vadd.f32 %v1881, %v2009
      %v2011 = vpop.f32.mrb[0].mxu0
      %2012 = vmatprep.mubr.f32.mxu0 0.0
      %2013 = vmatmul.mubr.f32.gmra.mrb[0].mxu0 %v1917
      %v2014 = vpop.f32.mrb[0].mxu0
      %v2015 = vadd.f32 %v1886, %v2014
      %v2016 = vpop.f32.mrb[0].mxu0
      %2017 = vmatprep.mubr.f32.mxu0 0.0
      %2018 = vmatmul.mubr.f32.gmra.mrb[0].mxu0 %v1920
      %v2019 = vpop.f32.mrb[0].mxu0
      %v2020 = vadd.f32 %v1891, %v2019
      %v2021 = vpop.f32.mrb[0].mxu0
      %2022 = vmatprep.mubr.f32.mxu0 0.0
      %2023 = vmatmul.mubr.f32.gmra.mrb[0].mxu0 %v1923
      %v2024 = vpop.f32.mrb[0].mxu0
      %v2025 = vadd.f32 %v1896, %v2024
      %v2026 = vpop.f32.mrb[0].mxu0
      %2027 = vmatprep.mubr.f32.mxu0 0.0
      %2028 = vmatmul.mubr.f32.gmra.mrb[0].mxu0 %v1926
      %v2029 = vpop.f32.mrb[0].mxu0
      %v2030 = vadd.f32 %v1901, %v2029
      %v2031 = vpop.f32.mrb[0].mxu0
      %2032 = vdwg.mxu0
      %v2034 = vrot.slane %v1722, 1
      %v2035 = vsel %vm722, %v723, %v2034
      %v2036 = vrot.slane %v1723, 1
      %v2037 = vsel %vm722, %v2034, %v2036
      %v2038 = vrot.slane %v1724, 1
      %v2039 = vsel %vm722, %v2036, %v2038
      %v2040 = vrot.slane %v1725, 1
      %v2041 = vsel %vm722, %v2038, %v2040
      %v2042 = vrot.slane %v1726, 1
      %v2043 = vsel %vm722, %v2040, %v2042
      %v2044 = vrot.slane %v1727, 1
      %v2045 = vsel %vm722, %v2042, %v2044
      %v2046 = vrot.slane %v1728, 1
      %v2047 = vsel %vm722, %v2044, %v2046
      %v2048 = vrot.slane %v1729, 1
      %v2049 = vsel %vm722, %v2046, %v2048
      %v2058 = vsel %vm713, %v2035, 0.0
      %v2059 = vsel %vm714, %v2037, 0.0
      %v2060 = vsel %vm715, %v2039, 0.0
      %v2061 = vsel %vm716, %v2041, 0.0
      %v2062 = vsel %vm717, %v2043, 0.0
      %v2063 = vsel %vm718, %v2045, 0.0
      %v2064 = vsel %vm719, %v2047, 0.0
      %v2065 = vsel %vm720, %v2049, 0.0
      %s2066 = scalar_lea.vmem %s3, 128
      %v2067 = vld [vmem:[%s2066] sm:$0xff]
      %v2068 = vld [vmem:[%s2066 + $0x8] sm:$0xff]
      %v2069 = vld [vmem:[%s2066 + $0x10] sm:$0xff]
      %v2070 = vld [vmem:[%s2066 + $0x18] sm:$0xff]
      %v2071 = vld [vmem:[%s2066 + $0x20] sm:$0xff]
      %v2072 = vld [vmem:[%s2066 + $0x28] sm:$0xff]
      %v2073 = vld [vmem:[%s2066 + $0x30] sm:$0xff]
      %v2074 = vld [vmem:[%s2066 + $0x38] sm:$0xff]
      %v2076 = vsel %vm1782, %v2058, 0
      %v2079 = vsel %vm1782, %v2059, 0
      %v2082 = vsel %vm1782, %v2060, 0
      %v2085 = vsel %vm1782, %v2061, 0
      %v2088 = vsel %vm1782, %v2062, 0
      %v2091 = vsel %vm1782, %v2063, 0
      %v2094 = vsel %vm1782, %v2064, 0
      %v2097 = vsel %vm1782, %v2065, 0
      %2099 = vmatprep.subr.mxu0 0.0
      %2100 = vmatpush1.msra.mxu0 %v2067
      %2101 = vmatprep.subr.mxu0 0.0
      %2102 = vmatpush1.msra.mxu0 %v2068
      %2103 = vmatprep.subr.mxu0 0.0
      %2104 = vmatpush1.msra.mxu0 %v2069
      %2105 = vmatprep.subr.mxu0 0.0
      %2106 = vmatpush1.msra.mxu0 %v2070
      %2107 = vmatprep.subr.mxu0 0.0
      %2108 = vmatpush1.msra.mxu0 %v2071
      %2109 = vmatprep.subr.mxu0 0.0
      %2110 = vmatpush1.msra.mxu0 %v2072
      %2111 = vmatprep.subr.mxu0 0.0
      %2112 = vmatpush1.msra.mxu0 %v2073
      %2113 = vmatprep.subr.mxu0 0.0
      %2114 = vmatpush1.msra.mxu0 %v2074
      %2115 = vmatprep.subr.mxu0 0.0
      %2116 = vmatpush1.msra.mxu0 0.0
      %2117 = vmatprep.subr.mxu0 0.0
      %2118 = vmatpush1.msra.mxu0 0.0
      %2119 = vmatprep.subr.mxu0 0.0
      %2120 = vmatpush1.msra.mxu0 0.0
      %2121 = vmatprep.subr.mxu0 0.0
      %2122 = vmatpush1.msra.mxu0 0.0
      %2123 = vmatprep.subr.mxu0 0.0
      %2124 = vmatpush1.msra.mxu0 0.0
      %2125 = vmatprep.subr.mxu0 0.0
      %2126 = vmatpush1.msra.mxu0 0.0
      %2127 = vmatprep.subr.mxu0 0.0
      %2128 = vmatpush1.msra.mxu0 0.0
      %2129 = vmatprep.subr.mxu0 0.0
      %2130 = vmatpush1.msra.mxu0 0.0
      %2131 = vmatprep.subr.mxu0 0.0
      %2132 = vmatpush1.msra.mxu0 0.0
      %2133 = vmatprep.subr.mxu0 0.0
      %2134 = vmatpush1.msra.mxu0 0.0
      %2135 = vmatprep.subr.mxu0 0.0
      %2136 = vmatpush1.msra.mxu0 0.0
      %2137 = vmatprep.subr.mxu0 0.0
      %2138 = vmatpush1.msra.mxu0 0.0
      %2139 = vmatprep.subr.mxu0 0.0
      %2140 = vmatpush1.msra.mxu0 0.0
      %2141 = vmatprep.subr.mxu0 0.0
      %2142 = vmatpush1.msra.mxu0 0.0
      %2143 = vmatprep.subr.mxu0 0.0
      %2144 = vmatpush1.msra.mxu0 0.0
      %2145 = vmatprep.subr.mxu0 0.0
      %2146 = vmatpush1.msra.mxu0 0.0
      %2147 = vmatprep.subr.mxu0 0.0
      %2148 = vmatpush1.msra.mxu0 0.0
      %2149 = vmatprep.subr.mxu0 0.0
      %2150 = vmatpush1.msra.mxu0 0.0
      %2151 = vmatprep.subr.mxu0 0.0
      %2152 = vmatpush1.msra.mxu0 0.0
      %2153 = vmatprep.subr.mxu0 0.0
      %2154 = vmatpush1.msra.mxu0 0.0
      %2155 = vmatprep.subr.mxu0 0.0
      %2156 = vmatpush1.msra.mxu0 0.0
      %2157 = vmatprep.subr.mxu0 0.0
      %2158 = vmatpush1.msra.mxu0 0.0
      %2159 = vmatprep.subr.mxu0 0.0
      %2160 = vmatpush1.msra.mxu0 0.0
      %2161 = vmatprep.subr.mxu0 0.0
      %2162 = vmatpush1.msra.mxu0 0.0
      %2163 = vmatprep.mubr.f32.mxu0 0.0
      %2164 = vmatmul.mubr.f32.gmra.mrb[0].mxu0 %v2076
      %v2165 = vpop.f32.mrb[0].mxu0
      %v2166 = vadd.f32 0.0, %v2165
      %v2167 = vpop.f32.mrb[0].mxu0
      %2168 = vmatprep.mubr.f32.mxu0 0.0
      %2169 = vmatmul.mubr.f32.gmra.mrb[0].mxu0 %v2079
      %v2170 = vpop.f32.mrb[0].mxu0
      %v2171 = vadd.f32 0.0, %v2170
      %v2172 = vpop.f32.mrb[0].mxu0
      %2173 = vmatprep.mubr.f32.mxu0 0.0
      %2174 = vmatmul.mubr.f32.gmra.mrb[0].mxu0 %v2082
      %v2175 = vpop.f32.mrb[0].mxu0
      %v2176 = vadd.f32 0.0, %v2175
      %v2177 = vpop.f32.mrb[0].mxu0
      %2178 = vmatprep.mubr.f32.mxu0 0.0
      %2179 = vmatmul.mubr.f32.gmra.mrb[0].mxu0 %v2085
      %v2180 = vpop.f32.mrb[0].mxu0
      %v2181 = vadd.f32 0.0, %v2180
      %v2182 = vpop.f32.mrb[0].mxu0
      %2183 = vmatprep.mubr.f32.mxu0 0.0
      %2184 = vmatmul.mubr.f32.gmra.mrb[0].mxu0 %v2088
      %v2185 = vpop.f32.mrb[0].mxu0
      %v2186 = vadd.f32 0.0, %v2185
      %v2187 = vpop.f32.mrb[0].mxu0
      %2188 = vmatprep.mubr.f32.mxu0 0.0
      %2189 = vmatmul.mubr.f32.gmra.mrb[0].mxu0 %v2091
      %v2190 = vpop.f32.mrb[0].mxu0
      %v2191 = vadd.f32 0.0, %v2190
      %v2192 = vpop.f32.mrb[0].mxu0
      %2193 = vmatprep.mubr.f32.mxu0 0.0
      %2194 = vmatmul.mubr.f32.gmra.mrb[0].mxu0 %v2094
      %v2195 = vpop.f32.mrb[0].mxu0
      %v2196 = vadd.f32 0.0, %v2195
      %v2197 = vpop.f32.mrb[0].mxu0
      %2198 = vmatprep.mubr.f32.mxu0 0.0
      %2199 = vmatmul.mubr.f32.gmra.mrb[0].mxu0 %v2097
      %v2200 = vpop.f32.mrb[0].mxu0
      %v2201 = vadd.f32 0.0, %v2200
      %v2202 = vpop.f32.mrb[0].mxu0
      %2203 = vdwg.mxu0
      %v2204 = vadd.f32 %v1995, %v2166
      %v2205 = vadd.f32 %v2000, %v2171
      %v2206 = vadd.f32 %v2005, %v2176
      %v2207 = vadd.f32 %v2010, %v2181
      %v2208 = vadd.f32 %v2015, %v2186
      %v2209 = vadd.f32 %v2020, %v2191
      %v2210 = vadd.f32 %v2025, %v2196
      %v2211 = vadd.f32 %v2030, %v2201
      %v2212 = vrot.slane %v1729, 7
      %v2213 = vsel %vm397, %v1749, %v2212
      %v2215 = vsel %vm381, %v1738, 0.0
      %v2216 = vsel %vm382, %v1740, 0.0
      %v2217 = vsel %vm383, %v1742, 0.0
      %v2218 = vsel %vm384, %v1744, 0.0
      %v2219 = vsel %vm385, %v1746, 0.0
      %v2220 = vsel %vm386, %v1748, 0.0
      %v2221 = vsel %vm387, %v1750, 0.0
      %v2222 = vsel %vm388, %v2213, 0.0
      %s2223 = scalar_lea.vmem %s3, 192
      %v2224 = vld [vmem:[%s2223] sm:$0xff]
      %v2225 = vld [vmem:[%s2223 + $0x8] sm:$0xff]
      %v2226 = vld [vmem:[%s2223 + $0x10] sm:$0xff]
      %v2227 = vld [vmem:[%s2223 + $0x18] sm:$0xff]
      %v2228 = vld [vmem:[%s2223 + $0x20] sm:$0xff]
      %v2229 = vld [vmem:[%s2223 + $0x28] sm:$0xff]
      %v2230 = vld [vmem:[%s2223 + $0x30] sm:$0xff]
      %v2231 = vld [vmem:[%s2223 + $0x38] sm:$0xff]
      %v2233 = vsel %vm1782, %v2215, 0
      %v2236 = vsel %vm1782, %v2216, 0
      %v2239 = vsel %vm1782, %v2217, 0
      %v2242 = vsel %vm1782, %v2218, 0
      %v2245 = vsel %vm1782, %v2219, 0
      %v2248 = vsel %vm1782, %v2220, 0
      %v2251 = vsel %vm1782, %v2221, 0
      %v2254 = vsel %vm1782, %v2222, 0
      %2256 = vmatprep.subr.mxu0 0.0
      %2257 = vmatpush1.msra.mxu0 %v2224
      %2258 = vmatprep.subr.mxu0 0.0
      %2259 = vmatpush1.msra.mxu0 %v2225
      %2260 = vmatprep.subr.mxu0 0.0
      %2261 = vmatpush1.msra.mxu0 %v2226
      %2262 = vmatprep.subr.mxu0 0.0
      %2263 = vmatpush1.msra.mxu0 %v2227
      %2264 = vmatprep.subr.mxu0 0.0
      %2265 = vmatpush1.msra.mxu0 %v2228
      %2266 = vmatprep.subr.mxu0 0.0
      %2267 = vmatpush1.msra.mxu0 %v2229
      %2268 = vmatprep.subr.mxu0 0.0
      %2269 = vmatpush1.msra.mxu0 %v2230
      %2270 = vmatprep.subr.mxu0 0.0
      %2271 = vmatpush1.msra.mxu0 %v2231
      %2272 = vmatprep.subr.mxu0 0.0
      %2273 = vmatpush1.msra.mxu0 0.0
      %2274 = vmatprep.subr.mxu0 0.0
      %2275 = vmatpush1.msra.mxu0 0.0
      %2276 = vmatprep.subr.mxu0 0.0
      %2277 = vmatpush1.msra.mxu0 0.0
      %2278 = vmatprep.subr.mxu0 0.0
      %2279 = vmatpush1.msra.mxu0 0.0
      %2280 = vmatprep.subr.mxu0 0.0
      %2281 = vmatpush1.msra.mxu0 0.0
      %2282 = vmatprep.subr.mxu0 0.0
      %2283 = vmatpush1.msra.mxu0 0.0
      %2284 = vmatprep.subr.mxu0 0.0
      %2285 = vmatpush1.msra.mxu0 0.0
      %2286 = vmatprep.subr.mxu0 0.0
      %2287 = vmatpush1.msra.mxu0 0.0
      %2288 = vmatprep.subr.mxu0 0.0
      %2289 = vmatpush1.msra.mxu0 0.0
      %2290 = vmatprep.subr.mxu0 0.0
      %2291 = vmatpush1.msra.mxu0 0.0
      %2292 = vmatprep.subr.mxu0 0.0
      %2293 = vmatpush1.msra.mxu0 0.0
      %2294 = vmatprep.subr.mxu0 0.0
      %2295 = vmatpush1.msra.mxu0 0.0
      %2296 = vmatprep.subr.mxu0 0.0
      %2297 = vmatpush1.msra.mxu0 0.0
      %2298 = vmatprep.subr.mxu0 0.0
      %2299 = vmatpush1.msra.mxu0 0.0
      %2300 = vmatprep.subr.mxu0 0.0
      %2301 = vmatpush1.msra.mxu0 0.0
      %2302 = vmatprep.subr.mxu0 0.0
      %2303 = vmatpush1.msra.mxu0 0.0
      %2304 = vmatprep.subr.mxu0 0.0
      %2305 = vmatpush1.msra.mxu0 0.0
      %2306 = vmatprep.subr.mxu0 0.0
      %2307 = vmatpush1.msra.mxu0 0.0
      %2308 = vmatprep.subr.mxu0 0.0
      %2309 = vmatpush1.msra.mxu0 0.0
      %2310 = vmatprep.subr.mxu0 0.0
      %2311 = vmatpush1.msra.mxu0 0.0
      %2312 = vmatprep.subr.mxu0 0.0
      %2313 = vmatpush1.msra.mxu0 0.0
      %2314 = vmatprep.subr.mxu0 0.0
      %2315 = vmatpush1.msra.mxu0 0.0
      %2316 = vmatprep.subr.mxu0 0.0
      %2317 = vmatpush1.msra.mxu0 0.0
      %2318 = vmatprep.subr.mxu0 0.0
      %2319 = vmatpush1.msra.mxu0 0.0
      %2320 = vmatprep.mubr.f32.mxu0 0.0
      %2321 = vmatmul.mubr.f32.gmra.mrb[0].mxu0 %v2233
      %v2322 = vpop.f32.mrb[0].mxu0
      %v2323 = vadd.f32 0.0, %v2322
      %v2324 = vpop.f32.mrb[0].mxu0
      %2325 = vmatprep.mubr.f32.mxu0 0.0
      %2326 = vmatmul.mubr.f32.gmra.mrb[0].mxu0 %v2236
      %v2327 = vpop.f32.mrb[0].mxu0
      %v2328 = vadd.f32 0.0, %v2327
      %v2329 = vpop.f32.mrb[0].mxu0
      %2330 = vmatprep.mubr.f32.mxu0 0.0
      %2331 = vmatmul.mubr.f32.gmra.mrb[0].mxu0 %v2239
      %v2332 = vpop.f32.mrb[0].mxu0
      %v2333 = vadd.f32 0.0, %v2332
      %v2334 = vpop.f32.mrb[0].mxu0
      %2335 = vmatprep.mubr.f32.mxu0 0.0
      %2336 = vmatmul.mubr.f32.gmra.mrb[0].mxu0 %v2242
      %v2337 = vpop.f32.mrb[0].mxu0
      %v2338 = vadd.f32 0.0, %v2337
      %v2339 = vpop.f32.mrb[0].mxu0
      %2340 = vmatprep.mubr.f32.mxu0 0.0
      %2341 = vmatmul.mubr.f32.gmra.mrb[0].mxu0 %v2245
      %v2342 = vpop.f32.mrb[0].mxu0
      %v2343 = vadd.f32 0.0, %v2342
      %v2344 = vpop.f32.mrb[0].mxu0
      %2345 = vmatprep.mubr.f32.mxu0 0.0
      %2346 = vmatmul.mubr.f32.gmra.mrb[0].mxu0 %v2248
      %v2347 = vpop.f32.mrb[0].mxu0
      %v2348 = vadd.f32 0.0, %v2347
      %v2349 = vpop.f32.mrb[0].mxu0
      %2350 = vmatprep.mubr.f32.mxu0 0.0
      %2351 = vmatmul.mubr.f32.gmra.mrb[0].mxu0 %v2251
      %v2352 = vpop.f32.mrb[0].mxu0
      %v2353 = vadd.f32 0.0, %v2352
      %v2354 = vpop.f32.mrb[0].mxu0
      %2355 = vmatprep.mubr.f32.mxu0 0.0
      %2356 = vmatmul.mubr.f32.gmra.mrb[0].mxu0 %v2254
      %v2357 = vpop.f32.mrb[0].mxu0
      %v2358 = vadd.f32 0.0, %v2357
      %v2359 = vpop.f32.mrb[0].mxu0
      %2360 = vdwg.mxu0
      %v2361 = vadd.f32 %v2204, %v2323
      %v2362 = vadd.f32 %v2205, %v2328
      %v2363 = vadd.f32 %v2206, %v2333
      %v2364 = vadd.f32 %v2207, %v2338
      %v2365 = vadd.f32 %v2208, %v2343
      %v2366 = vadd.f32 %v2209, %v2348
      %v2367 = vadd.f32 %v2210, %v2353
      %v2368 = vadd.f32 %v2211, %v2358
      %s2369 = scalar_lea.vmem %s3, 256
      %v2370 = vld [vmem:[%s2369] sm:$0xff]
      %v2371 = vld [vmem:[%s2369 + $0x8] sm:$0xff]
      %v2372 = vld [vmem:[%s2369 + $0x10] sm:$0xff]
      %v2373 = vld [vmem:[%s2369 + $0x18] sm:$0xff]
      %v2374 = vld [vmem:[%s2369 + $0x20] sm:$0xff]
      %v2375 = vld [vmem:[%s2369 + $0x28] sm:$0xff]
      %v2376 = vld [vmem:[%s2369 + $0x30] sm:$0xff]
      %v2377 = vld [vmem:[%s2369 + $0x38] sm:$0xff]
      %v2378 = vsel %vm1782, %v1729, 0
      %2380 = vmatprep.subr.mxu0 0.0
      %2381 = vmatpush1.msra.mxu0 %v2370
      %2382 = vmatprep.subr.mxu0 0.0
      %2383 = vmatpush1.msra.mxu0 %v2371
      %2384 = vmatprep.subr.mxu0 0.0
      %2385 = vmatpush1.msra.mxu0 %v2372
      %2386 = vmatprep.subr.mxu0 0.0
      %2387 = vmatpush1.msra.mxu0 %v2373
      %2388 = vmatprep.subr.mxu0 0.0
      %2389 = vmatpush1.msra.mxu0 %v2374
      %2390 = vmatprep.subr.mxu0 0.0
      %2391 = vmatpush1.msra.mxu0 %v2375
      %2392 = vmatprep.subr.mxu0 0.0
      %2393 = vmatpush1.msra.mxu0 %v2376
      %2394 = vmatprep.subr.mxu0 0.0
      %2395 = vmatpush1.msra.mxu0 %v2377
      %2396 = vmatprep.subr.mxu0 0.0
      %2397 = vmatpush1.msra.mxu0 0.0
      %2398 = vmatprep.subr.mxu0 0.0
      %2399 = vmatpush1.msra.mxu0 0.0
      %2400 = vmatprep.subr.mxu0 0.0
      %2401 = vmatpush1.msra.mxu0 0.0
      %2402 = vmatprep.subr.mxu0 0.0
      %2403 = vmatpush1.msra.mxu0 0.0
      %2404 = vmatprep.subr.mxu0 0.0
      %2405 = vmatpush1.msra.mxu0 0.0
      %2406 = vmatprep.subr.mxu0 0.0
      %2407 = vmatpush1.msra.mxu0 0.0
      %2408 = vmatprep.subr.mxu0 0.0
      %2409 = vmatpush1.msra.mxu0 0.0
      %2410 = vmatprep.subr.mxu0 0.0
      %2411 = vmatpush1.msra.mxu0 0.0
      %2412 = vmatprep.subr.mxu0 0.0
      %2413 = vmatpush1.msra.mxu0 0.0
      %2414 = vmatprep.subr.mxu0 0.0
      %2415 = vmatpush1.msra.mxu0 0.0
      %2416 = vmatprep.subr.mxu0 0.0
      %2417 = vmatpush1.msra.mxu0 0.0
      %2418 = vmatprep.subr.mxu0 0.0
      %2419 = vmatpush1.msra.mxu0 0.0
      %2420 = vmatprep.subr.mxu0 0.0
      %2421 = vmatpush1.msra.mxu0 0.0
      %2422 = vmatprep.subr.mxu0 0.0
      %2423 = vmatpush1.msra.mxu0 0.0
      %2424 = vmatprep.subr.mxu0 0.0
      %2425 = vmatpush1.msra.mxu0 0.0
      %2426 = vmatprep.subr.mxu0 0.0
      %2427 = vmatpush1.msra.mxu0 0.0
      %2428 = vmatprep.subr.mxu0 0.0
      %2429 = vmatpush1.msra.mxu0 0.0
      %2430 = vmatprep.subr.mxu0 0.0
      %2431 = vmatpush1.msra.mxu0 0.0
      %2432 = vmatprep.subr.mxu0 0.0
      %2433 = vmatpush1.msra.mxu0 0.0
      %2434 = vmatprep.subr.mxu0 0.0
      %2435 = vmatpush1.msra.mxu0 0.0
      %2436 = vmatprep.subr.mxu0 0.0
      %2437 = vmatpush1.msra.mxu0 0.0
      %2438 = vmatprep.subr.mxu0 0.0
      %2439 = vmatpush1.msra.mxu0 0.0
      %2440 = vmatprep.subr.mxu0 0.0
      %2441 = vmatpush1.msra.mxu0 0.0
      %2442 = vmatprep.subr.mxu0 0.0
      %2443 = vmatpush1.msra.mxu0 0.0
      %2444 = vmatprep.mubr.f32.mxu0 0.0
      %2445 = vmatmul.mubr.f32.gmra.mrb[0].mxu0 %v1785
      %v2446 = vpop.f32.mrb[0].mxu0
      %v2447 = vadd.f32 0.0, %v2446
      %v2448 = vpop.f32.mrb[0].mxu0
      %2449 = vmatprep.mubr.f32.mxu0 0.0
      %2450 = vmatmul.mubr.f32.gmra.mrb[0].mxu0 %v1787
      %v2451 = vpop.f32.mrb[0].mxu0
      %v2452 = vadd.f32 0.0, %v2451
      %v2453 = vpop.f32.mrb[0].mxu0
      %2454 = vmatprep.mubr.f32.mxu0 0.0
      %2455 = vmatmul.mubr.f32.gmra.mrb[0].mxu0 %v1789
      %v2456 = vpop.f32.mrb[0].mxu0
      %v2457 = vadd.f32 0.0, %v2456
      %v2458 = vpop.f32.mrb[0].mxu0
      %2459 = vmatprep.mubr.f32.mxu0 0.0
      %2460 = vmatmul.mubr.f32.gmra.mrb[0].mxu0 %v1791
      %v2461 = vpop.f32.mrb[0].mxu0
      %v2462 = vadd.f32 0.0, %v2461
      %v2463 = vpop.f32.mrb[0].mxu0
      %2464 = vmatprep.mubr.f32.mxu0 0.0
      %2465 = vmatmul.mubr.f32.gmra.mrb[0].mxu0 %v1793
      %v2466 = vpop.f32.mrb[0].mxu0
      %v2467 = vadd.f32 0.0, %v2466
      %v2468 = vpop.f32.mrb[0].mxu0
      %2469 = vmatprep.mubr.f32.mxu0 0.0
      %2470 = vmatmul.mubr.f32.gmra.mrb[0].mxu0 %v1795
      %v2471 = vpop.f32.mrb[0].mxu0
      %v2472 = vadd.f32 0.0, %v2471
      %v2473 = vpop.f32.mrb[0].mxu0
      %2474 = vmatprep.mubr.f32.mxu0 0.0
      %2475 = vmatmul.mubr.f32.gmra.mrb[0].mxu0 %v1797
      %v2476 = vpop.f32.mrb[0].mxu0
      %v2477 = vadd.f32 0.0, %v2476
      %v2478 = vpop.f32.mrb[0].mxu0
      %2479 = vmatprep.mubr.f32.mxu0 0.0
      %2480 = vmatmul.mubr.f32.gmra.mrb[0].mxu0 %v2378
      %v2481 = vpop.f32.mrb[0].mxu0
      %v2482 = vadd.f32 0.0, %v2481
      %v2483 = vpop.f32.mrb[0].mxu0
      %2484 = vdwg.mxu0
      %v2485 = vadd.f32 %v2361, %v2447
      %v2486 = vadd.f32 %v2362, %v2452
      %v2487 = vadd.f32 %v2363, %v2457
      %v2488 = vadd.f32 %v2364, %v2462
      %v2489 = vadd.f32 %v2365, %v2467
      %v2490 = vadd.f32 %v2366, %v2472
      %v2491 = vadd.f32 %v2367, %v2477
      %v2492 = vadd.f32 %v2368, %v2482
      %v2493 = vsel %vm722, %v2048, %v723
      %v2495 = vsel %vm713, %v2037, 0.0
      %v2496 = vsel %vm714, %v2039, 0.0
      %v2497 = vsel %vm715, %v2041, 0.0
      %v2498 = vsel %vm716, %v2043, 0.0
      %v2499 = vsel %vm717, %v2045, 0.0
      %v2500 = vsel %vm718, %v2047, 0.0
      %v2501 = vsel %vm719, %v2049, 0.0
      %v2502 = vsel %vm720, %v2493, 0.0
      %s2503 = scalar_lea.vmem %s3, 320
      %v2504 = vld [vmem:[%s2503] sm:$0xff]
      %v2505 = vld [vmem:[%s2503 + $0x8] sm:$0xff]
      %v2506 = vld [vmem:[%s2503 + $0x10] sm:$0xff]
      %v2507 = vld [vmem:[%s2503 + $0x18] sm:$0xff]
      %v2508 = vld [vmem:[%s2503 + $0x20] sm:$0xff]
      %v2509 = vld [vmem:[%s2503 + $0x28] sm:$0xff]
      %v2510 = vld [vmem:[%s2503 + $0x30] sm:$0xff]
      %v2511 = vld [vmem:[%s2503 + $0x38] sm:$0xff]
      %v2513 = vsel %vm1782, %v2495, 0
      %v2516 = vsel %vm1782, %v2496, 0
      %v2519 = vsel %vm1782, %v2497, 0
      %v2522 = vsel %vm1782, %v2498, 0
      %v2525 = vsel %vm1782, %v2499, 0
      %v2528 = vsel %vm1782, %v2500, 0
      %v2531 = vsel %vm1782, %v2501, 0
      %v2534 = vsel %vm1782, %v2502, 0
      %2536 = vmatprep.subr.mxu0 0.0
      %2537 = vmatpush1.msra.mxu0 %v2504
      %2538 = vmatprep.subr.mxu0 0.0
      %2539 = vmatpush1.msra.mxu0 %v2505
      %2540 = vmatprep.subr.mxu0 0.0
      %2541 = vmatpush1.msra.mxu0 %v2506
      %2542 = vmatprep.subr.mxu0 0.0
      %2543 = vmatpush1.msra.mxu0 %v2507
      %2544 = vmatprep.subr.mxu0 0.0
      %2545 = vmatpush1.msra.mxu0 %v2508
      %2546 = vmatprep.subr.mxu0 0.0
      %2547 = vmatpush1.msra.mxu0 %v2509
      %2548 = vmatprep.subr.mxu0 0.0
      %2549 = vmatpush1.msra.mxu0 %v2510
      %2550 = vmatprep.subr.mxu0 0.0
      %2551 = vmatpush1.msra.mxu0 %v2511
      %2552 = vmatprep.subr.mxu0 0.0
      %2553 = vmatpush1.msra.mxu0 0.0
      %2554 = vmatprep.subr.mxu0 0.0
      %2555 = vmatpush1.msra.mxu0 0.0
      %2556 = vmatprep.subr.mxu0 0.0
      %2557 = vmatpush1.msra.mxu0 0.0
      %2558 = vmatprep.subr.mxu0 0.0
      %2559 = vmatpush1.msra.mxu0 0.0
      %2560 = vmatprep.subr.mxu0 0.0
      %2561 = vmatpush1.msra.mxu0 0.0
      %2562 = vmatprep.subr.mxu0 0.0
      %2563 = vmatpush1.msra.mxu0 0.0
      %2564 = vmatprep.subr.mxu0 0.0
      %2565 = vmatpush1.msra.mxu0 0.0
      %2566 = vmatprep.subr.mxu0 0.0
      %2567 = vmatpush1.msra.mxu0 0.0
      %2568 = vmatprep.subr.mxu0 0.0
      %2569 = vmatpush1.msra.mxu0 0.0
      %2570 = vmatprep.subr.mxu0 0.0
      %2571 = vmatpush1.msra.mxu0 0.0
      %2572 = vmatprep.subr.mxu0 0.0
      %2573 = vmatpush1.msra.mxu0 0.0
      %2574 = vmatprep.subr.mxu0 0.0
      %2575 = vmatpush1.msra.mxu0 0.0
      %2576 = vmatprep.subr.mxu0 0.0
      %2577 = vmatpush1.msra.mxu0 0.0
      %2578 = vmatprep.subr.mxu0 0.0
      %2579 = vmatpush1.msra.mxu0 0.0
      %2580 = vmatprep.subr.mxu0 0.0
      %2581 = vmatpush1.msra.mxu0 0.0
      %2582 = vmatprep.subr.mxu0 0.0
      %2583 = vmatpush1.msra.mxu0 0.0
      %2584 = vmatprep.subr.mxu0 0.0
      %2585 = vmatpush1.msra.mxu0 0.0
      %2586 = vmatprep.subr.mxu0 0.0
      %2587 = vmatpush1.msra.mxu0 0.0
      %2588 = vmatprep.subr.mxu0 0.0
      %2589 = vmatpush1.msra.mxu0 0.0
      %2590 = vmatprep.subr.mxu0 0.0
      %2591 = vmatpush1.msra.mxu0 0.0
      %2592 = vmatprep.subr.mxu0 0.0
      %2593 = vmatpush1.msra.mxu0 0.0
      %2594 = vmatprep.subr.mxu0 0.0
      %2595 = vmatpush1.msra.mxu0 0.0
      %2596 = vmatprep.subr.mxu0 0.0
      %2597 = vmatpush1.msra.mxu0 0.0
      %2598 = vmatprep.subr.mxu0 0.0
      %2599 = vmatpush1.msra.mxu0 0.0
      %2600 = vmatprep.mubr.f32.mxu0 0.0
      %2601 = vmatmul.mubr.f32.gmra.mrb[0].mxu0 %v2513
      %v2602 = vpop.f32.mrb[0].mxu0
      %v2603 = vadd.f32 0.0, %v2602
      %v2604 = vpop.f32.mrb[0].mxu0
      %2605 = vmatprep.mubr.f32.mxu0 0.0
      %2606 = vmatmul.mubr.f32.gmra.mrb[0].mxu0 %v2516
      %v2607 = vpop.f32.mrb[0].mxu0
      %v2608 = vadd.f32 0.0, %v2607
      %v2609 = vpop.f32.mrb[0].mxu0
      %2610 = vmatprep.mubr.f32.mxu0 0.0
      %2611 = vmatmul.mubr.f32.gmra.mrb[0].mxu0 %v2519
      %v2612 = vpop.f32.mrb[0].mxu0
      %v2613 = vadd.f32 0.0, %v2612
      %v2614 = vpop.f32.mrb[0].mxu0
      %2615 = vmatprep.mubr.f32.mxu0 0.0
      %2616 = vmatmul.mubr.f32.gmra.mrb[0].mxu0 %v2522
      %v2617 = vpop.f32.mrb[0].mxu0
      %v2618 = vadd.f32 0.0, %v2617
      %v2619 = vpop.f32.mrb[0].mxu0
      %2620 = vmatprep.mubr.f32.mxu0 0.0
      %2621 = vmatmul.mubr.f32.gmra.mrb[0].mxu0 %v2525
      %v2622 = vpop.f32.mrb[0].mxu0
      %v2623 = vadd.f32 0.0, %v2622
      %v2624 = vpop.f32.mrb[0].mxu0
      %2625 = vmatprep.mubr.f32.mxu0 0.0
      %2626 = vmatmul.mubr.f32.gmra.mrb[0].mxu0 %v2528
      %v2627 = vpop.f32.mrb[0].mxu0
      %v2628 = vadd.f32 0.0, %v2627
      %v2629 = vpop.f32.mrb[0].mxu0
      %2630 = vmatprep.mubr.f32.mxu0 0.0
      %2631 = vmatmul.mubr.f32.gmra.mrb[0].mxu0 %v2531
      %v2632 = vpop.f32.mrb[0].mxu0
      %v2633 = vadd.f32 0.0, %v2632
      %v2634 = vpop.f32.mrb[0].mxu0
      %2635 = vmatprep.mubr.f32.mxu0 0.0
      %2636 = vmatmul.mubr.f32.gmra.mrb[0].mxu0 %v2534
      %v2637 = vpop.f32.mrb[0].mxu0
      %v2638 = vadd.f32 0.0, %v2637
      %v2639 = vpop.f32.mrb[0].mxu0
      %2640 = vdwg.mxu0
      %v2641 = vadd.f32 %v2485, %v2603
      %v2642 = vadd.f32 %v2486, %v2608
      %v2643 = vadd.f32 %v2487, %v2613
      %v2644 = vadd.f32 %v2488, %v2618
      %v2645 = vadd.f32 %v2489, %v2623
      %v2646 = vadd.f32 %v2490, %v2628
      %v2647 = vadd.f32 %v2491, %v2633
      %v2648 = vadd.f32 %v2492, %v2638
      %v2649 = vsel %vm397, %v2212, %v398
      %v2651 = vsel %vm381, %v1740, 0.0
      %v2652 = vsel %vm382, %v1742, 0.0
      %v2653 = vsel %vm383, %v1744, 0.0
      %v2654 = vsel %vm384, %v1746, 0.0
      %v2655 = vsel %vm385, %v1748, 0.0
      %v2656 = vsel %vm386, %v1750, 0.0
      %v2657 = vsel %vm387, %v2213, 0.0
      %v2658 = vsel %vm388, %v2649, 0.0
      %s2659 = scalar_lea.vmem %s3, 384
      %v2660 = vld [vmem:[%s2659] sm:$0xff]
      %v2661 = vld [vmem:[%s2659 + $0x8] sm:$0xff]
      %v2662 = vld [vmem:[%s2659 + $0x10] sm:$0xff]
      %v2663 = vld [vmem:[%s2659 + $0x18] sm:$0xff]
      %v2664 = vld [vmem:[%s2659 + $0x20] sm:$0xff]
      %v2665 = vld [vmem:[%s2659 + $0x28] sm:$0xff]
      %v2666 = vld [vmem:[%s2659 + $0x30] sm:$0xff]
      %v2667 = vld [vmem:[%s2659 + $0x38] sm:$0xff]
      %v2669 = vsel %vm1782, %v2651, 0
      %v2672 = vsel %vm1782, %v2652, 0
      %v2675 = vsel %vm1782, %v2653, 0
      %v2678 = vsel %vm1782, %v2654, 0
      %v2681 = vsel %vm1782, %v2655, 0
      %v2684 = vsel %vm1782, %v2656, 0
      %v2687 = vsel %vm1782, %v2657, 0
      %v2690 = vsel %vm1782, %v2658, 0
      %2692 = vmatprep.subr.mxu0 0.0
      %2693 = vmatpush1.msra.mxu0 %v2660
      %2694 = vmatprep.subr.mxu0 0.0
      %2695 = vmatpush1.msra.mxu0 %v2661
      %2696 = vmatprep.subr.mxu0 0.0
      %2697 = vmatpush1.msra.mxu0 %v2662
      %2698 = vmatprep.subr.mxu0 0.0
      %2699 = vmatpush1.msra.mxu0 %v2663
      %2700 = vmatprep.subr.mxu0 0.0
      %2701 = vmatpush1.msra.mxu0 %v2664
      %2702 = vmatprep.subr.mxu0 0.0
      %2703 = vmatpush1.msra.mxu0 %v2665
      %2704 = vmatprep.subr.mxu0 0.0
      %2705 = vmatpush1.msra.mxu0 %v2666
      %2706 = vmatprep.subr.mxu0 0.0
      %2707 = vmatpush1.msra.mxu0 %v2667
      %2708 = vmatprep.subr.mxu0 0.0
      %2709 = vmatpush1.msra.mxu0 0.0
      %2710 = vmatprep.subr.mxu0 0.0
      %2711 = vmatpush1.msra.mxu0 0.0
      %2712 = vmatprep.subr.mxu0 0.0
      %2713 = vmatpush1.msra.mxu0 0.0
      %2714 = vmatprep.subr.mxu0 0.0
      %2715 = vmatpush1.msra.mxu0 0.0
      %2716 = vmatprep.subr.mxu0 0.0
      %2717 = vmatpush1.msra.mxu0 0.0
      %2718 = vmatprep.subr.mxu0 0.0
      %2719 = vmatpush1.msra.mxu0 0.0
      %2720 = vmatprep.subr.mxu0 0.0
      %2721 = vmatpush1.msra.mxu0 0.0
      %2722 = vmatprep.subr.mxu0 0.0
      %2723 = vmatpush1.msra.mxu0 0.0
      %2724 = vmatprep.subr.mxu0 0.0
      %2725 = vmatpush1.msra.mxu0 0.0
      %2726 = vmatprep.subr.mxu0 0.0
      %2727 = vmatpush1.msra.mxu0 0.0
      %2728 = vmatprep.subr.mxu0 0.0
      %2729 = vmatpush1.msra.mxu0 0.0
      %2730 = vmatprep.subr.mxu0 0.0
      %2731 = vmatpush1.msra.mxu0 0.0
      %2732 = vmatprep.subr.mxu0 0.0
      %2733 = vmatpush1.msra.mxu0 0.0
      %2734 = vmatprep.subr.mxu0 0.0
      %2735 = vmatpush1.msra.mxu0 0.0
      %2736 = vmatprep.subr.mxu0 0.0
      %2737 = vmatpush1.msra.mxu0 0.0
      %2738 = vmatprep.subr.mxu0 0.0
      %2739 = vmatpush1.msra.mxu0 0.0
      %2740 = vmatprep.subr.mxu0 0.0
      %2741 = vmatpush1.msra.mxu0 0.0
      %2742 = vmatprep.subr.mxu0 0.0
      %2743 = vmatpush1.msra.mxu0 0.0
      %2744 = vmatprep.subr.mxu0 0.0
      %2745 = vmatpush1.msra.mxu0 0.0
      %2746 = vmatprep.subr.mxu0 0.0
      %2747 = vmatpush1.msra.mxu0 0.0
      %2748 = vmatprep.subr.mxu0 0.0
      %2749 = vmatpush1.msra.mxu0 0.0
      %2750 = vmatprep.subr.mxu0 0.0
      %2751 = vmatpush1.msra.mxu0 0.0
      %2752 = vmatprep.subr.mxu0 0.0
      %2753 = vmatpush1.msra.mxu0 0.0
      %2754 = vmatprep.subr.mxu0 0.0
      %2755 = vmatpush1.msra.mxu0 0.0
      %2756 = vmatprep.mubr.f32.mxu0 0.0
      %2757 = vmatmul.mubr.f32.gmra.mrb[0].mxu0 %v2669
      %v2758 = vpop.f32.mrb[0].mxu0
      %v2759 = vadd.f32 0.0, %v2758
      %v2760 = vpop.f32.mrb[0].mxu0
      %2761 = vmatprep.mubr.f32.mxu0 0.0
      %2762 = vmatmul.mubr.f32.gmra.mrb[0].mxu0 %v2672
      %v2763 = vpop.f32.mrb[0].mxu0
      %v2764 = vadd.f32 0.0, %v2763
      %v2765 = vpop.f32.mrb[0].mxu0
      %2766 = vmatprep.mubr.f32.mxu0 0.0
      %2767 = vmatmul.mubr.f32.gmra.mrb[0].mxu0 %v2675
      %v2768 = vpop.f32.mrb[0].mxu0
      %v2769 = vadd.f32 0.0, %v2768
      %v2770 = vpop.f32.mrb[0].mxu0
      %2771 = vmatprep.mubr.f32.mxu0 0.0
      %2772 = vmatmul.mubr.f32.gmra.mrb[0].mxu0 %v2678
      %v2773 = vpop.f32.mrb[0].mxu0
      %v2774 = vadd.f32 0.0, %v2773
      %v2775 = vpop.f32.mrb[0].mxu0
      %2776 = vmatprep.mubr.f32.mxu0 0.0
      %2777 = vmatmul.mubr.f32.gmra.mrb[0].mxu0 %v2681
      %v2778 = vpop.f32.mrb[0].mxu0
      %v2779 = vadd.f32 0.0, %v2778
      %v2780 = vpop.f32.mrb[0].mxu0
      %2781 = vmatprep.mubr.f32.mxu0 0.0
      %2782 = vmatmul.mubr.f32.gmra.mrb[0].mxu0 %v2684
      %v2783 = vpop.f32.mrb[0].mxu0
      %v2784 = vadd.f32 0.0, %v2783
      %v2785 = vpop.f32.mrb[0].mxu0
      %2786 = vmatprep.mubr.f32.mxu0 0.0
      %2787 = vmatmul.mubr.f32.gmra.mrb[0].mxu0 %v2687
      %v2788 = vpop.f32.mrb[0].mxu0
      %v2789 = vadd.f32 0.0, %v2788
      %v2790 = vpop.f32.mrb[0].mxu0
      %2791 = vmatprep.mubr.f32.mxu0 0.0
      %2792 = vmatmul.mubr.f32.gmra.mrb[0].mxu0 %v2690
      %v2793 = vpop.f32.mrb[0].mxu0
      %v2794 = vadd.f32 0.0, %v2793
      %v2795 = vpop.f32.mrb[0].mxu0
      %2796 = vdwg.mxu0
      %v2797 = vadd.f32 %v2641, %v2759
      %v2798 = vadd.f32 %v2642, %v2764
      %v2799 = vadd.f32 %v2643, %v2769
      %v2800 = vadd.f32 %v2644, %v2774
      %v2801 = vadd.f32 %v2645, %v2779
      %v2802 = vadd.f32 %v2646, %v2784
      %v2803 = vadd.f32 %v2647, %v2789
      %v2804 = vadd.f32 %v2648, %v2794
      %s2805 = scalar_lea.vmem %s3, 448
      %v2806 = vld [vmem:[%s2805] sm:$0xff]
      %v2807 = vld [vmem:[%s2805 + $0x8] sm:$0xff]
      %v2808 = vld [vmem:[%s2805 + $0x10] sm:$0xff]
      %v2809 = vld [vmem:[%s2805 + $0x18] sm:$0xff]
      %v2810 = vld [vmem:[%s2805 + $0x20] sm:$0xff]
      %v2811 = vld [vmem:[%s2805 + $0x28] sm:$0xff]
      %v2812 = vld [vmem:[%s2805 + $0x30] sm:$0xff]
      %v2813 = vld [vmem:[%s2805 + $0x38] sm:$0xff]
      %2814 = vmatprep.subr.mxu0 0.0
      %2815 = vmatpush1.msra.mxu0 %v2806
      %2816 = vmatprep.subr.mxu0 0.0
      %2817 = vmatpush1.msra.mxu0 %v2807
      %2818 = vmatprep.subr.mxu0 0.0
      %2819 = vmatpush1.msra.mxu0 %v2808
      %2820 = vmatprep.subr.mxu0 0.0
      %2821 = vmatpush1.msra.mxu0 %v2809
      %2822 = vmatprep.subr.mxu0 0.0
      %2823 = vmatpush1.msra.mxu0 %v2810
      %2824 = vmatprep.subr.mxu0 0.0
      %2825 = vmatpush1.msra.mxu0 %v2811
      %2826 = vmatprep.subr.mxu0 0.0
      %2827 = vmatpush1.msra.mxu0 %v2812
      %2828 = vmatprep.subr.mxu0 0.0
      %2829 = vmatpush1.msra.mxu0 %v2813
      %2830 = vmatprep.subr.mxu0 0.0
      %2831 = vmatpush1.msra.mxu0 0.0
      %2832 = vmatprep.subr.mxu0 0.0
      %2833 = vmatpush1.msra.mxu0 0.0
      %2834 = vmatprep.subr.mxu0 0.0
      %2835 = vmatpush1.msra.mxu0 0.0
      %2836 = vmatprep.subr.mxu0 0.0
      %2837 = vmatpush1.msra.mxu0 0.0
      %2838 = vmatprep.subr.mxu0 0.0
      %2839 = vmatpush1.msra.mxu0 0.0
      %2840 = vmatprep.subr.mxu0 0.0
      %2841 = vmatpush1.msra.mxu0 0.0
      %2842 = vmatprep.subr.mxu0 0.0
      %2843 = vmatpush1.msra.mxu0 0.0
      %2844 = vmatprep.subr.mxu0 0.0
      %2845 = vmatpush1.msra.mxu0 0.0
      %2846 = vmatprep.subr.mxu0 0.0
      %2847 = vmatpush1.msra.mxu0 0.0
      %2848 = vmatprep.subr.mxu0 0.0
      %2849 = vmatpush1.msra.mxu0 0.0
      %2850 = vmatprep.subr.mxu0 0.0
      %2851 = vmatpush1.msra.mxu0 0.0
      %2852 = vmatprep.subr.mxu0 0.0
      %2853 = vmatpush1.msra.mxu0 0.0
      %2854 = vmatprep.subr.mxu0 0.0
      %2855 = vmatpush1.msra.mxu0 0.0
      %2856 = vmatprep.subr.mxu0 0.0
      %2857 = vmatpush1.msra.mxu0 0.0
      %2858 = vmatprep.subr.mxu0 0.0
      %2859 = vmatpush1.msra.mxu0 0.0
      %2860 = vmatprep.subr.mxu0 0.0
      %2861 = vmatpush1.msra.mxu0 0.0
      %2862 = vmatprep.subr.mxu0 0.0
      %2863 = vmatpush1.msra.mxu0 0.0
      %2864 = vmatprep.subr.mxu0 0.0
      %2865 = vmatpush1.msra.mxu0 0.0
      %2866 = vmatprep.subr.mxu0 0.0
      %2867 = vmatpush1.msra.mxu0 0.0
      %2868 = vmatprep.subr.mxu0 0.0
      %2869 = vmatpush1.msra.mxu0 0.0
      %2870 = vmatprep.subr.mxu0 0.0
      %2871 = vmatpush1.msra.mxu0 0.0
      %2872 = vmatprep.subr.mxu0 0.0
      %2873 = vmatpush1.msra.mxu0 0.0
      %2874 = vmatprep.subr.mxu0 0.0
      %2875 = vmatpush1.msra.mxu0 0.0
      %2876 = vmatprep.subr.mxu0 0.0
      %2877 = vmatpush1.msra.mxu0 0.0
      %2878 = vmatprep.mubr.f32.mxu0 0.0
      %2879 = vmatmul.mubr.f32.gmra.mrb[0].mxu0 %v1787
      %v2880 = vpop.f32.mrb[0].mxu0
      %v2881 = vadd.f32 0.0, %v2880
      %v2882 = vpop.f32.mrb[0].mxu0
      %2883 = vmatprep.mubr.f32.mxu0 0.0
      %2884 = vmatmul.mubr.f32.gmra.mrb[0].mxu0 %v1789
      %v2885 = vpop.f32.mrb[0].mxu0
      %v2886 = vadd.f32 0.0, %v2885
      %v2887 = vpop.f32.mrb[0].mxu0
      %2888 = vmatprep.mubr.f32.mxu0 0.0
      %2889 = vmatmul.mubr.f32.gmra.mrb[0].mxu0 %v1791
      %v2890 = vpop.f32.mrb[0].mxu0
      %v2891 = vadd.f32 0.0, %v2890
      %v2892 = vpop.f32.mrb[0].mxu0
      %2893 = vmatprep.mubr.f32.mxu0 0.0
      %2894 = vmatmul.mubr.f32.gmra.mrb[0].mxu0 %v1793
      %v2895 = vpop.f32.mrb[0].mxu0
      %v2896 = vadd.f32 0.0, %v2895
      %v2897 = vpop.f32.mrb[0].mxu0
      %2898 = vmatprep.mubr.f32.mxu0 0.0
      %2899 = vmatmul.mubr.f32.gmra.mrb[0].mxu0 %v1795
      %v2900 = vpop.f32.mrb[0].mxu0
      %v2901 = vadd.f32 0.0, %v2900
      %v2902 = vpop.f32.mrb[0].mxu0
      %2903 = vmatprep.mubr.f32.mxu0 0.0
      %2904 = vmatmul.mubr.f32.gmra.mrb[0].mxu0 %v1797
      %v2905 = vpop.f32.mrb[0].mxu0
      %v2906 = vadd.f32 0.0, %v2905
      %v2907 = vpop.f32.mrb[0].mxu0
      %2908 = vmatprep.mubr.f32.mxu0 0.0
      %2909 = vmatmul.mubr.f32.gmra.mrb[0].mxu0 %v2378
      %v2910 = vpop.f32.mrb[0].mxu0
      %v2911 = vadd.f32 0.0, %v2910
      %v2912 = vpop.f32.mrb[0].mxu0
      %2913 = vmatprep.mubr.f32.mxu0 0.0
      %2914 = vmatmul.mubr.f32.gmra.mrb[0].mxu0 %v1783
      %v2915 = vpop.f32.mrb[0].mxu0
      %v2916 = vadd.f32 0.0, %v2915
      %v2917 = vpop.f32.mrb[0].mxu0
      %2918 = vdwg.mxu0
      %v2919 = vadd.f32 %v2797, %v2881
      %v2920 = vadd.f32 %v2798, %v2886
      %v2921 = vadd.f32 %v2799, %v2891
      %v2922 = vadd.f32 %v2800, %v2896
      %v2923 = vadd.f32 %v2801, %v2901
      %v2924 = vadd.f32 %v2802, %v2906
      %v2925 = vadd.f32 %v2803, %v2911
      %v2926 = vadd.f32 %v2804, %v2916
      %v2927 = vsel %vm713, %v2039, 0.0
      %v2928 = vsel %vm714, %v2041, 0.0
      %v2929 = vsel %vm715, %v2043, 0.0
      %v2930 = vsel %vm716, %v2045, 0.0
      %v2931 = vsel %vm717, %v2047, 0.0
      %v2932 = vsel %vm718, %v2049, 0.0
      %v2933 = vsel %vm719, %v2493, 0.0
      %s2934 = scalar_lea.vmem %s3, 512
      %v2935 = vld [vmem:[%s2934] sm:$0xff]
      %v2936 = vld [vmem:[%s2934 + $0x8] sm:$0xff]
      %v2937 = vld [vmem:[%s2934 + $0x10] sm:$0xff]
      %v2938 = vld [vmem:[%s2934 + $0x18] sm:$0xff]
      %v2939 = vld [vmem:[%s2934 + $0x20] sm:$0xff]
      %v2940 = vld [vmem:[%s2934 + $0x28] sm:$0xff]
      %v2941 = vld [vmem:[%s2934 + $0x30] sm:$0xff]
      %v2942 = vld [vmem:[%s2934 + $0x38] sm:$0xff]
      %v2944 = vsel %vm1782, %v2927, 0
      %v2947 = vsel %vm1782, %v2928, 0
      %v2950 = vsel %vm1782, %v2929, 0
      %v2953 = vsel %vm1782, %v2930, 0
      %v2956 = vsel %vm1782, %v2931, 0
      %v2959 = vsel %vm1782, %v2932, 0
      %v2962 = vsel %vm1782, %v2933, 0
      %v2965 = vsel %vm1782, %v1576, 0
      %2967 = vmatprep.subr.mxu0 0.0
      %2968 = vmatpush1.msra.mxu0 %v2935
      %2969 = vmatprep.subr.mxu0 0.0
      %2970 = vmatpush1.msra.mxu0 %v2936
      %2971 = vmatprep.subr.mxu0 0.0
      %2972 = vmatpush1.msra.mxu0 %v2937
      %2973 = vmatprep.subr.mxu0 0.0
      %2974 = vmatpush1.msra.mxu0 %v2938
      %2975 = vmatprep.subr.mxu0 0.0
      %2976 = vmatpush1.msra.mxu0 %v2939
      %2977 = vmatprep.subr.mxu0 0.0
      %2978 = vmatpush1.msra.mxu0 %v2940
      %2979 = vmatprep.subr.mxu0 0.0
      %2980 = vmatpush1.msra.mxu0 %v2941
      %2981 = vmatprep.subr.mxu0 0.0
      %2982 = vmatpush1.msra.mxu0 %v2942
      %2983 = vmatprep.subr.mxu0 0.0
      %2984 = vmatpush1.msra.mxu0 0.0
      %2985 = vmatprep.subr.mxu0 0.0
      %2986 = vmatpush1.msra.mxu0 0.0
      %2987 = vmatprep.subr.mxu0 0.0
      %2988 = vmatpush1.msra.mxu0 0.0
      %2989 = vmatprep.subr.mxu0 0.0
      %2990 = vmatpush1.msra.mxu0 0.0
      %2991 = vmatprep.subr.mxu0 0.0
      %2992 = vmatpush1.msra.mxu0 0.0
      %2993 = vmatprep.subr.mxu0 0.0
      %2994 = vmatpush1.msra.mxu0 0.0
      %2995 = vmatprep.subr.mxu0 0.0
      %2996 = vmatpush1.msra.mxu0 0.0
      %2997 = vmatprep.subr.mxu0 0.0
      %2998 = vmatpush1.msra.mxu0 0.0
      %2999 = vmatprep.subr.mxu0 0.0
      %3000 = vmatpush1.msra.mxu0 0.0
      %3001 = vmatprep.subr.mxu0 0.0
      %3002 = vmatpush1.msra.mxu0 0.0
      %3003 = vmatprep.subr.mxu0 0.0
      %3004 = vmatpush1.msra.mxu0 0.0
      %3005 = vmatprep.subr.mxu0 0.0
      %3006 = vmatpush1.msra.mxu0 0.0
      %3007 = vmatprep.subr.mxu0 0.0
      %3008 = vmatpush1.msra.mxu0 0.0
      %3009 = vmatprep.subr.mxu0 0.0
      %3010 = vmatpush1.msra.mxu0 0.0
      %3011 = vmatprep.subr.mxu0 0.0
      %3012 = vmatpush1.msra.mxu0 0.0
      %3013 = vmatprep.subr.mxu0 0.0
      %3014 = vmatpush1.msra.mxu0 0.0
      %3015 = vmatprep.subr.mxu0 0.0
      %3016 = vmatpush1.msra.mxu0 0.0
      %3017 = vmatprep.subr.mxu0 0.0
      %3018 = vmatpush1.msra.mxu0 0.0
      %3019 = vmatprep.subr.mxu0 0.0
      %3020 = vmatpush1.msra.mxu0 0.0
      %3021 = vmatprep.subr.mxu0 0.0
      %3022 = vmatpush1.msra.mxu0 0.0
      %3023 = vmatprep.subr.mxu0 0.0
      %3024 = vmatpush1.msra.mxu0 0.0
      %3025 = vmatprep.subr.mxu0 0.0
      %3026 = vmatpush1.msra.mxu0 0.0
      %3027 = vmatprep.subr.mxu0 0.0
      %3028 = vmatpush1.msra.mxu0 0.0
      %3029 = vmatprep.subr.mxu0 0.0
      %3030 = vmatpush1.msra.mxu0 0.0
      %3031 = vmatprep.mubr.f32.mxu0 0.0
      %3032 = vmatmul.mubr.f32.gmra.mrb[0].mxu0 %v2944
      %v3033 = vpop.f32.mrb[0].mxu0
      %v3034 = vadd.f32 0.0, %v3033
      %v3035 = vpop.f32.mrb[0].mxu0
      %3036 = vmatprep.mubr.f32.mxu0 0.0
      %3037 = vmatmul.mubr.f32.gmra.mrb[0].mxu0 %v2947
      %v3038 = vpop.f32.mrb[0].mxu0
      %v3039 = vadd.f32 0.0, %v3038
      %v3040 = vpop.f32.mrb[0].mxu0
      %3041 = vmatprep.mubr.f32.mxu0 0.0
      %3042 = vmatmul.mubr.f32.gmra.mrb[0].mxu0 %v2950
      %v3043 = vpop.f32.mrb[0].mxu0
      %v3044 = vadd.f32 0.0, %v3043
      %v3045 = vpop.f32.mrb[0].mxu0
      %3046 = vmatprep.mubr.f32.mxu0 0.0
      %3047 = vmatmul.mubr.f32.gmra.mrb[0].mxu0 %v2953
      %v3048 = vpop.f32.mrb[0].mxu0
      %v3049 = vadd.f32 0.0, %v3048
      %v3050 = vpop.f32.mrb[0].mxu0
      %3051 = vmatprep.mubr.f32.mxu0 0.0
      %3052 = vmatmul.mubr.f32.gmra.mrb[0].mxu0 %v2956
      %v3053 = vpop.f32.mrb[0].mxu0
      %v3054 = vadd.f32 0.0, %v3053
      %v3055 = vpop.f32.mrb[0].mxu0
      %3056 = vmatprep.mubr.f32.mxu0 0.0
      %3057 = vmatmul.mubr.f32.gmra.mrb[0].mxu0 %v2959
      %v3058 = vpop.f32.mrb[0].mxu0
      %v3059 = vadd.f32 0.0, %v3058
      %v3060 = vpop.f32.mrb[0].mxu0
      %3061 = vmatprep.mubr.f32.mxu0 0.0
      %3062 = vmatmul.mubr.f32.gmra.mrb[0].mxu0 %v2962
      %v3063 = vpop.f32.mrb[0].mxu0
      %v3064 = vadd.f32 0.0, %v3063
      %v3065 = vpop.f32.mrb[0].mxu0
      %3066 = vmatprep.mubr.f32.mxu0 0.0
      %3067 = vmatmul.mubr.f32.gmra.mrb[0].mxu0 %v2965
      %v3068 = vpop.f32.mrb[0].mxu0
      %v3069 = vadd.f32 0.0, %v3068
      %v3070 = vpop.f32.mrb[0].mxu0
      %3071 = vdwg.mxu0
      %v3072 = vadd.f32 %v2919, %v3034
      %v3073 = vadd.f32 %v2920, %v3039
      %v3074 = vadd.f32 %v2921, %v3044
      %v3075 = vadd.f32 %v2922, %v3049
      %v3076 = vadd.f32 %v2923, %v3054
      %v3077 = vadd.f32 %v2924, %v3059
      %v3078 = vadd.f32 %v2925, %v3064
      %v3079 = vadd.f32 %v2926, %v3069
      %v3080 = vld [vmem:[%s4] sm:$0x1]
      %v3082 = vlaneseq
      %v3083 = vshrl.u32 %v3082, 7
      %v3084 = vsub.s32 0, %v3083
      %v3085 = vrot.slane %v3080, %v3084
      %v3087 = vadd.f32 %v3072, %v3085
      %v3088 = vadd.f32 %v3073, %v3085
      %v3089 = vadd.f32 %v3074, %v3085
      %v3090 = vadd.f32 %v3075, %v3085
      %v3091 = vadd.f32 %v3076, %v3085
      %v3092 = vadd.f32 %v3077, %v3085
      %v3093 = vadd.f32 %v3078, %v3085
      %v3094 = vadd.f32 %v3079, %v3085
      %v3095 = vmax.f32 %v3087, 0.0
      %v3096 = vmax.f32 %v3088, 0.0
      %v3097 = vmax.f32 %v3089, 0.0
      %v3098 = vmax.f32 %v3090, 0.0
      %v3099 = vmax.f32 %v3091, 0.0
      %v3100 = vmax.f32 %v3092, 0.0
      %v3101 = vmax.f32 %v3093, 0.0
      %v3102 = vmax.f32 %v3094, 0.0
      %3103 = vst.msk [vmem:[%s226] sm:$0xff] %vm1782, %v3095
      %3104 = vst.msk [vmem:[%s226 + $0x8] sm:$0xff] %vm1782, %v3096
      %3105 = vst.msk [vmem:[%s226 + $0x10] sm:$0xff] %vm1782, %v3097
      %3106 = vst.msk [vmem:[%s226 + $0x18] sm:$0xff] %vm1782, %v3098
      %3107 = vst.msk [vmem:[%s226 + $0x20] sm:$0xff] %vm1782, %v3099
      %3108 = vst.msk [vmem:[%s226 + $0x28] sm:$0xff] %vm1782, %v3100
      %3109 = vst.msk [vmem:[%s226 + $0x30] sm:$0xff] %vm1782, %v3101
      %3110 = vst.msk [vmem:[%s226 + $0x38] sm:$0xff] %vm1782, %v3102
      %s3111 = smul.u32 8, %s16
      %p3112 = scmp.lt.s32.totalorder %s3111, 15
      %s3113 = scalar_select %p3112, %s3111, 15
      %s3114 = smul.addr %s3113, 8
      %s3115 = scalar_lea.vmem %s5, %s3114
      // Predicated region
      $region41: #{pilotnet_forward.8} parent=39 // pred_check
        %p3116 = pneg %p144
      $region42: #{pilotnet_forward.8} parent=39 // pred_check_branch
        %3118 = sbr.rel (%p3116) target = $region44
      $region43: #{pilotnet_forward.8} parent=39 // pred_region
        %s3119 = smul.u32 8, %s16
      $region44: #{pilotnet_forward.8} parent=39 // pred_fallthru
        _
    $region40: #{pilotnet_forward.8} parent=5 // pred_fallthru
      _
    %p3120 = scmp.le.s32.totalorder 2, %s11
    // Predicated region
    $region45: #{pilotnet_forward.8} parent=5 // pred_check
      %p3121 = pneg %p3120
    $region46: #{pilotnet_forward.8} parent=5 // pred_check_branch
      %3123 = sbr.rel (%p3121) target = $region48
    $region47: #{pilotnet_forward.8} parent=5 // pred_region
      %s3124 = ssub.s32 %s11, 2
      // Predicated region
      $region49: #{pilotnet_forward.8} parent=47 // pred_check
        %p3125 = pneg %p150
      $region50: #{pilotnet_forward.8} parent=47 // pred_check_branch
        %3127 = sbr.rel (%p3125) target = $region52
      $region51: #{pilotnet_forward.8} parent=47 // pred_region
        %s3128 = smul.u32 8, %s17
        %p3129 = scmp.lt.s32.totalorder %s3128, 15
        %s3130 = scalar_select %p3129, %s3128, 15
        %s3131 = smul.addr %s3130, 8
        %s3132 = scalar_lea.vmem %s5, %s3131
      $region52: #{pilotnet_forward.8} parent=47 // pred_fallthru
        _
    $region48: #{pilotnet_forward.8} parent=5 // pred_fallthru
      _
  $region6: #{pilotnet_forward.8} parent=0 // loop_footer
    %s15 = sadd.s32 1, %s11
  $region7: #{pilotnet_forward.8} parent=0 // loop_footer_branch
    %10 = sbr.rel target = $region3
  $region8: #{pilotnet_forward.8} parent=0 // loop_exit
    _

</llo_original>
